<compile_context>
chip_gen: v7x
topology: tpu7x:2x2x1
jax: 0.10.0
libtpu: 0.0.40
codegen_flags: <defaults>
</compile_context>

<pallas_src>
import functools

import numpy as np
import jax
import jax.numpy as jnp
from jax import lax
from jax.experimental import pallas as pl
from jax.experimental.pallas import tpu as pltpu

EPS = 1e-5


def _round_up(x, m):
    return (x + m - 1) // m * m


# ---------------------------------------------------------------------------
# pass 1: conv1 on the flat padded domain + per-image BN1 partial statistics
# ---------------------------------------------------------------------------
def _conv1_kernel(x_ref, w_ref, maskm_ref, y1_ref, st_ref, *, starts, m, a, brows):
    """x_ref:(1,R,C) f32 flat padded image; w_ref:(9,C,C) bf16;
    maskm_ref:(M,C) f32 interior mask; y1_ref:(1,BR,C) bf16; st_ref:(1,2,C) f32."""
    c = w_ref.shape[-1]
    pb = x_ref[0].astype(jnp.bfloat16)                       # cast once, slice 9x
    acc = jnp.zeros((m, c), jnp.float32)
    for t, s in enumerate(starts):                           # 9 taps, no concat
        acc = acc + jnp.dot(pb[s:s + m, :], w_ref[t],
                            preferred_element_type=jnp.float32)
    macc = acc * maskm_ref[...]                              # zero non-interior rows

    # Store the masked conv output embedded at offset `a`, flanked by zeros,
    # so pass 2 can slice it directly (all stores are sublane-aligned).
    y1_ref[:, 0:a, :] = jnp.zeros((1, a, c), y1_ref.dtype)
    y1_ref[:, a:a + m, :] = macc.astype(y1_ref.dtype)[None]
    y1_ref[:, a + m:brows, :] = jnp.zeros((1, brows - a - m, c), y1_ref.dtype)

    # BN1 partial statistics (interior-only thanks to the mask), once per image.
    st_ref[:, 0:1, :] = jnp.sum(macc, axis=0, keepdims=True)[None]
    st_ref[:, 1:2, :] = jnp.sum(macc * acc, axis=0, keepdims=True)[None]


# ---------------------------------------------------------------------------
# pass 2: BN1(scale/shift)+ReLU in bf16 -> conv2 + per-image BN2 partial stats
# ---------------------------------------------------------------------------
def _conv2_kernel(y1_ref, w_ref, sc_ref, sh_ref, maskb_ref, maskm_ref,
                  y2_ref, st_ref, *, starts, m):
    """y1_ref:(1,BR,C) bf16; sc/sh:(1,C) bf16; maskb:(BR,C) bf16; maskm:(M,C) f32."""
    c = w_ref.shape[-1]
    # bf16 elementwise preamble; the mask re-zeroes pad ring + flanks in one op.
    act = jnp.maximum(y1_ref[0] * sc_ref[...] + sh_ref[...], 0) * maskb_ref[...]
    acc = jnp.zeros((m, c), jnp.float32)
    for t, s in enumerate(starts):
        acc = acc + jnp.dot(act[s:s + m, :], w_ref[t],
                            preferred_element_type=jnp.float32)
    macc = acc * maskm_ref[...]
    y2_ref[...] = macc.astype(y2_ref.dtype)[None]            # bf16 writeback
    st_ref[:, 0:1, :] = jnp.sum(macc, axis=0, keepdims=True)[None]
    st_ref[:, 1:2, :] = jnp.sum(macc * acc, axis=0, keepdims=True)[None]


# ---------------------------------------------------------------------------
# pass 3: BN2 + residual add + ReLU (lane-dense 128-wide elementwise)
# ---------------------------------------------------------------------------
def _bn2_add_relu_kernel(y2_ref, x_ref, sc_ref, sh_ref, o_ref):
    z = y2_ref[...].astype(jnp.float32) * sc_ref[...] + sh_ref[...] + x_ref[...]
    o_ref[...] = jnp.maximum(z, 0.0)


# ---------------------------------------------------------------------------
# wrapper
# ---------------------------------------------------------------------------
def _bn_scale_shift(st, gamma, beta, count):
    """Fold per-image (sum, sum^2) into BN scale/shift (training-mode batch
    stats, biased variance, eps=1e-5 — matching nn.BatchNorm2d at call time)."""
    s = jnp.sum(st.astype(jnp.float32), axis=0)              # (2, C)
    mean = s[0] / count
    var = jnp.maximum(s[1] / count - mean * mean, 0.0)
    scale = gamma.reshape(-1) * lax.rsqrt(var + EPS)
    shift = beta.reshape(-1) - mean * scale
    return scale, shift


@jax.jit
def block_forward(x_nchw, w1, b1, g1, bt1, w2, b2, g2, bt2):
    """x_nchw: (N, C, H, W) f32; conv weights HWIO (3,3,Cin,Cout);
    conv biases / BN params (1, C).  Returns (N, C, H, W) f32."""
    # Conv biases accepted for API parity; a per-channel constant before
    # training-mode BN is exactly cancelled by the mean subtraction.
    del b1, b2

    N, C, H, W = x_nchw.shape
    Hp, Wp = H + 2, W + 2
    M = _round_up(H * Wp, 8)             # conv-output rows in flat padded domain
    R = _round_up(2 * (Wp + 1) + M, 8)   # rows of the flat padded input
    A = _round_up(Wp + 1, 8)             # offset of the M-domain inside y1
    BR = _round_up(A + M + Wp + 1, 8)    # rows of the y1 buffer
    count = jnp.float32(N * H * W)

    # NCHW -> NHWC -> flat padded rows (lane dim = C).
    x = jnp.transpose(x_nchw, (0, 2, 3, 1)).astype(jnp.float32)
    xp = jnp.pad(x, ((0, 0), (1, 1), (1, 1), (0, 0)))
    x_flat = jnp.pad(xp.reshape(N, Hp * Wp, C),
                     ((0, 0), (0, R - Hp * Wp), (0, 0)))

    # Static interior-row mask over the M-domain (built with numpy at trace time).
    r = np.arange(M) + (Wp + 1)
    p, q = r // Wp, r % Wp
    inter = ((p >= 1) & (p <= H) & (q >= 1) & (q <= W)).astype(np.float32)
    mask_m = jnp.asarray(np.repeat(inter[:, None], C, axis=1))      # (M, C) f32
    mb = np.zeros((BR, C), np.float32)
    mb[A:A + M] = inter[:, None]
    mask_b = jnp.asarray(mb, jnp.bfloat16)                          # (BR, C) bf16

    # 3x3 HWIO weights -> 9 per-tap (Cin, Cout) bf16 panels.
    w1r = jnp.asarray(w1, jnp.float32).reshape(9, C, C).astype(jnp.bfloat16)
    w2r = jnp.asarray(w2, jnp.float32).reshape(9, C, C).astype(jnp.bfloat16)

    starts1 = tuple(dy * Wp + dx for dy in range(3) for dx in range(3))
    starts2 = tuple(A - (Wp + 1) + s for s in starts1)

    cparams = pltpu.CompilerParams(dimension_semantics=("parallel",))

    # ---- pass 1: conv1 + BN1 partial stats ---------------------------------
    y1, st1 = pl.pallas_call(
        functools.partial(_conv1_kernel, starts=starts1, m=M, a=A, brows=BR),
        grid=(N,),
        in_specs=[pl.BlockSpec((1, R, C), lambda n: (n, 0, 0)),
                  pl.BlockSpec((9, C, C), lambda n: (0, 0, 0)),
                  pl.BlockSpec((M, C), lambda n: (0, 0))],
        out_specs=[pl.BlockSpec((1, BR, C), lambda n: (n, 0, 0)),
                   pl.BlockSpec((1, 2, C), lambda n: (n, 0, 0))],
        out_shape=[jax.ShapeDtypeStruct((N, BR, C), jnp.bfloat16),
                   jax.ShapeDtypeStruct((N, 2, C), jnp.float32)],
        compiler_params=cparams,
    )(x_flat, w1r, mask_m)
    scale1, shift1 = _bn_scale_shift(st1, g1, bt1, count)

    # ---- pass 2: BN1+ReLU -> conv2 + BN2 partial stats ----------------------
    y2, st2 = pl.pallas_call(
        functools.partial(_conv2_kernel, starts=starts2, m=M),
        grid=(N,),
        in_specs=[pl.BlockSpec((1, BR, C), lambda n: (n, 0, 0)),
                  pl.BlockSpec((9, C, C), lambda n: (0, 0, 0)),
                  pl.BlockSpec((1, C), lambda n: (0, 0)),
                  pl.BlockSpec((1, C), lambda n: (0, 0)),
                  pl.BlockSpec((BR, C), lambda n: (0, 0)),
                  pl.BlockSpec((M, C), lambda n: (0, 0))],
        out_specs=[pl.BlockSpec((1, M, C), lambda n: (n, 0, 0)),
                   pl.BlockSpec((1, 2, C), lambda n: (n, 0, 0))],
        out_shape=[jax.ShapeDtypeStruct((N, M, C), jnp.bfloat16),
                   jax.ShapeDtypeStruct((N, 2, C), jnp.float32)],
        compiler_params=cparams,
    )(y1, w2r,
      scale1.reshape(1, C).astype(jnp.bfloat16),
      shift1.reshape(1, C).astype(jnp.bfloat16),
      mask_b, mask_m)
    scale2, shift2 = _bn_scale_shift(st2, g2, bt2, count)

    # ---- pass 3: BN2 + residual + ReLU, on a lane-dense (rows, 128) view ----
    L = 128 if (M * C) % 128 == 0 else C
    rows3 = (M * C) // L
    rep = L // C
    y2v = y2.reshape(N, rows3, L)
    x_res = x_flat[:, Wp + 1:Wp + 1 + M, :].reshape(N, rows3, L)
    sc2 = jnp.tile(scale2.reshape(1, C), (1, rep))
    sh2 = jnp.tile(shift2.reshape(1, C), (1, rep))

    outv = pl.pallas_call(
        _bn2_add_relu_kernel,
        grid=(N,),
        in_specs=[pl.BlockSpec((1, rows3, L), lambda n: (n, 0, 0)),
                  pl.BlockSpec((1, rows3, L), lambda n: (n, 0, 0)),
                  pl.BlockSpec((1, L), lambda n: (0, 0)),
                  pl.BlockSpec((1, L), lambda n: (0, 0))],
        out_specs=pl.BlockSpec((1, rows3, L), lambda n: (n, 0, 0)),
        out_shape=jax.ShapeDtypeStruct((N, rows3, L), jnp.float32),
        compiler_params=cparams,
    )(y2v, x_res, sc2, sh2)

    # Un-flatten: keep interior rows, back to NCHW.
    out_mid = outv.reshape(N, M, C)
    out = out_mid[:, :H * Wp, :].reshape(N, H, Wp, C)[:, :, :W, :]
    return jnp.transpose(out, (0, 3, 1, 2))


# ---------------------------------------------------------------------------
# plain-JAX reference (mirrors the PyTorch Block forward, incl. conv biases)
# ---------------------------------------------------------------------------
def _reference_forward(x_nchw, w1, b1, g1, bt1, w2, b2, g2, bt2):
    def conv(x, w_hwio, b):
        w_oihw = jnp.transpose(w_hwio, (3, 2, 0, 1))
        y = lax.conv_general_dilated(
            x, w_oihw, window_strides=(1, 1), padding=((1, 1), (1, 1)),
            dimension_numbers=("NCHW", "OIHW", "NCHW"))
        return y + b.reshape(1, -1, 1, 1)

    def bn(x, g, bt):
        mean = jnp.mean(x, axis=(0, 2, 3), keepdims=True)
        var = jnp.var(x, axis=(0, 2, 3), keepdims=True)       # biased, like PyTorch
        return (x - mean) * lax.rsqrt(var + EPS) * g.reshape(1, -1, 1, 1) \
            + bt.reshape(1, -1, 1, 1)

    identity = x_nchw
    y = jax.nn.relu(bn(conv(x_nchw, w1, b1), g1, bt1))
    y = bn(conv(y, w2, b2), g2, bt2)
    return jax.nn.relu(y + identity)


if __name__ == "__main__":
    N, C, H, W = 2, 64, 16, 16     # in_channels == out_channels, stride == 1

    key = jax.random.PRNGKey(0)
    keys = jax.random.split(key, 9)
    x = jax.random.normal(keys[0], (N, C, H, W), jnp.float32)

    w1 = jax.random.normal(keys[1], (3, 3, C, C), jnp.float32) * 0.1
    b1 = jax.random.normal(keys[2], (1, C), jnp.float32) * 0.1
    g1 = 1.0 + 0.1 * jax.random.normal(keys[3], (1, C), jnp.float32)
    bt1 = 0.1 * jax.random.normal(keys[4], (1, C), jnp.float32)
    w2 = jax.random.normal(keys[5], (3, 3, C, C), jnp.float32) * 0.1
    b2 = jax.random.normal(keys[6], (1, C), jnp.float32) * 0.1
    g2 = 1.0 + 0.1 * jax.random.normal(keys[7], (1, C), jnp.float32)
    bt2 = 0.1 * jax.random.normal(keys[8], (1, C), jnp.float32)

    out = block_forward(x, w1, b1, g1, bt1, w2, b2, g2, bt2)
    out = jax.block_until_ready(out)

    ref = _reference_forward(x, w1, b1.ravel(), g1.ravel(), bt1.ravel(),
                             w2, b2.ravel(), g2.ravel(), bt2.ravel())
    assert out.shape == (N, C, H, W)
    max_diff = jnp.max(jnp.abs(out - ref))
    assert jnp.allclose(out, ref, atol=5e-2, rtol=5e-2), \
        f"max abs diff {max_diff}"

    print("KERNEL_OK")
</pallas_src>

<mosaic_0001>
module attributes {stable_mosaic.version = 11 : i64} {
  func.func @_conv1_kernel(%arg0: i32, %arg1: memref<1x328x64xf32, #tpu.memory_space<vmem>>, %arg2: memref<9x64x64xbf16, #tpu.memory_space<vmem>>, %arg3: memref<288x64xf32, #tpu.memory_space<vmem>>, %arg4: memref<1x336x64xbf16, #tpu.memory_space<vmem>>, %arg5: memref<1x2x64xf32, #tpu.memory_space<vmem>>) attributes {dimension_semantics = [#tpu.dimension_semantics<parallel>], iteration_bounds = array<i64: 2>, scalar_prefetch = 0 : i64, scratch_operands = 0 : i64, tpu.core_type = #tpu.core_type<tc>, window_params = [{transform_indices = @transform_0, window_bounds = array<i64: 1, 328, 64>}, {pipeline_mode = #tpu.pipeline_mode<synchronous>, transform_indices = @transform_1, window_bounds = array<i64: 9, 64, 64>}, {pipeline_mode = #tpu.pipeline_mode<synchronous>, transform_indices = @transform_2, window_bounds = array<i64: 288, 64>}, {transform_indices = @transform_3, window_bounds = array<i64: 1, 336, 64>}, {transform_indices = @transform_4, window_bounds = array<i64: 1, 2, 64>}]} {
    %c0 = arith.constant 0 : index
    %c0_0 = arith.constant 0 : index
    %c0_1 = arith.constant 0 : index
    %0 = vector.load %arg1[%c0, %c0_0, %c0_1] : memref<1x328x64xf32, #tpu.memory_space<vmem>>, vector<1x328x64xf32>
    %1 = vector.shape_cast %0 : vector<1x328x64xf32> to vector<328x64xf32>
    %2 = arith.truncf %1 : vector<328x64xf32> to vector<328x64xbf16>
    %cst = arith.constant 0.000000e+00 : f32
    %3 = vector.broadcast %cst : f32 to vector<288x64xf32>
    %4 = vector.extract_strided_slice %2 {offsets = [0, 0], sizes = [288, 64], strides = [1, 1]} : vector<328x64xbf16> to vector<288x64xbf16>
    %c0_2 = arith.constant 0 : index
    %c0_3 = arith.constant 0 : index
    %c0_4 = arith.constant 0 : index
    %5 = vector.load %arg2[%c0_2, %c0_3, %c0_4] : memref<9x64x64xbf16, #tpu.memory_space<vmem>>, vector<1x64x64xbf16>
    %6 = vector.shape_cast %5 : vector<1x64x64xbf16> to vector<64x64xbf16>
    %cst_5 = arith.constant dense<0.000000e+00> : vector<288x64xf32>
    %7 = tpu.matmul %4, %6, %cst_5 {dimension_numbers = #tpu.dot_dimension_numbers<[1], [0], [0], [1], [0, 0, 1, 1], [], []>} : vector<288x64xbf16>, vector<64x64xbf16>, vector<288x64xf32> -> vector<288x64xf32>
    %8 = arith.addf %3, %7 : vector<288x64xf32>
    %9 = vector.extract_strided_slice %2 {offsets = [1, 0], sizes = [288, 64], strides = [1, 1]} : vector<328x64xbf16> to vector<288x64xbf16>
    %c1 = arith.constant 1 : index
    %c0_6 = arith.constant 0 : index
    %c0_7 = arith.constant 0 : index
    %10 = vector.load %arg2[%c1, %c0_6, %c0_7] : memref<9x64x64xbf16, #tpu.memory_space<vmem>>, vector<1x64x64xbf16>
    %11 = vector.shape_cast %10 : vector<1x64x64xbf16> to vector<64x64xbf16>
    %cst_8 = arith.constant dense<0.000000e+00> : vector<288x64xf32>
    %12 = tpu.matmul %9, %11, %cst_8 {dimension_numbers = #tpu.dot_dimension_numbers<[1], [0], [0], [1], [0, 0, 1, 1], [], []>} : vector<288x64xbf16>, vector<64x64xbf16>, vector<288x64xf32> -> vector<288x64xf32>
    %13 = arith.addf %8, %12 : vector<288x64xf32>
    %14 = vector.extract_strided_slice %2 {offsets = [2, 0], sizes = [288, 64], strides = [1, 1]} : vector<328x64xbf16> to vector<288x64xbf16>
    %c2 = arith.constant 2 : index
    %c0_9 = arith.constant 0 : index
    %c0_10 = arith.constant 0 : index
    %15 = vector.load %arg2[%c2, %c0_9, %c0_10] : memref<9x64x64xbf16, #tpu.memory_space<vmem>>, vector<1x64x64xbf16>
    %16 = vector.shape_cast %15 : vector<1x64x64xbf16> to vector<64x64xbf16>
    %cst_11 = arith.constant dense<0.000000e+00> : vector<288x64xf32>
    %17 = tpu.matmul %14, %16, %cst_11 {dimension_numbers = #tpu.dot_dimension_numbers<[1], [0], [0], [1], [0, 0, 1, 1], [], []>} : vector<288x64xbf16>, vector<64x64xbf16>, vector<288x64xf32> -> vector<288x64xf32>
    %18 = arith.addf %13, %17 : vector<288x64xf32>
    %19 = vector.extract_strided_slice %2 {offsets = [18, 0], sizes = [288, 64], strides = [1, 1]} : vector<328x64xbf16> to vector<288x64xbf16>
    %c3 = arith.constant 3 : index
    %c0_12 = arith.constant 0 : index
    %c0_13 = arith.constant 0 : index
    %20 = vector.load %arg2[%c3, %c0_12, %c0_13] : memref<9x64x64xbf16, #tpu.memory_space<vmem>>, vector<1x64x64xbf16>
    %21 = vector.shape_cast %20 : vector<1x64x64xbf16> to vector<64x64xbf16>
    %cst_14 = arith.constant dense<0.000000e+00> : vector<288x64xf32>
    %22 = tpu.matmul %19, %21, %cst_14 {dimension_numbers = #tpu.dot_dimension_numbers<[1], [0], [0], [1], [0, 0, 1, 1], [], []>} : vector<288x64xbf16>, vector<64x64xbf16>, vector<288x64xf32> -> vector<288x64xf32>
    %23 = arith.addf %18, %22 : vector<288x64xf32>
    %24 = vector.extract_strided_slice %2 {offsets = [19, 0], sizes = [288, 64], strides = [1, 1]} : vector<328x64xbf16> to vector<288x64xbf16>
    %c4 = arith.constant 4 : index
    %c0_15 = arith.constant 0 : index
    %c0_16 = arith.constant 0 : index
    %25 = vector.load %arg2[%c4, %c0_15, %c0_16] : memref<9x64x64xbf16, #tpu.memory_space<vmem>>, vector<1x64x64xbf16>
    %26 = vector.shape_cast %25 : vector<1x64x64xbf16> to vector<64x64xbf16>
    %cst_17 = arith.constant dense<0.000000e+00> : vector<288x64xf32>
    %27 = tpu.matmul %24, %26, %cst_17 {dimension_numbers = #tpu.dot_dimension_numbers<[1], [0], [0], [1], [0, 0, 1, 1], [], []>} : vector<288x64xbf16>, vector<64x64xbf16>, vector<288x64xf32> -> vector<288x64xf32>
    %28 = arith.addf %23, %27 : vector<288x64xf32>
    %29 = vector.extract_strided_slice %2 {offsets = [20, 0], sizes = [288, 64], strides = [1, 1]} : vector<328x64xbf16> to vector<288x64xbf16>
    %c5 = arith.constant 5 : index
    %c0_18 = arith.constant 0 : index
    %c0_19 = arith.constant 0 : index
    %30 = vector.load %arg2[%c5, %c0_18, %c0_19] : memref<9x64x64xbf16, #tpu.memory_space<vmem>>, vector<1x64x64xbf16>
    %31 = vector.shape_cast %30 : vector<1x64x64xbf16> to vector<64x64xbf16>
    %cst_20 = arith.constant dense<0.000000e+00> : vector<288x64xf32>
    %32 = tpu.matmul %29, %31, %cst_20 {dimension_numbers = #tpu.dot_dimension_numbers<[1], [0], [0], [1], [0, 0, 1, 1], [], []>} : vector<288x64xbf16>, vector<64x64xbf16>, vector<288x64xf32> -> vector<288x64xf32>
    %33 = arith.addf %28, %32 : vector<288x64xf32>
    %34 = vector.extract_strided_slice %2 {offsets = [36, 0], sizes = [288, 64], strides = [1, 1]} : vector<328x64xbf16> to vector<288x64xbf16>
    %c6 = arith.constant 6 : index
    %c0_21 = arith.constant 0 : index
    %c0_22 = arith.constant 0 : index
    %35 = vector.load %arg2[%c6, %c0_21, %c0_22] : memref<9x64x64xbf16, #tpu.memory_space<vmem>>, vector<1x64x64xbf16>
    %36 = vector.shape_cast %35 : vector<1x64x64xbf16> to vector<64x64xbf16>
    %cst_23 = arith.constant dense<0.000000e+00> : vector<288x64xf32>
    %37 = tpu.matmul %34, %36, %cst_23 {dimension_numbers = #tpu.dot_dimension_numbers<[1], [0], [0], [1], [0, 0, 1, 1], [], []>} : vector<288x64xbf16>, vector<64x64xbf16>, vector<288x64xf32> -> vector<288x64xf32>
    %38 = arith.addf %33, %37 : vector<288x64xf32>
    %39 = vector.extract_strided_slice %2 {offsets = [37, 0], sizes = [288, 64], strides = [1, 1]} : vector<328x64xbf16> to vector<288x64xbf16>
    %c7 = arith.constant 7 : index
    %c0_24 = arith.constant 0 : index
    %c0_25 = arith.constant 0 : index
    %40 = vector.load %arg2[%c7, %c0_24, %c0_25] : memref<9x64x64xbf16, #tpu.memory_space<vmem>>, vector<1x64x64xbf16>
    %41 = vector.shape_cast %40 : vector<1x64x64xbf16> to vector<64x64xbf16>
    %cst_26 = arith.constant dense<0.000000e+00> : vector<288x64xf32>
    %42 = tpu.matmul %39, %41, %cst_26 {dimension_numbers = #tpu.dot_dimension_numbers<[1], [0], [0], [1], [0, 0, 1, 1], [], []>} : vector<288x64xbf16>, vector<64x64xbf16>, vector<288x64xf32> -> vector<288x64xf32>
    %43 = arith.addf %38, %42 : vector<288x64xf32>
    %44 = vector.extract_strided_slice %2 {offsets = [38, 0], sizes = [288, 64], strides = [1, 1]} : vector<328x64xbf16> to vector<288x64xbf16>
    %c8 = arith.constant 8 : index
    %c0_27 = arith.constant 0 : index
    %c0_28 = arith.constant 0 : index
    %45 = vector.load %arg2[%c8, %c0_27, %c0_28] : memref<9x64x64xbf16, #tpu.memory_space<vmem>>, vector<1x64x64xbf16>
    %46 = vector.shape_cast %45 : vector<1x64x64xbf16> to vector<64x64xbf16>
    %cst_29 = arith.constant dense<0.000000e+00> : vector<288x64xf32>
    %47 = tpu.matmul %44, %46, %cst_29 {dimension_numbers = #tpu.dot_dimension_numbers<[1], [0], [0], [1], [0, 0, 1, 1], [], []>} : vector<288x64xbf16>, vector<64x64xbf16>, vector<288x64xf32> -> vector<288x64xf32>
    %48 = arith.addf %43, %47 : vector<288x64xf32>
    %c0_30 = arith.constant 0 : index
    %c0_31 = arith.constant 0 : index
    %49 = vector.load %arg3[%c0_30, %c0_31] : memref<288x64xf32, #tpu.memory_space<vmem>>, vector<288x64xf32>
    %50 = arith.mulf %48, %49 : vector<288x64xf32>
    %cst_32 = arith.constant 0.000000e+00 : bf16
    %51 = vector.broadcast %cst_32 : bf16 to vector<1x24x64xbf16>
    %c0_33 = arith.constant 0 : index
    %c0_34 = arith.constant 0 : index
    %c0_35 = arith.constant 0 : index
    %52 = vector.load %arg4[%c0_33, %c0_34, %c0_35] : memref<1x336x64xbf16, #tpu.memory_space<vmem>>, vector<1x24x64xbf16>
    tpu.vector_store %arg4[%c0_33, %c0_34, %c0_35], %51 {strides = array<i32>} : memref<1x336x64xbf16, #tpu.memory_space<vmem>>, vector<1x24x64xbf16>,
    %53 = arith.truncf %50 : vector<288x64xf32> to vector<288x64xbf16>
    %54 = vector.shape_cast %53 : vector<288x64xbf16> to vector<1x288x64xbf16>
    %c0_36 = arith.constant 0 : index
    %c24 = arith.constant 24 : index
    %c0_37 = arith.constant 0 : index
    %55 = vector.load %arg4[%c0_36, %c24, %c0_37] : memref<1x336x64xbf16, #tpu.memory_space<vmem>>, vector<1x288x64xbf16>
    tpu.vector_store %arg4[%c0_36, %c24, %c0_37], %54 {strides = array<i32>} : memref<1x336x64xbf16, #tpu.memory_space<vmem>>, vector<1x288x64xbf16>,
    %cst_38 = arith.constant 0.000000e+00 : bf16
    %56 = vector.broadcast %cst_38 : bf16 to vector<1x24x64xbf16>
    %c0_39 = arith.constant 0 : index
    %c312 = arith.constant 312 : index
    %c0_40 = arith.constant 0 : index
    %57 = vector.load %arg4[%c0_39, %c312, %c0_40] : memref<1x336x64xbf16, #tpu.memory_space<vmem>>, vector<1x24x64xbf16>
    tpu.vector_store %arg4[%c0_39, %c312, %c0_40], %56 {strides = array<i32>} : memref<1x336x64xbf16, #tpu.memory_space<vmem>>, vector<1x24x64xbf16>,
    %cst_41 = arith.constant dense<0.000000e+00> : vector<64xf32>
    %58 = vector.multi_reduction <add>, %50, %cst_41 [0] : vector<288x64xf32> to vector<64xf32>
    %59 = vector.shape_cast %58 : vector<64xf32> to vector<1x64xf32>
    %60 = vector.shape_cast %59 : vector<1x64xf32> to vector<1x1x64xf32>
    %c0_42 = arith.constant 0 : index
    %c0_43 = arith.constant 0 : index
    %c0_44 = arith.constant 0 : index
    %61 = vector.load %arg5[%c0_42, %c0_43, %c0_44] : memref<1x2x64xf32, #tpu.memory_space<vmem>>, vector<1x1x64xf32>
    tpu.vector_store %arg5[%c0_42, %c0_43, %c0_44], %60 {strides = array<i32>} : memref<1x2x64xf32, #tpu.memory_space<vmem>>, vector<1x1x64xf32>,
    %62 = arith.mulf %50, %48 : vector<288x64xf32>
    %cst_45 = arith.constant dense<0.000000e+00> : vector<64xf32>
    %63 = vector.multi_reduction <add>, %62, %cst_45 [0] : vector<288x64xf32> to vector<64xf32>
    %64 = vector.shape_cast %63 : vector<64xf32> to vector<1x64xf32>
    %65 = vector.shape_cast %64 : vector<1x64xf32> to vector<1x1x64xf32>
    %c0_46 = arith.constant 0 : index
    %c1_47 = arith.constant 1 : index
    %c0_48 = arith.constant 0 : index
    %66 = vector.load %arg5[%c0_46, %c1_47, %c0_48] : memref<1x2x64xf32, #tpu.memory_space<vmem>>, vector<1x1x64xf32>
    tpu.vector_store %arg5[%c0_46, %c1_47, %c0_48], %65 {strides = array<i32>} : memref<1x2x64xf32, #tpu.memory_space<vmem>>, vector<1x1x64xf32>,
    return
  }
  func.func @transform_0(%arg0: i32) -> (i32, i32, i32) {
    %c0_i32 = arith.constant 0 : i32
    %c0_i32_0 = arith.constant 0 : i32
    %c0_i32_1 = arith.constant 0 : i32
    return %arg0, %c0_i32, %c0_i32_0 : i32, i32, i32
  }
  func.func @transform_1(%arg0: i32) -> (i32, i32, i32) {
    %c0_i32 = arith.constant 0 : i32
    %c0_i32_0 = arith.constant 0 : i32
    %c0_i32_1 = arith.constant 0 : i32
    %c0_i32_2 = arith.constant 0 : i32
    return %c0_i32, %c0_i32_0, %c0_i32_1 : i32, i32, i32
  }
  func.func @transform_2(%arg0: i32) -> (i32, i32) {
    %c0_i32 = arith.constant 0 : i32
    %c0_i32_0 = arith.constant 0 : i32
    %c0_i32_1 = arith.constant 0 : i32
    return %c0_i32, %c0_i32_0 : i32, i32
  }
  func.func @transform_3(%arg0: i32) -> (i32, i32, i32) {
    %c0_i32 = arith.constant 0 : i32
    %c0_i32_0 = arith.constant 0 : i32
    %c0_i32_1 = arith.constant 0 : i32
    return %arg0, %c0_i32, %c0_i32_0 : i32, i32, i32
  }
  func.func @transform_4(%arg0: i32) -> (i32, i32, i32) {
    %c0_i32 = arith.constant 0 : i32
    %c0_i32_0 = arith.constant 0 : i32
    %c0_i32_1 = arith.constant 0 : i32
    return %arg0, %c0_i32, %c0_i32_0 : i32, i32, i32
  }
}

module attributes {stable_mosaic.version = 11 : i64} {
  func.func @_conv2_kernel(%arg0: i32, %arg1: memref<1x336x64xbf16, #tpu.memory_space<vmem>>, %arg2: memref<9x64x64xbf16, #tpu.memory_space<vmem>>, %arg3: memref<1x64xbf16, #tpu.memory_space<vmem>>, %arg4: memref<1x64xbf16, #tpu.memory_space<vmem>>, %arg5: memref<336x64xbf16, #tpu.memory_space<vmem>>, %arg6: memref<288x64xf32, #tpu.memory_space<vmem>>, %arg7: memref<1x288x64xbf16, #tpu.memory_space<vmem>>, %arg8: memref<1x2x64xf32, #tpu.memory_space<vmem>>) attributes {dimension_semantics = [#tpu.dimension_semantics<parallel>], iteration_bounds = array<i64: 2>, scalar_prefetch = 0 : i64, scratch_operands = 0 : i64, tpu.core_type = #tpu.core_type<tc>, window_params = [{transform_indices = @transform_0, window_bounds = array<i64: 1, 336, 64>}, {pipeline_mode = #tpu.pipeline_mode<synchronous>, transform_indices = @transform_1, window_bounds = array<i64: 9, 64, 64>}, {pipeline_mode = #tpu.pipeline_mode<synchronous>, transform_indices = @transform_2, window_bounds = array<i64: 1, 64>}, {pipeline_mode = #tpu.pipeline_mode<synchronous>, transform_indices = @transform_3, window_bounds = array<i64: 1, 64>}, {pipeline_mode = #tpu.pipeline_mode<synchronous>, transform_indices = @transform_4, window_bounds = array<i64: 336, 64>}, {pipeline_mode = #tpu.pipeline_mode<synchronous>, transform_indices = @transform_5, window_bounds = array<i64: 288, 64>}, {transform_indices = @transform_6, window_bounds = array<i64: 1, 288, 64>}, {transform_indices = @transform_7, window_bounds = array<i64: 1, 2, 64>}]} {
    %c0 = arith.constant 0 : index
    %c0_0 = arith.constant 0 : index
    %c0_1 = arith.constant 0 : index
    %0 = vector.load %arg1[%c0, %c0_0, %c0_1] : memref<1x336x64xbf16, #tpu.memory_space<vmem>>, vector<1x336x64xbf16>
    %1 = vector.shape_cast %0 : vector<1x336x64xbf16> to vector<336x64xbf16>
    %c0_2 = arith.constant 0 : index
    %c0_3 = arith.constant 0 : index
    %2 = vector.load %arg3[%c0_2, %c0_3] : memref<1x64xbf16, #tpu.memory_space<vmem>>, vector<1x64xbf16>
    %3 = vector.broadcast %2 : vector<1x64xbf16> to vector<336x64xbf16>
    %4 = arith.mulf %1, %3 : vector<336x64xbf16>
    %c0_4 = arith.constant 0 : index
    %c0_5 = arith.constant 0 : index
    %5 = vector.load %arg4[%c0_4, %c0_5] : memref<1x64xbf16, #tpu.memory_space<vmem>>, vector<1x64xbf16>
    %6 = vector.broadcast %5 : vector<1x64xbf16> to vector<336x64xbf16>
    %7 = arith.addf %4, %6 : vector<336x64xbf16>
    %cst = arith.constant 0.000000e+00 : bf16
    %8 = vector.broadcast %cst : bf16 to vector<336x64xbf16>
    %9 = arith.maximumf %7, %8 : vector<336x64xbf16>
    %c0_6 = arith.constant 0 : index
    %c0_7 = arith.constant 0 : index
    %10 = vector.load %arg5[%c0_6, %c0_7] : memref<336x64xbf16, #tpu.memory_space<vmem>>, vector<336x64xbf16>
    %11 = arith.mulf %9, %10 : vector<336x64xbf16>
    %cst_8 = arith.constant 0.000000e+00 : f32
    %12 = vector.broadcast %cst_8 : f32 to vector<288x64xf32>
    %13 = vector.extract_strided_slice %11 {offsets = [5, 0], sizes = [288, 64], strides = [1, 1]} : vector<336x64xbf16> to vector<288x64xbf16>
    %c0_9 = arith.constant 0 : index
    %c0_10 = arith.constant 0 : index
    %c0_11 = arith.constant 0 : index
    %14 = vector.load %arg2[%c0_9, %c0_10, %c0_11] : memref<9x64x64xbf16, #tpu.memory_space<vmem>>, vector<1x64x64xbf16>
    %15 = vector.shape_cast %14 : vector<1x64x64xbf16> to vector<64x64xbf16>
    %cst_12 = arith.constant dense<0.000000e+00> : vector<288x64xf32>
    %16 = tpu.matmul %13, %15, %cst_12 {dimension_numbers = #tpu.dot_dimension_numbers<[1], [0], [0], [1], [0, 0, 1, 1], [], []>} : vector<288x64xbf16>, vector<64x64xbf16>, vector<288x64xf32> -> vector<288x64xf32>
    %17 = arith.addf %12, %16 : vector<288x64xf32>
    %18 = vector.extract_strided_slice %11 {offsets = [6, 0], sizes = [288, 64], strides = [1, 1]} : vector<336x64xbf16> to vector<288x64xbf16>
    %c1 = arith.constant 1 : index
    %c0_13 = arith.constant 0 : index
    %c0_14 = arith.constant 0 : index
    %19 = vector.load %arg2[%c1, %c0_13, %c0_14] : memref<9x64x64xbf16, #tpu.memory_space<vmem>>, vector<1x64x64xbf16>
    %20 = vector.shape_cast %19 : vector<1x64x64xbf16> to vector<64x64xbf16>
    %cst_15 = arith.constant dense<0.000000e+00> : vector<288x64xf32>
    %21 = tpu.matmul %18, %20, %cst_15 {dimension_numbers = #tpu.dot_dimension_numbers<[1], [0], [0], [1], [0, 0, 1, 1], [], []>} : vector<288x64xbf16>, vector<64x64xbf16>, vector<288x64xf32> -> vector<288x64xf32>
    %22 = arith.addf %17, %21 : vector<288x64xf32>
    %23 = vector.extract_strided_slice %11 {offsets = [7, 0], sizes = [288, 64], strides = [1, 1]} : vector<336x64xbf16> to vector<288x64xbf16>
    %c2 = arith.constant 2 : index
    %c0_16 = arith.constant 0 : index
    %c0_17 = arith.constant 0 : index
    %24 = vector.load %arg2[%c2, %c0_16, %c0_17] : memref<9x64x64xbf16, #tpu.memory_space<vmem>>, vector<1x64x64xbf16>
    %25 = vector.shape_cast %24 : vector<1x64x64xbf16> to vector<64x64xbf16>
    %cst_18 = arith.constant dense<0.000000e+00> : vector<288x64xf32>
    %26 = tpu.matmul %23, %25, %cst_18 {dimension_numbers = #tpu.dot_dimension_numbers<[1], [0], [0], [1], [0, 0, 1, 1], [], []>} : vector<288x64xbf16>, vector<64x64xbf16>, vector<288x64xf32> -> vector<288x64xf32>
    %27 = arith.addf %22, %26 : vector<288x64xf32>
    %28 = vector.extract_strided_slice %11 {offsets = [23, 0], sizes = [288, 64], strides = [1, 1]} : vector<336x64xbf16> to vector<288x64xbf16>
    %c3 = arith.constant 3 : index
    %c0_19 = arith.constant 0 : index
    %c0_20 = arith.constant 0 : index
    %29 = vector.load %arg2[%c3, %c0_19, %c0_20] : memref<9x64x64xbf16, #tpu.memory_space<vmem>>, vector<1x64x64xbf16>
    %30 = vector.shape_cast %29 : vector<1x64x64xbf16> to vector<64x64xbf16>
    %cst_21 = arith.constant dense<0.000000e+00> : vector<288x64xf32>
    %31 = tpu.matmul %28, %30, %cst_21 {dimension_numbers = #tpu.dot_dimension_numbers<[1], [0], [0], [1], [0, 0, 1, 1], [], []>} : vector<288x64xbf16>, vector<64x64xbf16>, vector<288x64xf32> -> vector<288x64xf32>
    %32 = arith.addf %27, %31 : vector<288x64xf32>
    %33 = vector.extract_strided_slice %11 {offsets = [24, 0], sizes = [288, 64], strides = [1, 1]} : vector<336x64xbf16> to vector<288x64xbf16>
    %c4 = arith.constant 4 : index
    %c0_22 = arith.constant 0 : index
    %c0_23 = arith.constant 0 : index
    %34 = vector.load %arg2[%c4, %c0_22, %c0_23] : memref<9x64x64xbf16, #tpu.memory_space<vmem>>, vector<1x64x64xbf16>
    %35 = vector.shape_cast %34 : vector<1x64x64xbf16> to vector<64x64xbf16>
    %cst_24 = arith.constant dense<0.000000e+00> : vector<288x64xf32>
    %36 = tpu.matmul %33, %35, %cst_24 {dimension_numbers = #tpu.dot_dimension_numbers<[1], [0], [0], [1], [0, 0, 1, 1], [], []>} : vector<288x64xbf16>, vector<64x64xbf16>, vector<288x64xf32> -> vector<288x64xf32>
    %37 = arith.addf %32, %36 : vector<288x64xf32>
    %38 = vector.extract_strided_slice %11 {offsets = [25, 0], sizes = [288, 64], strides = [1, 1]} : vector<336x64xbf16> to vector<288x64xbf16>
    %c5 = arith.constant 5 : index
    %c0_25 = arith.constant 0 : index
    %c0_26 = arith.constant 0 : index
    %39 = vector.load %arg2[%c5, %c0_25, %c0_26] : memref<9x64x64xbf16, #tpu.memory_space<vmem>>, vector<1x64x64xbf16>
    %40 = vector.shape_cast %39 : vector<1x64x64xbf16> to vector<64x64xbf16>
    %cst_27 = arith.constant dense<0.000000e+00> : vector<288x64xf32>
    %41 = tpu.matmul %38, %40, %cst_27 {dimension_numbers = #tpu.dot_dimension_numbers<[1], [0], [0], [1], [0, 0, 1, 1], [], []>} : vector<288x64xbf16>, vector<64x64xbf16>, vector<288x64xf32> -> vector<288x64xf32>
    %42 = arith.addf %37, %41 : vector<288x64xf32>
    %43 = vector.extract_strided_slice %11 {offsets = [41, 0], sizes = [288, 64], strides = [1, 1]} : vector<336x64xbf16> to vector<288x64xbf16>
    %c6 = arith.constant 6 : index
    %c0_28 = arith.constant 0 : index
    %c0_29 = arith.constant 0 : index
    %44 = vector.load %arg2[%c6, %c0_28, %c0_29] : memref<9x64x64xbf16, #tpu.memory_space<vmem>>, vector<1x64x64xbf16>
    %45 = vector.shape_cast %44 : vector<1x64x64xbf16> to vector<64x64xbf16>
    %cst_30 = arith.constant dense<0.000000e+00> : vector<288x64xf32>
    %46 = tpu.matmul %43, %45, %cst_30 {dimension_numbers = #tpu.dot_dimension_numbers<[1], [0], [0], [1], [0, 0, 1, 1], [], []>} : vector<288x64xbf16>, vector<64x64xbf16>, vector<288x64xf32> -> vector<288x64xf32>
    %47 = arith.addf %42, %46 : vector<288x64xf32>
    %48 = vector.extract_strided_slice %11 {offsets = [42, 0], sizes = [288, 64], strides = [1, 1]} : vector<336x64xbf16> to vector<288x64xbf16>
    %c7 = arith.constant 7 : index
    %c0_31 = arith.constant 0 : index
    %c0_32 = arith.constant 0 : index
    %49 = vector.load %arg2[%c7, %c0_31, %c0_32] : memref<9x64x64xbf16, #tpu.memory_space<vmem>>, vector<1x64x64xbf16>
    %50 = vector.shape_cast %49 : vector<1x64x64xbf16> to vector<64x64xbf16>
    %cst_33 = arith.constant dense<0.000000e+00> : vector<288x64xf32>
    %51 = tpu.matmul %48, %50, %cst_33 {dimension_numbers = #tpu.dot_dimension_numbers<[1], [0], [0], [1], [0, 0, 1, 1], [], []>} : vector<288x64xbf16>, vector<64x64xbf16>, vector<288x64xf32> -> vector<288x64xf32>
    %52 = arith.addf %47, %51 : vector<288x64xf32>
    %53 = vector.extract_strided_slice %11 {offsets = [43, 0], sizes = [288, 64], strides = [1, 1]} : vector<336x64xbf16> to vector<288x64xbf16>
    %c8 = arith.constant 8 : index
    %c0_34 = arith.constant 0 : index
    %c0_35 = arith.constant 0 : index
    %54 = vector.load %arg2[%c8, %c0_34, %c0_35] : memref<9x64x64xbf16, #tpu.memory_space<vmem>>, vector<1x64x64xbf16>
    %55 = vector.shape_cast %54 : vector<1x64x64xbf16> to vector<64x64xbf16>
    %cst_36 = arith.constant dense<0.000000e+00> : vector<288x64xf32>
    %56 = tpu.matmul %53, %55, %cst_36 {dimension_numbers = #tpu.dot_dimension_numbers<[1], [0], [0], [1], [0, 0, 1, 1], [], []>} : vector<288x64xbf16>, vector<64x64xbf16>, vector<288x64xf32> -> vector<288x64xf32>
    %57 = arith.addf %52, %56 : vector<288x64xf32>
    %c0_37 = arith.constant 0 : index
    %c0_38 = arith.constant 0 : index
    %58 = vector.load %arg6[%c0_37, %c0_38] : memref<288x64xf32, #tpu.memory_space<vmem>>, vector<288x64xf32>
    %59 = arith.mulf %57, %58 : vector<288x64xf32>
    %60 = arith.truncf %59 : vector<288x64xf32> to vector<288x64xbf16>
    %61 = vector.shape_cast %60 : vector<288x64xbf16> to vector<1x288x64xbf16>
    %c0_39 = arith.constant 0 : index
    %c0_40 = arith.constant 0 : index
    %c0_41 = arith.constant 0 : index
    %62 = vector.load %arg7[%c0_39, %c0_40, %c0_41] : memref<1x288x64xbf16, #tpu.memory_space<vmem>>, vector<1x288x64xbf16>
    tpu.vector_store %arg7[%c0_39, %c0_40, %c0_41], %61 {strides = array<i32>} : memref<1x288x64xbf16, #tpu.memory_space<vmem>>, vector<1x288x64xbf16>,
    %cst_42 = arith.constant dense<0.000000e+00> : vector<64xf32>
    %63 = vector.multi_reduction <add>, %59, %cst_42 [0] : vector<288x64xf32> to vector<64xf32>
    %64 = vector.shape_cast %63 : vector<64xf32> to vector<1x64xf32>
    %65 = vector.shape_cast %64 : vector<1x64xf32> to vector<1x1x64xf32>
    %c0_43 = arith.constant 0 : index
    %c0_44 = arith.constant 0 : index
    %c0_45 = arith.constant 0 : index
    %66 = vector.load %arg8[%c0_43, %c0_44, %c0_45] : memref<1x2x64xf32, #tpu.memory_space<vmem>>, vector<1x1x64xf32>
    tpu.vector_store %arg8[%c0_43, %c0_44, %c0_45], %65 {strides = array<i32>} : memref<1x2x64xf32, #tpu.memory_space<vmem>>, vector<1x1x64xf32>,
    %67 = arith.mulf %59, %57 : vector<288x64xf32>
    %cst_46 = arith.constant dense<0.000000e+00> : vector<64xf32>
    %68 = vector.multi_reduction <add>, %67, %cst_46 [0] : vector<288x64xf32> to vector<64xf32>
    %69 = vector.shape_cast %68 : vector<64xf32> to vector<1x64xf32>
    %70 = vector.shape_cast %69 : vector<1x64xf32> to vector<1x1x64xf32>
    %c0_47 = arith.constant 0 : index
    %c1_48 = arith.constant 1 : index
    %c0_49 = arith.constant 0 : index
    %71 = vector.load %arg8[%c0_47, %c1_48, %c0_49] : memref<1x2x64xf32, #tpu.memory_space<vmem>>, vector<1x1x64xf32>
    tpu.vector_store %arg8[%c0_47, %c1_48, %c0_49], %70 {strides = array<i32>} : memref<1x2x64xf32, #tpu.memory_space<vmem>>, vector<1x1x64xf32>,
    return
  }
  func.func @transform_0(%arg0: i32) -> (i32, i32, i32) {
    %c0_i32 = arith.constant 0 : i32
    %c0_i32_0 = arith.constant 0 : i32
    %c0_i32_1 = arith.constant 0 : i32
    return %arg0, %c0_i32, %c0_i32_0 : i32, i32, i32
  }
  func.func @transform_1(%arg0: i32) -> (i32, i32, i32) {
    %c0_i32 = arith.constant 0 : i32
    %c0_i32_0 = arith.constant 0 : i32
    %c0_i32_1 = arith.constant 0 : i32
    %c0_i32_2 = arith.constant 0 : i32
    return %c0_i32, %c0_i32_0, %c0_i32_1 : i32, i32, i32
  }
  func.func @transform_2(%arg0: i32) -> (i32, i32) {
    %c0_i32 = arith.constant 0 : i32
    %c0_i32_0 = arith.constant 0 : i32
    %c0_i32_1 = arith.constant 0 : i32
    return %c0_i32, %c0_i32_0 : i32, i32
  }
  func.func @transform_3(%arg0: i32) -> (i32, i32) {
    %c0_i32 = arith.constant 0 : i32
    %c0_i32_0 = arith.constant 0 : i32
    %c0_i32_1 = arith.constant 0 : i32
    return %c0_i32, %c0_i32_0 : i32, i32
  }
  func.func @transform_4(%arg0: i32) -> (i32, i32) {
    %c0_i32 = arith.constant 0 : i32
    %c0_i32_0 = arith.constant 0 : i32
    %c0_i32_1 = arith.constant 0 : i32
    return %c0_i32, %c0_i32_0 : i32, i32
  }
  func.func @transform_5(%arg0: i32) -> (i32, i32) {
    %c0_i32 = arith.constant 0 : i32
    %c0_i32_0 = arith.constant 0 : i32
    %c0_i32_1 = arith.constant 0 : i32
    return %c0_i32, %c0_i32_0 : i32, i32
  }
  func.func @transform_6(%arg0: i32) -> (i32, i32, i32) {
    %c0_i32 = arith.constant 0 : i32
    %c0_i32_0 = arith.constant 0 : i32
    %c0_i32_1 = arith.constant 0 : i32
    return %arg0, %c0_i32, %c0_i32_0 : i32, i32, i32
  }
  func.func @transform_7(%arg0: i32) -> (i32, i32, i32) {
    %c0_i32 = arith.constant 0 : i32
    %c0_i32_0 = arith.constant 0 : i32
    %c0_i32_1 = arith.constant 0 : i32
    return %arg0, %c0_i32, %c0_i32_0 : i32, i32, i32
  }
}

module attributes {stable_mosaic.version = 11 : i64} {
  func.func @_bn2_add_relu_kernel(%arg0: i32, %arg1: memref<1x144x128xbf16, #tpu.memory_space<vmem>>, %arg2: memref<1x144x128xf32, #tpu.memory_space<vmem>>, %arg3: memref<1x128xf32, #tpu.memory_space<vmem>>, %arg4: memref<1x128xf32, #tpu.memory_space<vmem>>, %arg5: memref<1x144x128xf32, #tpu.memory_space<vmem>>) attributes {dimension_semantics = [#tpu.dimension_semantics<parallel>], iteration_bounds = array<i64: 2>, scalar_prefetch = 0 : i64, scratch_operands = 0 : i64, tpu.core_type = #tpu.core_type<tc>, window_params = [{transform_indices = @transform_0, window_bounds = array<i64: 1, 144, 128>}, {transform_indices = @transform_1, window_bounds = array<i64: 1, 144, 128>}, {pipeline_mode = #tpu.pipeline_mode<synchronous>, transform_indices = @transform_2, window_bounds = array<i64: 1, 128>}, {pipeline_mode = #tpu.pipeline_mode<synchronous>, transform_indices = @transform_3, window_bounds = array<i64: 1, 128>}, {transform_indices = @transform_4, window_bounds = array<i64: 1, 144, 128>}]} {
    %c0 = arith.constant 0 : index
    %c0_0 = arith.constant 0 : index
    %c0_1 = arith.constant 0 : index
    %0 = vector.load %arg1[%c0, %c0_0, %c0_1] : memref<1x144x128xbf16, #tpu.memory_space<vmem>>, vector<1x144x128xbf16>
    %1 = arith.extf %0 : vector<1x144x128xbf16> to vector<1x144x128xf32>
    %c0_2 = arith.constant 0 : index
    %c0_3 = arith.constant 0 : index
    %2 = vector.load %arg3[%c0_2, %c0_3] : memref<1x128xf32, #tpu.memory_space<vmem>>, vector<1x128xf32>
    %3 = vector.shape_cast %2 : vector<1x128xf32> to vector<1x1x128xf32>
    %4 = vector.broadcast %3 : vector<1x1x128xf32> to vector<1x144x128xf32>
    %5 = arith.mulf %1, %4 : vector<1x144x128xf32>
    %c0_4 = arith.constant 0 : index
    %c0_5 = arith.constant 0 : index
    %6 = vector.load %arg4[%c0_4, %c0_5] : memref<1x128xf32, #tpu.memory_space<vmem>>, vector<1x128xf32>
    %7 = vector.shape_cast %6 : vector<1x128xf32> to vector<1x1x128xf32>
    %8 = vector.broadcast %7 : vector<1x1x128xf32> to vector<1x144x128xf32>
    %9 = arith.addf %5, %8 : vector<1x144x128xf32>
    %c0_6 = arith.constant 0 : index
    %c0_7 = arith.constant 0 : index
    %c0_8 = arith.constant 0 : index
    %10 = vector.load %arg2[%c0_6, %c0_7, %c0_8] : memref<1x144x128xf32, #tpu.memory_space<vmem>>, vector<1x144x128xf32>
    %11 = arith.addf %9, %10 : vector<1x144x128xf32>
    %cst = arith.constant 0.000000e+00 : f32
    %12 = vector.broadcast %cst : f32 to vector<1x144x128xf32>
    %13 = arith.maximumf %11, %12 : vector<1x144x128xf32>
    %c0_9 = arith.constant 0 : index
    %c0_10 = arith.constant 0 : index
    %c0_11 = arith.constant 0 : index
    %14 = vector.load %arg5[%c0_9, %c0_10, %c0_11] : memref<1x144x128xf32, #tpu.memory_space<vmem>>, vector<1x144x128xf32>
    tpu.vector_store %arg5[%c0_9, %c0_10, %c0_11], %13 {strides = array<i32>} : memref<1x144x128xf32, #tpu.memory_space<vmem>>, vector<1x144x128xf32>,
    return
  }
  func.func @transform_0(%arg0: i32) -> (i32, i32, i32) {
    %c0_i32 = arith.constant 0 : i32
    %c0_i32_0 = arith.constant 0 : i32
    %c0_i32_1 = arith.constant 0 : i32
    return %arg0, %c0_i32, %c0_i32_0 : i32, i32, i32
  }
  func.func @transform_1(%arg0: i32) -> (i32, i32, i32) {
    %c0_i32 = arith.constant 0 : i32
    %c0_i32_0 = arith.constant 0 : i32
    %c0_i32_1 = arith.constant 0 : i32
    return %arg0, %c0_i32, %c0_i32_0 : i32, i32, i32
  }
  func.func @transform_2(%arg0: i32) -> (i32, i32) {
    %c0_i32 = arith.constant 0 : i32
    %c0_i32_0 = arith.constant 0 : i32
    %c0_i32_1 = arith.constant 0 : i32
    return %c0_i32, %c0_i32_0 : i32, i32
  }
  func.func @transform_3(%arg0: i32) -> (i32, i32) {
    %c0_i32 = arith.constant 0 : i32
    %c0_i32_0 = arith.constant 0 : i32
    %c0_i32_1 = arith.constant 0 : i32
    return %c0_i32, %c0_i32_0 : i32, i32
  }
  func.func @transform_4(%arg0: i32) -> (i32, i32, i32) {
    %c0_i32 = arith.constant 0 : i32
    %c0_i32_0 = arith.constant 0 : i32
    %c0_i32_1 = arith.constant 0 : i32
    return %arg0, %c0_i32, %c0_i32_0 : i32, i32, i32
  }
}

</mosaic_0001>

<llo_original>
// kernel: block_forward.5
$region0: #{block_forward.5}
  #allocation0 [shape = 'u32[]', space=smem, size = 0x4, offset = 0x4, fixed_abs, tag = 'smem constant byte address 0x4 - core index']
  #allocation1 [shape = 'u32[144,128]{1,0:T(1,128)}', space=vmem, size = 0x12000, scoped, tag = 'internal scratch']
  %s0 = inlined_call_operand.vmem [shape: bf16[2,144,128], index: 0, kind: input, shape index: {}]
  %s1 = inlined_call_operand.vmem [shape: f32[2,144,128], index: 1, kind: input, shape index: {}]
  %s2 = inlined_call_operand.vmem [shape: f32[1,128], index: 2, kind: input, shape index: {}]
  %s3 = inlined_call_operand.vmem [shape: f32[1,128], index: 3, kind: input, shape index: {}]
  %s4 = inlined_call_operand.vmem [shape: f32[2,144,128], index: 4, kind: output, shape index: {}]
  %s5 = sld [smem:[#allocation0]]
  $region49: #{block_forward.5} parent=0
    _
  %s7 = ssub.s32 1, %s5
  %s8 = scalar_select 0, %s7, %s5
  loop: start=0, step=1, limit=4
  $region2: #{block_forward.5} parent=0 // loop_pre_header
    _
  $region3: #{block_forward.5} parent=0 // loop_header
    %s10 = sphi 0, %s14
    %p11 = scmp.ge.s32.totalorder %s10, 4
    %s20 = sphi 0, %s22
    %s23 = sphi 0, %s20
    %s24 = sphi 0, %s23
    %s40 = sphi 0, %s24
    %s46 = sphi 0, %s48
    %s49 = sphi 0, %s46
    %s50 = sphi 0, %s49
    %s66 = sphi 0, %s50
    %s70 = sphi 0, %s70
    %s72 = sphi 0, %s70
    %s73 = sphi 0, %s72
    %s87 = sphi 0, %s73
    %s91 = sphi 0, %s91
    %s93 = sphi 0, %s91
    %s94 = sphi 0, %s93
    %s108 = sphi 0, %s94
    %s114 = sphi 0, %s116
    %s117 = sphi 0, %s114
    %s118 = sphi 0, %s117
    %s134 = sphi 0, %s118
  $region4: #{block_forward.5} parent=0 // loop_header_branch
    %13 = sbr.rel (%p11) target = $region8
  $region5: #{block_forward.5} parent=0 // loop_body
    %s15 = ssub.s32 %s10, 1
    %s16 = ssub.s32 %s10, 2
    %s17 = sadd.s32 %s10, 1
    %s18 = ssub.s32 %s10, %s17
    %p19 = scmp.eq.s32.totalorder %s18, 0
    %s21 = sadd.s32 %s20, 1
    %s22 = scalar_select %p19, %s20, %s21
    %p25 = pneg %p19
    %p26 = scmp.eq.s32.totalorder %s10, 1
    %p27 = por %p25, %p26
    %p28 = scmp.ne.s32.totalorder %s20, %s23
    %p29 = scmp.eq.s32.totalorder %s10, 0
    %p30 = por %p28, %p29
    %p31 = scmp.ne.s32.totalorder %s20, %s23
    %p32 = scmp.eq.s32.totalorder %s15, 1
    %p33 = por %p31, %p32
    %p34 = scmp.ne.s32.totalorder %s23, %s24
    %p35 = scmp.eq.s32.totalorder %s15, 0
    %p36 = por %p34, %p35
    %p37 = scmp.ne.s32.totalorder %s23, %s24
    %p38 = scmp.eq.s32.totalorder %s16, 1
    %p39 = por %p37, %p38
    %p41 = scmp.ne.s32.totalorder %s24, %s40
    %p42 = scmp.eq.s32.totalorder %s16, 0
    %p43 = por %p41, %p42
    %s44 = ssub.s32 %s10, %s17
    %p45 = scmp.eq.s32.totalorder %s44, 0
    %s47 = sadd.s32 %s46, 1
    %s48 = scalar_select %p45, %s46, %s47
    %p51 = pneg %p45
    %p52 = scmp.eq.s32.totalorder %s10, 1
    %p53 = por %p51, %p52
    %p54 = scmp.ne.s32.totalorder %s46, %s49
    %p55 = scmp.eq.s32.totalorder %s10, 0
    %p56 = por %p54, %p55
    %p57 = scmp.ne.s32.totalorder %s46, %s49
    %p58 = scmp.eq.s32.totalorder %s15, 1
    %p59 = por %p57, %p58
    %p60 = scmp.ne.s32.totalorder %s49, %s50
    %p61 = scmp.eq.s32.totalorder %s15, 0
    %p62 = por %p60, %p61
    %p63 = scmp.ne.s32.totalorder %s49, %s50
    %p64 = scmp.eq.s32.totalorder %s16, 1
    %p65 = por %p63, %p64
    %p67 = scmp.ne.s32.totalorder %s50, %s66
    %p68 = scmp.eq.s32.totalorder %s16, 0
    %p69 = por %p67, %p68
    %s71 = sadd.s32 %s70, 1
    %p74 = scmp.eq.s32.totalorder %s10, 1
    %p75 = scmp.ne.s32.totalorder %s70, %s72
    %p76 = scmp.eq.s32.totalorder %s10, 0
    %p77 = por %p75, %p76
    %p78 = scmp.ne.s32.totalorder %s70, %s72
    %p79 = scmp.eq.s32.totalorder %s15, 1
    %p80 = por %p78, %p79
    %p81 = scmp.ne.s32.totalorder %s72, %s73
    %p82 = scmp.eq.s32.totalorder %s15, 0
    %p83 = por %p81, %p82
    %p84 = scmp.ne.s32.totalorder %s72, %s73
    %p85 = scmp.eq.s32.totalorder %s16, 1
    %p86 = por %p84, %p85
    %p88 = scmp.ne.s32.totalorder %s73, %s87
    %p89 = scmp.eq.s32.totalorder %s16, 0
    %p90 = por %p88, %p89
    %s92 = sadd.s32 %s91, 1
    %p95 = scmp.eq.s32.totalorder %s10, 1
    %p96 = scmp.ne.s32.totalorder %s91, %s93
    %p97 = scmp.eq.s32.totalorder %s10, 0
    %p98 = por %p96, %p97
    %p99 = scmp.ne.s32.totalorder %s91, %s93
    %p100 = scmp.eq.s32.totalorder %s15, 1
    %p101 = por %p99, %p100
    %p102 = scmp.ne.s32.totalorder %s93, %s94
    %p103 = scmp.eq.s32.totalorder %s15, 0
    %p104 = por %p102, %p103
    %p105 = scmp.ne.s32.totalorder %s93, %s94
    %p106 = scmp.eq.s32.totalorder %s16, 1
    %p107 = por %p105, %p106
    %p109 = scmp.ne.s32.totalorder %s94, %s108
    %p110 = scmp.eq.s32.totalorder %s16, 0
    %p111 = por %p109, %p110
    %s112 = ssub.s32 %s10, %s17
    %p113 = scmp.eq.s32.totalorder %s112, 0
    %s115 = sadd.s32 %s114, 1
    %s116 = scalar_select %p113, %s114, %s115
    %p119 = pneg %p113
    %p120 = scmp.eq.s32.totalorder %s10, 1
    %p121 = por %p119, %p120
    %p122 = scmp.ne.s32.totalorder %s114, %s117
    %p123 = scmp.eq.s32.totalorder %s10, 0
    %p124 = por %p122, %p123
    %p125 = scmp.ne.s32.totalorder %s114, %s117
    %p126 = scmp.eq.s32.totalorder %s15, 1
    %p127 = por %p125, %p126
    %p128 = scmp.ne.s32.totalorder %s117, %s118
    %p129 = scmp.eq.s32.totalorder %s15, 0
    %p130 = por %p128, %p129
    %p131 = scmp.ne.s32.totalorder %s117, %s118
    %p132 = scmp.eq.s32.totalorder %s16, 1
    %p133 = por %p131, %p132
    %p135 = scmp.ne.s32.totalorder %s118, %s134
    %p136 = scmp.eq.s32.totalorder %s16, 0
    %p137 = por %p135, %p136
    %p138 = scmp.le.s32.totalorder 1, %s10
    %p139 = scmp.lt.s32.totalorder %s10, 3
    %p140 = pnand %p138, %p139
    %p141 = pneg %p140
    // Predicated region
    $region9: #{block_forward.5} parent=5 // pred_check
      _
    $region10: #{block_forward.5} parent=5 // pred_check_branch
      %143 = sbr.rel (%p140) target = $region12
    $region11: #{block_forward.5} parent=5 // pred_region
      %s144 = ssub.s32 %s10, 1
      // Predicated region
      $region13: #{block_forward.5} parent=11 // pred_check
        %p145 = pneg %p83
      $region14: #{block_forward.5} parent=11 // pred_check_branch
        %147 = sbr.rel (%p145) target = $region16
      $region15: #{block_forward.5} parent=11 // pred_region
        _
      $region16: #{block_forward.5} parent=11 // pred_fallthru
        _
      // Predicated region
      $region17: #{block_forward.5} parent=11 // pred_check
        %p148 = pneg %p104
      $region18: #{block_forward.5} parent=11 // pred_check_branch
        %150 = sbr.rel (%p148) target = $region20
      $region19: #{block_forward.5} parent=11 // pred_region
        _
      $region20: #{block_forward.5} parent=11 // pred_fallthru
        _
    $region12: #{block_forward.5} parent=5 // pred_fallthru
      _
    %p151 = scmp.lt.s32.totalorder %s10, 2
    // Predicated region
    $region21: #{block_forward.5} parent=5 // pred_check
      %p152 = pneg %p151
    $region22: #{block_forward.5} parent=5 // pred_check_branch
      %154 = sbr.rel (%p152) target = $region24
    $region23: #{block_forward.5} parent=5 // pred_region
      // Predicated region
      $region25: #{block_forward.5} parent=23 // pred_check
        %p155 = pneg %p30
      $region26: #{block_forward.5} parent=23 // pred_check_branch
        %157 = sbr.rel (%p155) target = $region28
      $region27: #{block_forward.5} parent=23 // pred_region
        %p158 = scmp.lt.s32.totalorder %s10, 1
        %s159 = scalar_select %p158, %s10, 1
        %s160 = smul.addr %s159, 18
        %s161 = smul.addr %s160, 4
        %s162 = scalar_lea.vmem %s0, %s161
      $region28: #{block_forward.5} parent=23 // pred_fallthru
        _
      // Predicated region
      $region29: #{block_forward.5} parent=23 // pred_check
        %p163 = pneg %p56
      $region30: #{block_forward.5} parent=23 // pred_check_branch
        %165 = sbr.rel (%p163) target = $region32
      $region31: #{block_forward.5} parent=23 // pred_region
        %p166 = scmp.lt.s32.totalorder %s10, 1
        %s167 = scalar_select %p166, %s10, 1
        %s168 = smul.addr %s167, 18
        %s169 = smul.addr %s168, 8
        %s170 = scalar_lea.vmem %s1, %s169
      $region32: #{block_forward.5} parent=23 // pred_fallthru
        _
    $region24: #{block_forward.5} parent=5 // pred_fallthru
      _
    %p171 = scmp.le.s32.totalorder 1, %s10
    %p172 = scmp.lt.s32.totalorder %s10, 3
    %p173 = pnand %p171, %p172
    %p174 = pneg %p173
    // Predicated region
    $region33: #{block_forward.5} parent=5 // pred_check
      _
    $region34: #{block_forward.5} parent=5 // pred_check_branch
      %176 = sbr.rel (%p173) target = $region36
    $region35: #{block_forward.5} parent=5 // pred_region
      %s177 = ssub.s32 %s10, 1
      %p178 = scmp.lt.s32.totalorder %s15, 1
      %s179 = scalar_select %p178, %s15, 1
      %s180 = smul.addr %s179, 18
      %s181 = smul.addr %s180, 4
      %s182 = scalar_lea.vmem %s0, %s181
      %p183 = pneg %p36
      %p184 = pneg %p33
      %p185 = scmp.lt.s32.totalorder %s15, 1
      %s186 = scalar_select %p185, %s15, 1
      %s187 = smul.addr %s186, 18
      %s188 = smul.addr %s187, 8
      %s189 = scalar_lea.vmem %s1, %s188
      %p190 = pneg %p62
      %p191 = pneg %p59
      %p192 = pneg %p83
      %p193 = pneg %p80
      %p194 = pneg %p104
      %p195 = pneg %p101
      %p196 = pneg %p130
      %p197 = pneg %p127
      %p198 = scmp.lt.s32.totalorder %s15, 1
      %s199 = scalar_select %p198, %s15, 1
      %s200 = smul.addr %s199, 18
      %s201 = smul.addr %s200, 8
      %s202 = scalar_lea.vmem %s4, %s201
      %p203 = scmp.lt.s32.totalorder %s15, 1
      %s204 = scalar_select %p203, %s15, 1
      %s205 = smul.addr %s204, 18
      %s206 = smul.addr %s205, 4
      %s207 = scalar_lea.vmem %s0, %s206
      %p208 = scmp.lt.s32.totalorder %s15, 1
      %s209 = scalar_select %p208, %s15, 1
      %s210 = smul.addr %s209, 18
      %s211 = smul.addr %s210, 8
      %s212 = scalar_lea.vmem %s1, %s211
      %p213 = scmp.lt.s32.totalorder %s15, 1
      %s214 = scalar_select %p213, %s15, 1
      %s215 = smul.addr %s214, 18
      %s216 = smul.addr %s215, 8
      %s217 = scalar_lea.vmem %s4, %s216
      %v218 = vld [vmem:[%s207] sm:$0xf]
      %v219 = vld [vmem:[%s207 + $0x4] sm:$0xf]
      %v220 = vld [vmem:[%s207 + $0x8] sm:$0xf]
      %v221 = vld [vmem:[%s207 + $0xc] sm:$0xf]
      %v222 = vld [vmem:[%s207 + $0x10] sm:$0xf]
      %v223 = vld [vmem:[%s207 + $0x14] sm:$0xf]
      %v224 = vld [vmem:[%s207 + $0x18] sm:$0xf]
      %v225 = vld [vmem:[%s207 + $0x1c] sm:$0xf]
      %v226 = vld [vmem:[%s207 + $0x20] sm:$0xf]
      %v227 = vld [vmem:[%s207 + $0x24] sm:$0xf]
      %v228 = vld [vmem:[%s207 + $0x28] sm:$0xf]
      %v229 = vld [vmem:[%s207 + $0x2c] sm:$0xf]
      %v230 = vld [vmem:[%s207 + $0x30] sm:$0xf]
      %v231 = vld [vmem:[%s207 + $0x34] sm:$0xf]
      %v232 = vld [vmem:[%s207 + $0x38] sm:$0xf]
      %v233 = vld [vmem:[%s207 + $0x3c] sm:$0xf]
      %v234 = vld [vmem:[%s207 + $0x40] sm:$0xf]
      %v235 = vld [vmem:[%s207 + $0x44] sm:$0xf]
      %v236 = vunpack.c.l.bf16 %v218
      %v237 = vunpack.c.l.bf16 %v219
      %v238 = vunpack.c.l.bf16 %v220
      %v239 = vunpack.c.l.bf16 %v221
      %v240 = vunpack.c.l.bf16 %v222
      %v241 = vunpack.c.l.bf16 %v223
      %v242 = vunpack.c.l.bf16 %v224
      %v243 = vunpack.c.l.bf16 %v225
      %v244 = vunpack.c.l.bf16 %v226
      %v245 = vunpack.c.l.bf16 %v227
      %v246 = vunpack.c.l.bf16 %v228
      %v247 = vunpack.c.l.bf16 %v229
      %v248 = vunpack.c.l.bf16 %v230
      %v249 = vunpack.c.l.bf16 %v231
      %v250 = vunpack.c.l.bf16 %v232
      %v251 = vunpack.c.l.bf16 %v233
      %v252 = vunpack.c.l.bf16 %v234
      %v253 = vunpack.c.l.bf16 %v235
      %v254 = vld [vmem:[%s2] sm:$0x1]
      %v256 = vlaneseq
      %v257 = vshrl.u32 %v256, 7
      %v258 = vsub.s32 0, %v257
      %v259 = vrot.slane %v254, %v258
      %v261 = vmul.f32 %v236, %v259
      %v262 = vmul.f32 %v237, %v259
      %v263 = vmul.f32 %v238, %v259
      %v264 = vmul.f32 %v239, %v259
      %v265 = vmul.f32 %v240, %v259
      %v266 = vmul.f32 %v241, %v259
      %v267 = vmul.f32 %v242, %v259
      %v268 = vmul.f32 %v243, %v259
      %v269 = vmul.f32 %v244, %v259
      %v270 = vmul.f32 %v245, %v259
      %v271 = vmul.f32 %v246, %v259
      %v272 = vmul.f32 %v247, %v259
      %v273 = vmul.f32 %v248, %v259
      %v274 = vmul.f32 %v249, %v259
      %v275 = vmul.f32 %v250, %v259
      %v276 = vmul.f32 %v251, %v259
      %v277 = vmul.f32 %v252, %v259
      %v278 = vmul.f32 %v253, %v259
      %v279 = vld [vmem:[%s3] sm:$0x1]
      %v281 = vlaneseq
      %v282 = vshrl.u32 %v281, 7
      %v283 = vsub.s32 0, %v282
      %v284 = vrot.slane %v279, %v283
      %v286 = vadd.f32 %v261, %v284
      %v287 = vadd.f32 %v262, %v284
      %v288 = vadd.f32 %v263, %v284
      %v289 = vadd.f32 %v264, %v284
      %v290 = vadd.f32 %v265, %v284
      %v291 = vadd.f32 %v266, %v284
      %v292 = vadd.f32 %v267, %v284
      %v293 = vadd.f32 %v268, %v284
      %v294 = vadd.f32 %v269, %v284
      %v295 = vadd.f32 %v270, %v284
      %v296 = vadd.f32 %v271, %v284
      %v297 = vadd.f32 %v272, %v284
      %v298 = vadd.f32 %v273, %v284
      %v299 = vadd.f32 %v274, %v284
      %v300 = vadd.f32 %v275, %v284
      %v301 = vadd.f32 %v276, %v284
      %v302 = vadd.f32 %v277, %v284
      %v303 = vadd.f32 %v278, %v284
      %v304 = vld [vmem:[%s212] sm:$0xff]
      %v305 = vld [vmem:[%s212 + $0x8] sm:$0xff]
      %v306 = vld [vmem:[%s212 + $0x10] sm:$0xff]
      %v307 = vld [vmem:[%s212 + $0x18] sm:$0xff]
      %v308 = vld [vmem:[%s212 + $0x20] sm:$0xff]
      %v309 = vld [vmem:[%s212 + $0x28] sm:$0xff]
      %v310 = vld [vmem:[%s212 + $0x30] sm:$0xff]
      %v311 = vld [vmem:[%s212 + $0x38] sm:$0xff]
      %v312 = vld [vmem:[%s212 + $0x40] sm:$0xff]
      %v313 = vld [vmem:[%s212 + $0x48] sm:$0xff]
      %v314 = vld [vmem:[%s212 + $0x50] sm:$0xff]
      %v315 = vld [vmem:[%s212 + $0x58] sm:$0xff]
      %v316 = vld [vmem:[%s212 + $0x60] sm:$0xff]
      %v317 = vld [vmem:[%s212 + $0x68] sm:$0xff]
      %v318 = vld [vmem:[%s212 + $0x70] sm:$0xff]
      %v319 = vld [vmem:[%s212 + $0x78] sm:$0xff]
      %v320 = vld [vmem:[%s212 + $0x80] sm:$0xff]
      %v321 = vld [vmem:[%s212 + $0x88] sm:$0xff]
      %v322 = vadd.f32 %v286, %v304
      %v323 = vadd.f32 %v287, %v305
      %v324 = vadd.f32 %v288, %v306
      %v325 = vadd.f32 %v289, %v307
      %v326 = vadd.f32 %v290, %v308
      %v327 = vadd.f32 %v291, %v309
      %v328 = vadd.f32 %v292, %v310
      %v329 = vadd.f32 %v293, %v311
      %v330 = vadd.f32 %v294, %v312
      %v331 = vadd.f32 %v295, %v313
      %v332 = vadd.f32 %v296, %v314
      %v333 = vadd.f32 %v297, %v315
      %v334 = vadd.f32 %v298, %v316
      %v335 = vadd.f32 %v299, %v317
      %v336 = vadd.f32 %v300, %v318
      %v337 = vadd.f32 %v301, %v319
      %v338 = vadd.f32 %v302, %v320
      %v339 = vadd.f32 %v303, %v321
      %v340 = vmax.f32 %v322, 0.0
      %v341 = vmax.f32 %v323, 0.0
      %v342 = vmax.f32 %v324, 0.0
      %v343 = vmax.f32 %v325, 0.0
      %v344 = vmax.f32 %v326, 0.0
      %v345 = vmax.f32 %v327, 0.0
      %v346 = vmax.f32 %v328, 0.0
      %v347 = vmax.f32 %v329, 0.0
      %v348 = vmax.f32 %v330, 0.0
      %v349 = vmax.f32 %v331, 0.0
      %v350 = vmax.f32 %v332, 0.0
      %v351 = vmax.f32 %v333, 0.0
      %v352 = vmax.f32 %v334, 0.0
      %v353 = vmax.f32 %v335, 0.0
      %v354 = vmax.f32 %v336, 0.0
      %v355 = vmax.f32 %v337, 0.0
      %v356 = vmax.f32 %v338, 0.0
      %v357 = vmax.f32 %v339, 0.0
      %358 = vst [vmem:[%s217] sm:$0xff] %v340
      %359 = vst [vmem:[%s217 + $0x8] sm:$0xff] %v341
      %360 = vst [vmem:[%s217 + $0x10] sm:$0xff] %v342
      %361 = vst [vmem:[%s217 + $0x18] sm:$0xff] %v343
      %362 = vst [vmem:[%s217 + $0x20] sm:$0xff] %v344
      %363 = vst [vmem:[%s217 + $0x28] sm:$0xff] %v345
      %364 = vst [vmem:[%s217 + $0x30] sm:$0xff] %v346
      %365 = vst [vmem:[%s217 + $0x38] sm:$0xff] %v347
      %366 = vst [vmem:[%s217 + $0x40] sm:$0xff] %v348
      %367 = vst [vmem:[%s217 + $0x48] sm:$0xff] %v349
      %368 = vst [vmem:[%s217 + $0x50] sm:$0xff] %v350
      %369 = vst [vmem:[%s217 + $0x58] sm:$0xff] %v351
      %370 = vst [vmem:[%s217 + $0x60] sm:$0xff] %v352
      %371 = vst [vmem:[%s217 + $0x68] sm:$0xff] %v353
      %372 = vst [vmem:[%s217 + $0x70] sm:$0xff] %v354
      %373 = vst [vmem:[%s217 + $0x78] sm:$0xff] %v355
      %374 = vst [vmem:[%s217 + $0x80] sm:$0xff] %v356
      %375 = vst [vmem:[%s217 + $0x88] sm:$0xff] %v357
      %p376 = scmp.lt.s32.totalorder %s15, 1
      %s377 = scalar_select %p376, %s15, 1
      %s378 = smul.addr %s377, 18
      %s379 = smul.addr %s378, 8
      %s380 = scalar_lea.vmem %s4, %s379
      // Predicated region
      $region37: #{block_forward.5} parent=35 // pred_check
        %p381 = pneg %p127
      $region38: #{block_forward.5} parent=35 // pred_check_branch
        %383 = sbr.rel (%p381) target = $region40
      $region39: #{block_forward.5} parent=35 // pred_region
        _
      $region40: #{block_forward.5} parent=35 // pred_fallthru
        _
    $region36: #{block_forward.5} parent=5 // pred_fallthru
      _
    %p384 = scmp.le.s32.totalorder 2, %s10
    // Predicated region
    $region41: #{block_forward.5} parent=5 // pred_check
      %p385 = pneg %p384
    $region42: #{block_forward.5} parent=5 // pred_check_branch
      %387 = sbr.rel (%p385) target = $region44
    $region43: #{block_forward.5} parent=5 // pred_region
      %s388 = ssub.s32 %s10, 2
      // Predicated region
      $region45: #{block_forward.5} parent=43 // pred_check
        %p389 = pneg %p133
      $region46: #{block_forward.5} parent=43 // pred_check_branch
        %391 = sbr.rel (%p389) target = $region48
      $region47: #{block_forward.5} parent=43 // pred_region
        %p392 = scmp.lt.s32.totalorder %s16, 1
        %s393 = scalar_select %p392, %s16, 1
        %s394 = smul.addr %s393, 18
        %s395 = smul.addr %s394, 8
        %s396 = scalar_lea.vmem %s4, %s395
      $region48: #{block_forward.5} parent=43 // pred_fallthru
        _
    $region44: #{block_forward.5} parent=5 // pred_fallthru
      _
  $region6: #{block_forward.5} parent=0 // loop_footer
    %s14 = sadd.s32 1, %s10
  $region7: #{block_forward.5} parent=0 // loop_footer_branch
    %9 = sbr.rel target = $region3
  $region8: #{block_forward.5} parent=0 // loop_exit
    _

// kernel: block_forward.3
$region0: #{block_forward.3}
  #allocation0 [shape = 'u32[]', space=smem, size = 0x4, offset = 0x4, fixed_abs, tag = 'smem constant byte address 0x4 - core index']
  #allocation1 [shape = 'u32[144,128]{1,0:T(1,128)}', space=vmem, size = 0x12000, scoped, tag = 'internal scratch']
  %s0 = inlined_call_operand.vmem [shape: f32[2,328,64], index: 0, kind: input, shape index: {}]
  %s1 = inlined_call_operand.vmem [shape: bf16[9,64,64], index: 1, kind: input, shape index: {}]
  %s2 = inlined_call_operand.vmem [shape: f32[288,64], index: 2, kind: input, shape index: {}]
  %s3 = inlined_call_operand.vmem [shape: bf16[2,336,64], index: 3, kind: output, shape index: {0}]
  %s4 = inlined_call_operand.vmem [shape: f32[2,2,64], index: 4, kind: output, shape index: {1}]
  %5 = xla_tuple %s3, %s4
  %s6 = sld [smem:[#allocation0]]
  $region53: #{block_forward.3} parent=0
    _
  %s8 = ssub.s32 1, %s6
  %s9 = scalar_select 0, %s8, %s6
  loop: start=0, step=1, limit=4
  $region2: #{block_forward.3} parent=0 // loop_pre_header
    _
  $region3: #{block_forward.3} parent=0 // loop_header
    %s11 = sphi 0, %s15
    %p12 = scmp.ge.s32.totalorder %s11, 4
    %s21 = sphi 0, %s23
    %s24 = sphi 0, %s21
    %s25 = sphi 0, %s24
    %s41 = sphi 0, %s25
    %s45 = sphi 0, %s45
    %s47 = sphi 0, %s45
    %s48 = sphi 0, %s47
    %s62 = sphi 0, %s48
    %s66 = sphi 0, %s66
    %s68 = sphi 0, %s66
    %s69 = sphi 0, %s68
    %s83 = sphi 0, %s69
    %s89 = sphi 0, %s91
    %s92 = sphi 0, %s89
    %s93 = sphi 0, %s92
    %s109 = sphi 0, %s93
    %s115 = sphi 0, %s117
    %s118 = sphi 0, %s115
    %s119 = sphi 0, %s118
    %s135 = sphi 0, %s119
  $region4: #{block_forward.3} parent=0 // loop_header_branch
    %14 = sbr.rel (%p12) target = $region8
  $region5: #{block_forward.3} parent=0 // loop_body
    %s16 = ssub.s32 %s11, 1
    %s17 = ssub.s32 %s11, 2
    %s18 = sadd.s32 %s11, 1
    %s19 = ssub.s32 %s11, %s18
    %p20 = scmp.eq.s32.totalorder %s19, 0
    %s22 = sadd.s32 %s21, 1
    %s23 = scalar_select %p20, %s21, %s22
    %p26 = pneg %p20
    %p27 = scmp.eq.s32.totalorder %s11, 1
    %p28 = por %p26, %p27
    %p29 = scmp.ne.s32.totalorder %s21, %s24
    %p30 = scmp.eq.s32.totalorder %s11, 0
    %p31 = por %p29, %p30
    %p32 = scmp.ne.s32.totalorder %s21, %s24
    %p33 = scmp.eq.s32.totalorder %s16, 1
    %p34 = por %p32, %p33
    %p35 = scmp.ne.s32.totalorder %s24, %s25
    %p36 = scmp.eq.s32.totalorder %s16, 0
    %p37 = por %p35, %p36
    %p38 = scmp.ne.s32.totalorder %s24, %s25
    %p39 = scmp.eq.s32.totalorder %s17, 1
    %p40 = por %p38, %p39
    %p42 = scmp.ne.s32.totalorder %s25, %s41
    %p43 = scmp.eq.s32.totalorder %s17, 0
    %p44 = por %p42, %p43
    %s46 = sadd.s32 %s45, 1
    %p49 = scmp.eq.s32.totalorder %s11, 1
    %p50 = scmp.ne.s32.totalorder %s45, %s47
    %p51 = scmp.eq.s32.totalorder %s11, 0
    %p52 = por %p50, %p51
    %p53 = scmp.ne.s32.totalorder %s45, %s47
    %p54 = scmp.eq.s32.totalorder %s16, 1
    %p55 = por %p53, %p54
    %p56 = scmp.ne.s32.totalorder %s47, %s48
    %p57 = scmp.eq.s32.totalorder %s16, 0
    %p58 = por %p56, %p57
    %p59 = scmp.ne.s32.totalorder %s47, %s48
    %p60 = scmp.eq.s32.totalorder %s17, 1
    %p61 = por %p59, %p60
    %p63 = scmp.ne.s32.totalorder %s48, %s62
    %p64 = scmp.eq.s32.totalorder %s17, 0
    %p65 = por %p63, %p64
    %s67 = sadd.s32 %s66, 1
    %p70 = scmp.eq.s32.totalorder %s11, 1
    %p71 = scmp.ne.s32.totalorder %s66, %s68
    %p72 = scmp.eq.s32.totalorder %s11, 0
    %p73 = por %p71, %p72
    %p74 = scmp.ne.s32.totalorder %s66, %s68
    %p75 = scmp.eq.s32.totalorder %s16, 1
    %p76 = por %p74, %p75
    %p77 = scmp.ne.s32.totalorder %s68, %s69
    %p78 = scmp.eq.s32.totalorder %s16, 0
    %p79 = por %p77, %p78
    %p80 = scmp.ne.s32.totalorder %s68, %s69
    %p81 = scmp.eq.s32.totalorder %s17, 1
    %p82 = por %p80, %p81
    %p84 = scmp.ne.s32.totalorder %s69, %s83
    %p85 = scmp.eq.s32.totalorder %s17, 0
    %p86 = por %p84, %p85
    %s87 = ssub.s32 %s11, %s18
    %p88 = scmp.eq.s32.totalorder %s87, 0
    %s90 = sadd.s32 %s89, 1
    %s91 = scalar_select %p88, %s89, %s90
    %p94 = pneg %p88
    %p95 = scmp.eq.s32.totalorder %s11, 1
    %p96 = por %p94, %p95
    %p97 = scmp.ne.s32.totalorder %s89, %s92
    %p98 = scmp.eq.s32.totalorder %s11, 0
    %p99 = por %p97, %p98
    %p100 = scmp.ne.s32.totalorder %s89, %s92
    %p101 = scmp.eq.s32.totalorder %s16, 1
    %p102 = por %p100, %p101
    %p103 = scmp.ne.s32.totalorder %s92, %s93
    %p104 = scmp.eq.s32.totalorder %s16, 0
    %p105 = por %p103, %p104
    %p106 = scmp.ne.s32.totalorder %s92, %s93
    %p107 = scmp.eq.s32.totalorder %s17, 1
    %p108 = por %p106, %p107
    %p110 = scmp.ne.s32.totalorder %s93, %s109
    %p111 = scmp.eq.s32.totalorder %s17, 0
    %p112 = por %p110, %p111
    %s113 = ssub.s32 %s11, %s18
    %p114 = scmp.eq.s32.totalorder %s113, 0
    %s116 = sadd.s32 %s115, 1
    %s117 = scalar_select %p114, %s115, %s116
    %p120 = pneg %p114
    %p121 = scmp.eq.s32.totalorder %s11, 1
    %p122 = por %p120, %p121
    %p123 = scmp.ne.s32.totalorder %s115, %s118
    %p124 = scmp.eq.s32.totalorder %s11, 0
    %p125 = por %p123, %p124
    %p126 = scmp.ne.s32.totalorder %s115, %s118
    %p127 = scmp.eq.s32.totalorder %s16, 1
    %p128 = por %p126, %p127
    %p129 = scmp.ne.s32.totalorder %s118, %s119
    %p130 = scmp.eq.s32.totalorder %s16, 0
    %p131 = por %p129, %p130
    %p132 = scmp.ne.s32.totalorder %s118, %s119
    %p133 = scmp.eq.s32.totalorder %s17, 1
    %p134 = por %p132, %p133
    %p136 = scmp.ne.s32.totalorder %s119, %s135
    %p137 = scmp.eq.s32.totalorder %s17, 0
    %p138 = por %p136, %p137
    %p139 = scmp.le.s32.totalorder 1, %s11
    %p140 = scmp.lt.s32.totalorder %s11, 3
    %p141 = pnand %p139, %p140
    %p142 = pneg %p141
    // Predicated region
    $region9: #{block_forward.3} parent=5 // pred_check
      _
    $region10: #{block_forward.3} parent=5 // pred_check_branch
      %144 = sbr.rel (%p141) target = $region12
    $region11: #{block_forward.3} parent=5 // pred_region
      %s145 = ssub.s32 %s11, 1
      // Predicated region
      $region13: #{block_forward.3} parent=11 // pred_check
        %p146 = pneg %p58
      $region14: #{block_forward.3} parent=11 // pred_check_branch
        %148 = sbr.rel (%p146) target = $region16
      $region15: #{block_forward.3} parent=11 // pred_region
        _
      $region16: #{block_forward.3} parent=11 // pred_fallthru
        _
      // Predicated region
      $region17: #{block_forward.3} parent=11 // pred_check
        %p149 = pneg %p79
      $region18: #{block_forward.3} parent=11 // pred_check_branch
        %151 = sbr.rel (%p149) target = $region20
      $region19: #{block_forward.3} parent=11 // pred_region
        _
      $region20: #{block_forward.3} parent=11 // pred_fallthru
        _
    $region12: #{block_forward.3} parent=5 // pred_fallthru
      _
    %p152 = scmp.lt.s32.totalorder %s11, 2
    // Predicated region
    $region21: #{block_forward.3} parent=5 // pred_check
      %p153 = pneg %p152
    $region22: #{block_forward.3} parent=5 // pred_check_branch
      %155 = sbr.rel (%p153) target = $region24
    $region23: #{block_forward.3} parent=5 // pred_region
      // Predicated region
      $region25: #{block_forward.3} parent=23 // pred_check
        %p156 = pneg %p31
      $region26: #{block_forward.3} parent=23 // pred_check_branch
        %158 = sbr.rel (%p156) target = $region28
      $region27: #{block_forward.3} parent=23 // pred_region
        %p159 = scmp.lt.s32.totalorder %s11, 1
        %s160 = scalar_select %p159, %s11, 1
        %s161 = smul.addr %s160, 41
        %s162 = smul.addr %s161, 8
        %s163 = scalar_lea.vmem %s0, %s162
      $region28: #{block_forward.3} parent=23 // pred_fallthru
        _
    $region24: #{block_forward.3} parent=5 // pred_fallthru
      _
    %p164 = scmp.le.s32.totalorder 1, %s11
    %p165 = scmp.lt.s32.totalorder %s11, 3
    %p166 = pnand %p164, %p165
    %p167 = pneg %p166
    // Predicated region
    $region29: #{block_forward.3} parent=5 // pred_check
      _
    $region30: #{block_forward.3} parent=5 // pred_check_branch
      %169 = sbr.rel (%p166) target = $region32
    $region31: #{block_forward.3} parent=5 // pred_region
      %s170 = ssub.s32 %s11, 1
      %p171 = scmp.lt.s32.totalorder %s16, 1
      %s172 = scalar_select %p171, %s16, 1
      %s173 = smul.addr %s172, 41
      %s174 = smul.addr %s173, 8
      %s175 = scalar_lea.vmem %s0, %s174
      %p176 = pneg %p37
      %p177 = pneg %p34
      %p178 = pneg %p58
      %p179 = pneg %p55
      %p180 = pneg %p79
      %p181 = pneg %p76
      %p182 = pneg %p105
      %p183 = pneg %p102
      %p184 = scmp.lt.s32.totalorder %s16, 1
      %s185 = scalar_select %p184, %s16, 1
      %s186 = smul.addr %s185, 42
      %s187 = smul.addr %s186, 4
      %s188 = scalar_lea.vmem %s3, %s187
      %p189 = pneg %p131
      %p190 = pneg %p128
      %p191 = scmp.lt.s32.totalorder %s16, 1
      %s192 = scalar_select %p191, %s16, 1
      %s193 = smul.addr %s192, 2
      %s194 = scalar_lea.vmem %s4, %s193
      %p195 = scmp.lt.s32.totalorder %s16, 1
      %s196 = scalar_select %p195, %s16, 1
      %s197 = smul.addr %s196, 41
      %s198 = smul.addr %s197, 8
      %s199 = scalar_lea.vmem %s0, %s198
      %p200 = scmp.lt.s32.totalorder %s16, 1
      %s201 = scalar_select %p200, %s16, 1
      %s202 = smul.addr %s201, 42
      %s203 = smul.addr %s202, 4
      %s204 = scalar_lea.vmem %s3, %s203
      %p205 = scmp.lt.s32.totalorder %s16, 1
      %s206 = scalar_select %p205, %s16, 1
      %s207 = smul.addr %s206, 2
      %s208 = scalar_lea.vmem %s4, %s207
      %v210 = vld [vmem:[%s199] sm:$0xff]
      %v211 = vld [vmem:[%s199 + $0x8] sm:$0xff]
      %v212 = vld [vmem:[%s199 + $0x10] sm:$0xff]
      %v213 = vld [vmem:[%s199 + $0x18] sm:$0xff]
      %v214 = vld [vmem:[%s199 + $0x20] sm:$0xff]
      %v215 = vld [vmem:[%s199 + $0x28] sm:$0xff]
      %v216 = vld [vmem:[%s199 + $0x30] sm:$0xff]
      %v217 = vld [vmem:[%s199 + $0x38] sm:$0xff]
      %v218 = vld [vmem:[%s199 + $0x40] sm:$0xff]
      %v219 = vld [vmem:[%s199 + $0x48] sm:$0xff]
      %v220 = vld [vmem:[%s199 + $0x50] sm:$0xff]
      %v221 = vld [vmem:[%s199 + $0x58] sm:$0xff]
      %v222 = vld [vmem:[%s199 + $0x60] sm:$0xff]
      %v223 = vld [vmem:[%s199 + $0x68] sm:$0xff]
      %v224 = vld [vmem:[%s199 + $0x70] sm:$0xff]
      %v225 = vld [vmem:[%s199 + $0x78] sm:$0xff]
      %v226 = vld [vmem:[%s199 + $0x80] sm:$0xff]
      %v227 = vld [vmem:[%s199 + $0x88] sm:$0xff]
      %v228 = vld [vmem:[%s199 + $0x90] sm:$0xff]
      %v229 = vld [vmem:[%s199 + $0x98] sm:$0xff]
      %v230 = vld [vmem:[%s199 + $0xa0] sm:$0xff]
      %v231 = vld [vmem:[%s199 + $0xa8] sm:$0xff]
      %v232 = vld [vmem:[%s199 + $0xb0] sm:$0xff]
      %v233 = vld [vmem:[%s199 + $0xb8] sm:$0xff]
      %v234 = vld [vmem:[%s199 + $0xc0] sm:$0xff]
      %v235 = vld [vmem:[%s199 + $0xc8] sm:$0xff]
      %v236 = vld [vmem:[%s199 + $0xd0] sm:$0xff]
      %v237 = vld [vmem:[%s199 + $0xd8] sm:$0xff]
      %v238 = vld [vmem:[%s199 + $0xe0] sm:$0xff]
      %v239 = vld [vmem:[%s199 + $0xe8] sm:$0xff]
      %v240 = vld [vmem:[%s199 + $0xf0] sm:$0xff]
      %v241 = vld [vmem:[%s199 + $0xf8] sm:$0xff]
      %v242 = vld [vmem:[%s199 + $0x100] sm:$0xff]
      %v243 = vld [vmem:[%s199 + $0x108] sm:$0xff]
      %v244 = vld [vmem:[%s199 + $0x110] sm:$0xff]
      %v245 = vld [vmem:[%s199 + $0x118] sm:$0xff]
      %v246 = vld [vmem:[%s199 + $0x120] sm:$0xff]
      %v247 = vld [vmem:[%s199 + $0x128] sm:$0xff]
      %v248 = vld [vmem:[%s199 + $0x130] sm:$0xff]
      %v249 = vld [vmem:[%s199 + $0x138] sm:$0xff]
      %v250 = vld [vmem:[%s199 + $0x140] sm:$0xff]
      %v251 = vpack.c.bf16 %v211, %v210
      %v252 = vpack.c.bf16 %v213, %v212
      %v253 = vpack.c.bf16 %v215, %v214
      %v254 = vpack.c.bf16 %v217, %v216
      %v255 = vpack.c.bf16 %v219, %v218
      %v256 = vpack.c.bf16 %v221, %v220
      %v257 = vpack.c.bf16 %v223, %v222
      %v258 = vpack.c.bf16 %v225, %v224
      %v259 = vpack.c.bf16 %v227, %v226
      %v260 = vpack.c.bf16 %v229, %v228
      %v261 = vpack.c.bf16 %v231, %v230
      %v262 = vpack.c.bf16 %v233, %v232
      %v263 = vpack.c.bf16 %v235, %v234
      %v264 = vpack.c.bf16 %v237, %v236
      %v265 = vpack.c.bf16 %v239, %v238
      %v266 = vpack.c.bf16 %v241, %v240
      %v267 = vpack.c.bf16 %v243, %v242
      %v268 = vpack.c.bf16 %v245, %v244
      %v269 = vpack.c.bf16 %v247, %v246
      %v270 = vpack.c.bf16 %v249, %v248
      %v271 = vpack.c.bf16 %v250, %v250
      %v272 = vld [vmem:[%s1] sm:$0xf]
      %v273 = vld [vmem:[%s1 + $0x4] sm:$0xf]
      %v274 = vld [vmem:[%s1 + $0x8] sm:$0xf]
      %v275 = vld [vmem:[%s1 + $0xc] sm:$0xf]
      %v276 = vld [vmem:[%s1 + $0x10] sm:$0xf]
      %v277 = vld [vmem:[%s1 + $0x14] sm:$0xf]
      %v278 = vld [vmem:[%s1 + $0x18] sm:$0xf]
      %v279 = vld [vmem:[%s1 + $0x1c] sm:$0xf]
      %s280 = scalar_lea.vmem %s1, 32
      %v281 = vld [vmem:[%s280] sm:$0xf]
      %v282 = vld [vmem:[%s280 + $0x4] sm:$0xf]
      %v283 = vld [vmem:[%s280 + $0x8] sm:$0xf]
      %v284 = vld [vmem:[%s280 + $0xc] sm:$0xf]
      %v285 = vld [vmem:[%s280 + $0x10] sm:$0xf]
      %v286 = vld [vmem:[%s280 + $0x14] sm:$0xf]
      %v287 = vld [vmem:[%s280 + $0x18] sm:$0xf]
      %v288 = vld [vmem:[%s280 + $0x1c] sm:$0xf]
      %vm289 = vsmask.f32 7424
      %v291 = vshrl.u32 %v251, 16
      %v293 = vshll.u32 %v251, 16
      %v295 = vrot.slane %v293, 1
      %v296 = vor.u32 %v291, %v295
      %v298 = vshll.u32 %v252, 16
      %v300 = vrot.slane %v298, 1
      %v301 = vsel %vm289, %v296, %v300
      %v302 = vshrl.u32 %v252, 16
      %v304 = vor.u32 %v302, %v300
      %v306 = vshll.u32 %v253, 16
      %v308 = vrot.slane %v306, 1
      %v309 = vsel %vm289, %v304, %v308
      %v310 = vshrl.u32 %v253, 16
      %v312 = vor.u32 %v310, %v308
      %v314 = vshll.u32 %v254, 16
      %v316 = vrot.slane %v314, 1
      %v317 = vsel %vm289, %v312, %v316
      %v318 = vshrl.u32 %v254, 16
      %v320 = vor.u32 %v318, %v316
      %v322 = vshll.u32 %v255, 16
      %v324 = vrot.slane %v322, 1
      %v325 = vsel %vm289, %v320, %v324
      %v326 = vshrl.u32 %v255, 16
      %v328 = vor.u32 %v326, %v324
      %v330 = vshll.u32 %v256, 16
      %v332 = vrot.slane %v330, 1
      %v333 = vsel %vm289, %v328, %v332
      %v334 = vshrl.u32 %v256, 16
      %v336 = vor.u32 %v334, %v332
      %v338 = vshll.u32 %v257, 16
      %v340 = vrot.slane %v338, 1
      %v341 = vsel %vm289, %v336, %v340
      %v342 = vshrl.u32 %v257, 16
      %v344 = vor.u32 %v342, %v340
      %v346 = vshll.u32 %v258, 16
      %v348 = vrot.slane %v346, 1
      %v349 = vsel %vm289, %v344, %v348
      %v350 = vshrl.u32 %v258, 16
      %v352 = vor.u32 %v350, %v348
      %v354 = vshll.u32 %v259, 16
      %v356 = vrot.slane %v354, 1
      %v357 = vsel %vm289, %v352, %v356
      %v358 = vshrl.u32 %v259, 16
      %v360 = vor.u32 %v358, %v356
      %v362 = vshll.u32 %v260, 16
      %v364 = vrot.slane %v362, 1
      %v365 = vsel %vm289, %v360, %v364
      %v366 = vshrl.u32 %v260, 16
      %v368 = vor.u32 %v366, %v364
      %v370 = vshll.u32 %v261, 16
      %v372 = vrot.slane %v370, 1
      %v373 = vsel %vm289, %v368, %v372
      %v374 = vshrl.u32 %v261, 16
      %v376 = vor.u32 %v374, %v372
      %v378 = vshll.u32 %v262, 16
      %v380 = vrot.slane %v378, 1
      %v381 = vsel %vm289, %v376, %v380
      %v382 = vshrl.u32 %v262, 16
      %v384 = vor.u32 %v382, %v380
      %v386 = vshll.u32 %v263, 16
      %v388 = vrot.slane %v386, 1
      %v389 = vsel %vm289, %v384, %v388
      %v390 = vshrl.u32 %v263, 16
      %v392 = vor.u32 %v390, %v388
      %v394 = vshll.u32 %v264, 16
      %v396 = vrot.slane %v394, 1
      %v397 = vsel %vm289, %v392, %v396
      %v398 = vshrl.u32 %v264, 16
      %v400 = vor.u32 %v398, %v396
      %v402 = vshll.u32 %v265, 16
      %v404 = vrot.slane %v402, 1
      %v405 = vsel %vm289, %v400, %v404
      %v406 = vshrl.u32 %v265, 16
      %v408 = vor.u32 %v406, %v404
      %v410 = vshll.u32 %v266, 16
      %v412 = vrot.slane %v410, 1
      %v413 = vsel %vm289, %v408, %v412
      %v414 = vshrl.u32 %v266, 16
      %v416 = vor.u32 %v414, %v412
      %v418 = vshll.u32 %v267, 16
      %v420 = vrot.slane %v418, 1
      %v421 = vsel %vm289, %v416, %v420
      %v422 = vshrl.u32 %v267, 16
      %v424 = vor.u32 %v422, %v420
      %v426 = vshll.u32 %v268, 16
      %v428 = vrot.slane %v426, 1
      %v429 = vsel %vm289, %v424, %v428
      %v430 = vshrl.u32 %v268, 16
      %v432 = vor.u32 %v430, %v428
      %v434 = vshll.u32 %v269, 16
      %v436 = vrot.slane %v434, 1
      %v437 = vsel %vm289, %v432, %v436
      %v446 = vunpack.c.l.b16 %v281
      %v447 = vunpack.c.l.b16 %v282
      %v448 = vunpack.c.l.b16 %v283
      %v449 = vunpack.c.l.b16 %v284
      %v450 = vunpack.c.l.b16 %v285
      %v451 = vunpack.c.l.b16 %v286
      %v452 = vunpack.c.l.b16 %v287
      %v453 = vunpack.c.l.b16 %v288
      %v454 = vpack.c.b16 %v447, %v446
      %v455 = vpack.c.b16 %v449, %v448
      %v456 = vpack.c.b16 %v451, %v450
      %v457 = vpack.c.b16 %v453, %v452
      %vm462 = vcmask 523264
      %v464 = vsel %vm462, %v301, 0
      %v467 = vsel %vm462, %v309, 0
      %v470 = vsel %vm462, %v317, 0
      %v473 = vsel %vm462, %v325, 0
      %v476 = vsel %vm462, %v333, 0
      %v479 = vsel %vm462, %v341, 0
      %v482 = vsel %vm462, %v349, 0
      %v485 = vsel %vm462, %v357, 0
      %v488 = vsel %vm462, %v365, 0
      %v491 = vsel %vm462, %v373, 0
      %v494 = vsel %vm462, %v381, 0
      %v497 = vsel %vm462, %v389, 0
      %v500 = vsel %vm462, %v397, 0
      %v503 = vsel %vm462, %v405, 0
      %v506 = vsel %vm462, %v413, 0
      %v509 = vsel %vm462, %v421, 0
      %v512 = vsel %vm462, %v429, 0
      %v515 = vsel %vm462, %v437, 0
      %517 = vmatprep.subr.bf16.mxu0 0
      %518 = vmatpush1.bf16.msra.mxu0 %v454
      %519 = vmatprep.subr.bf16.mxu0 0
      %520 = vmatpush1.bf16.msra.mxu0 %v455
      %521 = vmatprep.subr.bf16.mxu0 0
      %522 = vmatpush1.bf16.msra.mxu0 %v456
      %523 = vmatprep.subr.bf16.mxu0 0
      %524 = vmatpush1.bf16.msra.mxu0 %v457
      %525 = vmatprep.subr.bf16.mxu0 0
      %526 = vmatpush1.bf16.msra.mxu0 0
      %527 = vmatprep.subr.bf16.mxu0 0
      %528 = vmatpush1.bf16.msra.mxu0 0
      %529 = vmatprep.subr.bf16.mxu0 0
      %530 = vmatpush1.bf16.msra.mxu0 0
      %531 = vmatprep.subr.bf16.mxu0 0
      %532 = vmatpush1.bf16.msra.mxu0 0
      %533 = vmatprep.subr.bf16.mxu0 0
      %534 = vmatpush1.bf16.msra.mxu0 0
      %535 = vmatprep.subr.bf16.mxu0 0
      %536 = vmatpush1.bf16.msra.mxu0 0
      %537 = vmatprep.subr.bf16.mxu0 0
      %538 = vmatpush1.bf16.msra.mxu0 0
      %539 = vmatprep.subr.bf16.mxu0 0
      %540 = vmatpush1.bf16.msra.mxu0 0
      %541 = vmatprep.subr.bf16.mxu0 0
      %542 = vmatpush1.bf16.msra.mxu0 0
      %543 = vmatprep.subr.bf16.mxu0 0
      %544 = vmatpush1.bf16.msra.mxu0 0
      %545 = vmatprep.subr.bf16.mxu0 0
      %546 = vmatpush1.bf16.msra.mxu0 0
      %547 = vmatprep.subr.bf16.mxu0 0
      %548 = vmatpush1.bf16.msra.mxu0 0
      %549 = vmatprep.mubr.bf16.mxu0 0
      %550 = vmatmul.mubr.bf16.gmra.mrb[0].mxu0 %v464
      %v551 = vpop.f32.mrb[0].mxu0
      %v552 = vadd.f32 0.0, %v551
      %v553 = vpop.f32.mrb[0].mxu0
      %v554 = vpop.f32.mrb[0].mxu0
      %v555 = vadd.f32 0.0, %v554
      %v556 = vpop.f32.mrb[0].mxu0
      %557 = vmatprep.mubr.bf16.mxu0 0
      %558 = vmatmul.mubr.bf16.gmra.mrb[0].mxu0 %v467
      %v559 = vpop.f32.mrb[0].mxu0
      %v560 = vadd.f32 0.0, %v559
      %v561 = vpop.f32.mrb[0].mxu0
      %v562 = vpop.f32.mrb[0].mxu0
      %v563 = vadd.f32 0.0, %v562
      %v564 = vpop.f32.mrb[0].mxu0
      %565 = vmatprep.mubr.bf16.mxu0 0
      %566 = vmatmul.mubr.bf16.gmra.mrb[0].mxu0 %v470
      %v567 = vpop.f32.mrb[0].mxu0
      %v568 = vadd.f32 0.0, %v567
      %v569 = vpop.f32.mrb[0].mxu0
      %v570 = vpop.f32.mrb[0].mxu0
      %v571 = vadd.f32 0.0, %v570
      %v572 = vpop.f32.mrb[0].mxu0
      %573 = vmatprep.mubr.bf16.mxu0 0
      %574 = vmatmul.mubr.bf16.gmra.mrb[0].mxu0 %v473
      %v575 = vpop.f32.mrb[0].mxu0
      %v576 = vadd.f32 0.0, %v575
      %v577 = vpop.f32.mrb[0].mxu0
      %v578 = vpop.f32.mrb[0].mxu0
      %v579 = vadd.f32 0.0, %v578
      %v580 = vpop.f32.mrb[0].mxu0
      %581 = vmatprep.mubr.bf16.mxu0 0
      %582 = vmatmul.mubr.bf16.gmra.mrb[0].mxu0 %v476
      %v583 = vpop.f32.mrb[0].mxu0
      %v584 = vadd.f32 0.0, %v583
      %v585 = vpop.f32.mrb[0].mxu0
      %v586 = vpop.f32.mrb[0].mxu0
      %v587 = vadd.f32 0.0, %v586
      %v588 = vpop.f32.mrb[0].mxu0
      %589 = vmatprep.mubr.bf16.mxu0 0
      %590 = vmatmul.mubr.bf16.gmra.mrb[0].mxu0 %v479
      %v591 = vpop.f32.mrb[0].mxu0
      %v592 = vadd.f32 0.0, %v591
      %v593 = vpop.f32.mrb[0].mxu0
      %v594 = vpop.f32.mrb[0].mxu0
      %v595 = vadd.f32 0.0, %v594
      %v596 = vpop.f32.mrb[0].mxu0
      %597 = vmatprep.mubr.bf16.mxu0 0
      %598 = vmatmul.mubr.bf16.gmra.mrb[0].mxu0 %v482
      %v599 = vpop.f32.mrb[0].mxu0
      %v600 = vadd.f32 0.0, %v599
      %v601 = vpop.f32.mrb[0].mxu0
      %v602 = vpop.f32.mrb[0].mxu0
      %v603 = vadd.f32 0.0, %v602
      %v604 = vpop.f32.mrb[0].mxu0
      %605 = vmatprep.mubr.bf16.mxu0 0
      %606 = vmatmul.mubr.bf16.gmra.mrb[0].mxu0 %v485
      %v607 = vpop.f32.mrb[0].mxu0
      %v608 = vadd.f32 0.0, %v607
      %v609 = vpop.f32.mrb[0].mxu0
      %v610 = vpop.f32.mrb[0].mxu0
      %v611 = vadd.f32 0.0, %v610
      %v612 = vpop.f32.mrb[0].mxu0
      %613 = vmatprep.mubr.bf16.mxu0 0
      %614 = vmatmul.mubr.bf16.gmra.mrb[0].mxu0 %v488
      %v615 = vpop.f32.mrb[0].mxu0
      %v616 = vadd.f32 0.0, %v615
      %v617 = vpop.f32.mrb[0].mxu0
      %v618 = vpop.f32.mrb[0].mxu0
      %v619 = vadd.f32 0.0, %v618
      %v620 = vpop.f32.mrb[0].mxu0
      %621 = vmatprep.mubr.bf16.mxu0 0
      %622 = vmatmul.mubr.bf16.gmra.mrb[0].mxu0 %v491
      %v623 = vpop.f32.mrb[0].mxu0
      %v624 = vadd.f32 0.0, %v623
      %v625 = vpop.f32.mrb[0].mxu0
      %v626 = vpop.f32.mrb[0].mxu0
      %v627 = vadd.f32 0.0, %v626
      %v628 = vpop.f32.mrb[0].mxu0
      %629 = vmatprep.mubr.bf16.mxu0 0
      %630 = vmatmul.mubr.bf16.gmra.mrb[0].mxu0 %v494
      %v631 = vpop.f32.mrb[0].mxu0
      %v632 = vadd.f32 0.0, %v631
      %v633 = vpop.f32.mrb[0].mxu0
      %v634 = vpop.f32.mrb[0].mxu0
      %v635 = vadd.f32 0.0, %v634
      %v636 = vpop.f32.mrb[0].mxu0
      %637 = vmatprep.mubr.bf16.mxu0 0
      %638 = vmatmul.mubr.bf16.gmra.mrb[0].mxu0 %v497
      %v639 = vpop.f32.mrb[0].mxu0
      %v640 = vadd.f32 0.0, %v639
      %v641 = vpop.f32.mrb[0].mxu0
      %v642 = vpop.f32.mrb[0].mxu0
      %v643 = vadd.f32 0.0, %v642
      %v644 = vpop.f32.mrb[0].mxu0
      %645 = vmatprep.mubr.bf16.mxu0 0
      %646 = vmatmul.mubr.bf16.gmra.mrb[0].mxu0 %v500
      %v647 = vpop.f32.mrb[0].mxu0
      %v648 = vadd.f32 0.0, %v647
      %v649 = vpop.f32.mrb[0].mxu0
      %v650 = vpop.f32.mrb[0].mxu0
      %v651 = vadd.f32 0.0, %v650
      %v652 = vpop.f32.mrb[0].mxu0
      %653 = vmatprep.mubr.bf16.mxu0 0
      %654 = vmatmul.mubr.bf16.gmra.mrb[0].mxu0 %v503
      %v655 = vpop.f32.mrb[0].mxu0
      %v656 = vadd.f32 0.0, %v655
      %v657 = vpop.f32.mrb[0].mxu0
      %v658 = vpop.f32.mrb[0].mxu0
      %v659 = vadd.f32 0.0, %v658
      %v660 = vpop.f32.mrb[0].mxu0
      %661 = vmatprep.mubr.bf16.mxu0 0
      %662 = vmatmul.mubr.bf16.gmra.mrb[0].mxu0 %v506
      %v663 = vpop.f32.mrb[0].mxu0
      %v664 = vadd.f32 0.0, %v663
      %v665 = vpop.f32.mrb[0].mxu0
      %v666 = vpop.f32.mrb[0].mxu0
      %v667 = vadd.f32 0.0, %v666
      %v668 = vpop.f32.mrb[0].mxu0
      %669 = vmatprep.mubr.bf16.mxu0 0
      %670 = vmatmul.mubr.bf16.gmra.mrb[0].mxu0 %v509
      %v671 = vpop.f32.mrb[0].mxu0
      %v672 = vadd.f32 0.0, %v671
      %v673 = vpop.f32.mrb[0].mxu0
      %v674 = vpop.f32.mrb[0].mxu0
      %v675 = vadd.f32 0.0, %v674
      %v676 = vpop.f32.mrb[0].mxu0
      %677 = vmatprep.mubr.bf16.mxu0 0
      %678 = vmatmul.mubr.bf16.gmra.mrb[0].mxu0 %v512
      %v679 = vpop.f32.mrb[0].mxu0
      %v680 = vadd.f32 0.0, %v679
      %v681 = vpop.f32.mrb[0].mxu0
      %v682 = vpop.f32.mrb[0].mxu0
      %v683 = vadd.f32 0.0, %v682
      %v684 = vpop.f32.mrb[0].mxu0
      %685 = vmatprep.mubr.bf16.mxu0 0
      %686 = vmatmul.mubr.bf16.gmra.mrb[0].mxu0 %v515
      %v687 = vpop.f32.mrb[0].mxu0
      %v688 = vadd.f32 0.0, %v687
      %v689 = vpop.f32.mrb[0].mxu0
      %v690 = vpop.f32.mrb[0].mxu0
      %v691 = vadd.f32 0.0, %v690
      %v692 = vpop.f32.mrb[0].mxu0
      %693 = vdwg.mxu0
      %v702 = vunpack.c.l.b16 %v272
      %v703 = vunpack.c.l.b16 %v273
      %v704 = vunpack.c.l.b16 %v274
      %v705 = vunpack.c.l.b16 %v275
      %v706 = vunpack.c.l.b16 %v276
      %v707 = vunpack.c.l.b16 %v277
      %v708 = vunpack.c.l.b16 %v278
      %v709 = vunpack.c.l.b16 %v279
      %v710 = vpack.c.b16 %v703, %v702
      %v711 = vpack.c.b16 %v705, %v704
      %v712 = vpack.c.b16 %v707, %v706
      %v713 = vpack.c.b16 %v709, %v708
      %v718 = vsel %vm462, %v251, 0
      %v720 = vsel %vm462, %v252, 0
      %v722 = vsel %vm462, %v253, 0
      %v724 = vsel %vm462, %v254, 0
      %v726 = vsel %vm462, %v255, 0
      %v728 = vsel %vm462, %v256, 0
      %v730 = vsel %vm462, %v257, 0
      %v732 = vsel %vm462, %v258, 0
      %v734 = vsel %vm462, %v259, 0
      %v736 = vsel %vm462, %v260, 0
      %v738 = vsel %vm462, %v261, 0
      %v740 = vsel %vm462, %v262, 0
      %v742 = vsel %vm462, %v263, 0
      %v744 = vsel %vm462, %v264, 0
      %v746 = vsel %vm462, %v265, 0
      %v748 = vsel %vm462, %v266, 0
      %v750 = vsel %vm462, %v267, 0
      %v752 = vsel %vm462, %v268, 0
      %754 = vmatprep.subr.bf16.mxu0 0
      %755 = vmatpush1.bf16.msra.mxu0 %v710
      %756 = vmatprep.subr.bf16.mxu0 0
      %757 = vmatpush1.bf16.msra.mxu0 %v711
      %758 = vmatprep.subr.bf16.mxu0 0
      %759 = vmatpush1.bf16.msra.mxu0 %v712
      %760 = vmatprep.subr.bf16.mxu0 0
      %761 = vmatpush1.bf16.msra.mxu0 %v713
      %762 = vmatprep.subr.bf16.mxu0 0
      %763 = vmatpush1.bf16.msra.mxu0 0
      %764 = vmatprep.subr.bf16.mxu0 0
      %765 = vmatpush1.bf16.msra.mxu0 0
      %766 = vmatprep.subr.bf16.mxu0 0
      %767 = vmatpush1.bf16.msra.mxu0 0
      %768 = vmatprep.subr.bf16.mxu0 0
      %769 = vmatpush1.bf16.msra.mxu0 0
      %770 = vmatprep.subr.bf16.mxu0 0
      %771 = vmatpush1.bf16.msra.mxu0 0
      %772 = vmatprep.subr.bf16.mxu0 0
      %773 = vmatpush1.bf16.msra.mxu0 0
      %774 = vmatprep.subr.bf16.mxu0 0
      %775 = vmatpush1.bf16.msra.mxu0 0
      %776 = vmatprep.subr.bf16.mxu0 0
      %777 = vmatpush1.bf16.msra.mxu0 0
      %778 = vmatprep.subr.bf16.mxu0 0
      %779 = vmatpush1.bf16.msra.mxu0 0
      %780 = vmatprep.subr.bf16.mxu0 0
      %781 = vmatpush1.bf16.msra.mxu0 0
      %782 = vmatprep.subr.bf16.mxu0 0
      %783 = vmatpush1.bf16.msra.mxu0 0
      %784 = vmatprep.subr.bf16.mxu0 0
      %785 = vmatpush1.bf16.msra.mxu0 0
      %786 = vmatprep.mubr.bf16.mxu0 0
      %787 = vmatmul.mubr.bf16.gmra.mrb[0].mxu0 %v718
      %v788 = vpop.f32.mrb[0].mxu0
      %v789 = vadd.f32 %v552, %v788
      %v790 = vpop.f32.mrb[0].mxu0
      %v791 = vpop.f32.mrb[0].mxu0
      %v792 = vadd.f32 %v555, %v791
      %v793 = vpop.f32.mrb[0].mxu0
      %794 = vmatprep.mubr.bf16.mxu0 0
      %795 = vmatmul.mubr.bf16.gmra.mrb[0].mxu0 %v720
      %v796 = vpop.f32.mrb[0].mxu0
      %v797 = vadd.f32 %v560, %v796
      %v798 = vpop.f32.mrb[0].mxu0
      %v799 = vpop.f32.mrb[0].mxu0
      %v800 = vadd.f32 %v563, %v799
      %v801 = vpop.f32.mrb[0].mxu0
      %802 = vmatprep.mubr.bf16.mxu0 0
      %803 = vmatmul.mubr.bf16.gmra.mrb[0].mxu0 %v722
      %v804 = vpop.f32.mrb[0].mxu0
      %v805 = vadd.f32 %v568, %v804
      %v806 = vpop.f32.mrb[0].mxu0
      %v807 = vpop.f32.mrb[0].mxu0
      %v808 = vadd.f32 %v571, %v807
      %v809 = vpop.f32.mrb[0].mxu0
      %810 = vmatprep.mubr.bf16.mxu0 0
      %811 = vmatmul.mubr.bf16.gmra.mrb[0].mxu0 %v724
      %v812 = vpop.f32.mrb[0].mxu0
      %v813 = vadd.f32 %v576, %v812
      %v814 = vpop.f32.mrb[0].mxu0
      %v815 = vpop.f32.mrb[0].mxu0
      %v816 = vadd.f32 %v579, %v815
      %v817 = vpop.f32.mrb[0].mxu0
      %818 = vmatprep.mubr.bf16.mxu0 0
      %819 = vmatmul.mubr.bf16.gmra.mrb[0].mxu0 %v726
      %v820 = vpop.f32.mrb[0].mxu0
      %v821 = vadd.f32 %v584, %v820
      %v822 = vpop.f32.mrb[0].mxu0
      %v823 = vpop.f32.mrb[0].mxu0
      %v824 = vadd.f32 %v587, %v823
      %v825 = vpop.f32.mrb[0].mxu0
      %826 = vmatprep.mubr.bf16.mxu0 0
      %827 = vmatmul.mubr.bf16.gmra.mrb[0].mxu0 %v728
      %v828 = vpop.f32.mrb[0].mxu0
      %v829 = vadd.f32 %v592, %v828
      %v830 = vpop.f32.mrb[0].mxu0
      %v831 = vpop.f32.mrb[0].mxu0
      %v832 = vadd.f32 %v595, %v831
      %v833 = vpop.f32.mrb[0].mxu0
      %834 = vmatprep.mubr.bf16.mxu0 0
      %835 = vmatmul.mubr.bf16.gmra.mrb[0].mxu0 %v730
      %v836 = vpop.f32.mrb[0].mxu0
      %v837 = vadd.f32 %v600, %v836
      %v838 = vpop.f32.mrb[0].mxu0
      %v839 = vpop.f32.mrb[0].mxu0
      %v840 = vadd.f32 %v603, %v839
      %v841 = vpop.f32.mrb[0].mxu0
      %842 = vmatprep.mubr.bf16.mxu0 0
      %843 = vmatmul.mubr.bf16.gmra.mrb[0].mxu0 %v732
      %v844 = vpop.f32.mrb[0].mxu0
      %v845 = vadd.f32 %v608, %v844
      %v846 = vpop.f32.mrb[0].mxu0
      %v847 = vpop.f32.mrb[0].mxu0
      %v848 = vadd.f32 %v611, %v847
      %v849 = vpop.f32.mrb[0].mxu0
      %850 = vmatprep.mubr.bf16.mxu0 0
      %851 = vmatmul.mubr.bf16.gmra.mrb[0].mxu0 %v734
      %v852 = vpop.f32.mrb[0].mxu0
      %v853 = vadd.f32 %v616, %v852
      %v854 = vpop.f32.mrb[0].mxu0
      %v855 = vpop.f32.mrb[0].mxu0
      %v856 = vadd.f32 %v619, %v855
      %v857 = vpop.f32.mrb[0].mxu0
      %858 = vmatprep.mubr.bf16.mxu0 0
      %859 = vmatmul.mubr.bf16.gmra.mrb[0].mxu0 %v736
      %v860 = vpop.f32.mrb[0].mxu0
      %v861 = vadd.f32 %v624, %v860
      %v862 = vpop.f32.mrb[0].mxu0
      %v863 = vpop.f32.mrb[0].mxu0
      %v864 = vadd.f32 %v627, %v863
      %v865 = vpop.f32.mrb[0].mxu0
      %866 = vmatprep.mubr.bf16.mxu0 0
      %867 = vmatmul.mubr.bf16.gmra.mrb[0].mxu0 %v738
      %v868 = vpop.f32.mrb[0].mxu0
      %v869 = vadd.f32 %v632, %v868
      %v870 = vpop.f32.mrb[0].mxu0
      %v871 = vpop.f32.mrb[0].mxu0
      %v872 = vadd.f32 %v635, %v871
      %v873 = vpop.f32.mrb[0].mxu0
      %874 = vmatprep.mubr.bf16.mxu0 0
      %875 = vmatmul.mubr.bf16.gmra.mrb[0].mxu0 %v740
      %v876 = vpop.f32.mrb[0].mxu0
      %v877 = vadd.f32 %v640, %v876
      %v878 = vpop.f32.mrb[0].mxu0
      %v879 = vpop.f32.mrb[0].mxu0
      %v880 = vadd.f32 %v643, %v879
      %v881 = vpop.f32.mrb[0].mxu0
      %882 = vmatprep.mubr.bf16.mxu0 0
      %883 = vmatmul.mubr.bf16.gmra.mrb[0].mxu0 %v742
      %v884 = vpop.f32.mrb[0].mxu0
      %v885 = vadd.f32 %v648, %v884
      %v886 = vpop.f32.mrb[0].mxu0
      %v887 = vpop.f32.mrb[0].mxu0
      %v888 = vadd.f32 %v651, %v887
      %v889 = vpop.f32.mrb[0].mxu0
      %890 = vmatprep.mubr.bf16.mxu0 0
      %891 = vmatmul.mubr.bf16.gmra.mrb[0].mxu0 %v744
      %v892 = vpop.f32.mrb[0].mxu0
      %v893 = vadd.f32 %v656, %v892
      %v894 = vpop.f32.mrb[0].mxu0
      %v895 = vpop.f32.mrb[0].mxu0
      %v896 = vadd.f32 %v659, %v895
      %v897 = vpop.f32.mrb[0].mxu0
      %898 = vmatprep.mubr.bf16.mxu0 0
      %899 = vmatmul.mubr.bf16.gmra.mrb[0].mxu0 %v746
      %v900 = vpop.f32.mrb[0].mxu0
      %v901 = vadd.f32 %v664, %v900
      %v902 = vpop.f32.mrb[0].mxu0
      %v903 = vpop.f32.mrb[0].mxu0
      %v904 = vadd.f32 %v667, %v903
      %v905 = vpop.f32.mrb[0].mxu0
      %906 = vmatprep.mubr.bf16.mxu0 0
      %907 = vmatmul.mubr.bf16.gmra.mrb[0].mxu0 %v748
      %v908 = vpop.f32.mrb[0].mxu0
      %v909 = vadd.f32 %v672, %v908
      %v910 = vpop.f32.mrb[0].mxu0
      %v911 = vpop.f32.mrb[0].mxu0
      %v912 = vadd.f32 %v675, %v911
      %v913 = vpop.f32.mrb[0].mxu0
      %914 = vmatprep.mubr.bf16.mxu0 0
      %915 = vmatmul.mubr.bf16.gmra.mrb[0].mxu0 %v750
      %v916 = vpop.f32.mrb[0].mxu0
      %v917 = vadd.f32 %v680, %v916
      %v918 = vpop.f32.mrb[0].mxu0
      %v919 = vpop.f32.mrb[0].mxu0
      %v920 = vadd.f32 %v683, %v919
      %v921 = vpop.f32.mrb[0].mxu0
      %922 = vmatprep.mubr.bf16.mxu0 0
      %923 = vmatmul.mubr.bf16.gmra.mrb[0].mxu0 %v752
      %v924 = vpop.f32.mrb[0].mxu0
      %v925 = vadd.f32 %v688, %v924
      %v926 = vpop.f32.mrb[0].mxu0
      %v927 = vpop.f32.mrb[0].mxu0
      %v928 = vadd.f32 %v691, %v927
      %v929 = vpop.f32.mrb[0].mxu0
      %930 = vdwg.mxu0
      %s931 = scalar_lea.vmem %s1, 64
      %v932 = vld [vmem:[%s931] sm:$0xf]
      %v933 = vld [vmem:[%s931 + $0x4] sm:$0xf]
      %v934 = vld [vmem:[%s931 + $0x8] sm:$0xf]
      %v935 = vld [vmem:[%s931 + $0xc] sm:$0xf]
      %v936 = vld [vmem:[%s931 + $0x10] sm:$0xf]
      %v937 = vld [vmem:[%s931 + $0x14] sm:$0xf]
      %v938 = vld [vmem:[%s931 + $0x18] sm:$0xf]
      %v939 = vld [vmem:[%s931 + $0x1c] sm:$0xf]
      %vm959 = vcmask 1046528
      %v960 = vrot.slane %v251, 1
      %v961 = vrot.slane %v252, 1
      %v962 = vsel %vm959, %v960, %v961
      %v963 = vrot.slane %v253, 1
      %v964 = vsel %vm959, %v961, %v963
      %v965 = vrot.slane %v254, 1
      %v966 = vsel %vm959, %v963, %v965
      %v967 = vrot.slane %v255, 1
      %v968 = vsel %vm959, %v965, %v967
      %v969 = vrot.slane %v256, 1
      %v970 = vsel %vm959, %v967, %v969
      %v971 = vrot.slane %v257, 1
      %v972 = vsel %vm959, %v969, %v971
      %v973 = vrot.slane %v258, 1
      %v974 = vsel %vm959, %v971, %v973
      %v975 = vrot.slane %v259, 1
      %v976 = vsel %vm959, %v973, %v975
      %v977 = vrot.slane %v260, 1
      %v978 = vsel %vm959, %v975, %v977
      %v979 = vrot.slane %v261, 1
      %v980 = vsel %vm959, %v977, %v979
      %v981 = vrot.slane %v262, 1
      %v982 = vsel %vm959, %v979, %v981
      %v983 = vrot.slane %v263, 1
      %v984 = vsel %vm959, %v981, %v983
      %v985 = vrot.slane %v264, 1
      %v986 = vsel %vm959, %v983, %v985
      %v987 = vrot.slane %v265, 1
      %v988 = vsel %vm959, %v985, %v987
      %v989 = vrot.slane %v266, 1
      %v990 = vsel %vm959, %v987, %v989
      %v991 = vrot.slane %v267, 1
      %v992 = vsel %vm959, %v989, %v991
      %v993 = vrot.slane %v268, 1
      %v994 = vsel %vm959, %v991, %v993
      %v995 = vrot.slane %v269, 1
      %v996 = vsel %vm959, %v993, %v995
      %v1005 = vunpack.c.l.b16 %v932
      %v1006 = vunpack.c.l.b16 %v933
      %v1007 = vunpack.c.l.b16 %v934
      %v1008 = vunpack.c.l.b16 %v935
      %v1009 = vunpack.c.l.b16 %v936
      %v1010 = vunpack.c.l.b16 %v937
      %v1011 = vunpack.c.l.b16 %v938
      %v1012 = vunpack.c.l.b16 %v939
      %v1013 = vpack.c.b16 %v1006, %v1005
      %v1014 = vpack.c.b16 %v1008, %v1007
      %v1015 = vpack.c.b16 %v1010, %v1009
      %v1016 = vpack.c.b16 %v1012, %v1011
      %v1022 = vsel %vm462, %v962, 0
      %v1025 = vsel %vm462, %v964, 0
      %v1028 = vsel %vm462, %v966, 0
      %v1031 = vsel %vm462, %v968, 0
      %v1034 = vsel %vm462, %v970, 0
      %v1037 = vsel %vm462, %v972, 0
      %v1040 = vsel %vm462, %v974, 0
      %v1043 = vsel %vm462, %v976, 0
      %v1046 = vsel %vm462, %v978, 0
      %v1049 = vsel %vm462, %v980, 0
      %v1052 = vsel %vm462, %v982, 0
      %v1055 = vsel %vm462, %v984, 0
      %v1058 = vsel %vm462, %v986, 0
      %v1061 = vsel %vm462, %v988, 0
      %v1064 = vsel %vm462, %v990, 0
      %v1067 = vsel %vm462, %v992, 0
      %v1070 = vsel %vm462, %v994, 0
      %v1073 = vsel %vm462, %v996, 0
      %1075 = vmatprep.subr.bf16.mxu0 0
      %1076 = vmatpush1.bf16.msra.mxu0 %v1013
      %1077 = vmatprep.subr.bf16.mxu0 0
      %1078 = vmatpush1.bf16.msra.mxu0 %v1014
      %1079 = vmatprep.subr.bf16.mxu0 0
      %1080 = vmatpush1.bf16.msra.mxu0 %v1015
      %1081 = vmatprep.subr.bf16.mxu0 0
      %1082 = vmatpush1.bf16.msra.mxu0 %v1016
      %1083 = vmatprep.subr.bf16.mxu0 0
      %1084 = vmatpush1.bf16.msra.mxu0 0
      %1085 = vmatprep.subr.bf16.mxu0 0
      %1086 = vmatpush1.bf16.msra.mxu0 0
      %1087 = vmatprep.subr.bf16.mxu0 0
      %1088 = vmatpush1.bf16.msra.mxu0 0
      %1089 = vmatprep.subr.bf16.mxu0 0
      %1090 = vmatpush1.bf16.msra.mxu0 0
      %1091 = vmatprep.subr.bf16.mxu0 0
      %1092 = vmatpush1.bf16.msra.mxu0 0
      %1093 = vmatprep.subr.bf16.mxu0 0
      %1094 = vmatpush1.bf16.msra.mxu0 0
      %1095 = vmatprep.subr.bf16.mxu0 0
      %1096 = vmatpush1.bf16.msra.mxu0 0
      %1097 = vmatprep.subr.bf16.mxu0 0
      %1098 = vmatpush1.bf16.msra.mxu0 0
      %1099 = vmatprep.subr.bf16.mxu0 0
      %1100 = vmatpush1.bf16.msra.mxu0 0
      %1101 = vmatprep.subr.bf16.mxu0 0
      %1102 = vmatpush1.bf16.msra.mxu0 0
      %1103 = vmatprep.subr.bf16.mxu0 0
      %1104 = vmatpush1.bf16.msra.mxu0 0
      %1105 = vmatprep.subr.bf16.mxu0 0
      %1106 = vmatpush1.bf16.msra.mxu0 0
      %1107 = vmatprep.mubr.bf16.mxu0 0
      %1108 = vmatmul.mubr.bf16.gmra.mrb[0].mxu0 %v1022
      %v1109 = vpop.f32.mrb[0].mxu0
      %v1110 = vadd.f32 0.0, %v1109
      %v1111 = vpop.f32.mrb[0].mxu0
      %v1112 = vpop.f32.mrb[0].mxu0
      %v1113 = vadd.f32 0.0, %v1112
      %v1114 = vpop.f32.mrb[0].mxu0
      %1115 = vmatprep.mubr.bf16.mxu0 0
      %1116 = vmatmul.mubr.bf16.gmra.mrb[0].mxu0 %v1025
      %v1117 = vpop.f32.mrb[0].mxu0
      %v1118 = vadd.f32 0.0, %v1117
      %v1119 = vpop.f32.mrb[0].mxu0
      %v1120 = vpop.f32.mrb[0].mxu0
      %v1121 = vadd.f32 0.0, %v1120
      %v1122 = vpop.f32.mrb[0].mxu0
      %1123 = vmatprep.mubr.bf16.mxu0 0
      %1124 = vmatmul.mubr.bf16.gmra.mrb[0].mxu0 %v1028
      %v1125 = vpop.f32.mrb[0].mxu0
      %v1126 = vadd.f32 0.0, %v1125
      %v1127 = vpop.f32.mrb[0].mxu0
      %v1128 = vpop.f32.mrb[0].mxu0
      %v1129 = vadd.f32 0.0, %v1128
      %v1130 = vpop.f32.mrb[0].mxu0
      %1131 = vmatprep.mubr.bf16.mxu0 0
      %1132 = vmatmul.mubr.bf16.gmra.mrb[0].mxu0 %v1031
      %v1133 = vpop.f32.mrb[0].mxu0
      %v1134 = vadd.f32 0.0, %v1133
      %v1135 = vpop.f32.mrb[0].mxu0
      %v1136 = vpop.f32.mrb[0].mxu0
      %v1137 = vadd.f32 0.0, %v1136
      %v1138 = vpop.f32.mrb[0].mxu0
      %1139 = vmatprep.mubr.bf16.mxu0 0
      %1140 = vmatmul.mubr.bf16.gmra.mrb[0].mxu0 %v1034
      %v1141 = vpop.f32.mrb[0].mxu0
      %v1142 = vadd.f32 0.0, %v1141
      %v1143 = vpop.f32.mrb[0].mxu0
      %v1144 = vpop.f32.mrb[0].mxu0
      %v1145 = vadd.f32 0.0, %v1144
      %v1146 = vpop.f32.mrb[0].mxu0
      %1147 = vmatprep.mubr.bf16.mxu0 0
      %1148 = vmatmul.mubr.bf16.gmra.mrb[0].mxu0 %v1037
      %v1149 = vpop.f32.mrb[0].mxu0
      %v1150 = vadd.f32 0.0, %v1149
      %v1151 = vpop.f32.mrb[0].mxu0
      %v1152 = vpop.f32.mrb[0].mxu0
      %v1153 = vadd.f32 0.0, %v1152
      %v1154 = vpop.f32.mrb[0].mxu0
      %1155 = vmatprep.mubr.bf16.mxu0 0
      %1156 = vmatmul.mubr.bf16.gmra.mrb[0].mxu0 %v1040
      %v1157 = vpop.f32.mrb[0].mxu0
      %v1158 = vadd.f32 0.0, %v1157
      %v1159 = vpop.f32.mrb[0].mxu0
      %v1160 = vpop.f32.mrb[0].mxu0
      %v1161 = vadd.f32 0.0, %v1160
      %v1162 = vpop.f32.mrb[0].mxu0
      %1163 = vmatprep.mubr.bf16.mxu0 0
      %1164 = vmatmul.mubr.bf16.gmra.mrb[0].mxu0 %v1043
      %v1165 = vpop.f32.mrb[0].mxu0
      %v1166 = vadd.f32 0.0, %v1165
      %v1167 = vpop.f32.mrb[0].mxu0
      %v1168 = vpop.f32.mrb[0].mxu0
      %v1169 = vadd.f32 0.0, %v1168
      %v1170 = vpop.f32.mrb[0].mxu0
      %1171 = vmatprep.mubr.bf16.mxu0 0
      %1172 = vmatmul.mubr.bf16.gmra.mrb[0].mxu0 %v1046
      %v1173 = vpop.f32.mrb[0].mxu0
      %v1174 = vadd.f32 0.0, %v1173
      %v1175 = vpop.f32.mrb[0].mxu0
      %v1176 = vpop.f32.mrb[0].mxu0
      %v1177 = vadd.f32 0.0, %v1176
      %v1178 = vpop.f32.mrb[0].mxu0
      %1179 = vmatprep.mubr.bf16.mxu0 0
      %1180 = vmatmul.mubr.bf16.gmra.mrb[0].mxu0 %v1049
      %v1181 = vpop.f32.mrb[0].mxu0
      %v1182 = vadd.f32 0.0, %v1181
      %v1183 = vpop.f32.mrb[0].mxu0
      %v1184 = vpop.f32.mrb[0].mxu0
      %v1185 = vadd.f32 0.0, %v1184
      %v1186 = vpop.f32.mrb[0].mxu0
      %1187 = vmatprep.mubr.bf16.mxu0 0
      %1188 = vmatmul.mubr.bf16.gmra.mrb[0].mxu0 %v1052
      %v1189 = vpop.f32.mrb[0].mxu0
      %v1190 = vadd.f32 0.0, %v1189
      %v1191 = vpop.f32.mrb[0].mxu0
      %v1192 = vpop.f32.mrb[0].mxu0
      %v1193 = vadd.f32 0.0, %v1192
      %v1194 = vpop.f32.mrb[0].mxu0
      %1195 = vmatprep.mubr.bf16.mxu0 0
      %1196 = vmatmul.mubr.bf16.gmra.mrb[0].mxu0 %v1055
      %v1197 = vpop.f32.mrb[0].mxu0
      %v1198 = vadd.f32 0.0, %v1197
      %v1199 = vpop.f32.mrb[0].mxu0
      %v1200 = vpop.f32.mrb[0].mxu0
      %v1201 = vadd.f32 0.0, %v1200
      %v1202 = vpop.f32.mrb[0].mxu0
      %1203 = vmatprep.mubr.bf16.mxu0 0
      %1204 = vmatmul.mubr.bf16.gmra.mrb[0].mxu0 %v1058
      %v1205 = vpop.f32.mrb[0].mxu0
      %v1206 = vadd.f32 0.0, %v1205
      %v1207 = vpop.f32.mrb[0].mxu0
      %v1208 = vpop.f32.mrb[0].mxu0
      %v1209 = vadd.f32 0.0, %v1208
      %v1210 = vpop.f32.mrb[0].mxu0
      %1211 = vmatprep.mubr.bf16.mxu0 0
      %1212 = vmatmul.mubr.bf16.gmra.mrb[0].mxu0 %v1061
      %v1213 = vpop.f32.mrb[0].mxu0
      %v1214 = vadd.f32 0.0, %v1213
      %v1215 = vpop.f32.mrb[0].mxu0
      %v1216 = vpop.f32.mrb[0].mxu0
      %v1217 = vadd.f32 0.0, %v1216
      %v1218 = vpop.f32.mrb[0].mxu0
      %1219 = vmatprep.mubr.bf16.mxu0 0
      %1220 = vmatmul.mubr.bf16.gmra.mrb[0].mxu0 %v1064
      %v1221 = vpop.f32.mrb[0].mxu0
      %v1222 = vadd.f32 0.0, %v1221
      %v1223 = vpop.f32.mrb[0].mxu0
      %v1224 = vpop.f32.mrb[0].mxu0
      %v1225 = vadd.f32 0.0, %v1224
      %v1226 = vpop.f32.mrb[0].mxu0
      %1227 = vmatprep.mubr.bf16.mxu0 0
      %1228 = vmatmul.mubr.bf16.gmra.mrb[0].mxu0 %v1067
      %v1229 = vpop.f32.mrb[0].mxu0
      %v1230 = vadd.f32 0.0, %v1229
      %v1231 = vpop.f32.mrb[0].mxu0
      %v1232 = vpop.f32.mrb[0].mxu0
      %v1233 = vadd.f32 0.0, %v1232
      %v1234 = vpop.f32.mrb[0].mxu0
      %1235 = vmatprep.mubr.bf16.mxu0 0
      %1236 = vmatmul.mubr.bf16.gmra.mrb[0].mxu0 %v1070
      %v1237 = vpop.f32.mrb[0].mxu0
      %v1238 = vadd.f32 0.0, %v1237
      %v1239 = vpop.f32.mrb[0].mxu0
      %v1240 = vpop.f32.mrb[0].mxu0
      %v1241 = vadd.f32 0.0, %v1240
      %v1242 = vpop.f32.mrb[0].mxu0
      %1243 = vmatprep.mubr.bf16.mxu0 0
      %1244 = vmatmul.mubr.bf16.gmra.mrb[0].mxu0 %v1073
      %v1245 = vpop.f32.mrb[0].mxu0
      %v1246 = vadd.f32 0.0, %v1245
      %v1247 = vpop.f32.mrb[0].mxu0
      %v1248 = vpop.f32.mrb[0].mxu0
      %v1249 = vadd.f32 0.0, %v1248
      %v1250 = vpop.f32.mrb[0].mxu0
      %1251 = vdwg.mxu0
      %v1252 = vadd.f32 %v789, %v1110
      %v1253 = vadd.f32 %v792, %v1113
      %v1254 = vadd.f32 %v797, %v1118
      %v1255 = vadd.f32 %v800, %v1121
      %v1256 = vadd.f32 %v805, %v1126
      %v1257 = vadd.f32 %v808, %v1129
      %v1258 = vadd.f32 %v813, %v1134
      %v1259 = vadd.f32 %v816, %v1137
      %v1260 = vadd.f32 %v821, %v1142
      %v1261 = vadd.f32 %v824, %v1145
      %v1262 = vadd.f32 %v829, %v1150
      %v1263 = vadd.f32 %v832, %v1153
      %v1264 = vadd.f32 %v837, %v1158
      %v1265 = vadd.f32 %v840, %v1161
      %v1266 = vadd.f32 %v845, %v1166
      %v1267 = vadd.f32 %v848, %v1169
      %v1268 = vadd.f32 %v853, %v1174
      %v1269 = vadd.f32 %v856, %v1177
      %v1270 = vadd.f32 %v861, %v1182
      %v1271 = vadd.f32 %v864, %v1185
      %v1272 = vadd.f32 %v869, %v1190
      %v1273 = vadd.f32 %v872, %v1193
      %v1274 = vadd.f32 %v877, %v1198
      %v1275 = vadd.f32 %v880, %v1201
      %v1276 = vadd.f32 %v885, %v1206
      %v1277 = vadd.f32 %v888, %v1209
      %v1278 = vadd.f32 %v893, %v1214
      %v1279 = vadd.f32 %v896, %v1217
      %v1280 = vadd.f32 %v901, %v1222
      %v1281 = vadd.f32 %v904, %v1225
      %v1282 = vadd.f32 %v909, %v1230
      %v1283 = vadd.f32 %v912, %v1233
      %v1284 = vadd.f32 %v917, %v1238
      %v1285 = vadd.f32 %v920, %v1241
      %v1286 = vadd.f32 %v925, %v1246
      %v1287 = vadd.f32 %v928, %v1249
      %s1288 = scalar_lea.vmem %s1, 96
      %v1289 = vld [vmem:[%s1288] sm:$0xf]
      %v1290 = vld [vmem:[%s1288 + $0x4] sm:$0xf]
      %v1291 = vld [vmem:[%s1288 + $0x8] sm:$0xf]
      %v1292 = vld [vmem:[%s1288 + $0xc] sm:$0xf]
      %v1293 = vld [vmem:[%s1288 + $0x10] sm:$0xf]
      %v1294 = vld [vmem:[%s1288 + $0x14] sm:$0xf]
      %v1295 = vld [vmem:[%s1288 + $0x18] sm:$0xf]
      %v1296 = vld [vmem:[%s1288 + $0x1c] sm:$0xf]
      %v1298 = vrot.slane %v270, 1
      %v1299 = vsel %vm959, %v995, %v1298
      %v1308 = vunpack.c.l.b16 %v1289
      %v1309 = vunpack.c.l.b16 %v1290
      %v1310 = vunpack.c.l.b16 %v1291
      %v1311 = vunpack.c.l.b16 %v1292
      %v1312 = vunpack.c.l.b16 %v1293
      %v1313 = vunpack.c.l.b16 %v1294
      %v1314 = vunpack.c.l.b16 %v1295
      %v1315 = vunpack.c.l.b16 %v1296
      %v1316 = vpack.c.b16 %v1309, %v1308
      %v1317 = vpack.c.b16 %v1311, %v1310
      %v1318 = vpack.c.b16 %v1313, %v1312
      %v1319 = vpack.c.b16 %v1315, %v1314
      %v1325 = vsel %vm462, %v1299, 0
      %1327 = vmatprep.subr.bf16.mxu0 0
      %1328 = vmatpush1.bf16.msra.mxu0 %v1316
      %1329 = vmatprep.subr.bf16.mxu0 0
      %1330 = vmatpush1.bf16.msra.mxu0 %v1317
      %1331 = vmatprep.subr.bf16.mxu0 0
      %1332 = vmatpush1.bf16.msra.mxu0 %v1318
      %1333 = vmatprep.subr.bf16.mxu0 0
      %1334 = vmatpush1.bf16.msra.mxu0 %v1319
      %1335 = vmatprep.subr.bf16.mxu0 0
      %1336 = vmatpush1.bf16.msra.mxu0 0
      %1337 = vmatprep.subr.bf16.mxu0 0
      %1338 = vmatpush1.bf16.msra.mxu0 0
      %1339 = vmatprep.subr.bf16.mxu0 0
      %1340 = vmatpush1.bf16.msra.mxu0 0
      %1341 = vmatprep.subr.bf16.mxu0 0
      %1342 = vmatpush1.bf16.msra.mxu0 0
      %1343 = vmatprep.subr.bf16.mxu0 0
      %1344 = vmatpush1.bf16.msra.mxu0 0
      %1345 = vmatprep.subr.bf16.mxu0 0
      %1346 = vmatpush1.bf16.msra.mxu0 0
      %1347 = vmatprep.subr.bf16.mxu0 0
      %1348 = vmatpush1.bf16.msra.mxu0 0
      %1349 = vmatprep.subr.bf16.mxu0 0
      %1350 = vmatpush1.bf16.msra.mxu0 0
      %1351 = vmatprep.subr.bf16.mxu0 0
      %1352 = vmatpush1.bf16.msra.mxu0 0
      %1353 = vmatprep.subr.bf16.mxu0 0
      %1354 = vmatpush1.bf16.msra.mxu0 0
      %1355 = vmatprep.subr.bf16.mxu0 0
      %1356 = vmatpush1.bf16.msra.mxu0 0
      %1357 = vmatprep.subr.bf16.mxu0 0
      %1358 = vmatpush1.bf16.msra.mxu0 0
      %1359 = vmatprep.mubr.bf16.mxu0 0
      %1360 = vmatmul.mubr.bf16.gmra.mrb[0].mxu0 %v1025
      %v1361 = vpop.f32.mrb[0].mxu0
      %v1362 = vadd.f32 0.0, %v1361
      %v1363 = vpop.f32.mrb[0].mxu0
      %v1364 = vpop.f32.mrb[0].mxu0
      %v1365 = vadd.f32 0.0, %v1364
      %v1366 = vpop.f32.mrb[0].mxu0
      %1367 = vmatprep.mubr.bf16.mxu0 0
      %1368 = vmatmul.mubr.bf16.gmra.mrb[0].mxu0 %v1028
      %v1369 = vpop.f32.mrb[0].mxu0
      %v1370 = vadd.f32 0.0, %v1369
      %v1371 = vpop.f32.mrb[0].mxu0
      %v1372 = vpop.f32.mrb[0].mxu0
      %v1373 = vadd.f32 0.0, %v1372
      %v1374 = vpop.f32.mrb[0].mxu0
      %1375 = vmatprep.mubr.bf16.mxu0 0
      %1376 = vmatmul.mubr.bf16.gmra.mrb[0].mxu0 %v1031
      %v1377 = vpop.f32.mrb[0].mxu0
      %v1378 = vadd.f32 0.0, %v1377
      %v1379 = vpop.f32.mrb[0].mxu0
      %v1380 = vpop.f32.mrb[0].mxu0
      %v1381 = vadd.f32 0.0, %v1380
      %v1382 = vpop.f32.mrb[0].mxu0
      %1383 = vmatprep.mubr.bf16.mxu0 0
      %1384 = vmatmul.mubr.bf16.gmra.mrb[0].mxu0 %v1034
      %v1385 = vpop.f32.mrb[0].mxu0
      %v1386 = vadd.f32 0.0, %v1385
      %v1387 = vpop.f32.mrb[0].mxu0
      %v1388 = vpop.f32.mrb[0].mxu0
      %v1389 = vadd.f32 0.0, %v1388
      %v1390 = vpop.f32.mrb[0].mxu0
      %1391 = vmatprep.mubr.bf16.mxu0 0
      %1392 = vmatmul.mubr.bf16.gmra.mrb[0].mxu0 %v1037
      %v1393 = vpop.f32.mrb[0].mxu0
      %v1394 = vadd.f32 0.0, %v1393
      %v1395 = vpop.f32.mrb[0].mxu0
      %v1396 = vpop.f32.mrb[0].mxu0
      %v1397 = vadd.f32 0.0, %v1396
      %v1398 = vpop.f32.mrb[0].mxu0
      %1399 = vmatprep.mubr.bf16.mxu0 0
      %1400 = vmatmul.mubr.bf16.gmra.mrb[0].mxu0 %v1040
      %v1401 = vpop.f32.mrb[0].mxu0
      %v1402 = vadd.f32 0.0, %v1401
      %v1403 = vpop.f32.mrb[0].mxu0
      %v1404 = vpop.f32.mrb[0].mxu0
      %v1405 = vadd.f32 0.0, %v1404
      %v1406 = vpop.f32.mrb[0].mxu0
      %1407 = vmatprep.mubr.bf16.mxu0 0
      %1408 = vmatmul.mubr.bf16.gmra.mrb[0].mxu0 %v1043
      %v1409 = vpop.f32.mrb[0].mxu0
      %v1410 = vadd.f32 0.0, %v1409
      %v1411 = vpop.f32.mrb[0].mxu0
      %v1412 = vpop.f32.mrb[0].mxu0
      %v1413 = vadd.f32 0.0, %v1412
      %v1414 = vpop.f32.mrb[0].mxu0
      %1415 = vmatprep.mubr.bf16.mxu0 0
      %1416 = vmatmul.mubr.bf16.gmra.mrb[0].mxu0 %v1046
      %v1417 = vpop.f32.mrb[0].mxu0
      %v1418 = vadd.f32 0.0, %v1417
      %v1419 = vpop.f32.mrb[0].mxu0
      %v1420 = vpop.f32.mrb[0].mxu0
      %v1421 = vadd.f32 0.0, %v1420
      %v1422 = vpop.f32.mrb[0].mxu0
      %1423 = vmatprep.mubr.bf16.mxu0 0
      %1424 = vmatmul.mubr.bf16.gmra.mrb[0].mxu0 %v1049
      %v1425 = vpop.f32.mrb[0].mxu0
      %v1426 = vadd.f32 0.0, %v1425
      %v1427 = vpop.f32.mrb[0].mxu0
      %v1428 = vpop.f32.mrb[0].mxu0
      %v1429 = vadd.f32 0.0, %v1428
      %v1430 = vpop.f32.mrb[0].mxu0
      %1431 = vmatprep.mubr.bf16.mxu0 0
      %1432 = vmatmul.mubr.bf16.gmra.mrb[0].mxu0 %v1052
      %v1433 = vpop.f32.mrb[0].mxu0
      %v1434 = vadd.f32 0.0, %v1433
      %v1435 = vpop.f32.mrb[0].mxu0
      %v1436 = vpop.f32.mrb[0].mxu0
      %v1437 = vadd.f32 0.0, %v1436
      %v1438 = vpop.f32.mrb[0].mxu0
      %1439 = vmatprep.mubr.bf16.mxu0 0
      %1440 = vmatmul.mubr.bf16.gmra.mrb[0].mxu0 %v1055
      %v1441 = vpop.f32.mrb[0].mxu0
      %v1442 = vadd.f32 0.0, %v1441
      %v1443 = vpop.f32.mrb[0].mxu0
      %v1444 = vpop.f32.mrb[0].mxu0
      %v1445 = vadd.f32 0.0, %v1444
      %v1446 = vpop.f32.mrb[0].mxu0
      %1447 = vmatprep.mubr.bf16.mxu0 0
      %1448 = vmatmul.mubr.bf16.gmra.mrb[0].mxu0 %v1058
      %v1449 = vpop.f32.mrb[0].mxu0
      %v1450 = vadd.f32 0.0, %v1449
      %v1451 = vpop.f32.mrb[0].mxu0
      %v1452 = vpop.f32.mrb[0].mxu0
      %v1453 = vadd.f32 0.0, %v1452
      %v1454 = vpop.f32.mrb[0].mxu0
      %1455 = vmatprep.mubr.bf16.mxu0 0
      %1456 = vmatmul.mubr.bf16.gmra.mrb[0].mxu0 %v1061
      %v1457 = vpop.f32.mrb[0].mxu0
      %v1458 = vadd.f32 0.0, %v1457
      %v1459 = vpop.f32.mrb[0].mxu0
      %v1460 = vpop.f32.mrb[0].mxu0
      %v1461 = vadd.f32 0.0, %v1460
      %v1462 = vpop.f32.mrb[0].mxu0
      %1463 = vmatprep.mubr.bf16.mxu0 0
      %1464 = vmatmul.mubr.bf16.gmra.mrb[0].mxu0 %v1064
      %v1465 = vpop.f32.mrb[0].mxu0
      %v1466 = vadd.f32 0.0, %v1465
      %v1467 = vpop.f32.mrb[0].mxu0
      %v1468 = vpop.f32.mrb[0].mxu0
      %v1469 = vadd.f32 0.0, %v1468
      %v1470 = vpop.f32.mrb[0].mxu0
      %1471 = vmatprep.mubr.bf16.mxu0 0
      %1472 = vmatmul.mubr.bf16.gmra.mrb[0].mxu0 %v1067
      %v1473 = vpop.f32.mrb[0].mxu0
      %v1474 = vadd.f32 0.0, %v1473
      %v1475 = vpop.f32.mrb[0].mxu0
      %v1476 = vpop.f32.mrb[0].mxu0
      %v1477 = vadd.f32 0.0, %v1476
      %v1478 = vpop.f32.mrb[0].mxu0
      %1479 = vmatprep.mubr.bf16.mxu0 0
      %1480 = vmatmul.mubr.bf16.gmra.mrb[0].mxu0 %v1070
      %v1481 = vpop.f32.mrb[0].mxu0
      %v1482 = vadd.f32 0.0, %v1481
      %v1483 = vpop.f32.mrb[0].mxu0
      %v1484 = vpop.f32.mrb[0].mxu0
      %v1485 = vadd.f32 0.0, %v1484
      %v1486 = vpop.f32.mrb[0].mxu0
      %1487 = vmatprep.mubr.bf16.mxu0 0
      %1488 = vmatmul.mubr.bf16.gmra.mrb[0].mxu0 %v1073
      %v1489 = vpop.f32.mrb[0].mxu0
      %v1490 = vadd.f32 0.0, %v1489
      %v1491 = vpop.f32.mrb[0].mxu0
      %v1492 = vpop.f32.mrb[0].mxu0
      %v1493 = vadd.f32 0.0, %v1492
      %v1494 = vpop.f32.mrb[0].mxu0
      %1495 = vmatprep.mubr.bf16.mxu0 0
      %1496 = vmatmul.mubr.bf16.gmra.mrb[0].mxu0 %v1325
      %v1497 = vpop.f32.mrb[0].mxu0
      %v1498 = vadd.f32 0.0, %v1497
      %v1499 = vpop.f32.mrb[0].mxu0
      %v1500 = vpop.f32.mrb[0].mxu0
      %v1501 = vadd.f32 0.0, %v1500
      %v1502 = vpop.f32.mrb[0].mxu0
      %1503 = vdwg.mxu0
      %v1504 = vadd.f32 %v1252, %v1362
      %v1505 = vadd.f32 %v1253, %v1365
      %v1506 = vadd.f32 %v1254, %v1370
      %v1507 = vadd.f32 %v1255, %v1373
      %v1508 = vadd.f32 %v1256, %v1378
      %v1509 = vadd.f32 %v1257, %v1381
      %v1510 = vadd.f32 %v1258, %v1386
      %v1511 = vadd.f32 %v1259, %v1389
      %v1512 = vadd.f32 %v1260, %v1394
      %v1513 = vadd.f32 %v1261, %v1397
      %v1514 = vadd.f32 %v1262, %v1402
      %v1515 = vadd.f32 %v1263, %v1405
      %v1516 = vadd.f32 %v1264, %v1410
      %v1517 = vadd.f32 %v1265, %v1413
      %v1518 = vadd.f32 %v1266, %v1418
      %v1519 = vadd.f32 %v1267, %v1421
      %v1520 = vadd.f32 %v1268, %v1426
      %v1521 = vadd.f32 %v1269, %v1429
      %v1522 = vadd.f32 %v1270, %v1434
      %v1523 = vadd.f32 %v1271, %v1437
      %v1524 = vadd.f32 %v1272, %v1442
      %v1525 = vadd.f32 %v1273, %v1445
      %v1526 = vadd.f32 %v1274, %v1450
      %v1527 = vadd.f32 %v1275, %v1453
      %v1528 = vadd.f32 %v1276, %v1458
      %v1529 = vadd.f32 %v1277, %v1461
      %v1530 = vadd.f32 %v1278, %v1466
      %v1531 = vadd.f32 %v1279, %v1469
      %v1532 = vadd.f32 %v1280, %v1474
      %v1533 = vadd.f32 %v1281, %v1477
      %v1534 = vadd.f32 %v1282, %v1482
      %v1535 = vadd.f32 %v1283, %v1485
      %v1536 = vadd.f32 %v1284, %v1490
      %v1537 = vadd.f32 %v1285, %v1493
      %v1538 = vadd.f32 %v1286, %v1498
      %v1539 = vadd.f32 %v1287, %v1501
      %s1540 = scalar_lea.vmem %s1, 128
      %v1541 = vld [vmem:[%s1540] sm:$0xf]
      %v1542 = vld [vmem:[%s1540 + $0x4] sm:$0xf]
      %v1543 = vld [vmem:[%s1540 + $0x8] sm:$0xf]
      %v1544 = vld [vmem:[%s1540 + $0xc] sm:$0xf]
      %v1545 = vld [vmem:[%s1540 + $0x10] sm:$0xf]
      %v1546 = vld [vmem:[%s1540 + $0x14] sm:$0xf]
      %v1547 = vld [vmem:[%s1540 + $0x18] sm:$0xf]
      %v1548 = vld [vmem:[%s1540 + $0x1c] sm:$0xf]
      %vm1549 = vsmask.f32 6400
      %v1550 = vrot.slane %v302, 1
      %v1551 = vrot.slane %v298, 2
      %v1552 = vor.u32 %v1550, %v1551
      %v1553 = vrot.slane %v310, 1
      %v1554 = vrot.slane %v306, 2
      %v1555 = vor.u32 %v1553, %v1554
      %v1556 = vsel %vm1549, %v1552, %v1555
      %v1557 = vrot.slane %v318, 1
      %v1558 = vrot.slane %v314, 2
      %v1559 = vor.u32 %v1557, %v1558
      %v1560 = vsel %vm1549, %v1555, %v1559
      %v1561 = vrot.slane %v326, 1
      %v1562 = vrot.slane %v322, 2
      %v1563 = vor.u32 %v1561, %v1562
      %v1564 = vsel %vm1549, %v1559, %v1563
      %v1565 = vrot.slane %v334, 1
      %v1566 = vrot.slane %v330, 2
      %v1567 = vor.u32 %v1565, %v1566
      %v1568 = vsel %vm1549, %v1563, %v1567
      %v1569 = vrot.slane %v342, 1
      %v1570 = vrot.slane %v338, 2
      %v1571 = vor.u32 %v1569, %v1570
      %v1572 = vsel %vm1549, %v1567, %v1571
      %v1573 = vrot.slane %v350, 1
      %v1574 = vrot.slane %v346, 2
      %v1575 = vor.u32 %v1573, %v1574
      %v1576 = vsel %vm1549, %v1571, %v1575
      %v1577 = vrot.slane %v358, 1
      %v1578 = vrot.slane %v354, 2
      %v1579 = vor.u32 %v1577, %v1578
      %v1580 = vsel %vm1549, %v1575, %v1579
      %v1581 = vrot.slane %v366, 1
      %v1582 = vrot.slane %v362, 2
      %v1583 = vor.u32 %v1581, %v1582
      %v1584 = vsel %vm1549, %v1579, %v1583
      %v1585 = vrot.slane %v374, 1
      %v1586 = vrot.slane %v370, 2
      %v1587 = vor.u32 %v1585, %v1586
      %v1588 = vsel %vm1549, %v1583, %v1587
      %v1589 = vrot.slane %v382, 1
      %v1590 = vrot.slane %v378, 2
      %v1591 = vor.u32 %v1589, %v1590
      %v1592 = vsel %vm1549, %v1587, %v1591
      %v1593 = vrot.slane %v390, 1
      %v1594 = vrot.slane %v386, 2
      %v1595 = vor.u32 %v1593, %v1594
      %v1596 = vsel %vm1549, %v1591, %v1595
      %v1597 = vrot.slane %v398, 1
      %v1598 = vrot.slane %v394, 2
      %v1599 = vor.u32 %v1597, %v1598
      %v1600 = vsel %vm1549, %v1595, %v1599
      %v1601 = vrot.slane %v406, 1
      %v1602 = vrot.slane %v402, 2
      %v1603 = vor.u32 %v1601, %v1602
      %v1604 = vsel %vm1549, %v1599, %v1603
      %v1605 = vrot.slane %v414, 1
      %v1606 = vrot.slane %v410, 2
      %v1607 = vor.u32 %v1605, %v1606
      %v1608 = vsel %vm1549, %v1603, %v1607
      %v1609 = vrot.slane %v422, 1
      %v1610 = vrot.slane %v418, 2
      %v1611 = vor.u32 %v1609, %v1610
      %v1612 = vsel %vm1549, %v1607, %v1611
      %v1613 = vrot.slane %v430, 1
      %v1614 = vrot.slane %v426, 2
      %v1615 = vor.u32 %v1613, %v1614
      %v1616 = vsel %vm1549, %v1611, %v1615
      %v1617 = vshrl.u32 %v269, 16
      %v1619 = vrot.slane %v1617, 1
      %v1620 = vrot.slane %v434, 2
      %v1621 = vor.u32 %v1619, %v1620
      %v1622 = vsel %vm1549, %v1615, %v1621
      %v1624 = vshrl.u32 %v270, 16
      %v1626 = vrot.slane %v1624, 1
      %v1627 = vshll.u32 %v270, 16
      %v1629 = vrot.slane %v1627, 2
      %v1630 = vor.u32 %v1626, %v1629
      %v1631 = vsel %vm1549, %v1621, %v1630
      %v1640 = vunpack.c.l.b16 %v1541
      %v1641 = vunpack.c.l.b16 %v1542
      %v1642 = vunpack.c.l.b16 %v1543
      %v1643 = vunpack.c.l.b16 %v1544
      %v1644 = vunpack.c.l.b16 %v1545
      %v1645 = vunpack.c.l.b16 %v1546
      %v1646 = vunpack.c.l.b16 %v1547
      %v1647 = vunpack.c.l.b16 %v1548
      %v1648 = vpack.c.b16 %v1641, %v1640
      %v1649 = vpack.c.b16 %v1643, %v1642
      %v1650 = vpack.c.b16 %v1645, %v1644
      %v1651 = vpack.c.b16 %v1647, %v1646
      %v1657 = vsel %vm462, %v1556, 0
      %v1660 = vsel %vm462, %v1560, 0
      %v1663 = vsel %vm462, %v1564, 0
      %v1666 = vsel %vm462, %v1568, 0
      %v1669 = vsel %vm462, %v1572, 0
      %v1672 = vsel %vm462, %v1576, 0
      %v1675 = vsel %vm462, %v1580, 0
      %v1678 = vsel %vm462, %v1584, 0
      %v1681 = vsel %vm462, %v1588, 0
      %v1684 = vsel %vm462, %v1592, 0
      %v1687 = vsel %vm462, %v1596, 0
      %v1690 = vsel %vm462, %v1600, 0
      %v1693 = vsel %vm462, %v1604, 0
      %v1696 = vsel %vm462, %v1608, 0
      %v1699 = vsel %vm462, %v1612, 0
      %v1702 = vsel %vm462, %v1616, 0
      %v1705 = vsel %vm462, %v1622, 0
      %v1708 = vsel %vm462, %v1631, 0
      %1710 = vmatprep.subr.bf16.mxu0 0
      %1711 = vmatpush1.bf16.msra.mxu0 %v1648
      %1712 = vmatprep.subr.bf16.mxu0 0
      %1713 = vmatpush1.bf16.msra.mxu0 %v1649
      %1714 = vmatprep.subr.bf16.mxu0 0
      %1715 = vmatpush1.bf16.msra.mxu0 %v1650
      %1716 = vmatprep.subr.bf16.mxu0 0
      %1717 = vmatpush1.bf16.msra.mxu0 %v1651
      %1718 = vmatprep.subr.bf16.mxu0 0
      %1719 = vmatpush1.bf16.msra.mxu0 0
      %1720 = vmatprep.subr.bf16.mxu0 0
      %1721 = vmatpush1.bf16.msra.mxu0 0
      %1722 = vmatprep.subr.bf16.mxu0 0
      %1723 = vmatpush1.bf16.msra.mxu0 0
      %1724 = vmatprep.subr.bf16.mxu0 0
      %1725 = vmatpush1.bf16.msra.mxu0 0
      %1726 = vmatprep.subr.bf16.mxu0 0
      %1727 = vmatpush1.bf16.msra.mxu0 0
      %1728 = vmatprep.subr.bf16.mxu0 0
      %1729 = vmatpush1.bf16.msra.mxu0 0
      %1730 = vmatprep.subr.bf16.mxu0 0
      %1731 = vmatpush1.bf16.msra.mxu0 0
      %1732 = vmatprep.subr.bf16.mxu0 0
      %1733 = vmatpush1.bf16.msra.mxu0 0
      %1734 = vmatprep.subr.bf16.mxu0 0
      %1735 = vmatpush1.bf16.msra.mxu0 0
      %1736 = vmatprep.subr.bf16.mxu0 0
      %1737 = vmatpush1.bf16.msra.mxu0 0
      %1738 = vmatprep.subr.bf16.mxu0 0
      %1739 = vmatpush1.bf16.msra.mxu0 0
      %1740 = vmatprep.subr.bf16.mxu0 0
      %1741 = vmatpush1.bf16.msra.mxu0 0
      %1742 = vmatprep.mubr.bf16.mxu0 0
      %1743 = vmatmul.mubr.bf16.gmra.mrb[0].mxu0 %v1657
      %v1744 = vpop.f32.mrb[0].mxu0
      %v1745 = vadd.f32 0.0, %v1744
      %v1746 = vpop.f32.mrb[0].mxu0
      %v1747 = vpop.f32.mrb[0].mxu0
      %v1748 = vadd.f32 0.0, %v1747
      %v1749 = vpop.f32.mrb[0].mxu0
      %1750 = vmatprep.mubr.bf16.mxu0 0
      %1751 = vmatmul.mubr.bf16.gmra.mrb[0].mxu0 %v1660
      %v1752 = vpop.f32.mrb[0].mxu0
      %v1753 = vadd.f32 0.0, %v1752
      %v1754 = vpop.f32.mrb[0].mxu0
      %v1755 = vpop.f32.mrb[0].mxu0
      %v1756 = vadd.f32 0.0, %v1755
      %v1757 = vpop.f32.mrb[0].mxu0
      %1758 = vmatprep.mubr.bf16.mxu0 0
      %1759 = vmatmul.mubr.bf16.gmra.mrb[0].mxu0 %v1663
      %v1760 = vpop.f32.mrb[0].mxu0
      %v1761 = vadd.f32 0.0, %v1760
      %v1762 = vpop.f32.mrb[0].mxu0
      %v1763 = vpop.f32.mrb[0].mxu0
      %v1764 = vadd.f32 0.0, %v1763
      %v1765 = vpop.f32.mrb[0].mxu0
      %1766 = vmatprep.mubr.bf16.mxu0 0
      %1767 = vmatmul.mubr.bf16.gmra.mrb[0].mxu0 %v1666
      %v1768 = vpop.f32.mrb[0].mxu0
      %v1769 = vadd.f32 0.0, %v1768
      %v1770 = vpop.f32.mrb[0].mxu0
      %v1771 = vpop.f32.mrb[0].mxu0
      %v1772 = vadd.f32 0.0, %v1771
      %v1773 = vpop.f32.mrb[0].mxu0
      %1774 = vmatprep.mubr.bf16.mxu0 0
      %1775 = vmatmul.mubr.bf16.gmra.mrb[0].mxu0 %v1669
      %v1776 = vpop.f32.mrb[0].mxu0
      %v1777 = vadd.f32 0.0, %v1776
      %v1778 = vpop.f32.mrb[0].mxu0
      %v1779 = vpop.f32.mrb[0].mxu0
      %v1780 = vadd.f32 0.0, %v1779
      %v1781 = vpop.f32.mrb[0].mxu0
      %1782 = vmatprep.mubr.bf16.mxu0 0
      %1783 = vmatmul.mubr.bf16.gmra.mrb[0].mxu0 %v1672
      %v1784 = vpop.f32.mrb[0].mxu0
      %v1785 = vadd.f32 0.0, %v1784
      %v1786 = vpop.f32.mrb[0].mxu0
      %v1787 = vpop.f32.mrb[0].mxu0
      %v1788 = vadd.f32 0.0, %v1787
      %v1789 = vpop.f32.mrb[0].mxu0
      %1790 = vmatprep.mubr.bf16.mxu0 0
      %1791 = vmatmul.mubr.bf16.gmra.mrb[0].mxu0 %v1675
      %v1792 = vpop.f32.mrb[0].mxu0
      %v1793 = vadd.f32 0.0, %v1792
      %v1794 = vpop.f32.mrb[0].mxu0
      %v1795 = vpop.f32.mrb[0].mxu0
      %v1796 = vadd.f32 0.0, %v1795
      %v1797 = vpop.f32.mrb[0].mxu0
      %1798 = vmatprep.mubr.bf16.mxu0 0
      %1799 = vmatmul.mubr.bf16.gmra.mrb[0].mxu0 %v1678
      %v1800 = vpop.f32.mrb[0].mxu0
      %v1801 = vadd.f32 0.0, %v1800
      %v1802 = vpop.f32.mrb[0].mxu0
      %v1803 = vpop.f32.mrb[0].mxu0
      %v1804 = vadd.f32 0.0, %v1803
      %v1805 = vpop.f32.mrb[0].mxu0
      %1806 = vmatprep.mubr.bf16.mxu0 0
      %1807 = vmatmul.mubr.bf16.gmra.mrb[0].mxu0 %v1681
      %v1808 = vpop.f32.mrb[0].mxu0
      %v1809 = vadd.f32 0.0, %v1808
      %v1810 = vpop.f32.mrb[0].mxu0
      %v1811 = vpop.f32.mrb[0].mxu0
      %v1812 = vadd.f32 0.0, %v1811
      %v1813 = vpop.f32.mrb[0].mxu0
      %1814 = vmatprep.mubr.bf16.mxu0 0
      %1815 = vmatmul.mubr.bf16.gmra.mrb[0].mxu0 %v1684
      %v1816 = vpop.f32.mrb[0].mxu0
      %v1817 = vadd.f32 0.0, %v1816
      %v1818 = vpop.f32.mrb[0].mxu0
      %v1819 = vpop.f32.mrb[0].mxu0
      %v1820 = vadd.f32 0.0, %v1819
      %v1821 = vpop.f32.mrb[0].mxu0
      %1822 = vmatprep.mubr.bf16.mxu0 0
      %1823 = vmatmul.mubr.bf16.gmra.mrb[0].mxu0 %v1687
      %v1824 = vpop.f32.mrb[0].mxu0
      %v1825 = vadd.f32 0.0, %v1824
      %v1826 = vpop.f32.mrb[0].mxu0
      %v1827 = vpop.f32.mrb[0].mxu0
      %v1828 = vadd.f32 0.0, %v1827
      %v1829 = vpop.f32.mrb[0].mxu0
      %1830 = vmatprep.mubr.bf16.mxu0 0
      %1831 = vmatmul.mubr.bf16.gmra.mrb[0].mxu0 %v1690
      %v1832 = vpop.f32.mrb[0].mxu0
      %v1833 = vadd.f32 0.0, %v1832
      %v1834 = vpop.f32.mrb[0].mxu0
      %v1835 = vpop.f32.mrb[0].mxu0
      %v1836 = vadd.f32 0.0, %v1835
      %v1837 = vpop.f32.mrb[0].mxu0
      %1838 = vmatprep.mubr.bf16.mxu0 0
      %1839 = vmatmul.mubr.bf16.gmra.mrb[0].mxu0 %v1693
      %v1840 = vpop.f32.mrb[0].mxu0
      %v1841 = vadd.f32 0.0, %v1840
      %v1842 = vpop.f32.mrb[0].mxu0
      %v1843 = vpop.f32.mrb[0].mxu0
      %v1844 = vadd.f32 0.0, %v1843
      %v1845 = vpop.f32.mrb[0].mxu0
      %1846 = vmatprep.mubr.bf16.mxu0 0
      %1847 = vmatmul.mubr.bf16.gmra.mrb[0].mxu0 %v1696
      %v1848 = vpop.f32.mrb[0].mxu0
      %v1849 = vadd.f32 0.0, %v1848
      %v1850 = vpop.f32.mrb[0].mxu0
      %v1851 = vpop.f32.mrb[0].mxu0
      %v1852 = vadd.f32 0.0, %v1851
      %v1853 = vpop.f32.mrb[0].mxu0
      %1854 = vmatprep.mubr.bf16.mxu0 0
      %1855 = vmatmul.mubr.bf16.gmra.mrb[0].mxu0 %v1699
      %v1856 = vpop.f32.mrb[0].mxu0
      %v1857 = vadd.f32 0.0, %v1856
      %v1858 = vpop.f32.mrb[0].mxu0
      %v1859 = vpop.f32.mrb[0].mxu0
      %v1860 = vadd.f32 0.0, %v1859
      %v1861 = vpop.f32.mrb[0].mxu0
      %1862 = vmatprep.mubr.bf16.mxu0 0
      %1863 = vmatmul.mubr.bf16.gmra.mrb[0].mxu0 %v1702
      %v1864 = vpop.f32.mrb[0].mxu0
      %v1865 = vadd.f32 0.0, %v1864
      %v1866 = vpop.f32.mrb[0].mxu0
      %v1867 = vpop.f32.mrb[0].mxu0
      %v1868 = vadd.f32 0.0, %v1867
      %v1869 = vpop.f32.mrb[0].mxu0
      %1870 = vmatprep.mubr.bf16.mxu0 0
      %1871 = vmatmul.mubr.bf16.gmra.mrb[0].mxu0 %v1705
      %v1872 = vpop.f32.mrb[0].mxu0
      %v1873 = vadd.f32 0.0, %v1872
      %v1874 = vpop.f32.mrb[0].mxu0
      %v1875 = vpop.f32.mrb[0].mxu0
      %v1876 = vadd.f32 0.0, %v1875
      %v1877 = vpop.f32.mrb[0].mxu0
      %1878 = vmatprep.mubr.bf16.mxu0 0
      %1879 = vmatmul.mubr.bf16.gmra.mrb[0].mxu0 %v1708
      %v1880 = vpop.f32.mrb[0].mxu0
      %v1881 = vadd.f32 0.0, %v1880
      %v1882 = vpop.f32.mrb[0].mxu0
      %v1883 = vpop.f32.mrb[0].mxu0
      %v1884 = vadd.f32 0.0, %v1883
      %v1885 = vpop.f32.mrb[0].mxu0
      %1886 = vdwg.mxu0
      %v1887 = vadd.f32 %v1504, %v1745
      %v1888 = vadd.f32 %v1505, %v1748
      %v1889 = vadd.f32 %v1506, %v1753
      %v1890 = vadd.f32 %v1507, %v1756
      %v1891 = vadd.f32 %v1508, %v1761
      %v1892 = vadd.f32 %v1509, %v1764
      %v1893 = vadd.f32 %v1510, %v1769
      %v1894 = vadd.f32 %v1511, %v1772
      %v1895 = vadd.f32 %v1512, %v1777
      %v1896 = vadd.f32 %v1513, %v1780
      %v1897 = vadd.f32 %v1514, %v1785
      %v1898 = vadd.f32 %v1515, %v1788
      %v1899 = vadd.f32 %v1516, %v1793
      %v1900 = vadd.f32 %v1517, %v1796
      %v1901 = vadd.f32 %v1518, %v1801
      %v1902 = vadd.f32 %v1519, %v1804
      %v1903 = vadd.f32 %v1520, %v1809
      %v1904 = vadd.f32 %v1521, %v1812
      %v1905 = vadd.f32 %v1522, %v1817
      %v1906 = vadd.f32 %v1523, %v1820
      %v1907 = vadd.f32 %v1524, %v1825
      %v1908 = vadd.f32 %v1525, %v1828
      %v1909 = vadd.f32 %v1526, %v1833
      %v1910 = vadd.f32 %v1527, %v1836
      %v1911 = vadd.f32 %v1528, %v1841
      %v1912 = vadd.f32 %v1529, %v1844
      %v1913 = vadd.f32 %v1530, %v1849
      %v1914 = vadd.f32 %v1531, %v1852
      %v1915 = vadd.f32 %v1532, %v1857
      %v1916 = vadd.f32 %v1533, %v1860
      %v1917 = vadd.f32 %v1534, %v1865
      %v1918 = vadd.f32 %v1535, %v1868
      %v1919 = vadd.f32 %v1536, %v1873
      %v1920 = vadd.f32 %v1537, %v1876
      %v1921 = vadd.f32 %v1538, %v1881
      %v1922 = vadd.f32 %v1539, %v1884
      %s1923 = scalar_lea.vmem %s1, 160
      %v1924 = vld [vmem:[%s1923] sm:$0xf]
      %v1925 = vld [vmem:[%s1923 + $0x4] sm:$0xf]
      %v1926 = vld [vmem:[%s1923 + $0x8] sm:$0xf]
      %v1927 = vld [vmem:[%s1923 + $0xc] sm:$0xf]
      %v1928 = vld [vmem:[%s1923 + $0x10] sm:$0xf]
      %v1929 = vld [vmem:[%s1923 + $0x14] sm:$0xf]
      %v1930 = vld [vmem:[%s1923 + $0x18] sm:$0xf]
      %v1931 = vld [vmem:[%s1923 + $0x1c] sm:$0xf]
      %vm1932 = vcmask 1045504
      %v1933 = vrot.slane %v252, 2
      %v1934 = vrot.slane %v253, 2
      %v1935 = vsel %vm1932, %v1933, %v1934
      %v1936 = vrot.slane %v254, 2
      %v1937 = vsel %vm1932, %v1934, %v1936
      %v1938 = vrot.slane %v255, 2
      %v1939 = vsel %vm1932, %v1936, %v1938
      %v1940 = vrot.slane %v256, 2
      %v1941 = vsel %vm1932, %v1938, %v1940
      %v1942 = vrot.slane %v257, 2
      %v1943 = vsel %vm1932, %v1940, %v1942
      %v1944 = vrot.slane %v258, 2
      %v1945 = vsel %vm1932, %v1942, %v1944
      %v1946 = vrot.slane %v259, 2
      %v1947 = vsel %vm1932, %v1944, %v1946
      %v1948 = vrot.slane %v260, 2
      %v1949 = vsel %vm1932, %v1946, %v1948
      %v1950 = vrot.slane %v261, 2
      %v1951 = vsel %vm1932, %v1948, %v1950
      %v1952 = vrot.slane %v262, 2
      %v1953 = vsel %vm1932, %v1950, %v1952
      %v1954 = vrot.slane %v263, 2
      %v1955 = vsel %vm1932, %v1952, %v1954
      %v1956 = vrot.slane %v264, 2
      %v1957 = vsel %vm1932, %v1954, %v1956
      %v1958 = vrot.slane %v265, 2
      %v1959 = vsel %vm1932, %v1956, %v1958
      %v1960 = vrot.slane %v266, 2
      %v1961 = vsel %vm1932, %v1958, %v1960
      %v1962 = vrot.slane %v267, 2
      %v1963 = vsel %vm1932, %v1960, %v1962
      %v1964 = vrot.slane %v268, 2
      %v1965 = vsel %vm1932, %v1962, %v1964
      %v1966 = vrot.slane %v269, 2
      %v1967 = vsel %vm1932, %v1964, %v1966
      %v1968 = vrot.slane %v270, 2
      %v1969 = vsel %vm1932, %v1966, %v1968
      %v1978 = vunpack.c.l.b16 %v1924
      %v1979 = vunpack.c.l.b16 %v1925
      %v1980 = vunpack.c.l.b16 %v1926
      %v1981 = vunpack.c.l.b16 %v1927
      %v1982 = vunpack.c.l.b16 %v1928
      %v1983 = vunpack.c.l.b16 %v1929
      %v1984 = vunpack.c.l.b16 %v1930
      %v1985 = vunpack.c.l.b16 %v1931
      %v1986 = vpack.c.b16 %v1979, %v1978
      %v1987 = vpack.c.b16 %v1981, %v1980
      %v1988 = vpack.c.b16 %v1983, %v1982
      %v1989 = vpack.c.b16 %v1985, %v1984
      %v1995 = vsel %vm462, %v1935, 0
      %v1998 = vsel %vm462, %v1937, 0
      %v2001 = vsel %vm462, %v1939, 0
      %v2004 = vsel %vm462, %v1941, 0
      %v2007 = vsel %vm462, %v1943, 0
      %v2010 = vsel %vm462, %v1945, 0
      %v2013 = vsel %vm462, %v1947, 0
      %v2016 = vsel %vm462, %v1949, 0
      %v2019 = vsel %vm462, %v1951, 0
      %v2022 = vsel %vm462, %v1953, 0
      %v2025 = vsel %vm462, %v1955, 0
      %v2028 = vsel %vm462, %v1957, 0
      %v2031 = vsel %vm462, %v1959, 0
      %v2034 = vsel %vm462, %v1961, 0
      %v2037 = vsel %vm462, %v1963, 0
      %v2040 = vsel %vm462, %v1965, 0
      %v2043 = vsel %vm462, %v1967, 0
      %v2046 = vsel %vm462, %v1969, 0
      %2048 = vmatprep.subr.bf16.mxu0 0
      %2049 = vmatpush1.bf16.msra.mxu0 %v1986
      %2050 = vmatprep.subr.bf16.mxu0 0
      %2051 = vmatpush1.bf16.msra.mxu0 %v1987
      %2052 = vmatprep.subr.bf16.mxu0 0
      %2053 = vmatpush1.bf16.msra.mxu0 %v1988
      %2054 = vmatprep.subr.bf16.mxu0 0
      %2055 = vmatpush1.bf16.msra.mxu0 %v1989
      %2056 = vmatprep.subr.bf16.mxu0 0
      %2057 = vmatpush1.bf16.msra.mxu0 0
      %2058 = vmatprep.subr.bf16.mxu0 0
      %2059 = vmatpush1.bf16.msra.mxu0 0
      %2060 = vmatprep.subr.bf16.mxu0 0
      %2061 = vmatpush1.bf16.msra.mxu0 0
      %2062 = vmatprep.subr.bf16.mxu0 0
      %2063 = vmatpush1.bf16.msra.mxu0 0
      %2064 = vmatprep.subr.bf16.mxu0 0
      %2065 = vmatpush1.bf16.msra.mxu0 0
      %2066 = vmatprep.subr.bf16.mxu0 0
      %2067 = vmatpush1.bf16.msra.mxu0 0
      %2068 = vmatprep.subr.bf16.mxu0 0
      %2069 = vmatpush1.bf16.msra.mxu0 0
      %2070 = vmatprep.subr.bf16.mxu0 0
      %2071 = vmatpush1.bf16.msra.mxu0 0
      %2072 = vmatprep.subr.bf16.mxu0 0
      %2073 = vmatpush1.bf16.msra.mxu0 0
      %2074 = vmatprep.subr.bf16.mxu0 0
      %2075 = vmatpush1.bf16.msra.mxu0 0
      %2076 = vmatprep.subr.bf16.mxu0 0
      %2077 = vmatpush1.bf16.msra.mxu0 0
      %2078 = vmatprep.subr.bf16.mxu0 0
      %2079 = vmatpush1.bf16.msra.mxu0 0
      %2080 = vmatprep.mubr.bf16.mxu0 0
      %2081 = vmatmul.mubr.bf16.gmra.mrb[0].mxu0 %v1995
      %v2082 = vpop.f32.mrb[0].mxu0
      %v2083 = vadd.f32 0.0, %v2082
      %v2084 = vpop.f32.mrb[0].mxu0
      %v2085 = vpop.f32.mrb[0].mxu0
      %v2086 = vadd.f32 0.0, %v2085
      %v2087 = vpop.f32.mrb[0].mxu0
      %2088 = vmatprep.mubr.bf16.mxu0 0
      %2089 = vmatmul.mubr.bf16.gmra.mrb[0].mxu0 %v1998
      %v2090 = vpop.f32.mrb[0].mxu0
      %v2091 = vadd.f32 0.0, %v2090
      %v2092 = vpop.f32.mrb[0].mxu0
      %v2093 = vpop.f32.mrb[0].mxu0
      %v2094 = vadd.f32 0.0, %v2093
      %v2095 = vpop.f32.mrb[0].mxu0
      %2096 = vmatprep.mubr.bf16.mxu0 0
      %2097 = vmatmul.mubr.bf16.gmra.mrb[0].mxu0 %v2001
      %v2098 = vpop.f32.mrb[0].mxu0
      %v2099 = vadd.f32 0.0, %v2098
      %v2100 = vpop.f32.mrb[0].mxu0
      %v2101 = vpop.f32.mrb[0].mxu0
      %v2102 = vadd.f32 0.0, %v2101
      %v2103 = vpop.f32.mrb[0].mxu0
      %2104 = vmatprep.mubr.bf16.mxu0 0
      %2105 = vmatmul.mubr.bf16.gmra.mrb[0].mxu0 %v2004
      %v2106 = vpop.f32.mrb[0].mxu0
      %v2107 = vadd.f32 0.0, %v2106
      %v2108 = vpop.f32.mrb[0].mxu0
      %v2109 = vpop.f32.mrb[0].mxu0
      %v2110 = vadd.f32 0.0, %v2109
      %v2111 = vpop.f32.mrb[0].mxu0
      %2112 = vmatprep.mubr.bf16.mxu0 0
      %2113 = vmatmul.mubr.bf16.gmra.mrb[0].mxu0 %v2007
      %v2114 = vpop.f32.mrb[0].mxu0
      %v2115 = vadd.f32 0.0, %v2114
      %v2116 = vpop.f32.mrb[0].mxu0
      %v2117 = vpop.f32.mrb[0].mxu0
      %v2118 = vadd.f32 0.0, %v2117
      %v2119 = vpop.f32.mrb[0].mxu0
      %2120 = vmatprep.mubr.bf16.mxu0 0
      %2121 = vmatmul.mubr.bf16.gmra.mrb[0].mxu0 %v2010
      %v2122 = vpop.f32.mrb[0].mxu0
      %v2123 = vadd.f32 0.0, %v2122
      %v2124 = vpop.f32.mrb[0].mxu0
      %v2125 = vpop.f32.mrb[0].mxu0
      %v2126 = vadd.f32 0.0, %v2125
      %v2127 = vpop.f32.mrb[0].mxu0
      %2128 = vmatprep.mubr.bf16.mxu0 0
      %2129 = vmatmul.mubr.bf16.gmra.mrb[0].mxu0 %v2013
      %v2130 = vpop.f32.mrb[0].mxu0
      %v2131 = vadd.f32 0.0, %v2130
      %v2132 = vpop.f32.mrb[0].mxu0
      %v2133 = vpop.f32.mrb[0].mxu0
      %v2134 = vadd.f32 0.0, %v2133
      %v2135 = vpop.f32.mrb[0].mxu0
      %2136 = vmatprep.mubr.bf16.mxu0 0
      %2137 = vmatmul.mubr.bf16.gmra.mrb[0].mxu0 %v2016
      %v2138 = vpop.f32.mrb[0].mxu0
      %v2139 = vadd.f32 0.0, %v2138
      %v2140 = vpop.f32.mrb[0].mxu0
      %v2141 = vpop.f32.mrb[0].mxu0
      %v2142 = vadd.f32 0.0, %v2141
      %v2143 = vpop.f32.mrb[0].mxu0
      %2144 = vmatprep.mubr.bf16.mxu0 0
      %2145 = vmatmul.mubr.bf16.gmra.mrb[0].mxu0 %v2019
      %v2146 = vpop.f32.mrb[0].mxu0
      %v2147 = vadd.f32 0.0, %v2146
      %v2148 = vpop.f32.mrb[0].mxu0
      %v2149 = vpop.f32.mrb[0].mxu0
      %v2150 = vadd.f32 0.0, %v2149
      %v2151 = vpop.f32.mrb[0].mxu0
      %2152 = vmatprep.mubr.bf16.mxu0 0
      %2153 = vmatmul.mubr.bf16.gmra.mrb[0].mxu0 %v2022
      %v2154 = vpop.f32.mrb[0].mxu0
      %v2155 = vadd.f32 0.0, %v2154
      %v2156 = vpop.f32.mrb[0].mxu0
      %v2157 = vpop.f32.mrb[0].mxu0
      %v2158 = vadd.f32 0.0, %v2157
      %v2159 = vpop.f32.mrb[0].mxu0
      %2160 = vmatprep.mubr.bf16.mxu0 0
      %2161 = vmatmul.mubr.bf16.gmra.mrb[0].mxu0 %v2025
      %v2162 = vpop.f32.mrb[0].mxu0
      %v2163 = vadd.f32 0.0, %v2162
      %v2164 = vpop.f32.mrb[0].mxu0
      %v2165 = vpop.f32.mrb[0].mxu0
      %v2166 = vadd.f32 0.0, %v2165
      %v2167 = vpop.f32.mrb[0].mxu0
      %2168 = vmatprep.mubr.bf16.mxu0 0
      %2169 = vmatmul.mubr.bf16.gmra.mrb[0].mxu0 %v2028
      %v2170 = vpop.f32.mrb[0].mxu0
      %v2171 = vadd.f32 0.0, %v2170
      %v2172 = vpop.f32.mrb[0].mxu0
      %v2173 = vpop.f32.mrb[0].mxu0
      %v2174 = vadd.f32 0.0, %v2173
      %v2175 = vpop.f32.mrb[0].mxu0
      %2176 = vmatprep.mubr.bf16.mxu0 0
      %2177 = vmatmul.mubr.bf16.gmra.mrb[0].mxu0 %v2031
      %v2178 = vpop.f32.mrb[0].mxu0
      %v2179 = vadd.f32 0.0, %v2178
      %v2180 = vpop.f32.mrb[0].mxu0
      %v2181 = vpop.f32.mrb[0].mxu0
      %v2182 = vadd.f32 0.0, %v2181
      %v2183 = vpop.f32.mrb[0].mxu0
      %2184 = vmatprep.mubr.bf16.mxu0 0
      %2185 = vmatmul.mubr.bf16.gmra.mrb[0].mxu0 %v2034
      %v2186 = vpop.f32.mrb[0].mxu0
      %v2187 = vadd.f32 0.0, %v2186
      %v2188 = vpop.f32.mrb[0].mxu0
      %v2189 = vpop.f32.mrb[0].mxu0
      %v2190 = vadd.f32 0.0, %v2189
      %v2191 = vpop.f32.mrb[0].mxu0
      %2192 = vmatprep.mubr.bf16.mxu0 0
      %2193 = vmatmul.mubr.bf16.gmra.mrb[0].mxu0 %v2037
      %v2194 = vpop.f32.mrb[0].mxu0
      %v2195 = vadd.f32 0.0, %v2194
      %v2196 = vpop.f32.mrb[0].mxu0
      %v2197 = vpop.f32.mrb[0].mxu0
      %v2198 = vadd.f32 0.0, %v2197
      %v2199 = vpop.f32.mrb[0].mxu0
      %2200 = vmatprep.mubr.bf16.mxu0 0
      %2201 = vmatmul.mubr.bf16.gmra.mrb[0].mxu0 %v2040
      %v2202 = vpop.f32.mrb[0].mxu0
      %v2203 = vadd.f32 0.0, %v2202
      %v2204 = vpop.f32.mrb[0].mxu0
      %v2205 = vpop.f32.mrb[0].mxu0
      %v2206 = vadd.f32 0.0, %v2205
      %v2207 = vpop.f32.mrb[0].mxu0
      %2208 = vmatprep.mubr.bf16.mxu0 0
      %2209 = vmatmul.mubr.bf16.gmra.mrb[0].mxu0 %v2043
      %v2210 = vpop.f32.mrb[0].mxu0
      %v2211 = vadd.f32 0.0, %v2210
      %v2212 = vpop.f32.mrb[0].mxu0
      %v2213 = vpop.f32.mrb[0].mxu0
      %v2214 = vadd.f32 0.0, %v2213
      %v2215 = vpop.f32.mrb[0].mxu0
      %2216 = vmatprep.mubr.bf16.mxu0 0
      %2217 = vmatmul.mubr.bf16.gmra.mrb[0].mxu0 %v2046
      %v2218 = vpop.f32.mrb[0].mxu0
      %v2219 = vadd.f32 0.0, %v2218
      %v2220 = vpop.f32.mrb[0].mxu0
      %v2221 = vpop.f32.mrb[0].mxu0
      %v2222 = vadd.f32 0.0, %v2221
      %v2223 = vpop.f32.mrb[0].mxu0
      %2224 = vdwg.mxu0
      %v2225 = vadd.f32 %v1887, %v2083
      %v2226 = vadd.f32 %v1888, %v2086
      %v2227 = vadd.f32 %v1889, %v2091
      %v2228 = vadd.f32 %v1890, %v2094
      %v2229 = vadd.f32 %v1891, %v2099
      %v2230 = vadd.f32 %v1892, %v2102
      %v2231 = vadd.f32 %v1893, %v2107
      %v2232 = vadd.f32 %v1894, %v2110
      %v2233 = vadd.f32 %v1895, %v2115
      %v2234 = vadd.f32 %v1896, %v2118
      %v2235 = vadd.f32 %v1897, %v2123
      %v2236 = vadd.f32 %v1898, %v2126
      %v2237 = vadd.f32 %v1899, %v2131
      %v2238 = vadd.f32 %v1900, %v2134
      %v2239 = vadd.f32 %v1901, %v2139
      %v2240 = vadd.f32 %v1902, %v2142
      %v2241 = vadd.f32 %v1903, %v2147
      %v2242 = vadd.f32 %v1904, %v2150
      %v2243 = vadd.f32 %v1905, %v2155
      %v2244 = vadd.f32 %v1906, %v2158
      %v2245 = vadd.f32 %v1907, %v2163
      %v2246 = vadd.f32 %v1908, %v2166
      %v2247 = vadd.f32 %v1909, %v2171
      %v2248 = vadd.f32 %v1910, %v2174
      %v2249 = vadd.f32 %v1911, %v2179
      %v2250 = vadd.f32 %v1912, %v2182
      %v2251 = vadd.f32 %v1913, %v2187
      %v2252 = vadd.f32 %v1914, %v2190
      %v2253 = vadd.f32 %v1915, %v2195
      %v2254 = vadd.f32 %v1916, %v2198
      %v2255 = vadd.f32 %v1917, %v2203
      %v2256 = vadd.f32 %v1918, %v2206
      %v2257 = vadd.f32 %v1919, %v2211
      %v2258 = vadd.f32 %v1920, %v2214
      %v2259 = vadd.f32 %v1921, %v2219
      %v2260 = vadd.f32 %v1922, %v2222
      %s2261 = scalar_lea.vmem %s1, 192
      %v2262 = vld [vmem:[%s2261] sm:$0xf]
      %v2263 = vld [vmem:[%s2261 + $0x4] sm:$0xf]
      %v2264 = vld [vmem:[%s2261 + $0x8] sm:$0xf]
      %v2265 = vld [vmem:[%s2261 + $0xc] sm:$0xf]
      %v2266 = vld [vmem:[%s2261 + $0x10] sm:$0xf]
      %v2267 = vld [vmem:[%s2261 + $0x14] sm:$0xf]
      %v2268 = vld [vmem:[%s2261 + $0x18] sm:$0xf]
      %v2269 = vld [vmem:[%s2261 + $0x1c] sm:$0xf]
      %v2271 = vrot.slane %v271, 2
      %v2272 = vsel %vm1932, %v1968, %v2271
      %v2281 = vunpack.c.l.b16 %v2262
      %v2282 = vunpack.c.l.b16 %v2263
      %v2283 = vunpack.c.l.b16 %v2264
      %v2284 = vunpack.c.l.b16 %v2265
      %v2285 = vunpack.c.l.b16 %v2266
      %v2286 = vunpack.c.l.b16 %v2267
      %v2287 = vunpack.c.l.b16 %v2268
      %v2288 = vunpack.c.l.b16 %v2269
      %v2289 = vpack.c.b16 %v2282, %v2281
      %v2290 = vpack.c.b16 %v2284, %v2283
      %v2291 = vpack.c.b16 %v2286, %v2285
      %v2292 = vpack.c.b16 %v2288, %v2287
      %v2298 = vsel %vm462, %v2272, 0
      %2300 = vmatprep.subr.bf16.mxu0 0
      %2301 = vmatpush1.bf16.msra.mxu0 %v2289
      %2302 = vmatprep.subr.bf16.mxu0 0
      %2303 = vmatpush1.bf16.msra.mxu0 %v2290
      %2304 = vmatprep.subr.bf16.mxu0 0
      %2305 = vmatpush1.bf16.msra.mxu0 %v2291
      %2306 = vmatprep.subr.bf16.mxu0 0
      %2307 = vmatpush1.bf16.msra.mxu0 %v2292
      %2308 = vmatprep.subr.bf16.mxu0 0
      %2309 = vmatpush1.bf16.msra.mxu0 0
      %2310 = vmatprep.subr.bf16.mxu0 0
      %2311 = vmatpush1.bf16.msra.mxu0 0
      %2312 = vmatprep.subr.bf16.mxu0 0
      %2313 = vmatpush1.bf16.msra.mxu0 0
      %2314 = vmatprep.subr.bf16.mxu0 0
      %2315 = vmatpush1.bf16.msra.mxu0 0
      %2316 = vmatprep.subr.bf16.mxu0 0
      %2317 = vmatpush1.bf16.msra.mxu0 0
      %2318 = vmatprep.subr.bf16.mxu0 0
      %2319 = vmatpush1.bf16.msra.mxu0 0
      %2320 = vmatprep.subr.bf16.mxu0 0
      %2321 = vmatpush1.bf16.msra.mxu0 0
      %2322 = vmatprep.subr.bf16.mxu0 0
      %2323 = vmatpush1.bf16.msra.mxu0 0
      %2324 = vmatprep.subr.bf16.mxu0 0
      %2325 = vmatpush1.bf16.msra.mxu0 0
      %2326 = vmatprep.subr.bf16.mxu0 0
      %2327 = vmatpush1.bf16.msra.mxu0 0
      %2328 = vmatprep.subr.bf16.mxu0 0
      %2329 = vmatpush1.bf16.msra.mxu0 0
      %2330 = vmatprep.subr.bf16.mxu0 0
      %2331 = vmatpush1.bf16.msra.mxu0 0
      %2332 = vmatprep.mubr.bf16.mxu0 0
      %2333 = vmatmul.mubr.bf16.gmra.mrb[0].mxu0 %v1998
      %v2334 = vpop.f32.mrb[0].mxu0
      %v2335 = vadd.f32 0.0, %v2334
      %v2336 = vpop.f32.mrb[0].mxu0
      %v2337 = vpop.f32.mrb[0].mxu0
      %v2338 = vadd.f32 0.0, %v2337
      %v2339 = vpop.f32.mrb[0].mxu0
      %2340 = vmatprep.mubr.bf16.mxu0 0
      %2341 = vmatmul.mubr.bf16.gmra.mrb[0].mxu0 %v2001
      %v2342 = vpop.f32.mrb[0].mxu0
      %v2343 = vadd.f32 0.0, %v2342
      %v2344 = vpop.f32.mrb[0].mxu0
      %v2345 = vpop.f32.mrb[0].mxu0
      %v2346 = vadd.f32 0.0, %v2345
      %v2347 = vpop.f32.mrb[0].mxu0
      %2348 = vmatprep.mubr.bf16.mxu0 0
      %2349 = vmatmul.mubr.bf16.gmra.mrb[0].mxu0 %v2004
      %v2350 = vpop.f32.mrb[0].mxu0
      %v2351 = vadd.f32 0.0, %v2350
      %v2352 = vpop.f32.mrb[0].mxu0
      %v2353 = vpop.f32.mrb[0].mxu0
      %v2354 = vadd.f32 0.0, %v2353
      %v2355 = vpop.f32.mrb[0].mxu0
      %2356 = vmatprep.mubr.bf16.mxu0 0
      %2357 = vmatmul.mubr.bf16.gmra.mrb[0].mxu0 %v2007
      %v2358 = vpop.f32.mrb[0].mxu0
      %v2359 = vadd.f32 0.0, %v2358
      %v2360 = vpop.f32.mrb[0].mxu0
      %v2361 = vpop.f32.mrb[0].mxu0
      %v2362 = vadd.f32 0.0, %v2361
      %v2363 = vpop.f32.mrb[0].mxu0
      %2364 = vmatprep.mubr.bf16.mxu0 0
      %2365 = vmatmul.mubr.bf16.gmra.mrb[0].mxu0 %v2010
      %v2366 = vpop.f32.mrb[0].mxu0
      %v2367 = vadd.f32 0.0, %v2366
      %v2368 = vpop.f32.mrb[0].mxu0
      %v2369 = vpop.f32.mrb[0].mxu0
      %v2370 = vadd.f32 0.0, %v2369
      %v2371 = vpop.f32.mrb[0].mxu0
      %2372 = vmatprep.mubr.bf16.mxu0 0
      %2373 = vmatmul.mubr.bf16.gmra.mrb[0].mxu0 %v2013
      %v2374 = vpop.f32.mrb[0].mxu0
      %v2375 = vadd.f32 0.0, %v2374
      %v2376 = vpop.f32.mrb[0].mxu0
      %v2377 = vpop.f32.mrb[0].mxu0
      %v2378 = vadd.f32 0.0, %v2377
      %v2379 = vpop.f32.mrb[0].mxu0
      %2380 = vmatprep.mubr.bf16.mxu0 0
      %2381 = vmatmul.mubr.bf16.gmra.mrb[0].mxu0 %v2016
      %v2382 = vpop.f32.mrb[0].mxu0
      %v2383 = vadd.f32 0.0, %v2382
      %v2384 = vpop.f32.mrb[0].mxu0
      %v2385 = vpop.f32.mrb[0].mxu0
      %v2386 = vadd.f32 0.0, %v2385
      %v2387 = vpop.f32.mrb[0].mxu0
      %2388 = vmatprep.mubr.bf16.mxu0 0
      %2389 = vmatmul.mubr.bf16.gmra.mrb[0].mxu0 %v2019
      %v2390 = vpop.f32.mrb[0].mxu0
      %v2391 = vadd.f32 0.0, %v2390
      %v2392 = vpop.f32.mrb[0].mxu0
      %v2393 = vpop.f32.mrb[0].mxu0
      %v2394 = vadd.f32 0.0, %v2393
      %v2395 = vpop.f32.mrb[0].mxu0
      %2396 = vmatprep.mubr.bf16.mxu0 0
      %2397 = vmatmul.mubr.bf16.gmra.mrb[0].mxu0 %v2022
      %v2398 = vpop.f32.mrb[0].mxu0
      %v2399 = vadd.f32 0.0, %v2398
      %v2400 = vpop.f32.mrb[0].mxu0
      %v2401 = vpop.f32.mrb[0].mxu0
      %v2402 = vadd.f32 0.0, %v2401
      %v2403 = vpop.f32.mrb[0].mxu0
      %2404 = vmatprep.mubr.bf16.mxu0 0
      %2405 = vmatmul.mubr.bf16.gmra.mrb[0].mxu0 %v2025
      %v2406 = vpop.f32.mrb[0].mxu0
      %v2407 = vadd.f32 0.0, %v2406
      %v2408 = vpop.f32.mrb[0].mxu0
      %v2409 = vpop.f32.mrb[0].mxu0
      %v2410 = vadd.f32 0.0, %v2409
      %v2411 = vpop.f32.mrb[0].mxu0
      %2412 = vmatprep.mubr.bf16.mxu0 0
      %2413 = vmatmul.mubr.bf16.gmra.mrb[0].mxu0 %v2028
      %v2414 = vpop.f32.mrb[0].mxu0
      %v2415 = vadd.f32 0.0, %v2414
      %v2416 = vpop.f32.mrb[0].mxu0
      %v2417 = vpop.f32.mrb[0].mxu0
      %v2418 = vadd.f32 0.0, %v2417
      %v2419 = vpop.f32.mrb[0].mxu0
      %2420 = vmatprep.mubr.bf16.mxu0 0
      %2421 = vmatmul.mubr.bf16.gmra.mrb[0].mxu0 %v2031
      %v2422 = vpop.f32.mrb[0].mxu0
      %v2423 = vadd.f32 0.0, %v2422
      %v2424 = vpop.f32.mrb[0].mxu0
      %v2425 = vpop.f32.mrb[0].mxu0
      %v2426 = vadd.f32 0.0, %v2425
      %v2427 = vpop.f32.mrb[0].mxu0
      %2428 = vmatprep.mubr.bf16.mxu0 0
      %2429 = vmatmul.mubr.bf16.gmra.mrb[0].mxu0 %v2034
      %v2430 = vpop.f32.mrb[0].mxu0
      %v2431 = vadd.f32 0.0, %v2430
      %v2432 = vpop.f32.mrb[0].mxu0
      %v2433 = vpop.f32.mrb[0].mxu0
      %v2434 = vadd.f32 0.0, %v2433
      %v2435 = vpop.f32.mrb[0].mxu0
      %2436 = vmatprep.mubr.bf16.mxu0 0
      %2437 = vmatmul.mubr.bf16.gmra.mrb[0].mxu0 %v2037
      %v2438 = vpop.f32.mrb[0].mxu0
      %v2439 = vadd.f32 0.0, %v2438
      %v2440 = vpop.f32.mrb[0].mxu0
      %v2441 = vpop.f32.mrb[0].mxu0
      %v2442 = vadd.f32 0.0, %v2441
      %v2443 = vpop.f32.mrb[0].mxu0
      %2444 = vmatprep.mubr.bf16.mxu0 0
      %2445 = vmatmul.mubr.bf16.gmra.mrb[0].mxu0 %v2040
      %v2446 = vpop.f32.mrb[0].mxu0
      %v2447 = vadd.f32 0.0, %v2446
      %v2448 = vpop.f32.mrb[0].mxu0
      %v2449 = vpop.f32.mrb[0].mxu0
      %v2450 = vadd.f32 0.0, %v2449
      %v2451 = vpop.f32.mrb[0].mxu0
      %2452 = vmatprep.mubr.bf16.mxu0 0
      %2453 = vmatmul.mubr.bf16.gmra.mrb[0].mxu0 %v2043
      %v2454 = vpop.f32.mrb[0].mxu0
      %v2455 = vadd.f32 0.0, %v2454
      %v2456 = vpop.f32.mrb[0].mxu0
      %v2457 = vpop.f32.mrb[0].mxu0
      %v2458 = vadd.f32 0.0, %v2457
      %v2459 = vpop.f32.mrb[0].mxu0
      %2460 = vmatprep.mubr.bf16.mxu0 0
      %2461 = vmatmul.mubr.bf16.gmra.mrb[0].mxu0 %v2046
      %v2462 = vpop.f32.mrb[0].mxu0
      %v2463 = vadd.f32 0.0, %v2462
      %v2464 = vpop.f32.mrb[0].mxu0
      %v2465 = vpop.f32.mrb[0].mxu0
      %v2466 = vadd.f32 0.0, %v2465
      %v2467 = vpop.f32.mrb[0].mxu0
      %2468 = vmatprep.mubr.bf16.mxu0 0
      %2469 = vmatmul.mubr.bf16.gmra.mrb[0].mxu0 %v2298
      %v2470 = vpop.f32.mrb[0].mxu0
      %v2471 = vadd.f32 0.0, %v2470
      %v2472 = vpop.f32.mrb[0].mxu0
      %v2473 = vpop.f32.mrb[0].mxu0
      %v2474 = vadd.f32 0.0, %v2473
      %v2475 = vpop.f32.mrb[0].mxu0
      %2476 = vdwg.mxu0
      %v2477 = vadd.f32 %v2225, %v2335
      %v2478 = vadd.f32 %v2226, %v2338
      %v2479 = vadd.f32 %v2227, %v2343
      %v2480 = vadd.f32 %v2228, %v2346
      %v2481 = vadd.f32 %v2229, %v2351
      %v2482 = vadd.f32 %v2230, %v2354
      %v2483 = vadd.f32 %v2231, %v2359
      %v2484 = vadd.f32 %v2232, %v2362
      %v2485 = vadd.f32 %v2233, %v2367
      %v2486 = vadd.f32 %v2234, %v2370
      %v2487 = vadd.f32 %v2235, %v2375
      %v2488 = vadd.f32 %v2236, %v2378
      %v2489 = vadd.f32 %v2237, %v2383
      %v2490 = vadd.f32 %v2238, %v2386
      %v2491 = vadd.f32 %v2239, %v2391
      %v2492 = vadd.f32 %v2240, %v2394
      %v2493 = vadd.f32 %v2241, %v2399
      %v2494 = vadd.f32 %v2242, %v2402
      %v2495 = vadd.f32 %v2243, %v2407
      %v2496 = vadd.f32 %v2244, %v2410
      %v2497 = vadd.f32 %v2245, %v2415
      %v2498 = vadd.f32 %v2246, %v2418
      %v2499 = vadd.f32 %v2247, %v2423
      %v2500 = vadd.f32 %v2248, %v2426
      %v2501 = vadd.f32 %v2249, %v2431
      %v2502 = vadd.f32 %v2250, %v2434
      %v2503 = vadd.f32 %v2251, %v2439
      %v2504 = vadd.f32 %v2252, %v2442
      %v2505 = vadd.f32 %v2253, %v2447
      %v2506 = vadd.f32 %v2254, %v2450
      %v2507 = vadd.f32 %v2255, %v2455
      %v2508 = vadd.f32 %v2256, %v2458
      %v2509 = vadd.f32 %v2257, %v2463
      %v2510 = vadd.f32 %v2258, %v2466
      %v2511 = vadd.f32 %v2259, %v2471
      %v2512 = vadd.f32 %v2260, %v2474
      %s2513 = scalar_lea.vmem %s1, 224
      %v2514 = vld [vmem:[%s2513] sm:$0xf]
      %v2515 = vld [vmem:[%s2513 + $0x4] sm:$0xf]
      %v2516 = vld [vmem:[%s2513 + $0x8] sm:$0xf]
      %v2517 = vld [vmem:[%s2513 + $0xc] sm:$0xf]
      %v2518 = vld [vmem:[%s2513 + $0x10] sm:$0xf]
      %v2519 = vld [vmem:[%s2513 + $0x14] sm:$0xf]
      %v2520 = vld [vmem:[%s2513 + $0x18] sm:$0xf]
      %v2521 = vld [vmem:[%s2513 + $0x1c] sm:$0xf]
      %vm2522 = vsmask.f32 5376
      %v2523 = vrot.slane %v310, 2
      %v2524 = vrot.slane %v306, 3
      %v2525 = vor.u32 %v2523, %v2524
      %v2526 = vrot.slane %v318, 2
      %v2527 = vrot.slane %v314, 3
      %v2528 = vor.u32 %v2526, %v2527
      %v2529 = vsel %vm2522, %v2525, %v2528
      %v2530 = vrot.slane %v326, 2
      %v2531 = vrot.slane %v322, 3
      %v2532 = vor.u32 %v2530, %v2531
      %v2533 = vsel %vm2522, %v2528, %v2532
      %v2534 = vrot.slane %v334, 2
      %v2535 = vrot.slane %v330, 3
      %v2536 = vor.u32 %v2534, %v2535
      %v2537 = vsel %vm2522, %v2532, %v2536
      %v2538 = vrot.slane %v342, 2
      %v2539 = vrot.slane %v338, 3
      %v2540 = vor.u32 %v2538, %v2539
      %v2541 = vsel %vm2522, %v2536, %v2540
      %v2542 = vrot.slane %v350, 2
      %v2543 = vrot.slane %v346, 3
      %v2544 = vor.u32 %v2542, %v2543
      %v2545 = vsel %vm2522, %v2540, %v2544
      %v2546 = vrot.slane %v358, 2
      %v2547 = vrot.slane %v354, 3
      %v2548 = vor.u32 %v2546, %v2547
      %v2549 = vsel %vm2522, %v2544, %v2548
      %v2550 = vrot.slane %v366, 2
      %v2551 = vrot.slane %v362, 3
      %v2552 = vor.u32 %v2550, %v2551
      %v2553 = vsel %vm2522, %v2548, %v2552
      %v2554 = vrot.slane %v374, 2
      %v2555 = vrot.slane %v370, 3
      %v2556 = vor.u32 %v2554, %v2555
      %v2557 = vsel %vm2522, %v2552, %v2556
      %v2558 = vrot.slane %v382, 2
      %v2559 = vrot.slane %v378, 3
      %v2560 = vor.u32 %v2558, %v2559
      %v2561 = vsel %vm2522, %v2556, %v2560
      %v2562 = vrot.slane %v390, 2
      %v2563 = vrot.slane %v386, 3
      %v2564 = vor.u32 %v2562, %v2563
      %v2565 = vsel %vm2522, %v2560, %v2564
      %v2566 = vrot.slane %v398, 2
      %v2567 = vrot.slane %v394, 3
      %v2568 = vor.u32 %v2566, %v2567
      %v2569 = vsel %vm2522, %v2564, %v2568
      %v2570 = vrot.slane %v406, 2
      %v2571 = vrot.slane %v402, 3
      %v2572 = vor.u32 %v2570, %v2571
      %v2573 = vsel %vm2522, %v2568, %v2572
      %v2574 = vrot.slane %v414, 2
      %v2575 = vrot.slane %v410, 3
      %v2576 = vor.u32 %v2574, %v2575
      %v2577 = vsel %vm2522, %v2572, %v2576
      %v2578 = vrot.slane %v422, 2
      %v2579 = vrot.slane %v418, 3
      %v2580 = vor.u32 %v2578, %v2579
      %v2581 = vsel %vm2522, %v2576, %v2580
      %v2582 = vrot.slane %v430, 2
      %v2583 = vrot.slane %v426, 3
      %v2584 = vor.u32 %v2582, %v2583
      %v2585 = vsel %vm2522, %v2580, %v2584
      %v2586 = vrot.slane %v1617, 2
      %v2587 = vrot.slane %v434, 3
      %v2588 = vor.u32 %v2586, %v2587
      %v2589 = vsel %vm2522, %v2584, %v2588
      %v2590 = vrot.slane %v1624, 2
      %v2591 = vrot.slane %v1627, 3
      %v2592 = vor.u32 %v2590, %v2591
      %v2593 = vsel %vm2522, %v2588, %v2592
      %v2595 = vshrl.u32 %v271, 16
      %v2597 = vrot.slane %v2595, 2
      %v2598 = vshll.u32 %v271, 16
      %v2600 = vrot.slane %v2598, 3
      %v2601 = vor.u32 %v2597, %v2600
      %v2602 = vsel %vm2522, %v2592, %v2601
      %v2611 = vunpack.c.l.b16 %v2514
      %v2612 = vunpack.c.l.b16 %v2515
      %v2613 = vunpack.c.l.b16 %v2516
      %v2614 = vunpack.c.l.b16 %v2517
      %v2615 = vunpack.c.l.b16 %v2518
      %v2616 = vunpack.c.l.b16 %v2519
      %v2617 = vunpack.c.l.b16 %v2520
      %v2618 = vunpack.c.l.b16 %v2521
      %v2619 = vpack.c.b16 %v2612, %v2611
      %v2620 = vpack.c.b16 %v2614, %v2613
      %v2621 = vpack.c.b16 %v2616, %v2615
      %v2622 = vpack.c.b16 %v2618, %v2617
      %v2628 = vsel %vm462, %v2529, 0
      %v2631 = vsel %vm462, %v2533, 0
      %v2634 = vsel %vm462, %v2537, 0
      %v2637 = vsel %vm462, %v2541, 0
      %v2640 = vsel %vm462, %v2545, 0
      %v2643 = vsel %vm462, %v2549, 0
      %v2646 = vsel %vm462, %v2553, 0
      %v2649 = vsel %vm462, %v2557, 0
      %v2652 = vsel %vm462, %v2561, 0
      %v2655 = vsel %vm462, %v2565, 0
      %v2658 = vsel %vm462, %v2569, 0
      %v2661 = vsel %vm462, %v2573, 0
      %v2664 = vsel %vm462, %v2577, 0
      %v2667 = vsel %vm462, %v2581, 0
      %v2670 = vsel %vm462, %v2585, 0
      %v2673 = vsel %vm462, %v2589, 0
      %v2676 = vsel %vm462, %v2593, 0
      %v2679 = vsel %vm462, %v2602, 0
      %2681 = vmatprep.subr.bf16.mxu0 0
      %2682 = vmatpush1.bf16.msra.mxu0 %v2619
      %2683 = vmatprep.subr.bf16.mxu0 0
      %2684 = vmatpush1.bf16.msra.mxu0 %v2620
      %2685 = vmatprep.subr.bf16.mxu0 0
      %2686 = vmatpush1.bf16.msra.mxu0 %v2621
      %2687 = vmatprep.subr.bf16.mxu0 0
      %2688 = vmatpush1.bf16.msra.mxu0 %v2622
      %2689 = vmatprep.subr.bf16.mxu0 0
      %2690 = vmatpush1.bf16.msra.mxu0 0
      %2691 = vmatprep.subr.bf16.mxu0 0
      %2692 = vmatpush1.bf16.msra.mxu0 0
      %2693 = vmatprep.subr.bf16.mxu0 0
      %2694 = vmatpush1.bf16.msra.mxu0 0
      %2695 = vmatprep.subr.bf16.mxu0 0
      %2696 = vmatpush1.bf16.msra.mxu0 0
      %2697 = vmatprep.subr.bf16.mxu0 0
      %2698 = vmatpush1.bf16.msra.mxu0 0
      %2699 = vmatprep.subr.bf16.mxu0 0
      %2700 = vmatpush1.bf16.msra.mxu0 0
      %2701 = vmatprep.subr.bf16.mxu0 0
      %2702 = vmatpush1.bf16.msra.mxu0 0
      %2703 = vmatprep.subr.bf16.mxu0 0
      %2704 = vmatpush1.bf16.msra.mxu0 0
      %2705 = vmatprep.subr.bf16.mxu0 0
      %2706 = vmatpush1.bf16.msra.mxu0 0
      %2707 = vmatprep.subr.bf16.mxu0 0
      %2708 = vmatpush1.bf16.msra.mxu0 0
      %2709 = vmatprep.subr.bf16.mxu0 0
      %2710 = vmatpush1.bf16.msra.mxu0 0
      %2711 = vmatprep.subr.bf16.mxu0 0
      %2712 = vmatpush1.bf16.msra.mxu0 0
      %2713 = vmatprep.mubr.bf16.mxu0 0
      %2714 = vmatmul.mubr.bf16.gmra.mrb[0].mxu0 %v2628
      %v2715 = vpop.f32.mrb[0].mxu0
      %v2716 = vadd.f32 0.0, %v2715
      %v2717 = vpop.f32.mrb[0].mxu0
      %v2718 = vpop.f32.mrb[0].mxu0
      %v2719 = vadd.f32 0.0, %v2718
      %v2720 = vpop.f32.mrb[0].mxu0
      %2721 = vmatprep.mubr.bf16.mxu0 0
      %2722 = vmatmul.mubr.bf16.gmra.mrb[0].mxu0 %v2631
      %v2723 = vpop.f32.mrb[0].mxu0
      %v2724 = vadd.f32 0.0, %v2723
      %v2725 = vpop.f32.mrb[0].mxu0
      %v2726 = vpop.f32.mrb[0].mxu0
      %v2727 = vadd.f32 0.0, %v2726
      %v2728 = vpop.f32.mrb[0].mxu0
      %2729 = vmatprep.mubr.bf16.mxu0 0
      %2730 = vmatmul.mubr.bf16.gmra.mrb[0].mxu0 %v2634
      %v2731 = vpop.f32.mrb[0].mxu0
      %v2732 = vadd.f32 0.0, %v2731
      %v2733 = vpop.f32.mrb[0].mxu0
      %v2734 = vpop.f32.mrb[0].mxu0
      %v2735 = vadd.f32 0.0, %v2734
      %v2736 = vpop.f32.mrb[0].mxu0
      %2737 = vmatprep.mubr.bf16.mxu0 0
      %2738 = vmatmul.mubr.bf16.gmra.mrb[0].mxu0 %v2637
      %v2739 = vpop.f32.mrb[0].mxu0
      %v2740 = vadd.f32 0.0, %v2739
      %v2741 = vpop.f32.mrb[0].mxu0
      %v2742 = vpop.f32.mrb[0].mxu0
      %v2743 = vadd.f32 0.0, %v2742
      %v2744 = vpop.f32.mrb[0].mxu0
      %2745 = vmatprep.mubr.bf16.mxu0 0
      %2746 = vmatmul.mubr.bf16.gmra.mrb[0].mxu0 %v2640
      %v2747 = vpop.f32.mrb[0].mxu0
      %v2748 = vadd.f32 0.0, %v2747
      %v2749 = vpop.f32.mrb[0].mxu0
      %v2750 = vpop.f32.mrb[0].mxu0
      %v2751 = vadd.f32 0.0, %v2750
      %v2752 = vpop.f32.mrb[0].mxu0
      %2753 = vmatprep.mubr.bf16.mxu0 0
      %2754 = vmatmul.mubr.bf16.gmra.mrb[0].mxu0 %v2643
      %v2755 = vpop.f32.mrb[0].mxu0
      %v2756 = vadd.f32 0.0, %v2755
      %v2757 = vpop.f32.mrb[0].mxu0
      %v2758 = vpop.f32.mrb[0].mxu0
      %v2759 = vadd.f32 0.0, %v2758
      %v2760 = vpop.f32.mrb[0].mxu0
      %2761 = vmatprep.mubr.bf16.mxu0 0
      %2762 = vmatmul.mubr.bf16.gmra.mrb[0].mxu0 %v2646
      %v2763 = vpop.f32.mrb[0].mxu0
      %v2764 = vadd.f32 0.0, %v2763
      %v2765 = vpop.f32.mrb[0].mxu0
      %v2766 = vpop.f32.mrb[0].mxu0
      %v2767 = vadd.f32 0.0, %v2766
      %v2768 = vpop.f32.mrb[0].mxu0
      %2769 = vmatprep.mubr.bf16.mxu0 0
      %2770 = vmatmul.mubr.bf16.gmra.mrb[0].mxu0 %v2649
      %v2771 = vpop.f32.mrb[0].mxu0
      %v2772 = vadd.f32 0.0, %v2771
      %v2773 = vpop.f32.mrb[0].mxu0
      %v2774 = vpop.f32.mrb[0].mxu0
      %v2775 = vadd.f32 0.0, %v2774
      %v2776 = vpop.f32.mrb[0].mxu0
      %2777 = vmatprep.mubr.bf16.mxu0 0
      %2778 = vmatmul.mubr.bf16.gmra.mrb[0].mxu0 %v2652
      %v2779 = vpop.f32.mrb[0].mxu0
      %v2780 = vadd.f32 0.0, %v2779
      %v2781 = vpop.f32.mrb[0].mxu0
      %v2782 = vpop.f32.mrb[0].mxu0
      %v2783 = vadd.f32 0.0, %v2782
      %v2784 = vpop.f32.mrb[0].mxu0
      %2785 = vmatprep.mubr.bf16.mxu0 0
      %2786 = vmatmul.mubr.bf16.gmra.mrb[0].mxu0 %v2655
      %v2787 = vpop.f32.mrb[0].mxu0
      %v2788 = vadd.f32 0.0, %v2787
      %v2789 = vpop.f32.mrb[0].mxu0
      %v2790 = vpop.f32.mrb[0].mxu0
      %v2791 = vadd.f32 0.0, %v2790
      %v2792 = vpop.f32.mrb[0].mxu0
      %2793 = vmatprep.mubr.bf16.mxu0 0
      %2794 = vmatmul.mubr.bf16.gmra.mrb[0].mxu0 %v2658
      %v2795 = vpop.f32.mrb[0].mxu0
      %v2796 = vadd.f32 0.0, %v2795
      %v2797 = vpop.f32.mrb[0].mxu0
      %v2798 = vpop.f32.mrb[0].mxu0
      %v2799 = vadd.f32 0.0, %v2798
      %v2800 = vpop.f32.mrb[0].mxu0
      %2801 = vmatprep.mubr.bf16.mxu0 0
      %2802 = vmatmul.mubr.bf16.gmra.mrb[0].mxu0 %v2661
      %v2803 = vpop.f32.mrb[0].mxu0
      %v2804 = vadd.f32 0.0, %v2803
      %v2805 = vpop.f32.mrb[0].mxu0
      %v2806 = vpop.f32.mrb[0].mxu0
      %v2807 = vadd.f32 0.0, %v2806
      %v2808 = vpop.f32.mrb[0].mxu0
      %2809 = vmatprep.mubr.bf16.mxu0 0
      %2810 = vmatmul.mubr.bf16.gmra.mrb[0].mxu0 %v2664
      %v2811 = vpop.f32.mrb[0].mxu0
      %v2812 = vadd.f32 0.0, %v2811
      %v2813 = vpop.f32.mrb[0].mxu0
      %v2814 = vpop.f32.mrb[0].mxu0
      %v2815 = vadd.f32 0.0, %v2814
      %v2816 = vpop.f32.mrb[0].mxu0
      %2817 = vmatprep.mubr.bf16.mxu0 0
      %2818 = vmatmul.mubr.bf16.gmra.mrb[0].mxu0 %v2667
      %v2819 = vpop.f32.mrb[0].mxu0
      %v2820 = vadd.f32 0.0, %v2819
      %v2821 = vpop.f32.mrb[0].mxu0
      %v2822 = vpop.f32.mrb[0].mxu0
      %v2823 = vadd.f32 0.0, %v2822
      %v2824 = vpop.f32.mrb[0].mxu0
      %2825 = vmatprep.mubr.bf16.mxu0 0
      %2826 = vmatmul.mubr.bf16.gmra.mrb[0].mxu0 %v2670
      %v2827 = vpop.f32.mrb[0].mxu0
      %v2828 = vadd.f32 0.0, %v2827
      %v2829 = vpop.f32.mrb[0].mxu0
      %v2830 = vpop.f32.mrb[0].mxu0
      %v2831 = vadd.f32 0.0, %v2830
      %v2832 = vpop.f32.mrb[0].mxu0
      %2833 = vmatprep.mubr.bf16.mxu0 0
      %2834 = vmatmul.mubr.bf16.gmra.mrb[0].mxu0 %v2673
      %v2835 = vpop.f32.mrb[0].mxu0
      %v2836 = vadd.f32 0.0, %v2835
      %v2837 = vpop.f32.mrb[0].mxu0
      %v2838 = vpop.f32.mrb[0].mxu0
      %v2839 = vadd.f32 0.0, %v2838
      %v2840 = vpop.f32.mrb[0].mxu0
      %2841 = vmatprep.mubr.bf16.mxu0 0
      %2842 = vmatmul.mubr.bf16.gmra.mrb[0].mxu0 %v2676
      %v2843 = vpop.f32.mrb[0].mxu0
      %v2844 = vadd.f32 0.0, %v2843
      %v2845 = vpop.f32.mrb[0].mxu0
      %v2846 = vpop.f32.mrb[0].mxu0
      %v2847 = vadd.f32 0.0, %v2846
      %v2848 = vpop.f32.mrb[0].mxu0
      %2849 = vmatprep.mubr.bf16.mxu0 0
      %2850 = vmatmul.mubr.bf16.gmra.mrb[0].mxu0 %v2679
      %v2851 = vpop.f32.mrb[0].mxu0
      %v2852 = vadd.f32 0.0, %v2851
      %v2853 = vpop.f32.mrb[0].mxu0
      %v2854 = vpop.f32.mrb[0].mxu0
      %v2855 = vadd.f32 0.0, %v2854
      %v2856 = vpop.f32.mrb[0].mxu0
      %2857 = vdwg.mxu0
      %v2858 = vadd.f32 %v2477, %v2716
      %v2859 = vadd.f32 %v2478, %v2719
      %v2860 = vadd.f32 %v2479, %v2724
      %v2861 = vadd.f32 %v2480, %v2727
      %v2862 = vadd.f32 %v2481, %v2732
      %v2863 = vadd.f32 %v2482, %v2735
      %v2864 = vadd.f32 %v2483, %v2740
      %v2865 = vadd.f32 %v2484, %v2743
      %v2866 = vadd.f32 %v2485, %v2748
      %v2867 = vadd.f32 %v2486, %v2751
      %v2868 = vadd.f32 %v2487, %v2756
      %v2869 = vadd.f32 %v2488, %v2759
      %v2870 = vadd.f32 %v2489, %v2764
      %v2871 = vadd.f32 %v2490, %v2767
      %v2872 = vadd.f32 %v2491, %v2772
      %v2873 = vadd.f32 %v2492, %v2775
      %v2874 = vadd.f32 %v2493, %v2780
      %v2875 = vadd.f32 %v2494, %v2783
      %v2876 = vadd.f32 %v2495, %v2788
      %v2877 = vadd.f32 %v2496, %v2791
      %v2878 = vadd.f32 %v2497, %v2796
      %v2879 = vadd.f32 %v2498, %v2799
      %v2880 = vadd.f32 %v2499, %v2804
      %v2881 = vadd.f32 %v2500, %v2807
      %v2882 = vadd.f32 %v2501, %v2812
      %v2883 = vadd.f32 %v2502, %v2815
      %v2884 = vadd.f32 %v2503, %v2820
      %v2885 = vadd.f32 %v2504, %v2823
      %v2886 = vadd.f32 %v2505, %v2828
      %v2887 = vadd.f32 %v2506, %v2831
      %v2888 = vadd.f32 %v2507, %v2836
      %v2889 = vadd.f32 %v2508, %v2839
      %v2890 = vadd.f32 %v2509, %v2844
      %v2891 = vadd.f32 %v2510, %v2847
      %v2892 = vadd.f32 %v2511, %v2852
      %v2893 = vadd.f32 %v2512, %v2855
      %s2894 = scalar_lea.vmem %s1, 256
      %v2895 = vld [vmem:[%s2894] sm:$0xf]
      %v2896 = vld [vmem:[%s2894 + $0x4] sm:$0xf]
      %v2897 = vld [vmem:[%s2894 + $0x8] sm:$0xf]
      %v2898 = vld [vmem:[%s2894 + $0xc] sm:$0xf]
      %v2899 = vld [vmem:[%s2894 + $0x10] sm:$0xf]
      %v2900 = vld [vmem:[%s2894 + $0x14] sm:$0xf]
      %v2901 = vld [vmem:[%s2894 + $0x18] sm:$0xf]
      %v2902 = vld [vmem:[%s2894 + $0x1c] sm:$0xf]
      %vm2903 = vcmask 1044480
      %v2904 = vrot.slane %v253, 3
      %v2905 = vrot.slane %v254, 3
      %v2906 = vsel %vm2903, %v2904, %v2905
      %v2907 = vrot.slane %v255, 3
      %v2908 = vsel %vm2903, %v2905, %v2907
      %v2909 = vrot.slane %v256, 3
      %v2910 = vsel %vm2903, %v2907, %v2909
      %v2911 = vrot.slane %v257, 3
      %v2912 = vsel %vm2903, %v2909, %v2911
      %v2913 = vrot.slane %v258, 3
      %v2914 = vsel %vm2903, %v2911, %v2913
      %v2915 = vrot.slane %v259, 3
      %v2916 = vsel %vm2903, %v2913, %v2915
      %v2917 = vrot.slane %v260, 3
      %v2918 = vsel %vm2903, %v2915, %v2917
      %v2919 = vrot.slane %v261, 3
      %v2920 = vsel %vm2903, %v2917, %v2919
      %v2921 = vrot.slane %v262, 3
      %v2922 = vsel %vm2903, %v2919, %v2921
      %v2923 = vrot.slane %v263, 3
      %v2924 = vsel %vm2903, %v2921, %v2923
      %v2925 = vrot.slane %v264, 3
      %v2926 = vsel %vm2903, %v2923, %v2925
      %v2927 = vrot.slane %v265, 3
      %v2928 = vsel %vm2903, %v2925, %v2927
      %v2929 = vrot.slane %v266, 3
      %v2930 = vsel %vm2903, %v2927, %v2929
      %v2931 = vrot.slane %v267, 3
      %v2932 = vsel %vm2903, %v2929, %v2931
      %v2933 = vrot.slane %v268, 3
      %v2934 = vsel %vm2903, %v2931, %v2933
      %v2935 = vrot.slane %v269, 3
      %v2936 = vsel %vm2903, %v2933, %v2935
      %v2937 = vrot.slane %v270, 3
      %v2938 = vsel %vm2903, %v2935, %v2937
      %v2939 = vrot.slane %v271, 3
      %v2940 = vsel %vm2903, %v2937, %v2939
      %v2949 = vunpack.c.l.b16 %v2895
      %v2950 = vunpack.c.l.b16 %v2896
      %v2951 = vunpack.c.l.b16 %v2897
      %v2952 = vunpack.c.l.b16 %v2898
      %v2953 = vunpack.c.l.b16 %v2899
      %v2954 = vunpack.c.l.b16 %v2900
      %v2955 = vunpack.c.l.b16 %v2901
      %v2956 = vunpack.c.l.b16 %v2902
      %v2957 = vpack.c.b16 %v2950, %v2949
      %v2958 = vpack.c.b16 %v2952, %v2951
      %v2959 = vpack.c.b16 %v2954, %v2953
      %v2960 = vpack.c.b16 %v2956, %v2955
      %v2966 = vsel %vm462, %v2906, 0
      %v2969 = vsel %vm462, %v2908, 0
      %v2972 = vsel %vm462, %v2910, 0
      %v2975 = vsel %vm462, %v2912, 0
      %v2978 = vsel %vm462, %v2914, 0
      %v2981 = vsel %vm462, %v2916, 0
      %v2984 = vsel %vm462, %v2918, 0
      %v2987 = vsel %vm462, %v2920, 0
      %v2990 = vsel %vm462, %v2922, 0
      %v2993 = vsel %vm462, %v2924, 0
      %v2996 = vsel %vm462, %v2926, 0
      %v2999 = vsel %vm462, %v2928, 0
      %v3002 = vsel %vm462, %v2930, 0
      %v3005 = vsel %vm462, %v2932, 0
      %v3008 = vsel %vm462, %v2934, 0
      %v3011 = vsel %vm462, %v2936, 0
      %v3014 = vsel %vm462, %v2938, 0
      %v3017 = vsel %vm462, %v2940, 0
      %3019 = vmatprep.subr.bf16.mxu0 0
      %3020 = vmatpush1.bf16.msra.mxu0 %v2957
      %3021 = vmatprep.subr.bf16.mxu0 0
      %3022 = vmatpush1.bf16.msra.mxu0 %v2958
      %3023 = vmatprep.subr.bf16.mxu0 0
      %3024 = vmatpush1.bf16.msra.mxu0 %v2959
      %3025 = vmatprep.subr.bf16.mxu0 0
      %3026 = vmatpush1.bf16.msra.mxu0 %v2960
      %3027 = vmatprep.subr.bf16.mxu0 0
      %3028 = vmatpush1.bf16.msra.mxu0 0
      %3029 = vmatprep.subr.bf16.mxu0 0
      %3030 = vmatpush1.bf16.msra.mxu0 0
      %3031 = vmatprep.subr.bf16.mxu0 0
      %3032 = vmatpush1.bf16.msra.mxu0 0
      %3033 = vmatprep.subr.bf16.mxu0 0
      %3034 = vmatpush1.bf16.msra.mxu0 0
      %3035 = vmatprep.subr.bf16.mxu0 0
      %3036 = vmatpush1.bf16.msra.mxu0 0
      %3037 = vmatprep.subr.bf16.mxu0 0
      %3038 = vmatpush1.bf16.msra.mxu0 0
      %3039 = vmatprep.subr.bf16.mxu0 0
      %3040 = vmatpush1.bf16.msra.mxu0 0
      %3041 = vmatprep.subr.bf16.mxu0 0
      %3042 = vmatpush1.bf16.msra.mxu0 0
      %3043 = vmatprep.subr.bf16.mxu0 0
      %3044 = vmatpush1.bf16.msra.mxu0 0
      %3045 = vmatprep.subr.bf16.mxu0 0
      %3046 = vmatpush1.bf16.msra.mxu0 0
      %3047 = vmatprep.subr.bf16.mxu0 0
      %3048 = vmatpush1.bf16.msra.mxu0 0
      %3049 = vmatprep.subr.bf16.mxu0 0
      %3050 = vmatpush1.bf16.msra.mxu0 0
      %3051 = vmatprep.mubr.bf16.mxu0 0
      %3052 = vmatmul.mubr.bf16.gmra.mrb[0].mxu0 %v2966
      %v3053 = vpop.f32.mrb[0].mxu0
      %v3054 = vadd.f32 0.0, %v3053
      %v3055 = vpop.f32.mrb[0].mxu0
      %v3056 = vpop.f32.mrb[0].mxu0
      %v3057 = vadd.f32 0.0, %v3056
      %v3058 = vpop.f32.mrb[0].mxu0
      %3059 = vmatprep.mubr.bf16.mxu0 0
      %3060 = vmatmul.mubr.bf16.gmra.mrb[0].mxu0 %v2969
      %v3061 = vpop.f32.mrb[0].mxu0
      %v3062 = vadd.f32 0.0, %v3061
      %v3063 = vpop.f32.mrb[0].mxu0
      %v3064 = vpop.f32.mrb[0].mxu0
      %v3065 = vadd.f32 0.0, %v3064
      %v3066 = vpop.f32.mrb[0].mxu0
      %3067 = vmatprep.mubr.bf16.mxu0 0
      %3068 = vmatmul.mubr.bf16.gmra.mrb[0].mxu0 %v2972
      %v3069 = vpop.f32.mrb[0].mxu0
      %v3070 = vadd.f32 0.0, %v3069
      %v3071 = vpop.f32.mrb[0].mxu0
      %v3072 = vpop.f32.mrb[0].mxu0
      %v3073 = vadd.f32 0.0, %v3072
      %v3074 = vpop.f32.mrb[0].mxu0
      %3075 = vmatprep.mubr.bf16.mxu0 0
      %3076 = vmatmul.mubr.bf16.gmra.mrb[0].mxu0 %v2975
      %v3077 = vpop.f32.mrb[0].mxu0
      %v3078 = vadd.f32 0.0, %v3077
      %v3079 = vpop.f32.mrb[0].mxu0
      %v3080 = vpop.f32.mrb[0].mxu0
      %v3081 = vadd.f32 0.0, %v3080
      %v3082 = vpop.f32.mrb[0].mxu0
      %3083 = vmatprep.mubr.bf16.mxu0 0
      %3084 = vmatmul.mubr.bf16.gmra.mrb[0].mxu0 %v2978
      %v3085 = vpop.f32.mrb[0].mxu0
      %v3086 = vadd.f32 0.0, %v3085
      %v3087 = vpop.f32.mrb[0].mxu0
      %v3088 = vpop.f32.mrb[0].mxu0
      %v3089 = vadd.f32 0.0, %v3088
      %v3090 = vpop.f32.mrb[0].mxu0
      %3091 = vmatprep.mubr.bf16.mxu0 0
      %3092 = vmatmul.mubr.bf16.gmra.mrb[0].mxu0 %v2981
      %v3093 = vpop.f32.mrb[0].mxu0
      %v3094 = vadd.f32 0.0, %v3093
      %v3095 = vpop.f32.mrb[0].mxu0
      %v3096 = vpop.f32.mrb[0].mxu0
      %v3097 = vadd.f32 0.0, %v3096
      %v3098 = vpop.f32.mrb[0].mxu0
      %3099 = vmatprep.mubr.bf16.mxu0 0
      %3100 = vmatmul.mubr.bf16.gmra.mrb[0].mxu0 %v2984
      %v3101 = vpop.f32.mrb[0].mxu0
      %v3102 = vadd.f32 0.0, %v3101
      %v3103 = vpop.f32.mrb[0].mxu0
      %v3104 = vpop.f32.mrb[0].mxu0
      %v3105 = vadd.f32 0.0, %v3104
      %v3106 = vpop.f32.mrb[0].mxu0
      %3107 = vmatprep.mubr.bf16.mxu0 0
      %3108 = vmatmul.mubr.bf16.gmra.mrb[0].mxu0 %v2987
      %v3109 = vpop.f32.mrb[0].mxu0
      %v3110 = vadd.f32 0.0, %v3109
      %v3111 = vpop.f32.mrb[0].mxu0
      %v3112 = vpop.f32.mrb[0].mxu0
      %v3113 = vadd.f32 0.0, %v3112
      %v3114 = vpop.f32.mrb[0].mxu0
      %3115 = vmatprep.mubr.bf16.mxu0 0
      %3116 = vmatmul.mubr.bf16.gmra.mrb[0].mxu0 %v2990
      %v3117 = vpop.f32.mrb[0].mxu0
      %v3118 = vadd.f32 0.0, %v3117
      %v3119 = vpop.f32.mrb[0].mxu0
      %v3120 = vpop.f32.mrb[0].mxu0
      %v3121 = vadd.f32 0.0, %v3120
      %v3122 = vpop.f32.mrb[0].mxu0
      %3123 = vmatprep.mubr.bf16.mxu0 0
      %3124 = vmatmul.mubr.bf16.gmra.mrb[0].mxu0 %v2993
      %v3125 = vpop.f32.mrb[0].mxu0
      %v3126 = vadd.f32 0.0, %v3125
      %v3127 = vpop.f32.mrb[0].mxu0
      %v3128 = vpop.f32.mrb[0].mxu0
      %v3129 = vadd.f32 0.0, %v3128
      %v3130 = vpop.f32.mrb[0].mxu0
      %3131 = vmatprep.mubr.bf16.mxu0 0
      %3132 = vmatmul.mubr.bf16.gmra.mrb[0].mxu0 %v2996
      %v3133 = vpop.f32.mrb[0].mxu0
      %v3134 = vadd.f32 0.0, %v3133
      %v3135 = vpop.f32.mrb[0].mxu0
      %v3136 = vpop.f32.mrb[0].mxu0
      %v3137 = vadd.f32 0.0, %v3136
      %v3138 = vpop.f32.mrb[0].mxu0
      %3139 = vmatprep.mubr.bf16.mxu0 0
      %3140 = vmatmul.mubr.bf16.gmra.mrb[0].mxu0 %v2999
      %v3141 = vpop.f32.mrb[0].mxu0
      %v3142 = vadd.f32 0.0, %v3141
      %v3143 = vpop.f32.mrb[0].mxu0
      %v3144 = vpop.f32.mrb[0].mxu0
      %v3145 = vadd.f32 0.0, %v3144
      %v3146 = vpop.f32.mrb[0].mxu0
      %3147 = vmatprep.mubr.bf16.mxu0 0
      %3148 = vmatmul.mubr.bf16.gmra.mrb[0].mxu0 %v3002
      %v3149 = vpop.f32.mrb[0].mxu0
      %v3150 = vadd.f32 0.0, %v3149
      %v3151 = vpop.f32.mrb[0].mxu0
      %v3152 = vpop.f32.mrb[0].mxu0
      %v3153 = vadd.f32 0.0, %v3152
      %v3154 = vpop.f32.mrb[0].mxu0
      %3155 = vmatprep.mubr.bf16.mxu0 0
      %3156 = vmatmul.mubr.bf16.gmra.mrb[0].mxu0 %v3005
      %v3157 = vpop.f32.mrb[0].mxu0
      %v3158 = vadd.f32 0.0, %v3157
      %v3159 = vpop.f32.mrb[0].mxu0
      %v3160 = vpop.f32.mrb[0].mxu0
      %v3161 = vadd.f32 0.0, %v3160
      %v3162 = vpop.f32.mrb[0].mxu0
      %3163 = vmatprep.mubr.bf16.mxu0 0
      %3164 = vmatmul.mubr.bf16.gmra.mrb[0].mxu0 %v3008
      %v3165 = vpop.f32.mrb[0].mxu0
      %v3166 = vadd.f32 0.0, %v3165
      %v3167 = vpop.f32.mrb[0].mxu0
      %v3168 = vpop.f32.mrb[0].mxu0
      %v3169 = vadd.f32 0.0, %v3168
      %v3170 = vpop.f32.mrb[0].mxu0
      %3171 = vmatprep.mubr.bf16.mxu0 0
      %3172 = vmatmul.mubr.bf16.gmra.mrb[0].mxu0 %v3011
      %v3173 = vpop.f32.mrb[0].mxu0
      %v3174 = vadd.f32 0.0, %v3173
      %v3175 = vpop.f32.mrb[0].mxu0
      %v3176 = vpop.f32.mrb[0].mxu0
      %v3177 = vadd.f32 0.0, %v3176
      %v3178 = vpop.f32.mrb[0].mxu0
      %3179 = vmatprep.mubr.bf16.mxu0 0
      %3180 = vmatmul.mubr.bf16.gmra.mrb[0].mxu0 %v3014
      %v3181 = vpop.f32.mrb[0].mxu0
      %v3182 = vadd.f32 0.0, %v3181
      %v3183 = vpop.f32.mrb[0].mxu0
      %v3184 = vpop.f32.mrb[0].mxu0
      %v3185 = vadd.f32 0.0, %v3184
      %v3186 = vpop.f32.mrb[0].mxu0
      %3187 = vmatprep.mubr.bf16.mxu0 0
      %3188 = vmatmul.mubr.bf16.gmra.mrb[0].mxu0 %v3017
      %v3189 = vpop.f32.mrb[0].mxu0
      %v3190 = vadd.f32 0.0, %v3189
      %v3191 = vpop.f32.mrb[0].mxu0
      %v3192 = vpop.f32.mrb[0].mxu0
      %v3193 = vadd.f32 0.0, %v3192
      %v3194 = vpop.f32.mrb[0].mxu0
      %3195 = vdwg.mxu0
      %v3196 = vadd.f32 %v2858, %v3054
      %v3197 = vadd.f32 %v2859, %v3057
      %v3198 = vadd.f32 %v2860, %v3062
      %v3199 = vadd.f32 %v2861, %v3065
      %v3200 = vadd.f32 %v2862, %v3070
      %v3201 = vadd.f32 %v2863, %v3073
      %v3202 = vadd.f32 %v2864, %v3078
      %v3203 = vadd.f32 %v2865, %v3081
      %v3204 = vadd.f32 %v2866, %v3086
      %v3205 = vadd.f32 %v2867, %v3089
      %v3206 = vadd.f32 %v2868, %v3094
      %v3207 = vadd.f32 %v2869, %v3097
      %v3208 = vadd.f32 %v2870, %v3102
      %v3209 = vadd.f32 %v2871, %v3105
      %v3210 = vadd.f32 %v2872, %v3110
      %v3211 = vadd.f32 %v2873, %v3113
      %v3212 = vadd.f32 %v2874, %v3118
      %v3213 = vadd.f32 %v2875, %v3121
      %v3214 = vadd.f32 %v2876, %v3126
      %v3215 = vadd.f32 %v2877, %v3129
      %v3216 = vadd.f32 %v2878, %v3134
      %v3217 = vadd.f32 %v2879, %v3137
      %v3218 = vadd.f32 %v2880, %v3142
      %v3219 = vadd.f32 %v2881, %v3145
      %v3220 = vadd.f32 %v2882, %v3150
      %v3221 = vadd.f32 %v2883, %v3153
      %v3222 = vadd.f32 %v2884, %v3158
      %v3223 = vadd.f32 %v2885, %v3161
      %v3224 = vadd.f32 %v2886, %v3166
      %v3225 = vadd.f32 %v2887, %v3169
      %v3226 = vadd.f32 %v2888, %v3174
      %v3227 = vadd.f32 %v2889, %v3177
      %v3228 = vadd.f32 %v2890, %v3182
      %v3229 = vadd.f32 %v2891, %v3185
      %v3230 = vadd.f32 %v2892, %v3190
      %v3231 = vadd.f32 %v2893, %v3193
      %v3232 = vld [vmem:[%s2] sm:$0xff]
      %v3233 = vld [vmem:[%s2 + $0x8] sm:$0xff]
      %v3234 = vld [vmem:[%s2 + $0x10] sm:$0xff]
      %v3235 = vld [vmem:[%s2 + $0x18] sm:$0xff]
      %v3236 = vld [vmem:[%s2 + $0x20] sm:$0xff]
      %v3237 = vld [vmem:[%s2 + $0x28] sm:$0xff]
      %v3238 = vld [vmem:[%s2 + $0x30] sm:$0xff]
      %v3239 = vld [vmem:[%s2 + $0x38] sm:$0xff]
      %v3240 = vld [vmem:[%s2 + $0x40] sm:$0xff]
      %v3241 = vld [vmem:[%s2 + $0x48] sm:$0xff]
      %v3242 = vld [vmem:[%s2 + $0x50] sm:$0xff]
      %v3243 = vld [vmem:[%s2 + $0x58] sm:$0xff]
      %v3244 = vld [vmem:[%s2 + $0x60] sm:$0xff]
      %v3245 = vld [vmem:[%s2 + $0x68] sm:$0xff]
      %v3246 = vld [vmem:[%s2 + $0x70] sm:$0xff]
      %v3247 = vld [vmem:[%s2 + $0x78] sm:$0xff]
      %v3248 = vld [vmem:[%s2 + $0x80] sm:$0xff]
      %v3249 = vld [vmem:[%s2 + $0x88] sm:$0xff]
      %v3250 = vld [vmem:[%s2 + $0x90] sm:$0xff]
      %v3251 = vld [vmem:[%s2 + $0x98] sm:$0xff]
      %v3252 = vld [vmem:[%s2 + $0xa0] sm:$0xff]
      %v3253 = vld [vmem:[%s2 + $0xa8] sm:$0xff]
      %v3254 = vld [vmem:[%s2 + $0xb0] sm:$0xff]
      %v3255 = vld [vmem:[%s2 + $0xb8] sm:$0xff]
      %v3256 = vld [vmem:[%s2 + $0xc0] sm:$0xff]
      %v3257 = vld [vmem:[%s2 + $0xc8] sm:$0xff]
      %v3258 = vld [vmem:[%s2 + $0xd0] sm:$0xff]
      %v3259 = vld [vmem:[%s2 + $0xd8] sm:$0xff]
      %v3260 = vld [vmem:[%s2 + $0xe0] sm:$0xff]
      %v3261 = vld [vmem:[%s2 + $0xe8] sm:$0xff]
      %v3262 = vld [vmem:[%s2 + $0xf0] sm:$0xff]
      %v3263 = vld [vmem:[%s2 + $0xf8] sm:$0xff]
      %v3264 = vld [vmem:[%s2 + $0x100] sm:$0xff]
      %v3265 = vld [vmem:[%s2 + $0x108] sm:$0xff]
      %v3266 = vld [vmem:[%s2 + $0x110] sm:$0xff]
      %v3267 = vld [vmem:[%s2 + $0x118] sm:$0xff]
      %v3268 = vmul.f32 %v3196, %v3232
      %v3269 = vmul.f32 %v3197, %v3233
      %v3270 = vmul.f32 %v3198, %v3234
      %v3271 = vmul.f32 %v3199, %v3235
      %v3272 = vmul.f32 %v3200, %v3236
      %v3273 = vmul.f32 %v3201, %v3237
      %v3274 = vmul.f32 %v3202, %v3238
      %v3275 = vmul.f32 %v3203, %v3239
      %v3276 = vmul.f32 %v3204, %v3240
      %v3277 = vmul.f32 %v3205, %v3241
      %v3278 = vmul.f32 %v3206, %v3242
      %v3279 = vmul.f32 %v3207, %v3243
      %v3280 = vmul.f32 %v3208, %v3244
      %v3281 = vmul.f32 %v3209, %v3245
      %v3282 = vmul.f32 %v3210, %v3246
      %v3283 = vmul.f32 %v3211, %v3247
      %v3284 = vmul.f32 %v3212, %v3248
      %v3285 = vmul.f32 %v3213, %v3249
      %v3286 = vmul.f32 %v3214, %v3250
      %v3287 = vmul.f32 %v3215, %v3251
      %v3288 = vmul.f32 %v3216, %v3252
      %v3289 = vmul.f32 %v3217, %v3253
      %v3290 = vmul.f32 %v3218, %v3254
      %v3291 = vmul.f32 %v3219, %v3255
      %v3292 = vmul.f32 %v3220, %v3256
      %v3293 = vmul.f32 %v3221, %v3257
      %v3294 = vmul.f32 %v3222, %v3258
      %v3295 = vmul.f32 %v3223, %v3259
      %v3296 = vmul.f32 %v3224, %v3260
      %v3297 = vmul.f32 %v3225, %v3261
      %v3298 = vmul.f32 %v3226, %v3262
      %v3299 = vmul.f32 %v3227, %v3263
      %v3300 = vmul.f32 %v3228, %v3264
      %v3301 = vmul.f32 %v3229, %v3265
      %v3302 = vmul.f32 %v3230, %v3266
      %v3303 = vmul.f32 %v3231, %v3267
      %vm3304 = vcmask 519168
      %3305 = vst.msk [vmem:[%s204] sm:$0xf] %vm3304, 0
      %3306 = vst.msk [vmem:[%s204 + $0x4] sm:$0xf] %vm3304, 0
      %3307 = vst.msk [vmem:[%s204 + $0x8] sm:$0xf] %vm3304, 0
      %v3308 = vpack.c.bf16 %v3269, %v3268
      %v3309 = vpack.c.bf16 %v3271, %v3270
      %v3310 = vpack.c.bf16 %v3273, %v3272
      %v3311 = vpack.c.bf16 %v3275, %v3274
      %v3312 = vpack.c.bf16 %v3277, %v3276
      %v3313 = vpack.c.bf16 %v3279, %v3278
      %v3314 = vpack.c.bf16 %v3281, %v3280
      %v3315 = vpack.c.bf16 %v3283, %v3282
      %v3316 = vpack.c.bf16 %v3285, %v3284
      %v3317 = vpack.c.bf16 %v3287, %v3286
      %v3318 = vpack.c.bf16 %v3289, %v3288
      %v3319 = vpack.c.bf16 %v3291, %v3290
      %v3320 = vpack.c.bf16 %v3293, %v3292
      %v3321 = vpack.c.bf16 %v3295, %v3294
      %v3322 = vpack.c.bf16 %v3297, %v3296
      %v3323 = vpack.c.bf16 %v3299, %v3298
      %v3324 = vpack.c.bf16 %v3301, %v3300
      %v3325 = vpack.c.bf16 %v3303, %v3302
      %v3344 = vunpack.c.l.b16 %v3308
      %v3345 = vunpack.c.h.b16 %v3308
      %v3346 = vunpack.c.l.b16 %v3309
      %v3347 = vunpack.c.h.b16 %v3309
      %v3348 = vunpack.c.l.b16 %v3310
      %v3349 = vunpack.c.h.b16 %v3310
      %v3350 = vunpack.c.l.b16 %v3311
      %v3351 = vunpack.c.h.b16 %v3311
      %v3352 = vunpack.c.l.b16 %v3312
      %v3353 = vunpack.c.h.b16 %v3312
      %v3354 = vunpack.c.l.b16 %v3313
      %v3355 = vunpack.c.h.b16 %v3313
      %v3356 = vunpack.c.l.b16 %v3314
      %v3357 = vunpack.c.h.b16 %v3314
      %v3358 = vunpack.c.l.b16 %v3315
      %v3359 = vunpack.c.h.b16 %v3315
      %v3360 = vunpack.c.l.b16 %v3316
      %v3361 = vunpack.c.h.b16 %v3316
      %v3362 = vunpack.c.l.b16 %v3317
      %v3363 = vunpack.c.h.b16 %v3317
      %v3364 = vunpack.c.l.b16 %v3318
      %v3365 = vunpack.c.h.b16 %v3318
      %v3366 = vunpack.c.l.b16 %v3319
      %v3367 = vunpack.c.h.b16 %v3319
      %v3368 = vunpack.c.l.b16 %v3320
      %v3369 = vunpack.c.h.b16 %v3320
      %v3370 = vunpack.c.l.b16 %v3321
      %v3371 = vunpack.c.h.b16 %v3321
      %v3372 = vunpack.c.l.b16 %v3322
      %v3373 = vunpack.c.h.b16 %v3322
      %v3374 = vunpack.c.l.b16 %v3323
      %v3375 = vunpack.c.h.b16 %v3323
      %v3376 = vunpack.c.l.b16 %v3324
      %v3377 = vunpack.c.h.b16 %v3324
      %v3378 = vunpack.c.l.b16 %v3325
      %v3379 = vunpack.c.h.b16 %v3325
      %v3380 = vpack.c.b16 %v3344, %v3344
      %v3381 = vpack.c.b16 %v3345, %v3345
      %v3382 = vpack.c.b16 %v3346, %v3346
      %v3383 = vpack.c.b16 %v3347, %v3347
      %v3384 = vpack.c.b16 %v3348, %v3348
      %v3385 = vpack.c.b16 %v3349, %v3349
      %v3386 = vpack.c.b16 %v3350, %v3350
      %v3387 = vpack.c.b16 %v3351, %v3351
      %v3388 = vpack.c.b16 %v3352, %v3352
      %v3389 = vpack.c.b16 %v3353, %v3353
      %v3390 = vpack.c.b16 %v3354, %v3354
      %v3391 = vpack.c.b16 %v3355, %v3355
      %v3392 = vpack.c.b16 %v3356, %v3356
      %v3393 = vpack.c.b16 %v3357, %v3357
      %v3394 = vpack.c.b16 %v3358, %v3358
      %v3395 = vpack.c.b16 %v3359, %v3359
      %v3396 = vpack.c.b16 %v3360, %v3360
      %v3397 = vpack.c.b16 %v3361, %v3361
      %v3398 = vpack.c.b16 %v3362, %v3362
      %v3399 = vpack.c.b16 %v3363, %v3363
      %v3400 = vpack.c.b16 %v3364, %v3364
      %v3401 = vpack.c.b16 %v3365, %v3365
      %v3402 = vpack.c.b16 %v3366, %v3366
      %v3403 = vpack.c.b16 %v3367, %v3367
      %v3404 = vpack.c.b16 %v3368, %v3368
      %v3405 = vpack.c.b16 %v3369, %v3369
      %v3406 = vpack.c.b16 %v3370, %v3370
      %v3407 = vpack.c.b16 %v3371, %v3371
      %v3408 = vpack.c.b16 %v3372, %v3372
      %v3409 = vpack.c.b16 %v3373, %v3373
      %v3410 = vpack.c.b16 %v3374, %v3374
      %v3411 = vpack.c.b16 %v3375, %v3375
      %v3412 = vpack.c.b16 %v3376, %v3376
      %v3413 = vpack.c.b16 %v3377, %v3377
      %v3414 = vpack.c.b16 %v3378, %v3378
      %v3415 = vpack.c.b16 %v3379, %v3379
      %3452 = vst.msk [vmem:[%s204 + $0xc] sm:$0xf] %vm3304, %v3380
      %3453 = vst.msk [vmem:[%s204 + $0x10] sm:$0xf] %vm3304, %v3381
      %3454 = vst.msk [vmem:[%s204 + $0x14] sm:$0xf] %vm3304, %v3382
      %3455 = vst.msk [vmem:[%s204 + $0x18] sm:$0xf] %vm3304, %v3383
      %3456 = vst.msk [vmem:[%s204 + $0x1c] sm:$0xf] %vm3304, %v3384
      %3457 = vst.msk [vmem:[%s204 + $0x20] sm:$0xf] %vm3304, %v3385
      %3458 = vst.msk [vmem:[%s204 + $0x24] sm:$0xf] %vm3304, %v3386
      %3459 = vst.msk [vmem:[%s204 + $0x28] sm:$0xf] %vm3304, %v3387
      %3460 = vst.msk [vmem:[%s204 + $0x2c] sm:$0xf] %vm3304, %v3388
      %3461 = vst.msk [vmem:[%s204 + $0x30] sm:$0xf] %vm3304, %v3389
      %3462 = vst.msk [vmem:[%s204 + $0x34] sm:$0xf] %vm3304, %v3390
      %3463 = vst.msk [vmem:[%s204 + $0x38] sm:$0xf] %vm3304, %v3391
      %3464 = vst.msk [vmem:[%s204 + $0x3c] sm:$0xf] %vm3304, %v3392
      %3465 = vst.msk [vmem:[%s204 + $0x40] sm:$0xf] %vm3304, %v3393
      %3466 = vst.msk [vmem:[%s204 + $0x44] sm:$0xf] %vm3304, %v3394
      %3467 = vst.msk [vmem:[%s204 + $0x48] sm:$0xf] %vm3304, %v3395
      %3468 = vst.msk [vmem:[%s204 + $0x4c] sm:$0xf] %vm3304, %v3396
      %3469 = vst.msk [vmem:[%s204 + $0x50] sm:$0xf] %vm3304, %v3397
      %3470 = vst.msk [vmem:[%s204 + $0x54] sm:$0xf] %vm3304, %v3398
      %3471 = vst.msk [vmem:[%s204 + $0x58] sm:$0xf] %vm3304, %v3399
      %3472 = vst.msk [vmem:[%s204 + $0x5c] sm:$0xf] %vm3304, %v3400
      %3473 = vst.msk [vmem:[%s204 + $0x60] sm:$0xf] %vm3304, %v3401
      %3474 = vst.msk [vmem:[%s204 + $0x64] sm:$0xf] %vm3304, %v3402
      %3475 = vst.msk [vmem:[%s204 + $0x68] sm:$0xf] %vm3304, %v3403
      %3476 = vst.msk [vmem:[%s204 + $0x6c] sm:$0xf] %vm3304, %v3404
      %3477 = vst.msk [vmem:[%s204 + $0x70] sm:$0xf] %vm3304, %v3405
      %3478 = vst.msk [vmem:[%s204 + $0x74] sm:$0xf] %vm3304, %v3406
      %3479 = vst.msk [vmem:[%s204 + $0x78] sm:$0xf] %vm3304, %v3407
      %3480 = vst.msk [vmem:[%s204 + $0x7c] sm:$0xf] %vm3304, %v3408
      %3481 = vst.msk [vmem:[%s204 + $0x80] sm:$0xf] %vm3304, %v3409
      %3482 = vst.msk [vmem:[%s204 + $0x84] sm:$0xf] %vm3304, %v3410
      %3483 = vst.msk [vmem:[%s204 + $0x88] sm:$0xf] %vm3304, %v3411
      %3484 = vst.msk [vmem:[%s204 + $0x8c] sm:$0xf] %vm3304, %v3412
      %3485 = vst.msk [vmem:[%s204 + $0x90] sm:$0xf] %vm3304, %v3413
      %3486 = vst.msk [vmem:[%s204 + $0x94] sm:$0xf] %vm3304, %v3414
      %3487 = vst.msk [vmem:[%s204 + $0x98] sm:$0xf] %vm3304, %v3415
      %3488 = vst.msk [vmem:[%s204 + $0x9c] sm:$0xf] %vm3304, 0
      %3489 = vst.msk [vmem:[%s204 + $0xa0] sm:$0xf] %vm3304, 0
      %3490 = vst.msk [vmem:[%s204 + $0xa4] sm:$0xf] %vm3304, 0
      %v3491 = vsel %vm462, %v3268, 0.0
      %v3492 = vsel %vm462, %v3269, 0.0
      %v3493 = vadd.f32 %v3491, %v3492
      %v3494 = vsel %vm462, %v3270, 0.0
      %v3495 = vadd.f32 %v3493, %v3494
      %v3496 = vsel %vm462, %v3271, 0.0
      %v3497 = vadd.f32 %v3495, %v3496
      %v3498 = vsel %vm462, %v3272, 0.0
      %v3499 = vadd.f32 %v3497, %v3498
      %v3500 = vsel %vm462, %v3273, 0.0
      %v3501 = vadd.f32 %v3499, %v3500
      %v3502 = vsel %vm462, %v3274, 0.0
      %v3503 = vadd.f32 %v3501, %v3502
      %v3504 = vsel %vm462, %v3275, 0.0
      %v3505 = vadd.f32 %v3503, %v3504
      %v3506 = vsel %vm462, %v3276, 0.0
      %v3507 = vadd.f32 %v3505, %v3506
      %v3508 = vsel %vm462, %v3277, 0.0
      %v3509 = vadd.f32 %v3507, %v3508
      %v3510 = vsel %vm462, %v3278, 0.0
      %v3511 = vadd.f32 %v3509, %v3510
      %v3512 = vsel %vm462, %v3279, 0.0
      %v3513 = vadd.f32 %v3511, %v3512
      %v3514 = vsel %vm462, %v3280, 0.0
      %v3515 = vadd.f32 %v3513, %v3514
      %v3516 = vsel %vm462, %v3281, 0.0
      %v3517 = vadd.f32 %v3515, %v3516
      %v3518 = vsel %vm462, %v3282, 0.0
      %v3519 = vadd.f32 %v3517, %v3518
      %v3520 = vsel %vm462, %v3283, 0.0
      %v3521 = vadd.f32 %v3519, %v3520
      %v3522 = vsel %vm462, %v3284, 0.0
      %v3523 = vadd.f32 %v3521, %v3522
      %v3524 = vsel %vm462, %v3285, 0.0
      %v3525 = vadd.f32 %v3523, %v3524
      %v3526 = vsel %vm462, %v3286, 0.0
      %v3527 = vadd.f32 %v3525, %v3526
      %v3528 = vsel %vm462, %v3287, 0.0
      %v3529 = vadd.f32 %v3527, %v3528
      %v3530 = vsel %vm462, %v3288, 0.0
      %v3531 = vadd.f32 %v3529, %v3530
      %v3532 = vsel %vm462, %v3289, 0.0
      %v3533 = vadd.f32 %v3531, %v3532
      %v3534 = vsel %vm462, %v3290, 0.0
      %v3535 = vadd.f32 %v3533, %v3534
      %v3536 = vsel %vm462, %v3291, 0.0
      %v3537 = vadd.f32 %v3535, %v3536
      %v3538 = vsel %vm462, %v3292, 0.0
      %v3539 = vadd.f32 %v3537, %v3538
      %v3540 = vsel %vm462, %v3293, 0.0
      %v3541 = vadd.f32 %v3539, %v3540
      %v3542 = vsel %vm462, %v3294, 0.0
      %v3543 = vadd.f32 %v3541, %v3542
      %v3544 = vsel %vm462, %v3295, 0.0
      %v3545 = vadd.f32 %v3543, %v3544
      %v3546 = vsel %vm462, %v3296, 0.0
      %v3547 = vadd.f32 %v3545, %v3546
      %v3548 = vsel %vm462, %v3297, 0.0
      %v3549 = vadd.f32 %v3547, %v3548
      %v3550 = vsel %vm462, %v3298, 0.0
      %v3551 = vadd.f32 %v3549, %v3550
      %v3552 = vsel %vm462, %v3299, 0.0
      %v3553 = vadd.f32 %v3551, %v3552
      %v3554 = vsel %vm462, %v3300, 0.0
      %v3555 = vadd.f32 %v3553, %v3554
      %v3556 = vsel %vm462, %v3301, 0.0
      %v3557 = vadd.f32 %v3555, %v3556
      %v3558 = vsel %vm462, %v3302, 0.0
      %v3559 = vadd.f32 %v3557, %v3558
      %v3560 = vsel %vm462, %v3303, 0.0
      %v3561 = vadd.f32 %v3559, %v3560
      %v3562 = vrot.slane %v3561, 4
      %v3563 = vadd.f32 %v3561, %v3562
      %v3564 = vrot.slane %v3563, 2
      %v3565 = vadd.f32 %v3563, %v3564
      %v3566 = vrot.slane %v3565, 1
      %v3567 = vadd.f32 %v3565, %v3566
      %vm3568 = vcmask 516096
      %3569 = vst.msk [vmem:[%s208] sm:$0x1] %vm3568, %v3567
      %v3570 = vmul.f32 %v3268, %v3196
      %v3571 = vmul.f32 %v3269, %v3197
      %v3572 = vmul.f32 %v3270, %v3198
      %v3573 = vmul.f32 %v3271, %v3199
      %v3574 = vmul.f32 %v3272, %v3200
      %v3575 = vmul.f32 %v3273, %v3201
      %v3576 = vmul.f32 %v3274, %v3202
      %v3577 = vmul.f32 %v3275, %v3203
      %v3578 = vmul.f32 %v3276, %v3204
      %v3579 = vmul.f32 %v3277, %v3205
      %v3580 = vmul.f32 %v3278, %v3206
      %v3581 = vmul.f32 %v3279, %v3207
      %v3582 = vmul.f32 %v3280, %v3208
      %v3583 = vmul.f32 %v3281, %v3209
      %v3584 = vmul.f32 %v3282, %v3210
      %v3585 = vmul.f32 %v3283, %v3211
      %v3586 = vmul.f32 %v3284, %v3212
      %v3587 = vmul.f32 %v3285, %v3213
      %v3588 = vmul.f32 %v3286, %v3214
      %v3589 = vmul.f32 %v3287, %v3215
      %v3590 = vmul.f32 %v3288, %v3216
      %v3591 = vmul.f32 %v3289, %v3217
      %v3592 = vmul.f32 %v3290, %v3218
      %v3593 = vmul.f32 %v3291, %v3219
      %v3594 = vmul.f32 %v3292, %v3220
      %v3595 = vmul.f32 %v3293, %v3221
      %v3596 = vmul.f32 %v3294, %v3222
      %v3597 = vmul.f32 %v3295, %v3223
      %v3598 = vmul.f32 %v3296, %v3224
      %v3599 = vmul.f32 %v3297, %v3225
      %v3600 = vmul.f32 %v3298, %v3226
      %v3601 = vmul.f32 %v3299, %v3227
      %v3602 = vmul.f32 %v3300, %v3228
      %v3603 = vmul.f32 %v3301, %v3229
      %v3604 = vmul.f32 %v3302, %v3230
      %v3605 = vmul.f32 %v3303, %v3231
      %v3606 = vsel %vm462, %v3570, 0.0
      %v3607 = vsel %vm462, %v3571, 0.0
      %v3608 = vadd.f32 %v3606, %v3607
      %v3609 = vsel %vm462, %v3572, 0.0
      %v3610 = vadd.f32 %v3608, %v3609
      %v3611 = vsel %vm462, %v3573, 0.0
      %v3612 = vadd.f32 %v3610, %v3611
      %v3613 = vsel %vm462, %v3574, 0.0
      %v3614 = vadd.f32 %v3612, %v3613
      %v3615 = vsel %vm462, %v3575, 0.0
      %v3616 = vadd.f32 %v3614, %v3615
      %v3617 = vsel %vm462, %v3576, 0.0
      %v3618 = vadd.f32 %v3616, %v3617
      %v3619 = vsel %vm462, %v3577, 0.0
      %v3620 = vadd.f32 %v3618, %v3619
      %v3621 = vsel %vm462, %v3578, 0.0
      %v3622 = vadd.f32 %v3620, %v3621
      %v3623 = vsel %vm462, %v3579, 0.0
      %v3624 = vadd.f32 %v3622, %v3623
      %v3625 = vsel %vm462, %v3580, 0.0
      %v3626 = vadd.f32 %v3624, %v3625
      %v3627 = vsel %vm462, %v3581, 0.0
      %v3628 = vadd.f32 %v3626, %v3627
      %v3629 = vsel %vm462, %v3582, 0.0
      %v3630 = vadd.f32 %v3628, %v3629
      %v3631 = vsel %vm462, %v3583, 0.0
      %v3632 = vadd.f32 %v3630, %v3631
      %v3633 = vsel %vm462, %v3584, 0.0
      %v3634 = vadd.f32 %v3632, %v3633
      %v3635 = vsel %vm462, %v3585, 0.0
      %v3636 = vadd.f32 %v3634, %v3635
      %v3637 = vsel %vm462, %v3586, 0.0
      %v3638 = vadd.f32 %v3636, %v3637
      %v3639 = vsel %vm462, %v3587, 0.0
      %v3640 = vadd.f32 %v3638, %v3639
      %v3641 = vsel %vm462, %v3588, 0.0
      %v3642 = vadd.f32 %v3640, %v3641
      %v3643 = vsel %vm462, %v3589, 0.0
      %v3644 = vadd.f32 %v3642, %v3643
      %v3645 = vsel %vm462, %v3590, 0.0
      %v3646 = vadd.f32 %v3644, %v3645
      %v3647 = vsel %vm462, %v3591, 0.0
      %v3648 = vadd.f32 %v3646, %v3647
      %v3649 = vsel %vm462, %v3592, 0.0
      %v3650 = vadd.f32 %v3648, %v3649
      %v3651 = vsel %vm462, %v3593, 0.0
      %v3652 = vadd.f32 %v3650, %v3651
      %v3653 = vsel %vm462, %v3594, 0.0
      %v3654 = vadd.f32 %v3652, %v3653
      %v3655 = vsel %vm462, %v3595, 0.0
      %v3656 = vadd.f32 %v3654, %v3655
      %v3657 = vsel %vm462, %v3596, 0.0
      %v3658 = vadd.f32 %v3656, %v3657
      %v3659 = vsel %vm462, %v3597, 0.0
      %v3660 = vadd.f32 %v3658, %v3659
      %v3661 = vsel %vm462, %v3598, 0.0
      %v3662 = vadd.f32 %v3660, %v3661
      %v3663 = vsel %vm462, %v3599, 0.0
      %v3664 = vadd.f32 %v3662, %v3663
      %v3665 = vsel %vm462, %v3600, 0.0
      %v3666 = vadd.f32 %v3664, %v3665
      %v3667 = vsel %vm462, %v3601, 0.0
      %v3668 = vadd.f32 %v3666, %v3667
      %v3669 = vsel %vm462, %v3602, 0.0
      %v3670 = vadd.f32 %v3668, %v3669
      %v3671 = vsel %vm462, %v3603, 0.0
      %v3672 = vadd.f32 %v3670, %v3671
      %v3673 = vsel %vm462, %v3604, 0.0
      %v3674 = vadd.f32 %v3672, %v3673
      %v3675 = vsel %vm462, %v3605, 0.0
      %v3676 = vadd.f32 %v3674, %v3675
      %v3677 = vrot.slane %v3676, 4
      %v3678 = vadd.f32 %v3676, %v3677
      %v3679 = vrot.slane %v3678, 2
      %v3680 = vadd.f32 %v3678, %v3679
      %v3681 = vrot.slane %v3680, 1
      %v3682 = vadd.f32 %v3680, %v3681
      %3683 = vst.msk [vmem:[%s208 + $0x1] sm:$0x1] %vm3568, %v3682
      %p3684 = scmp.lt.s32.totalorder %s16, 1
      %s3685 = scalar_select %p3684, %s16, 1
      %s3686 = smul.addr %s3685, 42
      %s3687 = smul.addr %s3686, 4
      %s3688 = scalar_lea.vmem %s3, %s3687
      %p3689 = scmp.lt.s32.totalorder %s16, 1
      %s3690 = scalar_select %p3689, %s16, 1
      %s3691 = smul.addr %s3690, 2
      %s3692 = scalar_lea.vmem %s4, %s3691
      // Predicated region
      $region33: #{block_forward.3} parent=31 // pred_check
        %p3693 = pneg %p102
      $region34: #{block_forward.3} parent=31 // pred_check_branch
        %3695 = sbr.rel (%p3693) target = $region36
      $region35: #{block_forward.3} parent=31 // pred_region
        _
      $region36: #{block_forward.3} parent=31 // pred_fallthru
        _
      // Predicated region
      $region37: #{block_forward.3} parent=31 // pred_check
        %p3696 = pneg %p128
      $region38: #{block_forward.3} parent=31 // pred_check_branch
        %3698 = sbr.rel (%p3696) target = $region40
      $region39: #{block_forward.3} parent=31 // pred_region
        _
      $region40: #{block_forward.3} parent=31 // pred_fallthru
        _
    $region32: #{block_forward.3} parent=5 // pred_fallthru
      _
    %p3699 = scmp.le.s32.totalorder 2, %s11
    // Predicated region
    $region41: #{block_forward.3} parent=5 // pred_check
      %p3700 = pneg %p3699
    $region42: #{block_forward.3} parent=5 // pred_check_branch
      %3702 = sbr.rel (%p3700) target = $region44
    $region43: #{block_forward.3} parent=5 // pred_region
      %s3703 = ssub.s32 %s11, 2
      // Predicated region
      $region45: #{block_forward.3} parent=43 // pred_check
        %p3704 = pneg %p108
      $region46: #{block_forward.3} parent=43 // pred_check_branch
        %3706 = sbr.rel (%p3704) target = $region48
      $region47: #{block_forward.3} parent=43 // pred_region
        %p3707 = scmp.lt.s32.totalorder %s17, 1
        %s3708 = scalar_select %p3707, %s17, 1
        %s3709 = smul.addr %s3708, 42
        %s3710 = smul.addr %s3709, 4
        %s3711 = scalar_lea.vmem %s3, %s3710
      $region48: #{block_forward.3} parent=43 // pred_fallthru
        _
      // Predicated region
      $region49: #{block_forward.3} parent=43 // pred_check
        %p3712 = pneg %p134
      $region50: #{block_forward.3} parent=43 // pred_check_branch
        %3714 = sbr.rel (%p3712) target = $region52
      $region51: #{block_forward.3} parent=43 // pred_region
        %p3715 = scmp.lt.s32.totalorder %s17, 1
        %s3716 = scalar_select %p3715, %s17, 1
        %s3717 = smul.addr %s3716, 2
        %s3718 = scalar_lea.vmem %s4, %s3717
      $region52: #{block_forward.3} parent=43 // pred_fallthru
        _
    $region44: #{block_forward.3} parent=5 // pred_fallthru
      _
  $region6: #{block_forward.3} parent=0 // loop_footer
    %s15 = sadd.s32 1, %s11
  $region7: #{block_forward.3} parent=0 // loop_footer_branch
    %10 = sbr.rel target = $region3
  $region8: #{block_forward.3} parent=0 // loop_exit
    _

// kernel: block_forward.4
$region0: #{block_forward.4}
  #allocation0 [shape = 'u32[]', space=smem, size = 0x4, offset = 0x4, fixed_abs, tag = 'smem constant byte address 0x4 - core index']
  #allocation1 [shape = 'u32[144,128]{1,0:T(1,128)}', space=vmem, size = 0x12000, scoped, tag = 'internal scratch']
  %s0 = inlined_call_operand.vmem [shape: bf16[2,336,64], index: 0, kind: input, shape index: {}]
  %s1 = inlined_call_operand.vmem [shape: bf16[9,64,64], index: 1, kind: input, shape index: {}]
  %s2 = inlined_call_operand.vmem [shape: bf16[1,64], index: 2, kind: input, shape index: {}]
  %s3 = inlined_call_operand.vmem [shape: bf16[1,64], index: 3, kind: input, shape index: {}]
  %s4 = inlined_call_operand.vmem [shape: bf16[336,64], index: 4, kind: input, shape index: {}]
  %s5 = inlined_call_operand.vmem [shape: f32[288,64], index: 5, kind: input, shape index: {}]
  %s6 = inlined_call_operand.vmem [shape: bf16[2,288,64], index: 6, kind: output, shape index: {0}]
  %s7 = inlined_call_operand.vmem [shape: f32[2,2,64], index: 7, kind: output, shape index: {1}]
  %8 = xla_tuple %s6, %s7
  %s9 = sld [smem:[#allocation0]]
  $region65: #{block_forward.4} parent=0
    _
  %s11 = ssub.s32 1, %s9
  %s12 = scalar_select 0, %s11, %s9
  loop: start=0, step=1, limit=4
  $region2: #{block_forward.4} parent=0 // loop_pre_header
    _
  $region3: #{block_forward.4} parent=0 // loop_header
    %s14 = sphi 0, %s18
    %p15 = scmp.ge.s32.totalorder %s14, 4
    %s24 = sphi 0, %s26
    %s27 = sphi 0, %s24
    %s28 = sphi 0, %s27
    %s44 = sphi 0, %s28
    %s48 = sphi 0, %s48
    %s50 = sphi 0, %s48
    %s51 = sphi 0, %s50
    %s65 = sphi 0, %s51
    %s69 = sphi 0, %s69
    %s71 = sphi 0, %s69
    %s72 = sphi 0, %s71
    %s86 = sphi 0, %s72
    %s90 = sphi 0, %s90
    %s92 = sphi 0, %s90
    %s93 = sphi 0, %s92
    %s107 = sphi 0, %s93
    %s111 = sphi 0, %s111
    %s113 = sphi 0, %s111
    %s114 = sphi 0, %s113
    %s128 = sphi 0, %s114
    %s132 = sphi 0, %s132
    %s134 = sphi 0, %s132
    %s135 = sphi 0, %s134
    %s149 = sphi 0, %s135
    %s155 = sphi 0, %s157
    %s158 = sphi 0, %s155
    %s159 = sphi 0, %s158
    %s175 = sphi 0, %s159
    %s181 = sphi 0, %s183
    %s184 = sphi 0, %s181
    %s185 = sphi 0, %s184
    %s201 = sphi 0, %s185
  $region4: #{block_forward.4} parent=0 // loop_header_branch
    %17 = sbr.rel (%p15) target = $region8
  $region5: #{block_forward.4} parent=0 // loop_body
    %s19 = ssub.s32 %s14, 1
    %s20 = ssub.s32 %s14, 2
    %s21 = sadd.s32 %s14, 1
    %s22 = ssub.s32 %s14, %s21
    %p23 = scmp.eq.s32.totalorder %s22, 0
    %s25 = sadd.s32 %s24, 1
    %s26 = scalar_select %p23, %s24, %s25
    %p29 = pneg %p23
    %p30 = scmp.eq.s32.totalorder %s14, 1
    %p31 = por %p29, %p30
    %p32 = scmp.ne.s32.totalorder %s24, %s27
    %p33 = scmp.eq.s32.totalorder %s14, 0
    %p34 = por %p32, %p33
    %p35 = scmp.ne.s32.totalorder %s24, %s27
    %p36 = scmp.eq.s32.totalorder %s19, 1
    %p37 = por %p35, %p36
    %p38 = scmp.ne.s32.totalorder %s27, %s28
    %p39 = scmp.eq.s32.totalorder %s19, 0
    %p40 = por %p38, %p39
    %p41 = scmp.ne.s32.totalorder %s27, %s28
    %p42 = scmp.eq.s32.totalorder %s20, 1
    %p43 = por %p41, %p42
    %p45 = scmp.ne.s32.totalorder %s28, %s44
    %p46 = scmp.eq.s32.totalorder %s20, 0
    %p47 = por %p45, %p46
    %s49 = sadd.s32 %s48, 1
    %p52 = scmp.eq.s32.totalorder %s14, 1
    %p53 = scmp.ne.s32.totalorder %s48, %s50
    %p54 = scmp.eq.s32.totalorder %s14, 0
    %p55 = por %p53, %p54
    %p56 = scmp.ne.s32.totalorder %s48, %s50
    %p57 = scmp.eq.s32.totalorder %s19, 1
    %p58 = por %p56, %p57
    %p59 = scmp.ne.s32.totalorder %s50, %s51
    %p60 = scmp.eq.s32.totalorder %s19, 0
    %p61 = por %p59, %p60
    %p62 = scmp.ne.s32.totalorder %s50, %s51
    %p63 = scmp.eq.s32.totalorder %s20, 1
    %p64 = por %p62, %p63
    %p66 = scmp.ne.s32.totalorder %s51, %s65
    %p67 = scmp.eq.s32.totalorder %s20, 0
    %p68 = por %p66, %p67
    %s70 = sadd.s32 %s69, 1
    %p73 = scmp.eq.s32.totalorder %s14, 1
    %p74 = scmp.ne.s32.totalorder %s69, %s71
    %p75 = scmp.eq.s32.totalorder %s14, 0
    %p76 = por %p74, %p75
    %p77 = scmp.ne.s32.totalorder %s69, %s71
    %p78 = scmp.eq.s32.totalorder %s19, 1
    %p79 = por %p77, %p78
    %p80 = scmp.ne.s32.totalorder %s71, %s72
    %p81 = scmp.eq.s32.totalorder %s19, 0
    %p82 = por %p80, %p81
    %p83 = scmp.ne.s32.totalorder %s71, %s72
    %p84 = scmp.eq.s32.totalorder %s20, 1
    %p85 = por %p83, %p84
    %p87 = scmp.ne.s32.totalorder %s72, %s86
    %p88 = scmp.eq.s32.totalorder %s20, 0
    %p89 = por %p87, %p88
    %s91 = sadd.s32 %s90, 1
    %p94 = scmp.eq.s32.totalorder %s14, 1
    %p95 = scmp.ne.s32.totalorder %s90, %s92
    %p96 = scmp.eq.s32.totalorder %s14, 0
    %p97 = por %p95, %p96
    %p98 = scmp.ne.s32.totalorder %s90, %s92
    %p99 = scmp.eq.s32.totalorder %s19, 1
    %p100 = por %p98, %p99
    %p101 = scmp.ne.s32.totalorder %s92, %s93
    %p102 = scmp.eq.s32.totalorder %s19, 0
    %p103 = por %p101, %p102
    %p104 = scmp.ne.s32.totalorder %s92, %s93
    %p105 = scmp.eq.s32.totalorder %s20, 1
    %p106 = por %p104, %p105
    %p108 = scmp.ne.s32.totalorder %s93, %s107
    %p109 = scmp.eq.s32.totalorder %s20, 0
    %p110 = por %p108, %p109
    %s112 = sadd.s32 %s111, 1
    %p115 = scmp.eq.s32.totalorder %s14, 1
    %p116 = scmp.ne.s32.totalorder %s111, %s113
    %p117 = scmp.eq.s32.totalorder %s14, 0
    %p118 = por %p116, %p117
    %p119 = scmp.ne.s32.totalorder %s111, %s113
    %p120 = scmp.eq.s32.totalorder %s19, 1
    %p121 = por %p119, %p120
    %p122 = scmp.ne.s32.totalorder %s113, %s114
    %p123 = scmp.eq.s32.totalorder %s19, 0
    %p124 = por %p122, %p123
    %p125 = scmp.ne.s32.totalorder %s113, %s114
    %p126 = scmp.eq.s32.totalorder %s20, 1
    %p127 = por %p125, %p126
    %p129 = scmp.ne.s32.totalorder %s114, %s128
    %p130 = scmp.eq.s32.totalorder %s20, 0
    %p131 = por %p129, %p130
    %s133 = sadd.s32 %s132, 1
    %p136 = scmp.eq.s32.totalorder %s14, 1
    %p137 = scmp.ne.s32.totalorder %s132, %s134
    %p138 = scmp.eq.s32.totalorder %s14, 0
    %p139 = por %p137, %p138
    %p140 = scmp.ne.s32.totalorder %s132, %s134
    %p141 = scmp.eq.s32.totalorder %s19, 1
    %p142 = por %p140, %p141
    %p143 = scmp.ne.s32.totalorder %s134, %s135
    %p144 = scmp.eq.s32.totalorder %s19, 0
    %p145 = por %p143, %p144
    %p146 = scmp.ne.s32.totalorder %s134, %s135
    %p147 = scmp.eq.s32.totalorder %s20, 1
    %p148 = por %p146, %p147
    %p150 = scmp.ne.s32.totalorder %s135, %s149
    %p151 = scmp.eq.s32.totalorder %s20, 0
    %p152 = por %p150, %p151
    %s153 = ssub.s32 %s14, %s21
    %p154 = scmp.eq.s32.totalorder %s153, 0
    %s156 = sadd.s32 %s155, 1
    %s157 = scalar_select %p154, %s155, %s156
    %p160 = pneg %p154
    %p161 = scmp.eq.s32.totalorder %s14, 1
    %p162 = por %p160, %p161
    %p163 = scmp.ne.s32.totalorder %s155, %s158
    %p164 = scmp.eq.s32.totalorder %s14, 0
    %p165 = por %p163, %p164
    %p166 = scmp.ne.s32.totalorder %s155, %s158
    %p167 = scmp.eq.s32.totalorder %s19, 1
    %p168 = por %p166, %p167
    %p169 = scmp.ne.s32.totalorder %s158, %s159
    %p170 = scmp.eq.s32.totalorder %s19, 0
    %p171 = por %p169, %p170
    %p172 = scmp.ne.s32.totalorder %s158, %s159
    %p173 = scmp.eq.s32.totalorder %s20, 1
    %p174 = por %p172, %p173
    %p176 = scmp.ne.s32.totalorder %s159, %s175
    %p177 = scmp.eq.s32.totalorder %s20, 0
    %p178 = por %p176, %p177
    %s179 = ssub.s32 %s14, %s21
    %p180 = scmp.eq.s32.totalorder %s179, 0
    %s182 = sadd.s32 %s181, 1
    %s183 = scalar_select %p180, %s181, %s182
    %p186 = pneg %p180
    %p187 = scmp.eq.s32.totalorder %s14, 1
    %p188 = por %p186, %p187
    %p189 = scmp.ne.s32.totalorder %s181, %s184
    %p190 = scmp.eq.s32.totalorder %s14, 0
    %p191 = por %p189, %p190
    %p192 = scmp.ne.s32.totalorder %s181, %s184
    %p193 = scmp.eq.s32.totalorder %s19, 1
    %p194 = por %p192, %p193
    %p195 = scmp.ne.s32.totalorder %s184, %s185
    %p196 = scmp.eq.s32.totalorder %s19, 0
    %p197 = por %p195, %p196
    %p198 = scmp.ne.s32.totalorder %s184, %s185
    %p199 = scmp.eq.s32.totalorder %s20, 1
    %p200 = por %p198, %p199
    %p202 = scmp.ne.s32.totalorder %s185, %s201
    %p203 = scmp.eq.s32.totalorder %s20, 0
    %p204 = por %p202, %p203
    %p205 = scmp.le.s32.totalorder 1, %s14
    %p206 = scmp.lt.s32.totalorder %s14, 3
    %p207 = pnand %p205, %p206
    %p208 = pneg %p207
    // Predicated region
    $region9: #{block_forward.4} parent=5 // pred_check
      _
    $region10: #{block_forward.4} parent=5 // pred_check_branch
      %210 = sbr.rel (%p207) target = $region12
    $region11: #{block_forward.4} parent=5 // pred_region
      %s211 = ssub.s32 %s14, 1
      // Predicated region
      $region13: #{block_forward.4} parent=11 // pred_check
        %p212 = pneg %p61
      $region14: #{block_forward.4} parent=11 // pred_check_branch
        %214 = sbr.rel (%p212) target = $region16
      $region15: #{block_forward.4} parent=11 // pred_region
        _
      $region16: #{block_forward.4} parent=11 // pred_fallthru
        _
      // Predicated region
      $region17: #{block_forward.4} parent=11 // pred_check
        %p215 = pneg %p82
      $region18: #{block_forward.4} parent=11 // pred_check_branch
        %217 = sbr.rel (%p215) target = $region20
      $region19: #{block_forward.4} parent=11 // pred_region
        _
      $region20: #{block_forward.4} parent=11 // pred_fallthru
        _
      // Predicated region
      $region21: #{block_forward.4} parent=11 // pred_check
        %p218 = pneg %p103
      $region22: #{block_forward.4} parent=11 // pred_check_branch
        %220 = sbr.rel (%p218) target = $region24
      $region23: #{block_forward.4} parent=11 // pred_region
        _
      $region24: #{block_forward.4} parent=11 // pred_fallthru
        _
      // Predicated region
      $region25: #{block_forward.4} parent=11 // pred_check
        %p221 = pneg %p124
      $region26: #{block_forward.4} parent=11 // pred_check_branch
        %223 = sbr.rel (%p221) target = $region28
      $region27: #{block_forward.4} parent=11 // pred_region
        _
      $region28: #{block_forward.4} parent=11 // pred_fallthru
        _
      // Predicated region
      $region29: #{block_forward.4} parent=11 // pred_check
        %p224 = pneg %p145
      $region30: #{block_forward.4} parent=11 // pred_check_branch
        %226 = sbr.rel (%p224) target = $region32
      $region31: #{block_forward.4} parent=11 // pred_region
        _
      $region32: #{block_forward.4} parent=11 // pred_fallthru
        _
    $region12: #{block_forward.4} parent=5 // pred_fallthru
      _
    %p227 = scmp.lt.s32.totalorder %s14, 2
    // Predicated region
    $region33: #{block_forward.4} parent=5 // pred_check
      %p228 = pneg %p227
    $region34: #{block_forward.4} parent=5 // pred_check_branch
      %230 = sbr.rel (%p228) target = $region36
    $region35: #{block_forward.4} parent=5 // pred_region
      // Predicated region
      $region37: #{block_forward.4} parent=35 // pred_check
        %p231 = pneg %p34
      $region38: #{block_forward.4} parent=35 // pred_check_branch
        %233 = sbr.rel (%p231) target = $region40
      $region39: #{block_forward.4} parent=35 // pred_region
        %p234 = scmp.lt.s32.totalorder %s14, 1
        %s235 = scalar_select %p234, %s14, 1
        %s236 = smul.addr %s235, 42
        %s237 = smul.addr %s236, 4
        %s238 = scalar_lea.vmem %s0, %s237
      $region40: #{block_forward.4} parent=35 // pred_fallthru
        _
    $region36: #{block_forward.4} parent=5 // pred_fallthru
      _
    %p239 = scmp.le.s32.totalorder 1, %s14
    %p240 = scmp.lt.s32.totalorder %s14, 3
    %p241 = pnand %p239, %p240
    %p242 = pneg %p241
    // Predicated region
    $region41: #{block_forward.4} parent=5 // pred_check
      _
    $region42: #{block_forward.4} parent=5 // pred_check_branch
      %244 = sbr.rel (%p241) target = $region44
    $region43: #{block_forward.4} parent=5 // pred_region
      %s245 = ssub.s32 %s14, 1
      %p246 = scmp.lt.s32.totalorder %s19, 1
      %s247 = scalar_select %p246, %s19, 1
      %s248 = smul.addr %s247, 42
      %s249 = smul.addr %s248, 4
      %s250 = scalar_lea.vmem %s0, %s249
      %p251 = pneg %p40
      %p252 = pneg %p37
      %p253 = pneg %p61
      %p254 = pneg %p58
      %p255 = pneg %p82
      %p256 = pneg %p79
      %p257 = pneg %p103
      %p258 = pneg %p100
      %p259 = pneg %p124
      %p260 = pneg %p121
      %p261 = pneg %p145
      %p262 = pneg %p142
      %p263 = pneg %p171
      %p264 = pneg %p168
      %p265 = scmp.lt.s32.totalorder %s19, 1
      %s266 = scalar_select %p265, %s19, 1
      %s267 = smul.addr %s266, 36
      %s268 = smul.addr %s267, 4
      %s269 = scalar_lea.vmem %s6, %s268
      %p270 = pneg %p197
      %p271 = pneg %p194
      %p272 = scmp.lt.s32.totalorder %s19, 1
      %s273 = scalar_select %p272, %s19, 1
      %s274 = smul.addr %s273, 2
      %s275 = scalar_lea.vmem %s7, %s274
      %p276 = scmp.lt.s32.totalorder %s19, 1
      %s277 = scalar_select %p276, %s19, 1
      %s278 = smul.addr %s277, 42
      %s279 = smul.addr %s278, 4
      %s280 = scalar_lea.vmem %s0, %s279
      %p281 = scmp.lt.s32.totalorder %s19, 1
      %s282 = scalar_select %p281, %s19, 1
      %s283 = smul.addr %s282, 36
      %s284 = smul.addr %s283, 4
      %s285 = scalar_lea.vmem %s6, %s284
      %p286 = scmp.lt.s32.totalorder %s19, 1
      %s287 = scalar_select %p286, %s19, 1
      %s288 = smul.addr %s287, 2
      %s289 = scalar_lea.vmem %s7, %s288
      %v291 = vld [vmem:[%s280] sm:$0xf]
      %v292 = vld [vmem:[%s280 + $0x4] sm:$0xf]
      %v293 = vld [vmem:[%s280 + $0x8] sm:$0xf]
      %v294 = vld [vmem:[%s280 + $0xc] sm:$0xf]
      %v295 = vld [vmem:[%s280 + $0x10] sm:$0xf]
      %v296 = vld [vmem:[%s280 + $0x14] sm:$0xf]
      %v297 = vld [vmem:[%s280 + $0x18] sm:$0xf]
      %v298 = vld [vmem:[%s280 + $0x1c] sm:$0xf]
      %v299 = vld [vmem:[%s280 + $0x20] sm:$0xf]
      %v300 = vld [vmem:[%s280 + $0x24] sm:$0xf]
      %v301 = vld [vmem:[%s280 + $0x28] sm:$0xf]
      %v302 = vld [vmem:[%s280 + $0x2c] sm:$0xf]
      %v303 = vld [vmem:[%s280 + $0x30] sm:$0xf]
      %v304 = vld [vmem:[%s280 + $0x34] sm:$0xf]
      %v305 = vld [vmem:[%s280 + $0x38] sm:$0xf]
      %v306 = vld [vmem:[%s280 + $0x3c] sm:$0xf]
      %v307 = vld [vmem:[%s280 + $0x40] sm:$0xf]
      %v308 = vld [vmem:[%s280 + $0x44] sm:$0xf]
      %v309 = vld [vmem:[%s280 + $0x48] sm:$0xf]
      %v310 = vld [vmem:[%s280 + $0x4c] sm:$0xf]
      %v311 = vld [vmem:[%s280 + $0x50] sm:$0xf]
      %v312 = vld [vmem:[%s280 + $0x54] sm:$0xf]
      %v313 = vld [vmem:[%s280 + $0x58] sm:$0xf]
      %v314 = vld [vmem:[%s280 + $0x5c] sm:$0xf]
      %v315 = vld [vmem:[%s280 + $0x60] sm:$0xf]
      %v316 = vld [vmem:[%s280 + $0x64] sm:$0xf]
      %v317 = vld [vmem:[%s280 + $0x68] sm:$0xf]
      %v318 = vld [vmem:[%s280 + $0x6c] sm:$0xf]
      %v319 = vld [vmem:[%s280 + $0x70] sm:$0xf]
      %v320 = vld [vmem:[%s280 + $0x74] sm:$0xf]
      %v321 = vld [vmem:[%s280 + $0x78] sm:$0xf]
      %v322 = vld [vmem:[%s280 + $0x7c] sm:$0xf]
      %v323 = vld [vmem:[%s280 + $0x80] sm:$0xf]
      %v324 = vld [vmem:[%s280 + $0x84] sm:$0xf]
      %v325 = vld [vmem:[%s280 + $0x88] sm:$0xf]
      %v326 = vld [vmem:[%s280 + $0x8c] sm:$0xf]
      %v327 = vld [vmem:[%s280 + $0x90] sm:$0xf]
      %v328 = vld [vmem:[%s280 + $0x94] sm:$0xf]
      %v329 = vld [vmem:[%s280 + $0x98] sm:$0xf]
      %v330 = vld [vmem:[%s280 + $0x9c] sm:$0xf]
      %v331 = vld [vmem:[%s280 + $0xa0] sm:$0xf]
      %v332 = vld [vmem:[%s280 + $0xa4] sm:$0xf]
      %v333 = vld [vmem:[%s2] sm:$0x1]
      %v335 = vpack.i.b16 %v333, %v333
      %v337 = vlaneseq
      %v338 = vshrl.u32 %v337, 7
      %v339 = vsub.s32 0, %v338
      %v340 = vrot.slane %v335, %v339
      %v342 = vunpack.c.l.b16 %v340
      %v343 = vpack.c.b16 %v342, %v342
      %v345 = vmul.bf16 %v291, %v343
      %v346 = vmul.bf16 %v292, %v343
      %v347 = vmul.bf16 %v293, %v343
      %v348 = vmul.bf16 %v294, %v343
      %v349 = vmul.bf16 %v295, %v343
      %v350 = vmul.bf16 %v296, %v343
      %v351 = vmul.bf16 %v297, %v343
      %v352 = vmul.bf16 %v298, %v343
      %v353 = vmul.bf16 %v299, %v343
      %v354 = vmul.bf16 %v300, %v343
      %v355 = vmul.bf16 %v301, %v343
      %v356 = vmul.bf16 %v302, %v343
      %v357 = vmul.bf16 %v303, %v343
      %v358 = vmul.bf16 %v304, %v343
      %v359 = vmul.bf16 %v305, %v343
      %v360 = vmul.bf16 %v306, %v343
      %v361 = vmul.bf16 %v307, %v343
      %v362 = vmul.bf16 %v308, %v343
      %v363 = vmul.bf16 %v309, %v343
      %v364 = vmul.bf16 %v310, %v343
      %v365 = vmul.bf16 %v311, %v343
      %v366 = vmul.bf16 %v312, %v343
      %v367 = vmul.bf16 %v313, %v343
      %v368 = vmul.bf16 %v314, %v343
      %v369 = vmul.bf16 %v315, %v343
      %v370 = vmul.bf16 %v316, %v343
      %v371 = vmul.bf16 %v317, %v343
      %v372 = vmul.bf16 %v318, %v343
      %v373 = vmul.bf16 %v319, %v343
      %v374 = vmul.bf16 %v320, %v343
      %v375 = vmul.bf16 %v321, %v343
      %v376 = vmul.bf16 %v322, %v343
      %v377 = vmul.bf16 %v323, %v343
      %v378 = vmul.bf16 %v324, %v343
      %v379 = vmul.bf16 %v325, %v343
      %v380 = vmul.bf16 %v326, %v343
      %v381 = vmul.bf16 %v327, %v343
      %v382 = vmul.bf16 %v328, %v343
      %v383 = vmul.bf16 %v329, %v343
      %v384 = vmul.bf16 %v330, %v343
      %v385 = vmul.bf16 %v331, %v343
      %v386 = vmul.bf16 %v332, %v343
      %v387 = vld [vmem:[%s3] sm:$0x1]
      %v389 = vpack.i.b16 %v387, %v387
      %v391 = vlaneseq
      %v392 = vshrl.u32 %v391, 7
      %v393 = vsub.s32 0, %v392
      %v394 = vrot.slane %v389, %v393
      %v396 = vunpack.c.l.b16 %v394
      %v397 = vpack.c.b16 %v396, %v396
      %v399 = vadd.bf16 %v345, %v397
      %v400 = vadd.bf16 %v346, %v397
      %v401 = vadd.bf16 %v347, %v397
      %v402 = vadd.bf16 %v348, %v397
      %v403 = vadd.bf16 %v349, %v397
      %v404 = vadd.bf16 %v350, %v397
      %v405 = vadd.bf16 %v351, %v397
      %v406 = vadd.bf16 %v352, %v397
      %v407 = vadd.bf16 %v353, %v397
      %v408 = vadd.bf16 %v354, %v397
      %v409 = vadd.bf16 %v355, %v397
      %v410 = vadd.bf16 %v356, %v397
      %v411 = vadd.bf16 %v357, %v397
      %v412 = vadd.bf16 %v358, %v397
      %v413 = vadd.bf16 %v359, %v397
      %v414 = vadd.bf16 %v360, %v397
      %v415 = vadd.bf16 %v361, %v397
      %v416 = vadd.bf16 %v362, %v397
      %v417 = vadd.bf16 %v363, %v397
      %v418 = vadd.bf16 %v364, %v397
      %v419 = vadd.bf16 %v365, %v397
      %v420 = vadd.bf16 %v366, %v397
      %v421 = vadd.bf16 %v367, %v397
      %v422 = vadd.bf16 %v368, %v397
      %v423 = vadd.bf16 %v369, %v397
      %v424 = vadd.bf16 %v370, %v397
      %v425 = vadd.bf16 %v371, %v397
      %v426 = vadd.bf16 %v372, %v397
      %v427 = vadd.bf16 %v373, %v397
      %v428 = vadd.bf16 %v374, %v397
      %v429 = vadd.bf16 %v375, %v397
      %v430 = vadd.bf16 %v376, %v397
      %v431 = vadd.bf16 %v377, %v397
      %v432 = vadd.bf16 %v378, %v397
      %v433 = vadd.bf16 %v379, %v397
      %v434 = vadd.bf16 %v380, %v397
      %v435 = vadd.bf16 %v381, %v397
      %v436 = vadd.bf16 %v382, %v397
      %v437 = vadd.bf16 %v383, %v397
      %v438 = vadd.bf16 %v384, %v397
      %v439 = vadd.bf16 %v385, %v397
      %v440 = vadd.bf16 %v386, %v397
      %v441 = vmax.bf16 %v399, 0
      %v442 = vmax.bf16 %v400, 0
      %v443 = vmax.bf16 %v401, 0
      %v444 = vmax.bf16 %v402, 0
      %v445 = vmax.bf16 %v403, 0
      %v446 = vmax.bf16 %v404, 0
      %v447 = vmax.bf16 %v405, 0
      %v448 = vmax.bf16 %v406, 0
      %v449 = vmax.bf16 %v407, 0
      %v450 = vmax.bf16 %v408, 0
      %v451 = vmax.bf16 %v409, 0
      %v452 = vmax.bf16 %v410, 0
      %v453 = vmax.bf16 %v411, 0
      %v454 = vmax.bf16 %v412, 0
      %v455 = vmax.bf16 %v413, 0
      %v456 = vmax.bf16 %v414, 0
      %v457 = vmax.bf16 %v415, 0
      %v458 = vmax.bf16 %v416, 0
      %v459 = vmax.bf16 %v417, 0
      %v460 = vmax.bf16 %v418, 0
      %v461 = vmax.bf16 %v419, 0
      %v462 = vmax.bf16 %v420, 0
      %v463 = vmax.bf16 %v421, 0
      %v464 = vmax.bf16 %v422, 0
      %v465 = vmax.bf16 %v423, 0
      %v466 = vmax.bf16 %v424, 0
      %v467 = vmax.bf16 %v425, 0
      %v468 = vmax.bf16 %v426, 0
      %v469 = vmax.bf16 %v427, 0
      %v470 = vmax.bf16 %v428, 0
      %v471 = vmax.bf16 %v429, 0
      %v472 = vmax.bf16 %v430, 0
      %v473 = vmax.bf16 %v431, 0
      %v474 = vmax.bf16 %v432, 0
      %v475 = vmax.bf16 %v433, 0
      %v476 = vmax.bf16 %v434, 0
      %v477 = vmax.bf16 %v435, 0
      %v478 = vmax.bf16 %v436, 0
      %v479 = vmax.bf16 %v437, 0
      %v480 = vmax.bf16 %v438, 0
      %v481 = vmax.bf16 %v439, 0
      %v482 = vmax.bf16 %v440, 0
      %v483 = vld [vmem:[%s4] sm:$0xf]
      %v484 = vld [vmem:[%s4 + $0x4] sm:$0xf]
      %v485 = vld [vmem:[%s4 + $0x8] sm:$0xf]
      %v486 = vld [vmem:[%s4 + $0xc] sm:$0xf]
      %v487 = vld [vmem:[%s4 + $0x10] sm:$0xf]
      %v488 = vld [vmem:[%s4 + $0x14] sm:$0xf]
      %v489 = vld [vmem:[%s4 + $0x18] sm:$0xf]
      %v490 = vld [vmem:[%s4 + $0x1c] sm:$0xf]
      %v491 = vld [vmem:[%s4 + $0x20] sm:$0xf]
      %v492 = vld [vmem:[%s4 + $0x24] sm:$0xf]
      %v493 = vld [vmem:[%s4 + $0x28] sm:$0xf]
      %v494 = vld [vmem:[%s4 + $0x2c] sm:$0xf]
      %v495 = vld [vmem:[%s4 + $0x30] sm:$0xf]
      %v496 = vld [vmem:[%s4 + $0x34] sm:$0xf]
      %v497 = vld [vmem:[%s4 + $0x38] sm:$0xf]
      %v498 = vld [vmem:[%s4 + $0x3c] sm:$0xf]
      %v499 = vld [vmem:[%s4 + $0x40] sm:$0xf]
      %v500 = vld [vmem:[%s4 + $0x44] sm:$0xf]
      %v501 = vld [vmem:[%s4 + $0x48] sm:$0xf]
      %v502 = vld [vmem:[%s4 + $0x4c] sm:$0xf]
      %v503 = vld [vmem:[%s4 + $0x50] sm:$0xf]
      %v504 = vld [vmem:[%s4 + $0x54] sm:$0xf]
      %v505 = vld [vmem:[%s4 + $0x58] sm:$0xf]
      %v506 = vld [vmem:[%s4 + $0x5c] sm:$0xf]
      %v507 = vld [vmem:[%s4 + $0x60] sm:$0xf]
      %v508 = vld [vmem:[%s4 + $0x64] sm:$0xf]
      %v509 = vld [vmem:[%s4 + $0x68] sm:$0xf]
      %v510 = vld [vmem:[%s4 + $0x6c] sm:$0xf]
      %v511 = vld [vmem:[%s4 + $0x70] sm:$0xf]
      %v512 = vld [vmem:[%s4 + $0x74] sm:$0xf]
      %v513 = vld [vmem:[%s4 + $0x78] sm:$0xf]
      %v514 = vld [vmem:[%s4 + $0x7c] sm:$0xf]
      %v515 = vld [vmem:[%s4 + $0x80] sm:$0xf]
      %v516 = vld [vmem:[%s4 + $0x84] sm:$0xf]
      %v517 = vld [vmem:[%s4 + $0x88] sm:$0xf]
      %v518 = vld [vmem:[%s4 + $0x8c] sm:$0xf]
      %v519 = vld [vmem:[%s4 + $0x90] sm:$0xf]
      %v520 = vld [vmem:[%s4 + $0x94] sm:$0xf]
      %v521 = vld [vmem:[%s4 + $0x98] sm:$0xf]
      %v522 = vld [vmem:[%s4 + $0x9c] sm:$0xf]
      %v523 = vld [vmem:[%s4 + $0xa0] sm:$0xf]
      %v524 = vld [vmem:[%s4 + $0xa4] sm:$0xf]
      %v525 = vmul.bf16 %v441, %v483
      %v526 = vmul.bf16 %v442, %v484
      %v527 = vmul.bf16 %v443, %v485
      %v528 = vmul.bf16 %v444, %v486
      %v529 = vmul.bf16 %v445, %v487
      %v530 = vmul.bf16 %v446, %v488
      %v531 = vmul.bf16 %v447, %v489
      %v532 = vmul.bf16 %v448, %v490
      %v533 = vmul.bf16 %v449, %v491
      %v534 = vmul.bf16 %v450, %v492
      %v535 = vmul.bf16 %v451, %v493
      %v536 = vmul.bf16 %v452, %v494
      %v537 = vmul.bf16 %v453, %v495
      %v538 = vmul.bf16 %v454, %v496
      %v539 = vmul.bf16 %v455, %v497
      %v540 = vmul.bf16 %v456, %v498
      %v541 = vmul.bf16 %v457, %v499
      %v542 = vmul.bf16 %v458, %v500
      %v543 = vmul.bf16 %v459, %v501
      %v544 = vmul.bf16 %v460, %v502
      %v545 = vmul.bf16 %v461, %v503
      %v546 = vmul.bf16 %v462, %v504
      %v547 = vmul.bf16 %v463, %v505
      %v548 = vmul.bf16 %v464, %v506
      %v549 = vmul.bf16 %v465, %v507
      %v550 = vmul.bf16 %v466, %v508
      %v551 = vmul.bf16 %v467, %v509
      %v552 = vmul.bf16 %v468, %v510
      %v553 = vmul.bf16 %v469, %v511
      %v554 = vmul.bf16 %v470, %v512
      %v555 = vmul.bf16 %v471, %v513
      %v556 = vmul.bf16 %v472, %v514
      %v557 = vmul.bf16 %v473, %v515
      %v558 = vmul.bf16 %v474, %v516
      %v559 = vmul.bf16 %v475, %v517
      %v560 = vmul.bf16 %v476, %v518
      %v561 = vmul.bf16 %v477, %v519
      %v562 = vmul.bf16 %v478, %v520
      %v563 = vmul.bf16 %v479, %v521
      %v564 = vmul.bf16 %v480, %v522
      %v565 = vmul.bf16 %v481, %v523
      %v566 = vmul.bf16 %v482, %v524
      %v567 = vld [vmem:[%s1] sm:$0xf]
      %v568 = vld [vmem:[%s1 + $0x4] sm:$0xf]
      %v569 = vld [vmem:[%s1 + $0x8] sm:$0xf]
      %v570 = vld [vmem:[%s1 + $0xc] sm:$0xf]
      %v571 = vld [vmem:[%s1 + $0x10] sm:$0xf]
      %v572 = vld [vmem:[%s1 + $0x14] sm:$0xf]
      %v573 = vld [vmem:[%s1 + $0x18] sm:$0xf]
      %v574 = vld [vmem:[%s1 + $0x1c] sm:$0xf]
      %s575 = scalar_lea.vmem %s1, 32
      %v576 = vld [vmem:[%s575] sm:$0xf]
      %v577 = vld [vmem:[%s575 + $0x4] sm:$0xf]
      %v578 = vld [vmem:[%s575 + $0x8] sm:$0xf]
      %v579 = vld [vmem:[%s575 + $0xc] sm:$0xf]
      %v580 = vld [vmem:[%s575 + $0x10] sm:$0xf]
      %v581 = vld [vmem:[%s575 + $0x14] sm:$0xf]
      %v582 = vld [vmem:[%s575 + $0x18] sm:$0xf]
      %v583 = vld [vmem:[%s575 + $0x1c] sm:$0xf]
      %v621 = vunpack.c.l.b16 %v525
      %v622 = vunpack.c.l.b16 %v526
      %v623 = vunpack.c.l.b16 %v527
      %v624 = vunpack.c.l.b16 %v528
      %v625 = vunpack.c.l.b16 %v529
      %v626 = vunpack.c.l.b16 %v530
      %v627 = vunpack.c.l.b16 %v531
      %v628 = vunpack.c.l.b16 %v532
      %v629 = vunpack.c.l.b16 %v533
      %v630 = vunpack.c.l.b16 %v534
      %v631 = vunpack.c.l.b16 %v535
      %v632 = vunpack.c.l.b16 %v536
      %v633 = vunpack.c.l.b16 %v537
      %v634 = vunpack.c.l.b16 %v538
      %v635 = vunpack.c.l.b16 %v539
      %v636 = vunpack.c.l.b16 %v540
      %v637 = vunpack.c.l.b16 %v541
      %v638 = vunpack.c.l.b16 %v542
      %v639 = vunpack.c.l.b16 %v543
      %v640 = vunpack.c.l.b16 %v544
      %v641 = vunpack.c.l.b16 %v545
      %v642 = vunpack.c.l.b16 %v546
      %v643 = vunpack.c.l.b16 %v547
      %v644 = vunpack.c.l.b16 %v548
      %v645 = vunpack.c.l.b16 %v549
      %v646 = vunpack.c.l.b16 %v550
      %v647 = vunpack.c.l.b16 %v551
      %v648 = vunpack.c.l.b16 %v552
      %v649 = vunpack.c.l.b16 %v553
      %v650 = vunpack.c.l.b16 %v554
      %v651 = vunpack.c.l.b16 %v555
      %v652 = vunpack.c.l.b16 %v556
      %v653 = vunpack.c.l.b16 %v557
      %v654 = vunpack.c.l.b16 %v558
      %v655 = vunpack.c.l.b16 %v559
      %v656 = vunpack.c.l.b16 %v560
      %v657 = vunpack.c.l.b16 %v561
      %v658 = vpack.c.b16 %v622, %v621
      %v659 = vpack.c.b16 %v624, %v623
      %v660 = vpack.c.b16 %v626, %v625
      %v661 = vpack.c.b16 %v628, %v627
      %v662 = vpack.c.b16 %v630, %v629
      %v663 = vpack.c.b16 %v632, %v631
      %v664 = vpack.c.b16 %v634, %v633
      %v665 = vpack.c.b16 %v636, %v635
      %v666 = vpack.c.b16 %v638, %v637
      %v667 = vpack.c.b16 %v640, %v639
      %v668 = vpack.c.b16 %v642, %v641
      %v669 = vpack.c.b16 %v644, %v643
      %v670 = vpack.c.b16 %v646, %v645
      %v671 = vpack.c.b16 %v648, %v647
      %v672 = vpack.c.b16 %v650, %v649
      %v673 = vpack.c.b16 %v652, %v651
      %v674 = vpack.c.b16 %v654, %v653
      %v675 = vpack.c.b16 %v656, %v655
      %v676 = vpack.c.b16 %v657, %v657
      %vm677 = vcmask 1044480
      %v678 = vrot.slane %v658, 3
      %v679 = vrot.slane %v659, 3
      %v680 = vsel %vm677, %v678, %v679
      %v681 = vrot.slane %v660, 3
      %v682 = vsel %vm677, %v679, %v681
      %v683 = vrot.slane %v661, 3
      %v684 = vsel %vm677, %v681, %v683
      %v685 = vrot.slane %v662, 3
      %v686 = vsel %vm677, %v683, %v685
      %v687 = vrot.slane %v663, 3
      %v688 = vsel %vm677, %v685, %v687
      %v689 = vrot.slane %v664, 3
      %v690 = vsel %vm677, %v687, %v689
      %v691 = vrot.slane %v665, 3
      %v692 = vsel %vm677, %v689, %v691
      %v693 = vrot.slane %v666, 3
      %v694 = vsel %vm677, %v691, %v693
      %v695 = vrot.slane %v667, 3
      %v696 = vsel %vm677, %v693, %v695
      %v697 = vrot.slane %v668, 3
      %v698 = vsel %vm677, %v695, %v697
      %v699 = vrot.slane %v669, 3
      %v700 = vsel %vm677, %v697, %v699
      %v701 = vrot.slane %v670, 3
      %v702 = vsel %vm677, %v699, %v701
      %v703 = vrot.slane %v671, 3
      %v704 = vsel %vm677, %v701, %v703
      %v705 = vrot.slane %v672, 3
      %v706 = vsel %vm677, %v703, %v705
      %v707 = vrot.slane %v673, 3
      %v708 = vsel %vm677, %v705, %v707
      %v709 = vrot.slane %v674, 3
      %v710 = vsel %vm677, %v707, %v709
      %v711 = vrot.slane %v675, 3
      %v712 = vsel %vm677, %v709, %v711
      %v713 = vrot.slane %v676, 3
      %v714 = vsel %vm677, %v711, %v713
      %v723 = vunpack.c.l.b16 %v576
      %v724 = vunpack.c.l.b16 %v577
      %v725 = vunpack.c.l.b16 %v578
      %v726 = vunpack.c.l.b16 %v579
      %v727 = vunpack.c.l.b16 %v580
      %v728 = vunpack.c.l.b16 %v581
      %v729 = vunpack.c.l.b16 %v582
      %v730 = vunpack.c.l.b16 %v583
      %v731 = vpack.c.b16 %v724, %v723
      %v732 = vpack.c.b16 %v726, %v725
      %v733 = vpack.c.b16 %v728, %v727
      %v734 = vpack.c.b16 %v730, %v729
      %vm739 = vcmask 523264
      %v741 = vsel %vm739, %v680, 0
      %v744 = vsel %vm739, %v682, 0
      %v747 = vsel %vm739, %v684, 0
      %v750 = vsel %vm739, %v686, 0
      %v753 = vsel %vm739, %v688, 0
      %v756 = vsel %vm739, %v690, 0
      %v759 = vsel %vm739, %v692, 0
      %v762 = vsel %vm739, %v694, 0
      %v765 = vsel %vm739, %v696, 0
      %v768 = vsel %vm739, %v698, 0
      %v771 = vsel %vm739, %v700, 0
      %v774 = vsel %vm739, %v702, 0
      %v777 = vsel %vm739, %v704, 0
      %v780 = vsel %vm739, %v706, 0
      %v783 = vsel %vm739, %v708, 0
      %v786 = vsel %vm739, %v710, 0
      %v789 = vsel %vm739, %v712, 0
      %v792 = vsel %vm739, %v714, 0
      %794 = vmatprep.subr.bf16.mxu0 0
      %795 = vmatpush1.bf16.msra.mxu0 %v731
      %796 = vmatprep.subr.bf16.mxu0 0
      %797 = vmatpush1.bf16.msra.mxu0 %v732
      %798 = vmatprep.subr.bf16.mxu0 0
      %799 = vmatpush1.bf16.msra.mxu0 %v733
      %800 = vmatprep.subr.bf16.mxu0 0
      %801 = vmatpush1.bf16.msra.mxu0 %v734
      %802 = vmatprep.subr.bf16.mxu0 0
      %803 = vmatpush1.bf16.msra.mxu0 0
      %804 = vmatprep.subr.bf16.mxu0 0
      %805 = vmatpush1.bf16.msra.mxu0 0
      %806 = vmatprep.subr.bf16.mxu0 0
      %807 = vmatpush1.bf16.msra.mxu0 0
      %808 = vmatprep.subr.bf16.mxu0 0
      %809 = vmatpush1.bf16.msra.mxu0 0
      %810 = vmatprep.subr.bf16.mxu0 0
      %811 = vmatpush1.bf16.msra.mxu0 0
      %812 = vmatprep.subr.bf16.mxu0 0
      %813 = vmatpush1.bf16.msra.mxu0 0
      %814 = vmatprep.subr.bf16.mxu0 0
      %815 = vmatpush1.bf16.msra.mxu0 0
      %816 = vmatprep.subr.bf16.mxu0 0
      %817 = vmatpush1.bf16.msra.mxu0 0
      %818 = vmatprep.subr.bf16.mxu0 0
      %819 = vmatpush1.bf16.msra.mxu0 0
      %820 = vmatprep.subr.bf16.mxu0 0
      %821 = vmatpush1.bf16.msra.mxu0 0
      %822 = vmatprep.subr.bf16.mxu0 0
      %823 = vmatpush1.bf16.msra.mxu0 0
      %824 = vmatprep.subr.bf16.mxu0 0
      %825 = vmatpush1.bf16.msra.mxu0 0
      %826 = vmatprep.mubr.bf16.mxu0 0
      %827 = vmatmul.mubr.bf16.gmra.mrb[0].mxu0 %v741
      %v828 = vpop.f32.mrb[0].mxu0
      %v829 = vadd.f32 0.0, %v828
      %v830 = vpop.f32.mrb[0].mxu0
      %v831 = vpop.f32.mrb[0].mxu0
      %v832 = vadd.f32 0.0, %v831
      %v833 = vpop.f32.mrb[0].mxu0
      %834 = vmatprep.mubr.bf16.mxu0 0
      %835 = vmatmul.mubr.bf16.gmra.mrb[0].mxu0 %v744
      %v836 = vpop.f32.mrb[0].mxu0
      %v837 = vadd.f32 0.0, %v836
      %v838 = vpop.f32.mrb[0].mxu0
      %v839 = vpop.f32.mrb[0].mxu0
      %v840 = vadd.f32 0.0, %v839
      %v841 = vpop.f32.mrb[0].mxu0
      %842 = vmatprep.mubr.bf16.mxu0 0
      %843 = vmatmul.mubr.bf16.gmra.mrb[0].mxu0 %v747
      %v844 = vpop.f32.mrb[0].mxu0
      %v845 = vadd.f32 0.0, %v844
      %v846 = vpop.f32.mrb[0].mxu0
      %v847 = vpop.f32.mrb[0].mxu0
      %v848 = vadd.f32 0.0, %v847
      %v849 = vpop.f32.mrb[0].mxu0
      %850 = vmatprep.mubr.bf16.mxu0 0
      %851 = vmatmul.mubr.bf16.gmra.mrb[0].mxu0 %v750
      %v852 = vpop.f32.mrb[0].mxu0
      %v853 = vadd.f32 0.0, %v852
      %v854 = vpop.f32.mrb[0].mxu0
      %v855 = vpop.f32.mrb[0].mxu0
      %v856 = vadd.f32 0.0, %v855
      %v857 = vpop.f32.mrb[0].mxu0
      %858 = vmatprep.mubr.bf16.mxu0 0
      %859 = vmatmul.mubr.bf16.gmra.mrb[0].mxu0 %v753
      %v860 = vpop.f32.mrb[0].mxu0
      %v861 = vadd.f32 0.0, %v860
      %v862 = vpop.f32.mrb[0].mxu0
      %v863 = vpop.f32.mrb[0].mxu0
      %v864 = vadd.f32 0.0, %v863
      %v865 = vpop.f32.mrb[0].mxu0
      %866 = vmatprep.mubr.bf16.mxu0 0
      %867 = vmatmul.mubr.bf16.gmra.mrb[0].mxu0 %v756
      %v868 = vpop.f32.mrb[0].mxu0
      %v869 = vadd.f32 0.0, %v868
      %v870 = vpop.f32.mrb[0].mxu0
      %v871 = vpop.f32.mrb[0].mxu0
      %v872 = vadd.f32 0.0, %v871
      %v873 = vpop.f32.mrb[0].mxu0
      %874 = vmatprep.mubr.bf16.mxu0 0
      %875 = vmatmul.mubr.bf16.gmra.mrb[0].mxu0 %v759
      %v876 = vpop.f32.mrb[0].mxu0
      %v877 = vadd.f32 0.0, %v876
      %v878 = vpop.f32.mrb[0].mxu0
      %v879 = vpop.f32.mrb[0].mxu0
      %v880 = vadd.f32 0.0, %v879
      %v881 = vpop.f32.mrb[0].mxu0
      %882 = vmatprep.mubr.bf16.mxu0 0
      %883 = vmatmul.mubr.bf16.gmra.mrb[0].mxu0 %v762
      %v884 = vpop.f32.mrb[0].mxu0
      %v885 = vadd.f32 0.0, %v884
      %v886 = vpop.f32.mrb[0].mxu0
      %v887 = vpop.f32.mrb[0].mxu0
      %v888 = vadd.f32 0.0, %v887
      %v889 = vpop.f32.mrb[0].mxu0
      %890 = vmatprep.mubr.bf16.mxu0 0
      %891 = vmatmul.mubr.bf16.gmra.mrb[0].mxu0 %v765
      %v892 = vpop.f32.mrb[0].mxu0
      %v893 = vadd.f32 0.0, %v892
      %v894 = vpop.f32.mrb[0].mxu0
      %v895 = vpop.f32.mrb[0].mxu0
      %v896 = vadd.f32 0.0, %v895
      %v897 = vpop.f32.mrb[0].mxu0
      %898 = vmatprep.mubr.bf16.mxu0 0
      %899 = vmatmul.mubr.bf16.gmra.mrb[0].mxu0 %v768
      %v900 = vpop.f32.mrb[0].mxu0
      %v901 = vadd.f32 0.0, %v900
      %v902 = vpop.f32.mrb[0].mxu0
      %v903 = vpop.f32.mrb[0].mxu0
      %v904 = vadd.f32 0.0, %v903
      %v905 = vpop.f32.mrb[0].mxu0
      %906 = vmatprep.mubr.bf16.mxu0 0
      %907 = vmatmul.mubr.bf16.gmra.mrb[0].mxu0 %v771
      %v908 = vpop.f32.mrb[0].mxu0
      %v909 = vadd.f32 0.0, %v908
      %v910 = vpop.f32.mrb[0].mxu0
      %v911 = vpop.f32.mrb[0].mxu0
      %v912 = vadd.f32 0.0, %v911
      %v913 = vpop.f32.mrb[0].mxu0
      %914 = vmatprep.mubr.bf16.mxu0 0
      %915 = vmatmul.mubr.bf16.gmra.mrb[0].mxu0 %v774
      %v916 = vpop.f32.mrb[0].mxu0
      %v917 = vadd.f32 0.0, %v916
      %v918 = vpop.f32.mrb[0].mxu0
      %v919 = vpop.f32.mrb[0].mxu0
      %v920 = vadd.f32 0.0, %v919
      %v921 = vpop.f32.mrb[0].mxu0
      %922 = vmatprep.mubr.bf16.mxu0 0
      %923 = vmatmul.mubr.bf16.gmra.mrb[0].mxu0 %v777
      %v924 = vpop.f32.mrb[0].mxu0
      %v925 = vadd.f32 0.0, %v924
      %v926 = vpop.f32.mrb[0].mxu0
      %v927 = vpop.f32.mrb[0].mxu0
      %v928 = vadd.f32 0.0, %v927
      %v929 = vpop.f32.mrb[0].mxu0
      %930 = vmatprep.mubr.bf16.mxu0 0
      %931 = vmatmul.mubr.bf16.gmra.mrb[0].mxu0 %v780
      %v932 = vpop.f32.mrb[0].mxu0
      %v933 = vadd.f32 0.0, %v932
      %v934 = vpop.f32.mrb[0].mxu0
      %v935 = vpop.f32.mrb[0].mxu0
      %v936 = vadd.f32 0.0, %v935
      %v937 = vpop.f32.mrb[0].mxu0
      %938 = vmatprep.mubr.bf16.mxu0 0
      %939 = vmatmul.mubr.bf16.gmra.mrb[0].mxu0 %v783
      %v940 = vpop.f32.mrb[0].mxu0
      %v941 = vadd.f32 0.0, %v940
      %v942 = vpop.f32.mrb[0].mxu0
      %v943 = vpop.f32.mrb[0].mxu0
      %v944 = vadd.f32 0.0, %v943
      %v945 = vpop.f32.mrb[0].mxu0
      %946 = vmatprep.mubr.bf16.mxu0 0
      %947 = vmatmul.mubr.bf16.gmra.mrb[0].mxu0 %v786
      %v948 = vpop.f32.mrb[0].mxu0
      %v949 = vadd.f32 0.0, %v948
      %v950 = vpop.f32.mrb[0].mxu0
      %v951 = vpop.f32.mrb[0].mxu0
      %v952 = vadd.f32 0.0, %v951
      %v953 = vpop.f32.mrb[0].mxu0
      %954 = vmatprep.mubr.bf16.mxu0 0
      %955 = vmatmul.mubr.bf16.gmra.mrb[0].mxu0 %v789
      %v956 = vpop.f32.mrb[0].mxu0
      %v957 = vadd.f32 0.0, %v956
      %v958 = vpop.f32.mrb[0].mxu0
      %v959 = vpop.f32.mrb[0].mxu0
      %v960 = vadd.f32 0.0, %v959
      %v961 = vpop.f32.mrb[0].mxu0
      %962 = vmatprep.mubr.bf16.mxu0 0
      %963 = vmatmul.mubr.bf16.gmra.mrb[0].mxu0 %v792
      %v964 = vpop.f32.mrb[0].mxu0
      %v965 = vadd.f32 0.0, %v964
      %v966 = vpop.f32.mrb[0].mxu0
      %v967 = vpop.f32.mrb[0].mxu0
      %v968 = vadd.f32 0.0, %v967
      %v969 = vpop.f32.mrb[0].mxu0
      %970 = vdwg.mxu0
      %vm971 = vsmask.f32 5376
      %v973 = vshrl.u32 %v658, 16
      %v975 = vrot.slane %v973, 2
      %v976 = vshll.u32 %v658, 16
      %v978 = vrot.slane %v976, 3
      %v979 = vor.u32 %v975, %v978
      %v981 = vshrl.u32 %v659, 16
      %v983 = vrot.slane %v981, 2
      %v984 = vshll.u32 %v659, 16
      %v986 = vrot.slane %v984, 3
      %v987 = vor.u32 %v983, %v986
      %v988 = vsel %vm971, %v979, %v987
      %v990 = vshrl.u32 %v660, 16
      %v992 = vrot.slane %v990, 2
      %v993 = vshll.u32 %v660, 16
      %v995 = vrot.slane %v993, 3
      %v996 = vor.u32 %v992, %v995
      %v997 = vsel %vm971, %v987, %v996
      %v999 = vshrl.u32 %v661, 16
      %v1001 = vrot.slane %v999, 2
      %v1002 = vshll.u32 %v661, 16
      %v1004 = vrot.slane %v1002, 3
      %v1005 = vor.u32 %v1001, %v1004
      %v1006 = vsel %vm971, %v996, %v1005
      %v1008 = vshrl.u32 %v662, 16
      %v1010 = vrot.slane %v1008, 2
      %v1011 = vshll.u32 %v662, 16
      %v1013 = vrot.slane %v1011, 3
      %v1014 = vor.u32 %v1010, %v1013
      %v1015 = vsel %vm971, %v1005, %v1014
      %v1017 = vshrl.u32 %v663, 16
      %v1019 = vrot.slane %v1017, 2
      %v1020 = vshll.u32 %v663, 16
      %v1022 = vrot.slane %v1020, 3
      %v1023 = vor.u32 %v1019, %v1022
      %v1024 = vsel %vm971, %v1014, %v1023
      %v1026 = vshrl.u32 %v664, 16
      %v1028 = vrot.slane %v1026, 2
      %v1029 = vshll.u32 %v664, 16
      %v1031 = vrot.slane %v1029, 3
      %v1032 = vor.u32 %v1028, %v1031
      %v1033 = vsel %vm971, %v1023, %v1032
      %v1035 = vshrl.u32 %v665, 16
      %v1037 = vrot.slane %v1035, 2
      %v1038 = vshll.u32 %v665, 16
      %v1040 = vrot.slane %v1038, 3
      %v1041 = vor.u32 %v1037, %v1040
      %v1042 = vsel %vm971, %v1032, %v1041
      %v1044 = vshrl.u32 %v666, 16
      %v1046 = vrot.slane %v1044, 2
      %v1047 = vshll.u32 %v666, 16
      %v1049 = vrot.slane %v1047, 3
      %v1050 = vor.u32 %v1046, %v1049
      %v1051 = vsel %vm971, %v1041, %v1050
      %v1053 = vshrl.u32 %v667, 16
      %v1055 = vrot.slane %v1053, 2
      %v1056 = vshll.u32 %v667, 16
      %v1058 = vrot.slane %v1056, 3
      %v1059 = vor.u32 %v1055, %v1058
      %v1060 = vsel %vm971, %v1050, %v1059
      %v1062 = vshrl.u32 %v668, 16
      %v1064 = vrot.slane %v1062, 2
      %v1065 = vshll.u32 %v668, 16
      %v1067 = vrot.slane %v1065, 3
      %v1068 = vor.u32 %v1064, %v1067
      %v1069 = vsel %vm971, %v1059, %v1068
      %v1071 = vshrl.u32 %v669, 16
      %v1073 = vrot.slane %v1071, 2
      %v1074 = vshll.u32 %v669, 16
      %v1076 = vrot.slane %v1074, 3
      %v1077 = vor.u32 %v1073, %v1076
      %v1078 = vsel %vm971, %v1068, %v1077
      %v1080 = vshrl.u32 %v670, 16
      %v1082 = vrot.slane %v1080, 2
      %v1083 = vshll.u32 %v670, 16
      %v1085 = vrot.slane %v1083, 3
      %v1086 = vor.u32 %v1082, %v1085
      %v1087 = vsel %vm971, %v1077, %v1086
      %v1089 = vshrl.u32 %v671, 16
      %v1091 = vrot.slane %v1089, 2
      %v1092 = vshll.u32 %v671, 16
      %v1094 = vrot.slane %v1092, 3
      %v1095 = vor.u32 %v1091, %v1094
      %v1096 = vsel %vm971, %v1086, %v1095
      %v1098 = vshrl.u32 %v672, 16
      %v1100 = vrot.slane %v1098, 2
      %v1101 = vshll.u32 %v672, 16
      %v1103 = vrot.slane %v1101, 3
      %v1104 = vor.u32 %v1100, %v1103
      %v1105 = vsel %vm971, %v1095, %v1104
      %v1107 = vshrl.u32 %v673, 16
      %v1109 = vrot.slane %v1107, 2
      %v1110 = vshll.u32 %v673, 16
      %v1112 = vrot.slane %v1110, 3
      %v1113 = vor.u32 %v1109, %v1112
      %v1114 = vsel %vm971, %v1104, %v1113
      %v1116 = vshrl.u32 %v674, 16
      %v1118 = vrot.slane %v1116, 2
      %v1119 = vshll.u32 %v674, 16
      %v1121 = vrot.slane %v1119, 3
      %v1122 = vor.u32 %v1118, %v1121
      %v1123 = vsel %vm971, %v1113, %v1122
      %v1125 = vshrl.u32 %v675, 16
      %v1127 = vrot.slane %v1125, 2
      %v1128 = vshll.u32 %v675, 16
      %v1130 = vrot.slane %v1128, 3
      %v1131 = vor.u32 %v1127, %v1130
      %v1132 = vsel %vm971, %v1122, %v1131
      %v1134 = vshrl.u32 %v676, 16
      %v1136 = vrot.slane %v1134, 2
      %v1137 = vshll.u32 %v676, 16
      %v1139 = vrot.slane %v1137, 3
      %v1140 = vor.u32 %v1136, %v1139
      %v1141 = vsel %vm971, %v1131, %v1140
      %v1150 = vunpack.c.l.b16 %v567
      %v1151 = vunpack.c.l.b16 %v568
      %v1152 = vunpack.c.l.b16 %v569
      %v1153 = vunpack.c.l.b16 %v570
      %v1154 = vunpack.c.l.b16 %v571
      %v1155 = vunpack.c.l.b16 %v572
      %v1156 = vunpack.c.l.b16 %v573
      %v1157 = vunpack.c.l.b16 %v574
      %v1158 = vpack.c.b16 %v1151, %v1150
      %v1159 = vpack.c.b16 %v1153, %v1152
      %v1160 = vpack.c.b16 %v1155, %v1154
      %v1161 = vpack.c.b16 %v1157, %v1156
      %v1167 = vsel %vm739, %v988, 0
      %v1170 = vsel %vm739, %v997, 0
      %v1173 = vsel %vm739, %v1006, 0
      %v1176 = vsel %vm739, %v1015, 0
      %v1179 = vsel %vm739, %v1024, 0
      %v1182 = vsel %vm739, %v1033, 0
      %v1185 = vsel %vm739, %v1042, 0
      %v1188 = vsel %vm739, %v1051, 0
      %v1191 = vsel %vm739, %v1060, 0
      %v1194 = vsel %vm739, %v1069, 0
      %v1197 = vsel %vm739, %v1078, 0
      %v1200 = vsel %vm739, %v1087, 0
      %v1203 = vsel %vm739, %v1096, 0
      %v1206 = vsel %vm739, %v1105, 0
      %v1209 = vsel %vm739, %v1114, 0
      %v1212 = vsel %vm739, %v1123, 0
      %v1215 = vsel %vm739, %v1132, 0
      %v1218 = vsel %vm739, %v1141, 0
      %1220 = vmatprep.subr.bf16.mxu0 0
      %1221 = vmatpush1.bf16.msra.mxu0 %v1158
      %1222 = vmatprep.subr.bf16.mxu0 0
      %1223 = vmatpush1.bf16.msra.mxu0 %v1159
      %1224 = vmatprep.subr.bf16.mxu0 0
      %1225 = vmatpush1.bf16.msra.mxu0 %v1160
      %1226 = vmatprep.subr.bf16.mxu0 0
      %1227 = vmatpush1.bf16.msra.mxu0 %v1161
      %1228 = vmatprep.subr.bf16.mxu0 0
      %1229 = vmatpush1.bf16.msra.mxu0 0
      %1230 = vmatprep.subr.bf16.mxu0 0
      %1231 = vmatpush1.bf16.msra.mxu0 0
      %1232 = vmatprep.subr.bf16.mxu0 0
      %1233 = vmatpush1.bf16.msra.mxu0 0
      %1234 = vmatprep.subr.bf16.mxu0 0
      %1235 = vmatpush1.bf16.msra.mxu0 0
      %1236 = vmatprep.subr.bf16.mxu0 0
      %1237 = vmatpush1.bf16.msra.mxu0 0
      %1238 = vmatprep.subr.bf16.mxu0 0
      %1239 = vmatpush1.bf16.msra.mxu0 0
      %1240 = vmatprep.subr.bf16.mxu0 0
      %1241 = vmatpush1.bf16.msra.mxu0 0
      %1242 = vmatprep.subr.bf16.mxu0 0
      %1243 = vmatpush1.bf16.msra.mxu0 0
      %1244 = vmatprep.subr.bf16.mxu0 0
      %1245 = vmatpush1.bf16.msra.mxu0 0
      %1246 = vmatprep.subr.bf16.mxu0 0
      %1247 = vmatpush1.bf16.msra.mxu0 0
      %1248 = vmatprep.subr.bf16.mxu0 0
      %1249 = vmatpush1.bf16.msra.mxu0 0
      %1250 = vmatprep.subr.bf16.mxu0 0
      %1251 = vmatpush1.bf16.msra.mxu0 0
      %1252 = vmatprep.mubr.bf16.mxu0 0
      %1253 = vmatmul.mubr.bf16.gmra.mrb[0].mxu0 %v1167
      %v1254 = vpop.f32.mrb[0].mxu0
      %v1255 = vadd.f32 %v829, %v1254
      %v1256 = vpop.f32.mrb[0].mxu0
      %v1257 = vpop.f32.mrb[0].mxu0
      %v1258 = vadd.f32 %v832, %v1257
      %v1259 = vpop.f32.mrb[0].mxu0
      %1260 = vmatprep.mubr.bf16.mxu0 0
      %1261 = vmatmul.mubr.bf16.gmra.mrb[0].mxu0 %v1170
      %v1262 = vpop.f32.mrb[0].mxu0
      %v1263 = vadd.f32 %v837, %v1262
      %v1264 = vpop.f32.mrb[0].mxu0
      %v1265 = vpop.f32.mrb[0].mxu0
      %v1266 = vadd.f32 %v840, %v1265
      %v1267 = vpop.f32.mrb[0].mxu0
      %1268 = vmatprep.mubr.bf16.mxu0 0
      %1269 = vmatmul.mubr.bf16.gmra.mrb[0].mxu0 %v1173
      %v1270 = vpop.f32.mrb[0].mxu0
      %v1271 = vadd.f32 %v845, %v1270
      %v1272 = vpop.f32.mrb[0].mxu0
      %v1273 = vpop.f32.mrb[0].mxu0
      %v1274 = vadd.f32 %v848, %v1273
      %v1275 = vpop.f32.mrb[0].mxu0
      %1276 = vmatprep.mubr.bf16.mxu0 0
      %1277 = vmatmul.mubr.bf16.gmra.mrb[0].mxu0 %v1176
      %v1278 = vpop.f32.mrb[0].mxu0
      %v1279 = vadd.f32 %v853, %v1278
      %v1280 = vpop.f32.mrb[0].mxu0
      %v1281 = vpop.f32.mrb[0].mxu0
      %v1282 = vadd.f32 %v856, %v1281
      %v1283 = vpop.f32.mrb[0].mxu0
      %1284 = vmatprep.mubr.bf16.mxu0 0
      %1285 = vmatmul.mubr.bf16.gmra.mrb[0].mxu0 %v1179
      %v1286 = vpop.f32.mrb[0].mxu0
      %v1287 = vadd.f32 %v861, %v1286
      %v1288 = vpop.f32.mrb[0].mxu0
      %v1289 = vpop.f32.mrb[0].mxu0
      %v1290 = vadd.f32 %v864, %v1289
      %v1291 = vpop.f32.mrb[0].mxu0
      %1292 = vmatprep.mubr.bf16.mxu0 0
      %1293 = vmatmul.mubr.bf16.gmra.mrb[0].mxu0 %v1182
      %v1294 = vpop.f32.mrb[0].mxu0
      %v1295 = vadd.f32 %v869, %v1294
      %v1296 = vpop.f32.mrb[0].mxu0
      %v1297 = vpop.f32.mrb[0].mxu0
      %v1298 = vadd.f32 %v872, %v1297
      %v1299 = vpop.f32.mrb[0].mxu0
      %1300 = vmatprep.mubr.bf16.mxu0 0
      %1301 = vmatmul.mubr.bf16.gmra.mrb[0].mxu0 %v1185
      %v1302 = vpop.f32.mrb[0].mxu0
      %v1303 = vadd.f32 %v877, %v1302
      %v1304 = vpop.f32.mrb[0].mxu0
      %v1305 = vpop.f32.mrb[0].mxu0
      %v1306 = vadd.f32 %v880, %v1305
      %v1307 = vpop.f32.mrb[0].mxu0
      %1308 = vmatprep.mubr.bf16.mxu0 0
      %1309 = vmatmul.mubr.bf16.gmra.mrb[0].mxu0 %v1188
      %v1310 = vpop.f32.mrb[0].mxu0
      %v1311 = vadd.f32 %v885, %v1310
      %v1312 = vpop.f32.mrb[0].mxu0
      %v1313 = vpop.f32.mrb[0].mxu0
      %v1314 = vadd.f32 %v888, %v1313
      %v1315 = vpop.f32.mrb[0].mxu0
      %1316 = vmatprep.mubr.bf16.mxu0 0
      %1317 = vmatmul.mubr.bf16.gmra.mrb[0].mxu0 %v1191
      %v1318 = vpop.f32.mrb[0].mxu0
      %v1319 = vadd.f32 %v893, %v1318
      %v1320 = vpop.f32.mrb[0].mxu0
      %v1321 = vpop.f32.mrb[0].mxu0
      %v1322 = vadd.f32 %v896, %v1321
      %v1323 = vpop.f32.mrb[0].mxu0
      %1324 = vmatprep.mubr.bf16.mxu0 0
      %1325 = vmatmul.mubr.bf16.gmra.mrb[0].mxu0 %v1194
      %v1326 = vpop.f32.mrb[0].mxu0
      %v1327 = vadd.f32 %v901, %v1326
      %v1328 = vpop.f32.mrb[0].mxu0
      %v1329 = vpop.f32.mrb[0].mxu0
      %v1330 = vadd.f32 %v904, %v1329
      %v1331 = vpop.f32.mrb[0].mxu0
      %1332 = vmatprep.mubr.bf16.mxu0 0
      %1333 = vmatmul.mubr.bf16.gmra.mrb[0].mxu0 %v1197
      %v1334 = vpop.f32.mrb[0].mxu0
      %v1335 = vadd.f32 %v909, %v1334
      %v1336 = vpop.f32.mrb[0].mxu0
      %v1337 = vpop.f32.mrb[0].mxu0
      %v1338 = vadd.f32 %v912, %v1337
      %v1339 = vpop.f32.mrb[0].mxu0
      %1340 = vmatprep.mubr.bf16.mxu0 0
      %1341 = vmatmul.mubr.bf16.gmra.mrb[0].mxu0 %v1200
      %v1342 = vpop.f32.mrb[0].mxu0
      %v1343 = vadd.f32 %v917, %v1342
      %v1344 = vpop.f32.mrb[0].mxu0
      %v1345 = vpop.f32.mrb[0].mxu0
      %v1346 = vadd.f32 %v920, %v1345
      %v1347 = vpop.f32.mrb[0].mxu0
      %1348 = vmatprep.mubr.bf16.mxu0 0
      %1349 = vmatmul.mubr.bf16.gmra.mrb[0].mxu0 %v1203
      %v1350 = vpop.f32.mrb[0].mxu0
      %v1351 = vadd.f32 %v925, %v1350
      %v1352 = vpop.f32.mrb[0].mxu0
      %v1353 = vpop.f32.mrb[0].mxu0
      %v1354 = vadd.f32 %v928, %v1353
      %v1355 = vpop.f32.mrb[0].mxu0
      %1356 = vmatprep.mubr.bf16.mxu0 0
      %1357 = vmatmul.mubr.bf16.gmra.mrb[0].mxu0 %v1206
      %v1358 = vpop.f32.mrb[0].mxu0
      %v1359 = vadd.f32 %v933, %v1358
      %v1360 = vpop.f32.mrb[0].mxu0
      %v1361 = vpop.f32.mrb[0].mxu0
      %v1362 = vadd.f32 %v936, %v1361
      %v1363 = vpop.f32.mrb[0].mxu0
      %1364 = vmatprep.mubr.bf16.mxu0 0
      %1365 = vmatmul.mubr.bf16.gmra.mrb[0].mxu0 %v1209
      %v1366 = vpop.f32.mrb[0].mxu0
      %v1367 = vadd.f32 %v941, %v1366
      %v1368 = vpop.f32.mrb[0].mxu0
      %v1369 = vpop.f32.mrb[0].mxu0
      %v1370 = vadd.f32 %v944, %v1369
      %v1371 = vpop.f32.mrb[0].mxu0
      %1372 = vmatprep.mubr.bf16.mxu0 0
      %1373 = vmatmul.mubr.bf16.gmra.mrb[0].mxu0 %v1212
      %v1374 = vpop.f32.mrb[0].mxu0
      %v1375 = vadd.f32 %v949, %v1374
      %v1376 = vpop.f32.mrb[0].mxu0
      %v1377 = vpop.f32.mrb[0].mxu0
      %v1378 = vadd.f32 %v952, %v1377
      %v1379 = vpop.f32.mrb[0].mxu0
      %1380 = vmatprep.mubr.bf16.mxu0 0
      %1381 = vmatmul.mubr.bf16.gmra.mrb[0].mxu0 %v1215
      %v1382 = vpop.f32.mrb[0].mxu0
      %v1383 = vadd.f32 %v957, %v1382
      %v1384 = vpop.f32.mrb[0].mxu0
      %v1385 = vpop.f32.mrb[0].mxu0
      %v1386 = vadd.f32 %v960, %v1385
      %v1387 = vpop.f32.mrb[0].mxu0
      %1388 = vmatprep.mubr.bf16.mxu0 0
      %1389 = vmatmul.mubr.bf16.gmra.mrb[0].mxu0 %v1218
      %v1390 = vpop.f32.mrb[0].mxu0
      %v1391 = vadd.f32 %v965, %v1390
      %v1392 = vpop.f32.mrb[0].mxu0
      %v1393 = vpop.f32.mrb[0].mxu0
      %v1394 = vadd.f32 %v968, %v1393
      %v1395 = vpop.f32.mrb[0].mxu0
      %1396 = vdwg.mxu0
      %s1397 = scalar_lea.vmem %s1, 64
      %v1398 = vld [vmem:[%s1397] sm:$0xf]
      %v1399 = vld [vmem:[%s1397 + $0x4] sm:$0xf]
      %v1400 = vld [vmem:[%s1397 + $0x8] sm:$0xf]
      %v1401 = vld [vmem:[%s1397 + $0xc] sm:$0xf]
      %v1402 = vld [vmem:[%s1397 + $0x10] sm:$0xf]
      %v1403 = vld [vmem:[%s1397 + $0x14] sm:$0xf]
      %v1404 = vld [vmem:[%s1397 + $0x18] sm:$0xf]
      %v1405 = vld [vmem:[%s1397 + $0x1c] sm:$0xf]
      %vm1406 = vsmask.f32 4352
      %v1407 = vrot.slane %v973, 3
      %v1408 = vrot.slane %v976, 4
      %v1409 = vor.u32 %v1407, %v1408
      %v1410 = vrot.slane %v981, 3
      %v1411 = vrot.slane %v984, 4
      %v1412 = vor.u32 %v1410, %v1411
      %v1413 = vsel %vm1406, %v1409, %v1412
      %v1414 = vrot.slane %v990, 3
      %v1415 = vrot.slane %v993, 4
      %v1416 = vor.u32 %v1414, %v1415
      %v1417 = vsel %vm1406, %v1412, %v1416
      %v1418 = vrot.slane %v999, 3
      %v1419 = vrot.slane %v1002, 4
      %v1420 = vor.u32 %v1418, %v1419
      %v1421 = vsel %vm1406, %v1416, %v1420
      %v1422 = vrot.slane %v1008, 3
      %v1423 = vrot.slane %v1011, 4
      %v1424 = vor.u32 %v1422, %v1423
      %v1425 = vsel %vm1406, %v1420, %v1424
      %v1426 = vrot.slane %v1017, 3
      %v1427 = vrot.slane %v1020, 4
      %v1428 = vor.u32 %v1426, %v1427
      %v1429 = vsel %vm1406, %v1424, %v1428
      %v1430 = vrot.slane %v1026, 3
      %v1431 = vrot.slane %v1029, 4
      %v1432 = vor.u32 %v1430, %v1431
      %v1433 = vsel %vm1406, %v1428, %v1432
      %v1434 = vrot.slane %v1035, 3
      %v1435 = vrot.slane %v1038, 4
      %v1436 = vor.u32 %v1434, %v1435
      %v1437 = vsel %vm1406, %v1432, %v1436
      %v1438 = vrot.slane %v1044, 3
      %v1439 = vrot.slane %v1047, 4
      %v1440 = vor.u32 %v1438, %v1439
      %v1441 = vsel %vm1406, %v1436, %v1440
      %v1442 = vrot.slane %v1053, 3
      %v1443 = vrot.slane %v1056, 4
      %v1444 = vor.u32 %v1442, %v1443
      %v1445 = vsel %vm1406, %v1440, %v1444
      %v1446 = vrot.slane %v1062, 3
      %v1447 = vrot.slane %v1065, 4
      %v1448 = vor.u32 %v1446, %v1447
      %v1449 = vsel %vm1406, %v1444, %v1448
      %v1450 = vrot.slane %v1071, 3
      %v1451 = vrot.slane %v1074, 4
      %v1452 = vor.u32 %v1450, %v1451
      %v1453 = vsel %vm1406, %v1448, %v1452
      %v1454 = vrot.slane %v1080, 3
      %v1455 = vrot.slane %v1083, 4
      %v1456 = vor.u32 %v1454, %v1455
      %v1457 = vsel %vm1406, %v1452, %v1456
      %v1458 = vrot.slane %v1089, 3
      %v1459 = vrot.slane %v1092, 4
      %v1460 = vor.u32 %v1458, %v1459
      %v1461 = vsel %vm1406, %v1456, %v1460
      %v1462 = vrot.slane %v1098, 3
      %v1463 = vrot.slane %v1101, 4
      %v1464 = vor.u32 %v1462, %v1463
      %v1465 = vsel %vm1406, %v1460, %v1464
      %v1466 = vrot.slane %v1107, 3
      %v1467 = vrot.slane %v1110, 4
      %v1468 = vor.u32 %v1466, %v1467
      %v1469 = vsel %vm1406, %v1464, %v1468
      %v1470 = vrot.slane %v1116, 3
      %v1471 = vrot.slane %v1119, 4
      %v1472 = vor.u32 %v1470, %v1471
      %v1473 = vsel %vm1406, %v1468, %v1472
      %v1474 = vrot.slane %v1125, 3
      %v1475 = vrot.slane %v1128, 4
      %v1476 = vor.u32 %v1474, %v1475
      %v1477 = vsel %vm1406, %v1472, %v1476
      %v1478 = vrot.slane %v1134, 3
      %v1479 = vrot.slane %v1137, 4
      %v1480 = vor.u32 %v1478, %v1479
      %v1481 = vsel %vm1406, %v1476, %v1480
      %v1490 = vunpack.c.l.b16 %v1398
      %v1491 = vunpack.c.l.b16 %v1399
      %v1492 = vunpack.c.l.b16 %v1400
      %v1493 = vunpack.c.l.b16 %v1401
      %v1494 = vunpack.c.l.b16 %v1402
      %v1495 = vunpack.c.l.b16 %v1403
      %v1496 = vunpack.c.l.b16 %v1404
      %v1497 = vunpack.c.l.b16 %v1405
      %v1498 = vpack.c.b16 %v1491, %v1490
      %v1499 = vpack.c.b16 %v1493, %v1492
      %v1500 = vpack.c.b16 %v1495, %v1494
      %v1501 = vpack.c.b16 %v1497, %v1496
      %v1507 = vsel %vm739, %v1413, 0
      %v1510 = vsel %vm739, %v1417, 0
      %v1513 = vsel %vm739, %v1421, 0
      %v1516 = vsel %vm739, %v1425, 0
      %v1519 = vsel %vm739, %v1429, 0
      %v1522 = vsel %vm739, %v1433, 0
      %v1525 = vsel %vm739, %v1437, 0
      %v1528 = vsel %vm739, %v1441, 0
      %v1531 = vsel %vm739, %v1445, 0
      %v1534 = vsel %vm739, %v1449, 0
      %v1537 = vsel %vm739, %v1453, 0
      %v1540 = vsel %vm739, %v1457, 0
      %v1543 = vsel %vm739, %v1461, 0
      %v1546 = vsel %vm739, %v1465, 0
      %v1549 = vsel %vm739, %v1469, 0
      %v1552 = vsel %vm739, %v1473, 0
      %v1555 = vsel %vm739, %v1477, 0
      %v1558 = vsel %vm739, %v1481, 0
      %1560 = vmatprep.subr.bf16.mxu0 0
      %1561 = vmatpush1.bf16.msra.mxu0 %v1498
      %1562 = vmatprep.subr.bf16.mxu0 0
      %1563 = vmatpush1.bf16.msra.mxu0 %v1499
      %1564 = vmatprep.subr.bf16.mxu0 0
      %1565 = vmatpush1.bf16.msra.mxu0 %v1500
      %1566 = vmatprep.subr.bf16.mxu0 0
      %1567 = vmatpush1.bf16.msra.mxu0 %v1501
      %1568 = vmatprep.subr.bf16.mxu0 0
      %1569 = vmatpush1.bf16.msra.mxu0 0
      %1570 = vmatprep.subr.bf16.mxu0 0
      %1571 = vmatpush1.bf16.msra.mxu0 0
      %1572 = vmatprep.subr.bf16.mxu0 0
      %1573 = vmatpush1.bf16.msra.mxu0 0
      %1574 = vmatprep.subr.bf16.mxu0 0
      %1575 = vmatpush1.bf16.msra.mxu0 0
      %1576 = vmatprep.subr.bf16.mxu0 0
      %1577 = vmatpush1.bf16.msra.mxu0 0
      %1578 = vmatprep.subr.bf16.mxu0 0
      %1579 = vmatpush1.bf16.msra.mxu0 0
      %1580 = vmatprep.subr.bf16.mxu0 0
      %1581 = vmatpush1.bf16.msra.mxu0 0
      %1582 = vmatprep.subr.bf16.mxu0 0
      %1583 = vmatpush1.bf16.msra.mxu0 0
      %1584 = vmatprep.subr.bf16.mxu0 0
      %1585 = vmatpush1.bf16.msra.mxu0 0
      %1586 = vmatprep.subr.bf16.mxu0 0
      %1587 = vmatpush1.bf16.msra.mxu0 0
      %1588 = vmatprep.subr.bf16.mxu0 0
      %1589 = vmatpush1.bf16.msra.mxu0 0
      %1590 = vmatprep.subr.bf16.mxu0 0
      %1591 = vmatpush1.bf16.msra.mxu0 0
      %1592 = vmatprep.mubr.bf16.mxu0 0
      %1593 = vmatmul.mubr.bf16.gmra.mrb[0].mxu0 %v1507
      %v1594 = vpop.f32.mrb[0].mxu0
      %v1595 = vadd.f32 0.0, %v1594
      %v1596 = vpop.f32.mrb[0].mxu0
      %v1597 = vpop.f32.mrb[0].mxu0
      %v1598 = vadd.f32 0.0, %v1597
      %v1599 = vpop.f32.mrb[0].mxu0
      %1600 = vmatprep.mubr.bf16.mxu0 0
      %1601 = vmatmul.mubr.bf16.gmra.mrb[0].mxu0 %v1510
      %v1602 = vpop.f32.mrb[0].mxu0
      %v1603 = vadd.f32 0.0, %v1602
      %v1604 = vpop.f32.mrb[0].mxu0
      %v1605 = vpop.f32.mrb[0].mxu0
      %v1606 = vadd.f32 0.0, %v1605
      %v1607 = vpop.f32.mrb[0].mxu0
      %1608 = vmatprep.mubr.bf16.mxu0 0
      %1609 = vmatmul.mubr.bf16.gmra.mrb[0].mxu0 %v1513
      %v1610 = vpop.f32.mrb[0].mxu0
      %v1611 = vadd.f32 0.0, %v1610
      %v1612 = vpop.f32.mrb[0].mxu0
      %v1613 = vpop.f32.mrb[0].mxu0
      %v1614 = vadd.f32 0.0, %v1613
      %v1615 = vpop.f32.mrb[0].mxu0
      %1616 = vmatprep.mubr.bf16.mxu0 0
      %1617 = vmatmul.mubr.bf16.gmra.mrb[0].mxu0 %v1516
      %v1618 = vpop.f32.mrb[0].mxu0
      %v1619 = vadd.f32 0.0, %v1618
      %v1620 = vpop.f32.mrb[0].mxu0
      %v1621 = vpop.f32.mrb[0].mxu0
      %v1622 = vadd.f32 0.0, %v1621
      %v1623 = vpop.f32.mrb[0].mxu0
      %1624 = vmatprep.mubr.bf16.mxu0 0
      %1625 = vmatmul.mubr.bf16.gmra.mrb[0].mxu0 %v1519
      %v1626 = vpop.f32.mrb[0].mxu0
      %v1627 = vadd.f32 0.0, %v1626
      %v1628 = vpop.f32.mrb[0].mxu0
      %v1629 = vpop.f32.mrb[0].mxu0
      %v1630 = vadd.f32 0.0, %v1629
      %v1631 = vpop.f32.mrb[0].mxu0
      %1632 = vmatprep.mubr.bf16.mxu0 0
      %1633 = vmatmul.mubr.bf16.gmra.mrb[0].mxu0 %v1522
      %v1634 = vpop.f32.mrb[0].mxu0
      %v1635 = vadd.f32 0.0, %v1634
      %v1636 = vpop.f32.mrb[0].mxu0
      %v1637 = vpop.f32.mrb[0].mxu0
      %v1638 = vadd.f32 0.0, %v1637
      %v1639 = vpop.f32.mrb[0].mxu0
      %1640 = vmatprep.mubr.bf16.mxu0 0
      %1641 = vmatmul.mubr.bf16.gmra.mrb[0].mxu0 %v1525
      %v1642 = vpop.f32.mrb[0].mxu0
      %v1643 = vadd.f32 0.0, %v1642
      %v1644 = vpop.f32.mrb[0].mxu0
      %v1645 = vpop.f32.mrb[0].mxu0
      %v1646 = vadd.f32 0.0, %v1645
      %v1647 = vpop.f32.mrb[0].mxu0
      %1648 = vmatprep.mubr.bf16.mxu0 0
      %1649 = vmatmul.mubr.bf16.gmra.mrb[0].mxu0 %v1528
      %v1650 = vpop.f32.mrb[0].mxu0
      %v1651 = vadd.f32 0.0, %v1650
      %v1652 = vpop.f32.mrb[0].mxu0
      %v1653 = vpop.f32.mrb[0].mxu0
      %v1654 = vadd.f32 0.0, %v1653
      %v1655 = vpop.f32.mrb[0].mxu0
      %1656 = vmatprep.mubr.bf16.mxu0 0
      %1657 = vmatmul.mubr.bf16.gmra.mrb[0].mxu0 %v1531
      %v1658 = vpop.f32.mrb[0].mxu0
      %v1659 = vadd.f32 0.0, %v1658
      %v1660 = vpop.f32.mrb[0].mxu0
      %v1661 = vpop.f32.mrb[0].mxu0
      %v1662 = vadd.f32 0.0, %v1661
      %v1663 = vpop.f32.mrb[0].mxu0
      %1664 = vmatprep.mubr.bf16.mxu0 0
      %1665 = vmatmul.mubr.bf16.gmra.mrb[0].mxu0 %v1534
      %v1666 = vpop.f32.mrb[0].mxu0
      %v1667 = vadd.f32 0.0, %v1666
      %v1668 = vpop.f32.mrb[0].mxu0
      %v1669 = vpop.f32.mrb[0].mxu0
      %v1670 = vadd.f32 0.0, %v1669
      %v1671 = vpop.f32.mrb[0].mxu0
      %1672 = vmatprep.mubr.bf16.mxu0 0
      %1673 = vmatmul.mubr.bf16.gmra.mrb[0].mxu0 %v1537
      %v1674 = vpop.f32.mrb[0].mxu0
      %v1675 = vadd.f32 0.0, %v1674
      %v1676 = vpop.f32.mrb[0].mxu0
      %v1677 = vpop.f32.mrb[0].mxu0
      %v1678 = vadd.f32 0.0, %v1677
      %v1679 = vpop.f32.mrb[0].mxu0
      %1680 = vmatprep.mubr.bf16.mxu0 0
      %1681 = vmatmul.mubr.bf16.gmra.mrb[0].mxu0 %v1540
      %v1682 = vpop.f32.mrb[0].mxu0
      %v1683 = vadd.f32 0.0, %v1682
      %v1684 = vpop.f32.mrb[0].mxu0
      %v1685 = vpop.f32.mrb[0].mxu0
      %v1686 = vadd.f32 0.0, %v1685
      %v1687 = vpop.f32.mrb[0].mxu0
      %1688 = vmatprep.mubr.bf16.mxu0 0
      %1689 = vmatmul.mubr.bf16.gmra.mrb[0].mxu0 %v1543
      %v1690 = vpop.f32.mrb[0].mxu0
      %v1691 = vadd.f32 0.0, %v1690
      %v1692 = vpop.f32.mrb[0].mxu0
      %v1693 = vpop.f32.mrb[0].mxu0
      %v1694 = vadd.f32 0.0, %v1693
      %v1695 = vpop.f32.mrb[0].mxu0
      %1696 = vmatprep.mubr.bf16.mxu0 0
      %1697 = vmatmul.mubr.bf16.gmra.mrb[0].mxu0 %v1546
      %v1698 = vpop.f32.mrb[0].mxu0
      %v1699 = vadd.f32 0.0, %v1698
      %v1700 = vpop.f32.mrb[0].mxu0
      %v1701 = vpop.f32.mrb[0].mxu0
      %v1702 = vadd.f32 0.0, %v1701
      %v1703 = vpop.f32.mrb[0].mxu0
      %1704 = vmatprep.mubr.bf16.mxu0 0
      %1705 = vmatmul.mubr.bf16.gmra.mrb[0].mxu0 %v1549
      %v1706 = vpop.f32.mrb[0].mxu0
      %v1707 = vadd.f32 0.0, %v1706
      %v1708 = vpop.f32.mrb[0].mxu0
      %v1709 = vpop.f32.mrb[0].mxu0
      %v1710 = vadd.f32 0.0, %v1709
      %v1711 = vpop.f32.mrb[0].mxu0
      %1712 = vmatprep.mubr.bf16.mxu0 0
      %1713 = vmatmul.mubr.bf16.gmra.mrb[0].mxu0 %v1552
      %v1714 = vpop.f32.mrb[0].mxu0
      %v1715 = vadd.f32 0.0, %v1714
      %v1716 = vpop.f32.mrb[0].mxu0
      %v1717 = vpop.f32.mrb[0].mxu0
      %v1718 = vadd.f32 0.0, %v1717
      %v1719 = vpop.f32.mrb[0].mxu0
      %1720 = vmatprep.mubr.bf16.mxu0 0
      %1721 = vmatmul.mubr.bf16.gmra.mrb[0].mxu0 %v1555
      %v1722 = vpop.f32.mrb[0].mxu0
      %v1723 = vadd.f32 0.0, %v1722
      %v1724 = vpop.f32.mrb[0].mxu0
      %v1725 = vpop.f32.mrb[0].mxu0
      %v1726 = vadd.f32 0.0, %v1725
      %v1727 = vpop.f32.mrb[0].mxu0
      %1728 = vmatprep.mubr.bf16.mxu0 0
      %1729 = vmatmul.mubr.bf16.gmra.mrb[0].mxu0 %v1558
      %v1730 = vpop.f32.mrb[0].mxu0
      %v1731 = vadd.f32 0.0, %v1730
      %v1732 = vpop.f32.mrb[0].mxu0
      %v1733 = vpop.f32.mrb[0].mxu0
      %v1734 = vadd.f32 0.0, %v1733
      %v1735 = vpop.f32.mrb[0].mxu0
      %1736 = vdwg.mxu0
      %v1737 = vadd.f32 %v1255, %v1595
      %v1738 = vadd.f32 %v1258, %v1598
      %v1739 = vadd.f32 %v1263, %v1603
      %v1740 = vadd.f32 %v1266, %v1606
      %v1741 = vadd.f32 %v1271, %v1611
      %v1742 = vadd.f32 %v1274, %v1614
      %v1743 = vadd.f32 %v1279, %v1619
      %v1744 = vadd.f32 %v1282, %v1622
      %v1745 = vadd.f32 %v1287, %v1627
      %v1746 = vadd.f32 %v1290, %v1630
      %v1747 = vadd.f32 %v1295, %v1635
      %v1748 = vadd.f32 %v1298, %v1638
      %v1749 = vadd.f32 %v1303, %v1643
      %v1750 = vadd.f32 %v1306, %v1646
      %v1751 = vadd.f32 %v1311, %v1651
      %v1752 = vadd.f32 %v1314, %v1654
      %v1753 = vadd.f32 %v1319, %v1659
      %v1754 = vadd.f32 %v1322, %v1662
      %v1755 = vadd.f32 %v1327, %v1667
      %v1756 = vadd.f32 %v1330, %v1670
      %v1757 = vadd.f32 %v1335, %v1675
      %v1758 = vadd.f32 %v1338, %v1678
      %v1759 = vadd.f32 %v1343, %v1683
      %v1760 = vadd.f32 %v1346, %v1686
      %v1761 = vadd.f32 %v1351, %v1691
      %v1762 = vadd.f32 %v1354, %v1694
      %v1763 = vadd.f32 %v1359, %v1699
      %v1764 = vadd.f32 %v1362, %v1702
      %v1765 = vadd.f32 %v1367, %v1707
      %v1766 = vadd.f32 %v1370, %v1710
      %v1767 = vadd.f32 %v1375, %v1715
      %v1768 = vadd.f32 %v1378, %v1718
      %v1769 = vadd.f32 %v1383, %v1723
      %v1770 = vadd.f32 %v1386, %v1726
      %v1771 = vadd.f32 %v1391, %v1731
      %v1772 = vadd.f32 %v1394, %v1734
      %s1773 = scalar_lea.vmem %s1, 96
      %v1774 = vld [vmem:[%s1773] sm:$0xf]
      %v1775 = vld [vmem:[%s1773 + $0x4] sm:$0xf]
      %v1776 = vld [vmem:[%s1773 + $0x8] sm:$0xf]
      %v1777 = vld [vmem:[%s1773 + $0xc] sm:$0xf]
      %v1778 = vld [vmem:[%s1773 + $0x10] sm:$0xf]
      %v1779 = vld [vmem:[%s1773 + $0x14] sm:$0xf]
      %v1780 = vld [vmem:[%s1773 + $0x18] sm:$0xf]
      %v1781 = vld [vmem:[%s1773 + $0x1c] sm:$0xf]
      %v1784 = vunpack.c.l.b16 %v562
      %v1785 = vunpack.c.l.b16 %v563
      %v1786 = vpack.c.b16 %v1784, %v657
      %v1787 = vpack.c.b16 %v1785, %v1785
      %v1789 = vshrl.u32 %v1786, 16
      %v1791 = vrot.slane %v1789, 3
      %v1792 = vshll.u32 %v1786, 16
      %v1794 = vrot.slane %v1792, 4
      %v1795 = vor.u32 %v1791, %v1794
      %v1796 = vsel %vm1406, %v1476, %v1795
      %v1798 = vshrl.u32 %v1787, 16
      %v1800 = vrot.slane %v1798, 3
      %v1801 = vshll.u32 %v1787, 16
      %v1803 = vrot.slane %v1801, 4
      %v1804 = vor.u32 %v1800, %v1803
      %v1805 = vsel %vm1406, %v1795, %v1804
      %v1814 = vunpack.c.l.b16 %v1774
      %v1815 = vunpack.c.l.b16 %v1775
      %v1816 = vunpack.c.l.b16 %v1776
      %v1817 = vunpack.c.l.b16 %v1777
      %v1818 = vunpack.c.l.b16 %v1778
      %v1819 = vunpack.c.l.b16 %v1779
      %v1820 = vunpack.c.l.b16 %v1780
      %v1821 = vunpack.c.l.b16 %v1781
      %v1822 = vpack.c.b16 %v1815, %v1814
      %v1823 = vpack.c.b16 %v1817, %v1816
      %v1824 = vpack.c.b16 %v1819, %v1818
      %v1825 = vpack.c.b16 %v1821, %v1820
      %v1831 = vsel %vm739, %v1796, 0
      %v1834 = vsel %vm739, %v1805, 0
      %1836 = vmatprep.subr.bf16.mxu0 0
      %1837 = vmatpush1.bf16.msra.mxu0 %v1822
      %1838 = vmatprep.subr.bf16.mxu0 0
      %1839 = vmatpush1.bf16.msra.mxu0 %v1823
      %1840 = vmatprep.subr.bf16.mxu0 0
      %1841 = vmatpush1.bf16.msra.mxu0 %v1824
      %1842 = vmatprep.subr.bf16.mxu0 0
      %1843 = vmatpush1.bf16.msra.mxu0 %v1825
      %1844 = vmatprep.subr.bf16.mxu0 0
      %1845 = vmatpush1.bf16.msra.mxu0 0
      %1846 = vmatprep.subr.bf16.mxu0 0
      %1847 = vmatpush1.bf16.msra.mxu0 0
      %1848 = vmatprep.subr.bf16.mxu0 0
      %1849 = vmatpush1.bf16.msra.mxu0 0
      %1850 = vmatprep.subr.bf16.mxu0 0
      %1851 = vmatpush1.bf16.msra.mxu0 0
      %1852 = vmatprep.subr.bf16.mxu0 0
      %1853 = vmatpush1.bf16.msra.mxu0 0
      %1854 = vmatprep.subr.bf16.mxu0 0
      %1855 = vmatpush1.bf16.msra.mxu0 0
      %1856 = vmatprep.subr.bf16.mxu0 0
      %1857 = vmatpush1.bf16.msra.mxu0 0
      %1858 = vmatprep.subr.bf16.mxu0 0
      %1859 = vmatpush1.bf16.msra.mxu0 0
      %1860 = vmatprep.subr.bf16.mxu0 0
      %1861 = vmatpush1.bf16.msra.mxu0 0
      %1862 = vmatprep.subr.bf16.mxu0 0
      %1863 = vmatpush1.bf16.msra.mxu0 0
      %1864 = vmatprep.subr.bf16.mxu0 0
      %1865 = vmatpush1.bf16.msra.mxu0 0
      %1866 = vmatprep.subr.bf16.mxu0 0
      %1867 = vmatpush1.bf16.msra.mxu0 0
      %1868 = vmatprep.mubr.bf16.mxu0 0
      %1869 = vmatmul.mubr.bf16.gmra.mrb[0].mxu0 %v1510
      %v1870 = vpop.f32.mrb[0].mxu0
      %v1871 = vadd.f32 0.0, %v1870
      %v1872 = vpop.f32.mrb[0].mxu0
      %v1873 = vpop.f32.mrb[0].mxu0
      %v1874 = vadd.f32 0.0, %v1873
      %v1875 = vpop.f32.mrb[0].mxu0
      %1876 = vmatprep.mubr.bf16.mxu0 0
      %1877 = vmatmul.mubr.bf16.gmra.mrb[0].mxu0 %v1513
      %v1878 = vpop.f32.mrb[0].mxu0
      %v1879 = vadd.f32 0.0, %v1878
      %v1880 = vpop.f32.mrb[0].mxu0
      %v1881 = vpop.f32.mrb[0].mxu0
      %v1882 = vadd.f32 0.0, %v1881
      %v1883 = vpop.f32.mrb[0].mxu0
      %1884 = vmatprep.mubr.bf16.mxu0 0
      %1885 = vmatmul.mubr.bf16.gmra.mrb[0].mxu0 %v1516
      %v1886 = vpop.f32.mrb[0].mxu0
      %v1887 = vadd.f32 0.0, %v1886
      %v1888 = vpop.f32.mrb[0].mxu0
      %v1889 = vpop.f32.mrb[0].mxu0
      %v1890 = vadd.f32 0.0, %v1889
      %v1891 = vpop.f32.mrb[0].mxu0
      %1892 = vmatprep.mubr.bf16.mxu0 0
      %1893 = vmatmul.mubr.bf16.gmra.mrb[0].mxu0 %v1519
      %v1894 = vpop.f32.mrb[0].mxu0
      %v1895 = vadd.f32 0.0, %v1894
      %v1896 = vpop.f32.mrb[0].mxu0
      %v1897 = vpop.f32.mrb[0].mxu0
      %v1898 = vadd.f32 0.0, %v1897
      %v1899 = vpop.f32.mrb[0].mxu0
      %1900 = vmatprep.mubr.bf16.mxu0 0
      %1901 = vmatmul.mubr.bf16.gmra.mrb[0].mxu0 %v1522
      %v1902 = vpop.f32.mrb[0].mxu0
      %v1903 = vadd.f32 0.0, %v1902
      %v1904 = vpop.f32.mrb[0].mxu0
      %v1905 = vpop.f32.mrb[0].mxu0
      %v1906 = vadd.f32 0.0, %v1905
      %v1907 = vpop.f32.mrb[0].mxu0
      %1908 = vmatprep.mubr.bf16.mxu0 0
      %1909 = vmatmul.mubr.bf16.gmra.mrb[0].mxu0 %v1525
      %v1910 = vpop.f32.mrb[0].mxu0
      %v1911 = vadd.f32 0.0, %v1910
      %v1912 = vpop.f32.mrb[0].mxu0
      %v1913 = vpop.f32.mrb[0].mxu0
      %v1914 = vadd.f32 0.0, %v1913
      %v1915 = vpop.f32.mrb[0].mxu0
      %1916 = vmatprep.mubr.bf16.mxu0 0
      %1917 = vmatmul.mubr.bf16.gmra.mrb[0].mxu0 %v1528
      %v1918 = vpop.f32.mrb[0].mxu0
      %v1919 = vadd.f32 0.0, %v1918
      %v1920 = vpop.f32.mrb[0].mxu0
      %v1921 = vpop.f32.mrb[0].mxu0
      %v1922 = vadd.f32 0.0, %v1921
      %v1923 = vpop.f32.mrb[0].mxu0
      %1924 = vmatprep.mubr.bf16.mxu0 0
      %1925 = vmatmul.mubr.bf16.gmra.mrb[0].mxu0 %v1531
      %v1926 = vpop.f32.mrb[0].mxu0
      %v1927 = vadd.f32 0.0, %v1926
      %v1928 = vpop.f32.mrb[0].mxu0
      %v1929 = vpop.f32.mrb[0].mxu0
      %v1930 = vadd.f32 0.0, %v1929
      %v1931 = vpop.f32.mrb[0].mxu0
      %1932 = vmatprep.mubr.bf16.mxu0 0
      %1933 = vmatmul.mubr.bf16.gmra.mrb[0].mxu0 %v1534
      %v1934 = vpop.f32.mrb[0].mxu0
      %v1935 = vadd.f32 0.0, %v1934
      %v1936 = vpop.f32.mrb[0].mxu0
      %v1937 = vpop.f32.mrb[0].mxu0
      %v1938 = vadd.f32 0.0, %v1937
      %v1939 = vpop.f32.mrb[0].mxu0
      %1940 = vmatprep.mubr.bf16.mxu0 0
      %1941 = vmatmul.mubr.bf16.gmra.mrb[0].mxu0 %v1537
      %v1942 = vpop.f32.mrb[0].mxu0
      %v1943 = vadd.f32 0.0, %v1942
      %v1944 = vpop.f32.mrb[0].mxu0
      %v1945 = vpop.f32.mrb[0].mxu0
      %v1946 = vadd.f32 0.0, %v1945
      %v1947 = vpop.f32.mrb[0].mxu0
      %1948 = vmatprep.mubr.bf16.mxu0 0
      %1949 = vmatmul.mubr.bf16.gmra.mrb[0].mxu0 %v1540
      %v1950 = vpop.f32.mrb[0].mxu0
      %v1951 = vadd.f32 0.0, %v1950
      %v1952 = vpop.f32.mrb[0].mxu0
      %v1953 = vpop.f32.mrb[0].mxu0
      %v1954 = vadd.f32 0.0, %v1953
      %v1955 = vpop.f32.mrb[0].mxu0
      %1956 = vmatprep.mubr.bf16.mxu0 0
      %1957 = vmatmul.mubr.bf16.gmra.mrb[0].mxu0 %v1543
      %v1958 = vpop.f32.mrb[0].mxu0
      %v1959 = vadd.f32 0.0, %v1958
      %v1960 = vpop.f32.mrb[0].mxu0
      %v1961 = vpop.f32.mrb[0].mxu0
      %v1962 = vadd.f32 0.0, %v1961
      %v1963 = vpop.f32.mrb[0].mxu0
      %1964 = vmatprep.mubr.bf16.mxu0 0
      %1965 = vmatmul.mubr.bf16.gmra.mrb[0].mxu0 %v1546
      %v1966 = vpop.f32.mrb[0].mxu0
      %v1967 = vadd.f32 0.0, %v1966
      %v1968 = vpop.f32.mrb[0].mxu0
      %v1969 = vpop.f32.mrb[0].mxu0
      %v1970 = vadd.f32 0.0, %v1969
      %v1971 = vpop.f32.mrb[0].mxu0
      %1972 = vmatprep.mubr.bf16.mxu0 0
      %1973 = vmatmul.mubr.bf16.gmra.mrb[0].mxu0 %v1549
      %v1974 = vpop.f32.mrb[0].mxu0
      %v1975 = vadd.f32 0.0, %v1974
      %v1976 = vpop.f32.mrb[0].mxu0
      %v1977 = vpop.f32.mrb[0].mxu0
      %v1978 = vadd.f32 0.0, %v1977
      %v1979 = vpop.f32.mrb[0].mxu0
      %1980 = vmatprep.mubr.bf16.mxu0 0
      %1981 = vmatmul.mubr.bf16.gmra.mrb[0].mxu0 %v1552
      %v1982 = vpop.f32.mrb[0].mxu0
      %v1983 = vadd.f32 0.0, %v1982
      %v1984 = vpop.f32.mrb[0].mxu0
      %v1985 = vpop.f32.mrb[0].mxu0
      %v1986 = vadd.f32 0.0, %v1985
      %v1987 = vpop.f32.mrb[0].mxu0
      %1988 = vmatprep.mubr.bf16.mxu0 0
      %1989 = vmatmul.mubr.bf16.gmra.mrb[0].mxu0 %v1555
      %v1990 = vpop.f32.mrb[0].mxu0
      %v1991 = vadd.f32 0.0, %v1990
      %v1992 = vpop.f32.mrb[0].mxu0
      %v1993 = vpop.f32.mrb[0].mxu0
      %v1994 = vadd.f32 0.0, %v1993
      %v1995 = vpop.f32.mrb[0].mxu0
      %1996 = vmatprep.mubr.bf16.mxu0 0
      %1997 = vmatmul.mubr.bf16.gmra.mrb[0].mxu0 %v1831
      %v1998 = vpop.f32.mrb[0].mxu0
      %v1999 = vadd.f32 0.0, %v1998
      %v2000 = vpop.f32.mrb[0].mxu0
      %v2001 = vpop.f32.mrb[0].mxu0
      %v2002 = vadd.f32 0.0, %v2001
      %v2003 = vpop.f32.mrb[0].mxu0
      %2004 = vmatprep.mubr.bf16.mxu0 0
      %2005 = vmatmul.mubr.bf16.gmra.mrb[0].mxu0 %v1834
      %v2006 = vpop.f32.mrb[0].mxu0
      %v2007 = vadd.f32 0.0, %v2006
      %v2008 = vpop.f32.mrb[0].mxu0
      %v2009 = vpop.f32.mrb[0].mxu0
      %v2010 = vadd.f32 0.0, %v2009
      %v2011 = vpop.f32.mrb[0].mxu0
      %2012 = vdwg.mxu0
      %v2013 = vadd.f32 %v1737, %v1871
      %v2014 = vadd.f32 %v1738, %v1874
      %v2015 = vadd.f32 %v1739, %v1879
      %v2016 = vadd.f32 %v1740, %v1882
      %v2017 = vadd.f32 %v1741, %v1887
      %v2018 = vadd.f32 %v1742, %v1890
      %v2019 = vadd.f32 %v1743, %v1895
      %v2020 = vadd.f32 %v1744, %v1898
      %v2021 = vadd.f32 %v1745, %v1903
      %v2022 = vadd.f32 %v1746, %v1906
      %v2023 = vadd.f32 %v1747, %v1911
      %v2024 = vadd.f32 %v1748, %v1914
      %v2025 = vadd.f32 %v1749, %v1919
      %v2026 = vadd.f32 %v1750, %v1922
      %v2027 = vadd.f32 %v1751, %v1927
      %v2028 = vadd.f32 %v1752, %v1930
      %v2029 = vadd.f32 %v1753, %v1935
      %v2030 = vadd.f32 %v1754, %v1938
      %v2031 = vadd.f32 %v1755, %v1943
      %v2032 = vadd.f32 %v1756, %v1946
      %v2033 = vadd.f32 %v1757, %v1951
      %v2034 = vadd.f32 %v1758, %v1954
      %v2035 = vadd.f32 %v1759, %v1959
      %v2036 = vadd.f32 %v1760, %v1962
      %v2037 = vadd.f32 %v1761, %v1967
      %v2038 = vadd.f32 %v1762, %v1970
      %v2039 = vadd.f32 %v1763, %v1975
      %v2040 = vadd.f32 %v1764, %v1978
      %v2041 = vadd.f32 %v1765, %v1983
      %v2042 = vadd.f32 %v1766, %v1986
      %v2043 = vadd.f32 %v1767, %v1991
      %v2044 = vadd.f32 %v1768, %v1994
      %v2045 = vadd.f32 %v1769, %v1999
      %v2046 = vadd.f32 %v1770, %v2002
      %v2047 = vadd.f32 %v1771, %v2007
      %v2048 = vadd.f32 %v1772, %v2010
      %s2049 = scalar_lea.vmem %s1, 128
      %v2050 = vld [vmem:[%s2049] sm:$0xf]
      %v2051 = vld [vmem:[%s2049 + $0x4] sm:$0xf]
      %v2052 = vld [vmem:[%s2049 + $0x8] sm:$0xf]
      %v2053 = vld [vmem:[%s2049 + $0xc] sm:$0xf]
      %v2054 = vld [vmem:[%s2049 + $0x10] sm:$0xf]
      %v2055 = vld [vmem:[%s2049 + $0x14] sm:$0xf]
      %v2056 = vld [vmem:[%s2049 + $0x18] sm:$0xf]
      %v2057 = vld [vmem:[%s2049 + $0x1c] sm:$0xf]
      %v2058 = vpack.c.b16 %v625, %v624
      %v2059 = vpack.c.b16 %v627, %v626
      %v2060 = vpack.c.b16 %v629, %v628
      %v2061 = vpack.c.b16 %v631, %v630
      %v2062 = vpack.c.b16 %v633, %v632
      %v2063 = vpack.c.b16 %v635, %v634
      %v2064 = vpack.c.b16 %v637, %v636
      %v2065 = vpack.c.b16 %v639, %v638
      %v2066 = vpack.c.b16 %v641, %v640
      %v2067 = vpack.c.b16 %v643, %v642
      %v2068 = vpack.c.b16 %v645, %v644
      %v2069 = vpack.c.b16 %v647, %v646
      %v2070 = vpack.c.b16 %v649, %v648
      %v2071 = vpack.c.b16 %v651, %v650
      %v2072 = vpack.c.b16 %v653, %v652
      %v2073 = vpack.c.b16 %v655, %v654
      %v2074 = vpack.c.b16 %v657, %v656
      %v2075 = vpack.c.b16 %v1785, %v1784
      %v2084 = vunpack.c.l.b16 %v2050
      %v2085 = vunpack.c.l.b16 %v2051
      %v2086 = vunpack.c.l.b16 %v2052
      %v2087 = vunpack.c.l.b16 %v2053
      %v2088 = vunpack.c.l.b16 %v2054
      %v2089 = vunpack.c.l.b16 %v2055
      %v2090 = vunpack.c.l.b16 %v2056
      %v2091 = vunpack.c.l.b16 %v2057
      %v2092 = vpack.c.b16 %v2085, %v2084
      %v2093 = vpack.c.b16 %v2087, %v2086
      %v2094 = vpack.c.b16 %v2089, %v2088
      %v2095 = vpack.c.b16 %v2091, %v2090
      %v2101 = vsel %vm739, %v2058, 0
      %v2104 = vsel %vm739, %v2059, 0
      %v2107 = vsel %vm739, %v2060, 0
      %v2110 = vsel %vm739, %v2061, 0
      %v2113 = vsel %vm739, %v2062, 0
      %v2116 = vsel %vm739, %v2063, 0
      %v2119 = vsel %vm739, %v2064, 0
      %v2122 = vsel %vm739, %v2065, 0
      %v2125 = vsel %vm739, %v2066, 0
      %v2128 = vsel %vm739, %v2067, 0
      %v2131 = vsel %vm739, %v2068, 0
      %v2134 = vsel %vm739, %v2069, 0
      %v2137 = vsel %vm739, %v2070, 0
      %v2140 = vsel %vm739, %v2071, 0
      %v2143 = vsel %vm739, %v2072, 0
      %v2146 = vsel %vm739, %v2073, 0
      %v2149 = vsel %vm739, %v2074, 0
      %v2152 = vsel %vm739, %v2075, 0
      %2154 = vmatprep.subr.bf16.mxu0 0
      %2155 = vmatpush1.bf16.msra.mxu0 %v2092
      %2156 = vmatprep.subr.bf16.mxu0 0
      %2157 = vmatpush1.bf16.msra.mxu0 %v2093
      %2158 = vmatprep.subr.bf16.mxu0 0
      %2159 = vmatpush1.bf16.msra.mxu0 %v2094
      %2160 = vmatprep.subr.bf16.mxu0 0
      %2161 = vmatpush1.bf16.msra.mxu0 %v2095
      %2162 = vmatprep.subr.bf16.mxu0 0
      %2163 = vmatpush1.bf16.msra.mxu0 0
      %2164 = vmatprep.subr.bf16.mxu0 0
      %2165 = vmatpush1.bf16.msra.mxu0 0
      %2166 = vmatprep.subr.bf16.mxu0 0
      %2167 = vmatpush1.bf16.msra.mxu0 0
      %2168 = vmatprep.subr.bf16.mxu0 0
      %2169 = vmatpush1.bf16.msra.mxu0 0
      %2170 = vmatprep.subr.bf16.mxu0 0
      %2171 = vmatpush1.bf16.msra.mxu0 0
      %2172 = vmatprep.subr.bf16.mxu0 0
      %2173 = vmatpush1.bf16.msra.mxu0 0
      %2174 = vmatprep.subr.bf16.mxu0 0
      %2175 = vmatpush1.bf16.msra.mxu0 0
      %2176 = vmatprep.subr.bf16.mxu0 0
      %2177 = vmatpush1.bf16.msra.mxu0 0
      %2178 = vmatprep.subr.bf16.mxu0 0
      %2179 = vmatpush1.bf16.msra.mxu0 0
      %2180 = vmatprep.subr.bf16.mxu0 0
      %2181 = vmatpush1.bf16.msra.mxu0 0
      %2182 = vmatprep.subr.bf16.mxu0 0
      %2183 = vmatpush1.bf16.msra.mxu0 0
      %2184 = vmatprep.subr.bf16.mxu0 0
      %2185 = vmatpush1.bf16.msra.mxu0 0
      %2186 = vmatprep.mubr.bf16.mxu0 0
      %2187 = vmatmul.mubr.bf16.gmra.mrb[0].mxu0 %v2101
      %v2188 = vpop.f32.mrb[0].mxu0
      %v2189 = vadd.f32 0.0, %v2188
      %v2190 = vpop.f32.mrb[0].mxu0
      %v2191 = vpop.f32.mrb[0].mxu0
      %v2192 = vadd.f32 0.0, %v2191
      %v2193 = vpop.f32.mrb[0].mxu0
      %2194 = vmatprep.mubr.bf16.mxu0 0
      %2195 = vmatmul.mubr.bf16.gmra.mrb[0].mxu0 %v2104
      %v2196 = vpop.f32.mrb[0].mxu0
      %v2197 = vadd.f32 0.0, %v2196
      %v2198 = vpop.f32.mrb[0].mxu0
      %v2199 = vpop.f32.mrb[0].mxu0
      %v2200 = vadd.f32 0.0, %v2199
      %v2201 = vpop.f32.mrb[0].mxu0
      %2202 = vmatprep.mubr.bf16.mxu0 0
      %2203 = vmatmul.mubr.bf16.gmra.mrb[0].mxu0 %v2107
      %v2204 = vpop.f32.mrb[0].mxu0
      %v2205 = vadd.f32 0.0, %v2204
      %v2206 = vpop.f32.mrb[0].mxu0
      %v2207 = vpop.f32.mrb[0].mxu0
      %v2208 = vadd.f32 0.0, %v2207
      %v2209 = vpop.f32.mrb[0].mxu0
      %2210 = vmatprep.mubr.bf16.mxu0 0
      %2211 = vmatmul.mubr.bf16.gmra.mrb[0].mxu0 %v2110
      %v2212 = vpop.f32.mrb[0].mxu0
      %v2213 = vadd.f32 0.0, %v2212
      %v2214 = vpop.f32.mrb[0].mxu0
      %v2215 = vpop.f32.mrb[0].mxu0
      %v2216 = vadd.f32 0.0, %v2215
      %v2217 = vpop.f32.mrb[0].mxu0
      %2218 = vmatprep.mubr.bf16.mxu0 0
      %2219 = vmatmul.mubr.bf16.gmra.mrb[0].mxu0 %v2113
      %v2220 = vpop.f32.mrb[0].mxu0
      %v2221 = vadd.f32 0.0, %v2220
      %v2222 = vpop.f32.mrb[0].mxu0
      %v2223 = vpop.f32.mrb[0].mxu0
      %v2224 = vadd.f32 0.0, %v2223
      %v2225 = vpop.f32.mrb[0].mxu0
      %2226 = vmatprep.mubr.bf16.mxu0 0
      %2227 = vmatmul.mubr.bf16.gmra.mrb[0].mxu0 %v2116
      %v2228 = vpop.f32.mrb[0].mxu0
      %v2229 = vadd.f32 0.0, %v2228
      %v2230 = vpop.f32.mrb[0].mxu0
      %v2231 = vpop.f32.mrb[0].mxu0
      %v2232 = vadd.f32 0.0, %v2231
      %v2233 = vpop.f32.mrb[0].mxu0
      %2234 = vmatprep.mubr.bf16.mxu0 0
      %2235 = vmatmul.mubr.bf16.gmra.mrb[0].mxu0 %v2119
      %v2236 = vpop.f32.mrb[0].mxu0
      %v2237 = vadd.f32 0.0, %v2236
      %v2238 = vpop.f32.mrb[0].mxu0
      %v2239 = vpop.f32.mrb[0].mxu0
      %v2240 = vadd.f32 0.0, %v2239
      %v2241 = vpop.f32.mrb[0].mxu0
      %2242 = vmatprep.mubr.bf16.mxu0 0
      %2243 = vmatmul.mubr.bf16.gmra.mrb[0].mxu0 %v2122
      %v2244 = vpop.f32.mrb[0].mxu0
      %v2245 = vadd.f32 0.0, %v2244
      %v2246 = vpop.f32.mrb[0].mxu0
      %v2247 = vpop.f32.mrb[0].mxu0
      %v2248 = vadd.f32 0.0, %v2247
      %v2249 = vpop.f32.mrb[0].mxu0
      %2250 = vmatprep.mubr.bf16.mxu0 0
      %2251 = vmatmul.mubr.bf16.gmra.mrb[0].mxu0 %v2125
      %v2252 = vpop.f32.mrb[0].mxu0
      %v2253 = vadd.f32 0.0, %v2252
      %v2254 = vpop.f32.mrb[0].mxu0
      %v2255 = vpop.f32.mrb[0].mxu0
      %v2256 = vadd.f32 0.0, %v2255
      %v2257 = vpop.f32.mrb[0].mxu0
      %2258 = vmatprep.mubr.bf16.mxu0 0
      %2259 = vmatmul.mubr.bf16.gmra.mrb[0].mxu0 %v2128
      %v2260 = vpop.f32.mrb[0].mxu0
      %v2261 = vadd.f32 0.0, %v2260
      %v2262 = vpop.f32.mrb[0].mxu0
      %v2263 = vpop.f32.mrb[0].mxu0
      %v2264 = vadd.f32 0.0, %v2263
      %v2265 = vpop.f32.mrb[0].mxu0
      %2266 = vmatprep.mubr.bf16.mxu0 0
      %2267 = vmatmul.mubr.bf16.gmra.mrb[0].mxu0 %v2131
      %v2268 = vpop.f32.mrb[0].mxu0
      %v2269 = vadd.f32 0.0, %v2268
      %v2270 = vpop.f32.mrb[0].mxu0
      %v2271 = vpop.f32.mrb[0].mxu0
      %v2272 = vadd.f32 0.0, %v2271
      %v2273 = vpop.f32.mrb[0].mxu0
      %2274 = vmatprep.mubr.bf16.mxu0 0
      %2275 = vmatmul.mubr.bf16.gmra.mrb[0].mxu0 %v2134
      %v2276 = vpop.f32.mrb[0].mxu0
      %v2277 = vadd.f32 0.0, %v2276
      %v2278 = vpop.f32.mrb[0].mxu0
      %v2279 = vpop.f32.mrb[0].mxu0
      %v2280 = vadd.f32 0.0, %v2279
      %v2281 = vpop.f32.mrb[0].mxu0
      %2282 = vmatprep.mubr.bf16.mxu0 0
      %2283 = vmatmul.mubr.bf16.gmra.mrb[0].mxu0 %v2137
      %v2284 = vpop.f32.mrb[0].mxu0
      %v2285 = vadd.f32 0.0, %v2284
      %v2286 = vpop.f32.mrb[0].mxu0
      %v2287 = vpop.f32.mrb[0].mxu0
      %v2288 = vadd.f32 0.0, %v2287
      %v2289 = vpop.f32.mrb[0].mxu0
      %2290 = vmatprep.mubr.bf16.mxu0 0
      %2291 = vmatmul.mubr.bf16.gmra.mrb[0].mxu0 %v2140
      %v2292 = vpop.f32.mrb[0].mxu0
      %v2293 = vadd.f32 0.0, %v2292
      %v2294 = vpop.f32.mrb[0].mxu0
      %v2295 = vpop.f32.mrb[0].mxu0
      %v2296 = vadd.f32 0.0, %v2295
      %v2297 = vpop.f32.mrb[0].mxu0
      %2298 = vmatprep.mubr.bf16.mxu0 0
      %2299 = vmatmul.mubr.bf16.gmra.mrb[0].mxu0 %v2143
      %v2300 = vpop.f32.mrb[0].mxu0
      %v2301 = vadd.f32 0.0, %v2300
      %v2302 = vpop.f32.mrb[0].mxu0
      %v2303 = vpop.f32.mrb[0].mxu0
      %v2304 = vadd.f32 0.0, %v2303
      %v2305 = vpop.f32.mrb[0].mxu0
      %2306 = vmatprep.mubr.bf16.mxu0 0
      %2307 = vmatmul.mubr.bf16.gmra.mrb[0].mxu0 %v2146
      %v2308 = vpop.f32.mrb[0].mxu0
      %v2309 = vadd.f32 0.0, %v2308
      %v2310 = vpop.f32.mrb[0].mxu0
      %v2311 = vpop.f32.mrb[0].mxu0
      %v2312 = vadd.f32 0.0, %v2311
      %v2313 = vpop.f32.mrb[0].mxu0
      %2314 = vmatprep.mubr.bf16.mxu0 0
      %2315 = vmatmul.mubr.bf16.gmra.mrb[0].mxu0 %v2149
      %v2316 = vpop.f32.mrb[0].mxu0
      %v2317 = vadd.f32 0.0, %v2316
      %v2318 = vpop.f32.mrb[0].mxu0
      %v2319 = vpop.f32.mrb[0].mxu0
      %v2320 = vadd.f32 0.0, %v2319
      %v2321 = vpop.f32.mrb[0].mxu0
      %2322 = vmatprep.mubr.bf16.mxu0 0
      %2323 = vmatmul.mubr.bf16.gmra.mrb[0].mxu0 %v2152
      %v2324 = vpop.f32.mrb[0].mxu0
      %v2325 = vadd.f32 0.0, %v2324
      %v2326 = vpop.f32.mrb[0].mxu0
      %v2327 = vpop.f32.mrb[0].mxu0
      %v2328 = vadd.f32 0.0, %v2327
      %v2329 = vpop.f32.mrb[0].mxu0
      %2330 = vdwg.mxu0
      %v2331 = vadd.f32 %v2013, %v2189
      %v2332 = vadd.f32 %v2014, %v2192
      %v2333 = vadd.f32 %v2015, %v2197
      %v2334 = vadd.f32 %v2016, %v2200
      %v2335 = vadd.f32 %v2017, %v2205
      %v2336 = vadd.f32 %v2018, %v2208
      %v2337 = vadd.f32 %v2019, %v2213
      %v2338 = vadd.f32 %v2020, %v2216
      %v2339 = vadd.f32 %v2021, %v2221
      %v2340 = vadd.f32 %v2022, %v2224
      %v2341 = vadd.f32 %v2023, %v2229
      %v2342 = vadd.f32 %v2024, %v2232
      %v2343 = vadd.f32 %v2025, %v2237
      %v2344 = vadd.f32 %v2026, %v2240
      %v2345 = vadd.f32 %v2027, %v2245
      %v2346 = vadd.f32 %v2028, %v2248
      %v2347 = vadd.f32 %v2029, %v2253
      %v2348 = vadd.f32 %v2030, %v2256
      %v2349 = vadd.f32 %v2031, %v2261
      %v2350 = vadd.f32 %v2032, %v2264
      %v2351 = vadd.f32 %v2033, %v2269
      %v2352 = vadd.f32 %v2034, %v2272
      %v2353 = vadd.f32 %v2035, %v2277
      %v2354 = vadd.f32 %v2036, %v2280
      %v2355 = vadd.f32 %v2037, %v2285
      %v2356 = vadd.f32 %v2038, %v2288
      %v2357 = vadd.f32 %v2039, %v2293
      %v2358 = vadd.f32 %v2040, %v2296
      %v2359 = vadd.f32 %v2041, %v2301
      %v2360 = vadd.f32 %v2042, %v2304
      %v2361 = vadd.f32 %v2043, %v2309
      %v2362 = vadd.f32 %v2044, %v2312
      %v2363 = vadd.f32 %v2045, %v2317
      %v2364 = vadd.f32 %v2046, %v2320
      %v2365 = vadd.f32 %v2047, %v2325
      %v2366 = vadd.f32 %v2048, %v2328
      %s2367 = scalar_lea.vmem %s1, 160
      %v2368 = vld [vmem:[%s2367] sm:$0xf]
      %v2369 = vld [vmem:[%s2367 + $0x4] sm:$0xf]
      %v2370 = vld [vmem:[%s2367 + $0x8] sm:$0xf]
      %v2371 = vld [vmem:[%s2367 + $0xc] sm:$0xf]
      %v2372 = vld [vmem:[%s2367 + $0x10] sm:$0xf]
      %v2373 = vld [vmem:[%s2367 + $0x14] sm:$0xf]
      %v2374 = vld [vmem:[%s2367 + $0x18] sm:$0xf]
      %v2375 = vld [vmem:[%s2367 + $0x1c] sm:$0xf]
      %v2377 = vunpack.c.l.b16 %v564
      %v2378 = vpack.c.b16 %v2377, %v2377
      %vm2379 = vsmask.f32 7424
      %v2380 = vshrl.u32 %v2058, 16
      %v2382 = vshll.u32 %v2058, 16
      %v2384 = vrot.slane %v2382, 1
      %v2385 = vor.u32 %v2380, %v2384
      %v2386 = vshll.u32 %v2059, 16
      %v2388 = vrot.slane %v2386, 1
      %v2389 = vsel %vm2379, %v2385, %v2388
      %v2390 = vshrl.u32 %v2059, 16
      %v2392 = vor.u32 %v2390, %v2388
      %v2393 = vshll.u32 %v2060, 16
      %v2395 = vrot.slane %v2393, 1
      %v2396 = vsel %vm2379, %v2392, %v2395
      %v2397 = vshrl.u32 %v2060, 16
      %v2399 = vor.u32 %v2397, %v2395
      %v2400 = vshll.u32 %v2061, 16
      %v2402 = vrot.slane %v2400, 1
      %v2403 = vsel %vm2379, %v2399, %v2402
      %v2404 = vshrl.u32 %v2061, 16
      %v2406 = vor.u32 %v2404, %v2402
      %v2407 = vshll.u32 %v2062, 16
      %v2409 = vrot.slane %v2407, 1
      %v2410 = vsel %vm2379, %v2406, %v2409
      %v2411 = vshrl.u32 %v2062, 16
      %v2413 = vor.u32 %v2411, %v2409
      %v2414 = vshll.u32 %v2063, 16
      %v2416 = vrot.slane %v2414, 1
      %v2417 = vsel %vm2379, %v2413, %v2416
      %v2418 = vshrl.u32 %v2063, 16
      %v2420 = vor.u32 %v2418, %v2416
      %v2421 = vshll.u32 %v2064, 16
      %v2423 = vrot.slane %v2421, 1
      %v2424 = vsel %vm2379, %v2420, %v2423
      %v2425 = vshrl.u32 %v2064, 16
      %v2427 = vor.u32 %v2425, %v2423
      %v2428 = vshll.u32 %v2065, 16
      %v2430 = vrot.slane %v2428, 1
      %v2431 = vsel %vm2379, %v2427, %v2430
      %v2432 = vshrl.u32 %v2065, 16
      %v2434 = vor.u32 %v2432, %v2430
      %v2435 = vshll.u32 %v2066, 16
      %v2437 = vrot.slane %v2435, 1
      %v2438 = vsel %vm2379, %v2434, %v2437
      %v2439 = vshrl.u32 %v2066, 16
      %v2441 = vor.u32 %v2439, %v2437
      %v2442 = vshll.u32 %v2067, 16
      %v2444 = vrot.slane %v2442, 1
      %v2445 = vsel %vm2379, %v2441, %v2444
      %v2446 = vshrl.u32 %v2067, 16
      %v2448 = vor.u32 %v2446, %v2444
      %v2449 = vshll.u32 %v2068, 16
      %v2451 = vrot.slane %v2449, 1
      %v2452 = vsel %vm2379, %v2448, %v2451
      %v2453 = vshrl.u32 %v2068, 16
      %v2455 = vor.u32 %v2453, %v2451
      %v2456 = vshll.u32 %v2069, 16
      %v2458 = vrot.slane %v2456, 1
      %v2459 = vsel %vm2379, %v2455, %v2458
      %v2460 = vshrl.u32 %v2069, 16
      %v2462 = vor.u32 %v2460, %v2458
      %v2463 = vshll.u32 %v2070, 16
      %v2465 = vrot.slane %v2463, 1
      %v2466 = vsel %vm2379, %v2462, %v2465
      %v2467 = vshrl.u32 %v2070, 16
      %v2469 = vor.u32 %v2467, %v2465
      %v2470 = vshll.u32 %v2071, 16
      %v2472 = vrot.slane %v2470, 1
      %v2473 = vsel %vm2379, %v2469, %v2472
      %v2474 = vshrl.u32 %v2071, 16
      %v2476 = vor.u32 %v2474, %v2472
      %v2477 = vshll.u32 %v2072, 16
      %v2479 = vrot.slane %v2477, 1
      %v2480 = vsel %vm2379, %v2476, %v2479
      %v2481 = vshrl.u32 %v2072, 16
      %v2483 = vor.u32 %v2481, %v2479
      %v2484 = vshll.u32 %v2073, 16
      %v2486 = vrot.slane %v2484, 1
      %v2487 = vsel %vm2379, %v2483, %v2486
      %v2488 = vshrl.u32 %v2073, 16
      %v2490 = vor.u32 %v2488, %v2486
      %v2491 = vshll.u32 %v2074, 16
      %v2493 = vrot.slane %v2491, 1
      %v2494 = vsel %vm2379, %v2490, %v2493
      %v2495 = vshrl.u32 %v2074, 16
      %v2497 = vor.u32 %v2495, %v2493
      %v2498 = vshll.u32 %v2075, 16
      %v2500 = vrot.slane %v2498, 1
      %v2501 = vsel %vm2379, %v2497, %v2500
      %v2502 = vshrl.u32 %v2075, 16
      %v2504 = vor.u32 %v2502, %v2500
      %v2506 = vshll.u32 %v2378, 16
      %v2508 = vrot.slane %v2506, 1
      %v2509 = vsel %vm2379, %v2504, %v2508
      %v2518 = vunpack.c.l.b16 %v2368
      %v2519 = vunpack.c.l.b16 %v2369
      %v2520 = vunpack.c.l.b16 %v2370
      %v2521 = vunpack.c.l.b16 %v2371
      %v2522 = vunpack.c.l.b16 %v2372
      %v2523 = vunpack.c.l.b16 %v2373
      %v2524 = vunpack.c.l.b16 %v2374
      %v2525 = vunpack.c.l.b16 %v2375
      %v2526 = vpack.c.b16 %v2519, %v2518
      %v2527 = vpack.c.b16 %v2521, %v2520
      %v2528 = vpack.c.b16 %v2523, %v2522
      %v2529 = vpack.c.b16 %v2525, %v2524
      %v2535 = vsel %vm739, %v2389, 0
      %v2538 = vsel %vm739, %v2396, 0
      %v2541 = vsel %vm739, %v2403, 0
      %v2544 = vsel %vm739, %v2410, 0
      %v2547 = vsel %vm739, %v2417, 0
      %v2550 = vsel %vm739, %v2424, 0
      %v2553 = vsel %vm739, %v2431, 0
      %v2556 = vsel %vm739, %v2438, 0
      %v2559 = vsel %vm739, %v2445, 0
      %v2562 = vsel %vm739, %v2452, 0
      %v2565 = vsel %vm739, %v2459, 0
      %v2568 = vsel %vm739, %v2466, 0
      %v2571 = vsel %vm739, %v2473, 0
      %v2574 = vsel %vm739, %v2480, 0
      %v2577 = vsel %vm739, %v2487, 0
      %v2580 = vsel %vm739, %v2494, 0
      %v2583 = vsel %vm739, %v2501, 0
      %v2586 = vsel %vm739, %v2509, 0
      %2588 = vmatprep.subr.bf16.mxu0 0
      %2589 = vmatpush1.bf16.msra.mxu0 %v2526
      %2590 = vmatprep.subr.bf16.mxu0 0
      %2591 = vmatpush1.bf16.msra.mxu0 %v2527
      %2592 = vmatprep.subr.bf16.mxu0 0
      %2593 = vmatpush1.bf16.msra.mxu0 %v2528
      %2594 = vmatprep.subr.bf16.mxu0 0
      %2595 = vmatpush1.bf16.msra.mxu0 %v2529
      %2596 = vmatprep.subr.bf16.mxu0 0
      %2597 = vmatpush1.bf16.msra.mxu0 0
      %2598 = vmatprep.subr.bf16.mxu0 0
      %2599 = vmatpush1.bf16.msra.mxu0 0
      %2600 = vmatprep.subr.bf16.mxu0 0
      %2601 = vmatpush1.bf16.msra.mxu0 0
      %2602 = vmatprep.subr.bf16.mxu0 0
      %2603 = vmatpush1.bf16.msra.mxu0 0
      %2604 = vmatprep.subr.bf16.mxu0 0
      %2605 = vmatpush1.bf16.msra.mxu0 0
      %2606 = vmatprep.subr.bf16.mxu0 0
      %2607 = vmatpush1.bf16.msra.mxu0 0
      %2608 = vmatprep.subr.bf16.mxu0 0
      %2609 = vmatpush1.bf16.msra.mxu0 0
      %2610 = vmatprep.subr.bf16.mxu0 0
      %2611 = vmatpush1.bf16.msra.mxu0 0
      %2612 = vmatprep.subr.bf16.mxu0 0
      %2613 = vmatpush1.bf16.msra.mxu0 0
      %2614 = vmatprep.subr.bf16.mxu0 0
      %2615 = vmatpush1.bf16.msra.mxu0 0
      %2616 = vmatprep.subr.bf16.mxu0 0
      %2617 = vmatpush1.bf16.msra.mxu0 0
      %2618 = vmatprep.subr.bf16.mxu0 0
      %2619 = vmatpush1.bf16.msra.mxu0 0
      %2620 = vmatprep.mubr.bf16.mxu0 0
      %2621 = vmatmul.mubr.bf16.gmra.mrb[0].mxu0 %v2535
      %v2622 = vpop.f32.mrb[0].mxu0
      %v2623 = vadd.f32 0.0, %v2622
      %v2624 = vpop.f32.mrb[0].mxu0
      %v2625 = vpop.f32.mrb[0].mxu0
      %v2626 = vadd.f32 0.0, %v2625
      %v2627 = vpop.f32.mrb[0].mxu0
      %2628 = vmatprep.mubr.bf16.mxu0 0
      %2629 = vmatmul.mubr.bf16.gmra.mrb[0].mxu0 %v2538
      %v2630 = vpop.f32.mrb[0].mxu0
      %v2631 = vadd.f32 0.0, %v2630
      %v2632 = vpop.f32.mrb[0].mxu0
      %v2633 = vpop.f32.mrb[0].mxu0
      %v2634 = vadd.f32 0.0, %v2633
      %v2635 = vpop.f32.mrb[0].mxu0
      %2636 = vmatprep.mubr.bf16.mxu0 0
      %2637 = vmatmul.mubr.bf16.gmra.mrb[0].mxu0 %v2541
      %v2638 = vpop.f32.mrb[0].mxu0
      %v2639 = vadd.f32 0.0, %v2638
      %v2640 = vpop.f32.mrb[0].mxu0
      %v2641 = vpop.f32.mrb[0].mxu0
      %v2642 = vadd.f32 0.0, %v2641
      %v2643 = vpop.f32.mrb[0].mxu0
      %2644 = vmatprep.mubr.bf16.mxu0 0
      %2645 = vmatmul.mubr.bf16.gmra.mrb[0].mxu0 %v2544
      %v2646 = vpop.f32.mrb[0].mxu0
      %v2647 = vadd.f32 0.0, %v2646
      %v2648 = vpop.f32.mrb[0].mxu0
      %v2649 = vpop.f32.mrb[0].mxu0
      %v2650 = vadd.f32 0.0, %v2649
      %v2651 = vpop.f32.mrb[0].mxu0
      %2652 = vmatprep.mubr.bf16.mxu0 0
      %2653 = vmatmul.mubr.bf16.gmra.mrb[0].mxu0 %v2547
      %v2654 = vpop.f32.mrb[0].mxu0
      %v2655 = vadd.f32 0.0, %v2654
      %v2656 = vpop.f32.mrb[0].mxu0
      %v2657 = vpop.f32.mrb[0].mxu0
      %v2658 = vadd.f32 0.0, %v2657
      %v2659 = vpop.f32.mrb[0].mxu0
      %2660 = vmatprep.mubr.bf16.mxu0 0
      %2661 = vmatmul.mubr.bf16.gmra.mrb[0].mxu0 %v2550
      %v2662 = vpop.f32.mrb[0].mxu0
      %v2663 = vadd.f32 0.0, %v2662
      %v2664 = vpop.f32.mrb[0].mxu0
      %v2665 = vpop.f32.mrb[0].mxu0
      %v2666 = vadd.f32 0.0, %v2665
      %v2667 = vpop.f32.mrb[0].mxu0
      %2668 = vmatprep.mubr.bf16.mxu0 0
      %2669 = vmatmul.mubr.bf16.gmra.mrb[0].mxu0 %v2553
      %v2670 = vpop.f32.mrb[0].mxu0
      %v2671 = vadd.f32 0.0, %v2670
      %v2672 = vpop.f32.mrb[0].mxu0
      %v2673 = vpop.f32.mrb[0].mxu0
      %v2674 = vadd.f32 0.0, %v2673
      %v2675 = vpop.f32.mrb[0].mxu0
      %2676 = vmatprep.mubr.bf16.mxu0 0
      %2677 = vmatmul.mubr.bf16.gmra.mrb[0].mxu0 %v2556
      %v2678 = vpop.f32.mrb[0].mxu0
      %v2679 = vadd.f32 0.0, %v2678
      %v2680 = vpop.f32.mrb[0].mxu0
      %v2681 = vpop.f32.mrb[0].mxu0
      %v2682 = vadd.f32 0.0, %v2681
      %v2683 = vpop.f32.mrb[0].mxu0
      %2684 = vmatprep.mubr.bf16.mxu0 0
      %2685 = vmatmul.mubr.bf16.gmra.mrb[0].mxu0 %v2559
      %v2686 = vpop.f32.mrb[0].mxu0
      %v2687 = vadd.f32 0.0, %v2686
      %v2688 = vpop.f32.mrb[0].mxu0
      %v2689 = vpop.f32.mrb[0].mxu0
      %v2690 = vadd.f32 0.0, %v2689
      %v2691 = vpop.f32.mrb[0].mxu0
      %2692 = vmatprep.mubr.bf16.mxu0 0
      %2693 = vmatmul.mubr.bf16.gmra.mrb[0].mxu0 %v2562
      %v2694 = vpop.f32.mrb[0].mxu0
      %v2695 = vadd.f32 0.0, %v2694
      %v2696 = vpop.f32.mrb[0].mxu0
      %v2697 = vpop.f32.mrb[0].mxu0
      %v2698 = vadd.f32 0.0, %v2697
      %v2699 = vpop.f32.mrb[0].mxu0
      %2700 = vmatprep.mubr.bf16.mxu0 0
      %2701 = vmatmul.mubr.bf16.gmra.mrb[0].mxu0 %v2565
      %v2702 = vpop.f32.mrb[0].mxu0
      %v2703 = vadd.f32 0.0, %v2702
      %v2704 = vpop.f32.mrb[0].mxu0
      %v2705 = vpop.f32.mrb[0].mxu0
      %v2706 = vadd.f32 0.0, %v2705
      %v2707 = vpop.f32.mrb[0].mxu0
      %2708 = vmatprep.mubr.bf16.mxu0 0
      %2709 = vmatmul.mubr.bf16.gmra.mrb[0].mxu0 %v2568
      %v2710 = vpop.f32.mrb[0].mxu0
      %v2711 = vadd.f32 0.0, %v2710
      %v2712 = vpop.f32.mrb[0].mxu0
      %v2713 = vpop.f32.mrb[0].mxu0
      %v2714 = vadd.f32 0.0, %v2713
      %v2715 = vpop.f32.mrb[0].mxu0
      %2716 = vmatprep.mubr.bf16.mxu0 0
      %2717 = vmatmul.mubr.bf16.gmra.mrb[0].mxu0 %v2571
      %v2718 = vpop.f32.mrb[0].mxu0
      %v2719 = vadd.f32 0.0, %v2718
      %v2720 = vpop.f32.mrb[0].mxu0
      %v2721 = vpop.f32.mrb[0].mxu0
      %v2722 = vadd.f32 0.0, %v2721
      %v2723 = vpop.f32.mrb[0].mxu0
      %2724 = vmatprep.mubr.bf16.mxu0 0
      %2725 = vmatmul.mubr.bf16.gmra.mrb[0].mxu0 %v2574
      %v2726 = vpop.f32.mrb[0].mxu0
      %v2727 = vadd.f32 0.0, %v2726
      %v2728 = vpop.f32.mrb[0].mxu0
      %v2729 = vpop.f32.mrb[0].mxu0
      %v2730 = vadd.f32 0.0, %v2729
      %v2731 = vpop.f32.mrb[0].mxu0
      %2732 = vmatprep.mubr.bf16.mxu0 0
      %2733 = vmatmul.mubr.bf16.gmra.mrb[0].mxu0 %v2577
      %v2734 = vpop.f32.mrb[0].mxu0
      %v2735 = vadd.f32 0.0, %v2734
      %v2736 = vpop.f32.mrb[0].mxu0
      %v2737 = vpop.f32.mrb[0].mxu0
      %v2738 = vadd.f32 0.0, %v2737
      %v2739 = vpop.f32.mrb[0].mxu0
      %2740 = vmatprep.mubr.bf16.mxu0 0
      %2741 = vmatmul.mubr.bf16.gmra.mrb[0].mxu0 %v2580
      %v2742 = vpop.f32.mrb[0].mxu0
      %v2743 = vadd.f32 0.0, %v2742
      %v2744 = vpop.f32.mrb[0].mxu0
      %v2745 = vpop.f32.mrb[0].mxu0
      %v2746 = vadd.f32 0.0, %v2745
      %v2747 = vpop.f32.mrb[0].mxu0
      %2748 = vmatprep.mubr.bf16.mxu0 0
      %2749 = vmatmul.mubr.bf16.gmra.mrb[0].mxu0 %v2583
      %v2750 = vpop.f32.mrb[0].mxu0
      %v2751 = vadd.f32 0.0, %v2750
      %v2752 = vpop.f32.mrb[0].mxu0
      %v2753 = vpop.f32.mrb[0].mxu0
      %v2754 = vadd.f32 0.0, %v2753
      %v2755 = vpop.f32.mrb[0].mxu0
      %2756 = vmatprep.mubr.bf16.mxu0 0
      %2757 = vmatmul.mubr.bf16.gmra.mrb[0].mxu0 %v2586
      %v2758 = vpop.f32.mrb[0].mxu0
      %v2759 = vadd.f32 0.0, %v2758
      %v2760 = vpop.f32.mrb[0].mxu0
      %v2761 = vpop.f32.mrb[0].mxu0
      %v2762 = vadd.f32 0.0, %v2761
      %v2763 = vpop.f32.mrb[0].mxu0
      %2764 = vdwg.mxu0
      %v2765 = vadd.f32 %v2331, %v2623
      %v2766 = vadd.f32 %v2332, %v2626
      %v2767 = vadd.f32 %v2333, %v2631
      %v2768 = vadd.f32 %v2334, %v2634
      %v2769 = vadd.f32 %v2335, %v2639
      %v2770 = vadd.f32 %v2336, %v2642
      %v2771 = vadd.f32 %v2337, %v2647
      %v2772 = vadd.f32 %v2338, %v2650
      %v2773 = vadd.f32 %v2339, %v2655
      %v2774 = vadd.f32 %v2340, %v2658
      %v2775 = vadd.f32 %v2341, %v2663
      %v2776 = vadd.f32 %v2342, %v2666
      %v2777 = vadd.f32 %v2343, %v2671
      %v2778 = vadd.f32 %v2344, %v2674
      %v2779 = vadd.f32 %v2345, %v2679
      %v2780 = vadd.f32 %v2346, %v2682
      %v2781 = vadd.f32 %v2347, %v2687
      %v2782 = vadd.f32 %v2348, %v2690
      %v2783 = vadd.f32 %v2349, %v2695
      %v2784 = vadd.f32 %v2350, %v2698
      %v2785 = vadd.f32 %v2351, %v2703
      %v2786 = vadd.f32 %v2352, %v2706
      %v2787 = vadd.f32 %v2353, %v2711
      %v2788 = vadd.f32 %v2354, %v2714
      %v2789 = vadd.f32 %v2355, %v2719
      %v2790 = vadd.f32 %v2356, %v2722
      %v2791 = vadd.f32 %v2357, %v2727
      %v2792 = vadd.f32 %v2358, %v2730
      %v2793 = vadd.f32 %v2359, %v2735
      %v2794 = vadd.f32 %v2360, %v2738
      %v2795 = vadd.f32 %v2361, %v2743
      %v2796 = vadd.f32 %v2362, %v2746
      %v2797 = vadd.f32 %v2363, %v2751
      %v2798 = vadd.f32 %v2364, %v2754
      %v2799 = vadd.f32 %v2365, %v2759
      %v2800 = vadd.f32 %v2366, %v2762
      %s2801 = scalar_lea.vmem %s1, 192
      %v2802 = vld [vmem:[%s2801] sm:$0xf]
      %v2803 = vld [vmem:[%s2801 + $0x4] sm:$0xf]
      %v2804 = vld [vmem:[%s2801 + $0x8] sm:$0xf]
      %v2805 = vld [vmem:[%s2801 + $0xc] sm:$0xf]
      %v2806 = vld [vmem:[%s2801 + $0x10] sm:$0xf]
      %v2807 = vld [vmem:[%s2801 + $0x14] sm:$0xf]
      %v2808 = vld [vmem:[%s2801 + $0x18] sm:$0xf]
      %v2809 = vld [vmem:[%s2801 + $0x1c] sm:$0xf]
      %v2812 = vunpack.c.l.b16 %v565
      %v2813 = vunpack.c.l.b16 %v566
      %v2814 = vpack.c.b16 %v2812, %v2377
      %v2815 = vpack.c.b16 %v2813, %v2813
      %v2817 = vshll.u32 %v2814, 16
      %v2819 = vrot.slane %v2817, 1
      %v2820 = vsel %vm2379, %v2504, %v2819
      %v2821 = vshrl.u32 %v2814, 16
      %v2823 = vor.u32 %v2821, %v2819
      %v2825 = vshll.u32 %v2815, 16
      %v2827 = vrot.slane %v2825, 1
      %v2828 = vsel %vm2379, %v2823, %v2827
      %v2837 = vunpack.c.l.b16 %v2802
      %v2838 = vunpack.c.l.b16 %v2803
      %v2839 = vunpack.c.l.b16 %v2804
      %v2840 = vunpack.c.l.b16 %v2805
      %v2841 = vunpack.c.l.b16 %v2806
      %v2842 = vunpack.c.l.b16 %v2807
      %v2843 = vunpack.c.l.b16 %v2808
      %v2844 = vunpack.c.l.b16 %v2809
      %v2845 = vpack.c.b16 %v2838, %v2837
      %v2846 = vpack.c.b16 %v2840, %v2839
      %v2847 = vpack.c.b16 %v2842, %v2841
      %v2848 = vpack.c.b16 %v2844, %v2843
      %v2854 = vsel %vm739, %v2820, 0
      %v2857 = vsel %vm739, %v2828, 0
      %2859 = vmatprep.subr.bf16.mxu0 0
      %2860 = vmatpush1.bf16.msra.mxu0 %v2845
      %2861 = vmatprep.subr.bf16.mxu0 0
      %2862 = vmatpush1.bf16.msra.mxu0 %v2846
      %2863 = vmatprep.subr.bf16.mxu0 0
      %2864 = vmatpush1.bf16.msra.mxu0 %v2847
      %2865 = vmatprep.subr.bf16.mxu0 0
      %2866 = vmatpush1.bf16.msra.mxu0 %v2848
      %2867 = vmatprep.subr.bf16.mxu0 0
      %2868 = vmatpush1.bf16.msra.mxu0 0
      %2869 = vmatprep.subr.bf16.mxu0 0
      %2870 = vmatpush1.bf16.msra.mxu0 0
      %2871 = vmatprep.subr.bf16.mxu0 0
      %2872 = vmatpush1.bf16.msra.mxu0 0
      %2873 = vmatprep.subr.bf16.mxu0 0
      %2874 = vmatpush1.bf16.msra.mxu0 0
      %2875 = vmatprep.subr.bf16.mxu0 0
      %2876 = vmatpush1.bf16.msra.mxu0 0
      %2877 = vmatprep.subr.bf16.mxu0 0
      %2878 = vmatpush1.bf16.msra.mxu0 0
      %2879 = vmatprep.subr.bf16.mxu0 0
      %2880 = vmatpush1.bf16.msra.mxu0 0
      %2881 = vmatprep.subr.bf16.mxu0 0
      %2882 = vmatpush1.bf16.msra.mxu0 0
      %2883 = vmatprep.subr.bf16.mxu0 0
      %2884 = vmatpush1.bf16.msra.mxu0 0
      %2885 = vmatprep.subr.bf16.mxu0 0
      %2886 = vmatpush1.bf16.msra.mxu0 0
      %2887 = vmatprep.subr.bf16.mxu0 0
      %2888 = vmatpush1.bf16.msra.mxu0 0
      %2889 = vmatprep.subr.bf16.mxu0 0
      %2890 = vmatpush1.bf16.msra.mxu0 0
      %2891 = vmatprep.mubr.bf16.mxu0 0
      %2892 = vmatmul.mubr.bf16.gmra.mrb[0].mxu0 %v2538
      %v2893 = vpop.f32.mrb[0].mxu0
      %v2894 = vadd.f32 0.0, %v2893
      %v2895 = vpop.f32.mrb[0].mxu0
      %v2896 = vpop.f32.mrb[0].mxu0
      %v2897 = vadd.f32 0.0, %v2896
      %v2898 = vpop.f32.mrb[0].mxu0
      %2899 = vmatprep.mubr.bf16.mxu0 0
      %2900 = vmatmul.mubr.bf16.gmra.mrb[0].mxu0 %v2541
      %v2901 = vpop.f32.mrb[0].mxu0
      %v2902 = vadd.f32 0.0, %v2901
      %v2903 = vpop.f32.mrb[0].mxu0
      %v2904 = vpop.f32.mrb[0].mxu0
      %v2905 = vadd.f32 0.0, %v2904
      %v2906 = vpop.f32.mrb[0].mxu0
      %2907 = vmatprep.mubr.bf16.mxu0 0
      %2908 = vmatmul.mubr.bf16.gmra.mrb[0].mxu0 %v2544
      %v2909 = vpop.f32.mrb[0].mxu0
      %v2910 = vadd.f32 0.0, %v2909
      %v2911 = vpop.f32.mrb[0].mxu0
      %v2912 = vpop.f32.mrb[0].mxu0
      %v2913 = vadd.f32 0.0, %v2912
      %v2914 = vpop.f32.mrb[0].mxu0
      %2915 = vmatprep.mubr.bf16.mxu0 0
      %2916 = vmatmul.mubr.bf16.gmra.mrb[0].mxu0 %v2547
      %v2917 = vpop.f32.mrb[0].mxu0
      %v2918 = vadd.f32 0.0, %v2917
      %v2919 = vpop.f32.mrb[0].mxu0
      %v2920 = vpop.f32.mrb[0].mxu0
      %v2921 = vadd.f32 0.0, %v2920
      %v2922 = vpop.f32.mrb[0].mxu0
      %2923 = vmatprep.mubr.bf16.mxu0 0
      %2924 = vmatmul.mubr.bf16.gmra.mrb[0].mxu0 %v2550
      %v2925 = vpop.f32.mrb[0].mxu0
      %v2926 = vadd.f32 0.0, %v2925
      %v2927 = vpop.f32.mrb[0].mxu0
      %v2928 = vpop.f32.mrb[0].mxu0
      %v2929 = vadd.f32 0.0, %v2928
      %v2930 = vpop.f32.mrb[0].mxu0
      %2931 = vmatprep.mubr.bf16.mxu0 0
      %2932 = vmatmul.mubr.bf16.gmra.mrb[0].mxu0 %v2553
      %v2933 = vpop.f32.mrb[0].mxu0
      %v2934 = vadd.f32 0.0, %v2933
      %v2935 = vpop.f32.mrb[0].mxu0
      %v2936 = vpop.f32.mrb[0].mxu0
      %v2937 = vadd.f32 0.0, %v2936
      %v2938 = vpop.f32.mrb[0].mxu0
      %2939 = vmatprep.mubr.bf16.mxu0 0
      %2940 = vmatmul.mubr.bf16.gmra.mrb[0].mxu0 %v2556
      %v2941 = vpop.f32.mrb[0].mxu0
      %v2942 = vadd.f32 0.0, %v2941
      %v2943 = vpop.f32.mrb[0].mxu0
      %v2944 = vpop.f32.mrb[0].mxu0
      %v2945 = vadd.f32 0.0, %v2944
      %v2946 = vpop.f32.mrb[0].mxu0
      %2947 = vmatprep.mubr.bf16.mxu0 0
      %2948 = vmatmul.mubr.bf16.gmra.mrb[0].mxu0 %v2559
      %v2949 = vpop.f32.mrb[0].mxu0
      %v2950 = vadd.f32 0.0, %v2949
      %v2951 = vpop.f32.mrb[0].mxu0
      %v2952 = vpop.f32.mrb[0].mxu0
      %v2953 = vadd.f32 0.0, %v2952
      %v2954 = vpop.f32.mrb[0].mxu0
      %2955 = vmatprep.mubr.bf16.mxu0 0
      %2956 = vmatmul.mubr.bf16.gmra.mrb[0].mxu0 %v2562
      %v2957 = vpop.f32.mrb[0].mxu0
      %v2958 = vadd.f32 0.0, %v2957
      %v2959 = vpop.f32.mrb[0].mxu0
      %v2960 = vpop.f32.mrb[0].mxu0
      %v2961 = vadd.f32 0.0, %v2960
      %v2962 = vpop.f32.mrb[0].mxu0
      %2963 = vmatprep.mubr.bf16.mxu0 0
      %2964 = vmatmul.mubr.bf16.gmra.mrb[0].mxu0 %v2565
      %v2965 = vpop.f32.mrb[0].mxu0
      %v2966 = vadd.f32 0.0, %v2965
      %v2967 = vpop.f32.mrb[0].mxu0
      %v2968 = vpop.f32.mrb[0].mxu0
      %v2969 = vadd.f32 0.0, %v2968
      %v2970 = vpop.f32.mrb[0].mxu0
      %2971 = vmatprep.mubr.bf16.mxu0 0
      %2972 = vmatmul.mubr.bf16.gmra.mrb[0].mxu0 %v2568
      %v2973 = vpop.f32.mrb[0].mxu0
      %v2974 = vadd.f32 0.0, %v2973
      %v2975 = vpop.f32.mrb[0].mxu0
      %v2976 = vpop.f32.mrb[0].mxu0
      %v2977 = vadd.f32 0.0, %v2976
      %v2978 = vpop.f32.mrb[0].mxu0
      %2979 = vmatprep.mubr.bf16.mxu0 0
      %2980 = vmatmul.mubr.bf16.gmra.mrb[0].mxu0 %v2571
      %v2981 = vpop.f32.mrb[0].mxu0
      %v2982 = vadd.f32 0.0, %v2981
      %v2983 = vpop.f32.mrb[0].mxu0
      %v2984 = vpop.f32.mrb[0].mxu0
      %v2985 = vadd.f32 0.0, %v2984
      %v2986 = vpop.f32.mrb[0].mxu0
      %2987 = vmatprep.mubr.bf16.mxu0 0
      %2988 = vmatmul.mubr.bf16.gmra.mrb[0].mxu0 %v2574
      %v2989 = vpop.f32.mrb[0].mxu0
      %v2990 = vadd.f32 0.0, %v2989
      %v2991 = vpop.f32.mrb[0].mxu0
      %v2992 = vpop.f32.mrb[0].mxu0
      %v2993 = vadd.f32 0.0, %v2992
      %v2994 = vpop.f32.mrb[0].mxu0
      %2995 = vmatprep.mubr.bf16.mxu0 0
      %2996 = vmatmul.mubr.bf16.gmra.mrb[0].mxu0 %v2577
      %v2997 = vpop.f32.mrb[0].mxu0
      %v2998 = vadd.f32 0.0, %v2997
      %v2999 = vpop.f32.mrb[0].mxu0
      %v3000 = vpop.f32.mrb[0].mxu0
      %v3001 = vadd.f32 0.0, %v3000
      %v3002 = vpop.f32.mrb[0].mxu0
      %3003 = vmatprep.mubr.bf16.mxu0 0
      %3004 = vmatmul.mubr.bf16.gmra.mrb[0].mxu0 %v2580
      %v3005 = vpop.f32.mrb[0].mxu0
      %v3006 = vadd.f32 0.0, %v3005
      %v3007 = vpop.f32.mrb[0].mxu0
      %v3008 = vpop.f32.mrb[0].mxu0
      %v3009 = vadd.f32 0.0, %v3008
      %v3010 = vpop.f32.mrb[0].mxu0
      %3011 = vmatprep.mubr.bf16.mxu0 0
      %3012 = vmatmul.mubr.bf16.gmra.mrb[0].mxu0 %v2583
      %v3013 = vpop.f32.mrb[0].mxu0
      %v3014 = vadd.f32 0.0, %v3013
      %v3015 = vpop.f32.mrb[0].mxu0
      %v3016 = vpop.f32.mrb[0].mxu0
      %v3017 = vadd.f32 0.0, %v3016
      %v3018 = vpop.f32.mrb[0].mxu0
      %3019 = vmatprep.mubr.bf16.mxu0 0
      %3020 = vmatmul.mubr.bf16.gmra.mrb[0].mxu0 %v2854
      %v3021 = vpop.f32.mrb[0].mxu0
      %v3022 = vadd.f32 0.0, %v3021
      %v3023 = vpop.f32.mrb[0].mxu0
      %v3024 = vpop.f32.mrb[0].mxu0
      %v3025 = vadd.f32 0.0, %v3024
      %v3026 = vpop.f32.mrb[0].mxu0
      %3027 = vmatprep.mubr.bf16.mxu0 0
      %3028 = vmatmul.mubr.bf16.gmra.mrb[0].mxu0 %v2857
      %v3029 = vpop.f32.mrb[0].mxu0
      %v3030 = vadd.f32 0.0, %v3029
      %v3031 = vpop.f32.mrb[0].mxu0
      %v3032 = vpop.f32.mrb[0].mxu0
      %v3033 = vadd.f32 0.0, %v3032
      %v3034 = vpop.f32.mrb[0].mxu0
      %3035 = vdwg.mxu0
      %v3036 = vadd.f32 %v2765, %v2894
      %v3037 = vadd.f32 %v2766, %v2897
      %v3038 = vadd.f32 %v2767, %v2902
      %v3039 = vadd.f32 %v2768, %v2905
      %v3040 = vadd.f32 %v2769, %v2910
      %v3041 = vadd.f32 %v2770, %v2913
      %v3042 = vadd.f32 %v2771, %v2918
      %v3043 = vadd.f32 %v2772, %v2921
      %v3044 = vadd.f32 %v2773, %v2926
      %v3045 = vadd.f32 %v2774, %v2929
      %v3046 = vadd.f32 %v2775, %v2934
      %v3047 = vadd.f32 %v2776, %v2937
      %v3048 = vadd.f32 %v2777, %v2942
      %v3049 = vadd.f32 %v2778, %v2945
      %v3050 = vadd.f32 %v2779, %v2950
      %v3051 = vadd.f32 %v2780, %v2953
      %v3052 = vadd.f32 %v2781, %v2958
      %v3053 = vadd.f32 %v2782, %v2961
      %v3054 = vadd.f32 %v2783, %v2966
      %v3055 = vadd.f32 %v2784, %v2969
      %v3056 = vadd.f32 %v2785, %v2974
      %v3057 = vadd.f32 %v2786, %v2977
      %v3058 = vadd.f32 %v2787, %v2982
      %v3059 = vadd.f32 %v2788, %v2985
      %v3060 = vadd.f32 %v2789, %v2990
      %v3061 = vadd.f32 %v2790, %v2993
      %v3062 = vadd.f32 %v2791, %v2998
      %v3063 = vadd.f32 %v2792, %v3001
      %v3064 = vadd.f32 %v2793, %v3006
      %v3065 = vadd.f32 %v2794, %v3009
      %v3066 = vadd.f32 %v2795, %v3014
      %v3067 = vadd.f32 %v2796, %v3017
      %v3068 = vadd.f32 %v2797, %v3022
      %v3069 = vadd.f32 %v2798, %v3025
      %v3070 = vadd.f32 %v2799, %v3030
      %v3071 = vadd.f32 %v2800, %v3033
      %s3072 = scalar_lea.vmem %s1, 224
      %v3073 = vld [vmem:[%s3072] sm:$0xf]
      %v3074 = vld [vmem:[%s3072 + $0x4] sm:$0xf]
      %v3075 = vld [vmem:[%s3072 + $0x8] sm:$0xf]
      %v3076 = vld [vmem:[%s3072 + $0xc] sm:$0xf]
      %v3077 = vld [vmem:[%s3072 + $0x10] sm:$0xf]
      %v3078 = vld [vmem:[%s3072 + $0x14] sm:$0xf]
      %v3079 = vld [vmem:[%s3072 + $0x18] sm:$0xf]
      %v3080 = vld [vmem:[%s3072 + $0x1c] sm:$0xf]
      %vm3081 = vcmask 1046528
      %v3082 = vrot.slane %v2059, 1
      %v3083 = vrot.slane %v2060, 1
      %v3084 = vsel %vm3081, %v3082, %v3083
      %v3085 = vrot.slane %v2061, 1
      %v3086 = vsel %vm3081, %v3083, %v3085
      %v3087 = vrot.slane %v2062, 1
      %v3088 = vsel %vm3081, %v3085, %v3087
      %v3089 = vrot.slane %v2063, 1
      %v3090 = vsel %vm3081, %v3087, %v3089
      %v3091 = vrot.slane %v2064, 1
      %v3092 = vsel %vm3081, %v3089, %v3091
      %v3093 = vrot.slane %v2065, 1
      %v3094 = vsel %vm3081, %v3091, %v3093
      %v3095 = vrot.slane %v2066, 1
      %v3096 = vsel %vm3081, %v3093, %v3095
      %v3097 = vrot.slane %v2067, 1
      %v3098 = vsel %vm3081, %v3095, %v3097
      %v3099 = vrot.slane %v2068, 1
      %v3100 = vsel %vm3081, %v3097, %v3099
      %v3101 = vrot.slane %v2069, 1
      %v3102 = vsel %vm3081, %v3099, %v3101
      %v3103 = vrot.slane %v2070, 1
      %v3104 = vsel %vm3081, %v3101, %v3103
      %v3105 = vrot.slane %v2071, 1
      %v3106 = vsel %vm3081, %v3103, %v3105
      %v3107 = vrot.slane %v2072, 1
      %v3108 = vsel %vm3081, %v3105, %v3107
      %v3109 = vrot.slane %v2073, 1
      %v3110 = vsel %vm3081, %v3107, %v3109
      %v3111 = vrot.slane %v2074, 1
      %v3112 = vsel %vm3081, %v3109, %v3111
      %v3113 = vrot.slane %v2075, 1
      %v3114 = vsel %vm3081, %v3111, %v3113
      %v3115 = vrot.slane %v2814, 1
      %v3116 = vsel %vm3081, %v3113, %v3115
      %v3117 = vrot.slane %v2815, 1
      %v3118 = vsel %vm3081, %v3115, %v3117
      %v3127 = vunpack.c.l.b16 %v3073
      %v3128 = vunpack.c.l.b16 %v3074
      %v3129 = vunpack.c.l.b16 %v3075
      %v3130 = vunpack.c.l.b16 %v3076
      %v3131 = vunpack.c.l.b16 %v3077
      %v3132 = vunpack.c.l.b16 %v3078
      %v3133 = vunpack.c.l.b16 %v3079
      %v3134 = vunpack.c.l.b16 %v3080
      %v3135 = vpack.c.b16 %v3128, %v3127
      %v3136 = vpack.c.b16 %v3130, %v3129
      %v3137 = vpack.c.b16 %v3132, %v3131
      %v3138 = vpack.c.b16 %v3134, %v3133
      %v3144 = vsel %vm739, %v3084, 0
      %v3147 = vsel %vm739, %v3086, 0
      %v3150 = vsel %vm739, %v3088, 0
      %v3153 = vsel %vm739, %v3090, 0
      %v3156 = vsel %vm739, %v3092, 0
      %v3159 = vsel %vm739, %v3094, 0
      %v3162 = vsel %vm739, %v3096, 0
      %v3165 = vsel %vm739, %v3098, 0
      %v3168 = vsel %vm739, %v3100, 0
      %v3171 = vsel %vm739, %v3102, 0
      %v3174 = vsel %vm739, %v3104, 0
      %v3177 = vsel %vm739, %v3106, 0
      %v3180 = vsel %vm739, %v3108, 0
      %v3183 = vsel %vm739, %v3110, 0
      %v3186 = vsel %vm739, %v3112, 0
      %v3189 = vsel %vm739, %v3114, 0
      %v3192 = vsel %vm739, %v3116, 0
      %v3195 = vsel %vm739, %v3118, 0
      %3197 = vmatprep.subr.bf16.mxu0 0
      %3198 = vmatpush1.bf16.msra.mxu0 %v3135
      %3199 = vmatprep.subr.bf16.mxu0 0
      %3200 = vmatpush1.bf16.msra.mxu0 %v3136
      %3201 = vmatprep.subr.bf16.mxu0 0
      %3202 = vmatpush1.bf16.msra.mxu0 %v3137
      %3203 = vmatprep.subr.bf16.mxu0 0
      %3204 = vmatpush1.bf16.msra.mxu0 %v3138
      %3205 = vmatprep.subr.bf16.mxu0 0
      %3206 = vmatpush1.bf16.msra.mxu0 0
      %3207 = vmatprep.subr.bf16.mxu0 0
      %3208 = vmatpush1.bf16.msra.mxu0 0
      %3209 = vmatprep.subr.bf16.mxu0 0
      %3210 = vmatpush1.bf16.msra.mxu0 0
      %3211 = vmatprep.subr.bf16.mxu0 0
      %3212 = vmatpush1.bf16.msra.mxu0 0
      %3213 = vmatprep.subr.bf16.mxu0 0
      %3214 = vmatpush1.bf16.msra.mxu0 0
      %3215 = vmatprep.subr.bf16.mxu0 0
      %3216 = vmatpush1.bf16.msra.mxu0 0
      %3217 = vmatprep.subr.bf16.mxu0 0
      %3218 = vmatpush1.bf16.msra.mxu0 0
      %3219 = vmatprep.subr.bf16.mxu0 0
      %3220 = vmatpush1.bf16.msra.mxu0 0
      %3221 = vmatprep.subr.bf16.mxu0 0
      %3222 = vmatpush1.bf16.msra.mxu0 0
      %3223 = vmatprep.subr.bf16.mxu0 0
      %3224 = vmatpush1.bf16.msra.mxu0 0
      %3225 = vmatprep.subr.bf16.mxu0 0
      %3226 = vmatpush1.bf16.msra.mxu0 0
      %3227 = vmatprep.subr.bf16.mxu0 0
      %3228 = vmatpush1.bf16.msra.mxu0 0
      %3229 = vmatprep.mubr.bf16.mxu0 0
      %3230 = vmatmul.mubr.bf16.gmra.mrb[0].mxu0 %v3144
      %v3231 = vpop.f32.mrb[0].mxu0
      %v3232 = vadd.f32 0.0, %v3231
      %v3233 = vpop.f32.mrb[0].mxu0
      %v3234 = vpop.f32.mrb[0].mxu0
      %v3235 = vadd.f32 0.0, %v3234
      %v3236 = vpop.f32.mrb[0].mxu0
      %3237 = vmatprep.mubr.bf16.mxu0 0
      %3238 = vmatmul.mubr.bf16.gmra.mrb[0].mxu0 %v3147
      %v3239 = vpop.f32.mrb[0].mxu0
      %v3240 = vadd.f32 0.0, %v3239
      %v3241 = vpop.f32.mrb[0].mxu0
      %v3242 = vpop.f32.mrb[0].mxu0
      %v3243 = vadd.f32 0.0, %v3242
      %v3244 = vpop.f32.mrb[0].mxu0
      %3245 = vmatprep.mubr.bf16.mxu0 0
      %3246 = vmatmul.mubr.bf16.gmra.mrb[0].mxu0 %v3150
      %v3247 = vpop.f32.mrb[0].mxu0
      %v3248 = vadd.f32 0.0, %v3247
      %v3249 = vpop.f32.mrb[0].mxu0
      %v3250 = vpop.f32.mrb[0].mxu0
      %v3251 = vadd.f32 0.0, %v3250
      %v3252 = vpop.f32.mrb[0].mxu0
      %3253 = vmatprep.mubr.bf16.mxu0 0
      %3254 = vmatmul.mubr.bf16.gmra.mrb[0].mxu0 %v3153
      %v3255 = vpop.f32.mrb[0].mxu0
      %v3256 = vadd.f32 0.0, %v3255
      %v3257 = vpop.f32.mrb[0].mxu0
      %v3258 = vpop.f32.mrb[0].mxu0
      %v3259 = vadd.f32 0.0, %v3258
      %v3260 = vpop.f32.mrb[0].mxu0
      %3261 = vmatprep.mubr.bf16.mxu0 0
      %3262 = vmatmul.mubr.bf16.gmra.mrb[0].mxu0 %v3156
      %v3263 = vpop.f32.mrb[0].mxu0
      %v3264 = vadd.f32 0.0, %v3263
      %v3265 = vpop.f32.mrb[0].mxu0
      %v3266 = vpop.f32.mrb[0].mxu0
      %v3267 = vadd.f32 0.0, %v3266
      %v3268 = vpop.f32.mrb[0].mxu0
      %3269 = vmatprep.mubr.bf16.mxu0 0
      %3270 = vmatmul.mubr.bf16.gmra.mrb[0].mxu0 %v3159
      %v3271 = vpop.f32.mrb[0].mxu0
      %v3272 = vadd.f32 0.0, %v3271
      %v3273 = vpop.f32.mrb[0].mxu0
      %v3274 = vpop.f32.mrb[0].mxu0
      %v3275 = vadd.f32 0.0, %v3274
      %v3276 = vpop.f32.mrb[0].mxu0
      %3277 = vmatprep.mubr.bf16.mxu0 0
      %3278 = vmatmul.mubr.bf16.gmra.mrb[0].mxu0 %v3162
      %v3279 = vpop.f32.mrb[0].mxu0
      %v3280 = vadd.f32 0.0, %v3279
      %v3281 = vpop.f32.mrb[0].mxu0
      %v3282 = vpop.f32.mrb[0].mxu0
      %v3283 = vadd.f32 0.0, %v3282
      %v3284 = vpop.f32.mrb[0].mxu0
      %3285 = vmatprep.mubr.bf16.mxu0 0
      %3286 = vmatmul.mubr.bf16.gmra.mrb[0].mxu0 %v3165
      %v3287 = vpop.f32.mrb[0].mxu0
      %v3288 = vadd.f32 0.0, %v3287
      %v3289 = vpop.f32.mrb[0].mxu0
      %v3290 = vpop.f32.mrb[0].mxu0
      %v3291 = vadd.f32 0.0, %v3290
      %v3292 = vpop.f32.mrb[0].mxu0
      %3293 = vmatprep.mubr.bf16.mxu0 0
      %3294 = vmatmul.mubr.bf16.gmra.mrb[0].mxu0 %v3168
      %v3295 = vpop.f32.mrb[0].mxu0
      %v3296 = vadd.f32 0.0, %v3295
      %v3297 = vpop.f32.mrb[0].mxu0
      %v3298 = vpop.f32.mrb[0].mxu0
      %v3299 = vadd.f32 0.0, %v3298
      %v3300 = vpop.f32.mrb[0].mxu0
      %3301 = vmatprep.mubr.bf16.mxu0 0
      %3302 = vmatmul.mubr.bf16.gmra.mrb[0].mxu0 %v3171
      %v3303 = vpop.f32.mrb[0].mxu0
      %v3304 = vadd.f32 0.0, %v3303
      %v3305 = vpop.f32.mrb[0].mxu0
      %v3306 = vpop.f32.mrb[0].mxu0
      %v3307 = vadd.f32 0.0, %v3306
      %v3308 = vpop.f32.mrb[0].mxu0
      %3309 = vmatprep.mubr.bf16.mxu0 0
      %3310 = vmatmul.mubr.bf16.gmra.mrb[0].mxu0 %v3174
      %v3311 = vpop.f32.mrb[0].mxu0
      %v3312 = vadd.f32 0.0, %v3311
      %v3313 = vpop.f32.mrb[0].mxu0
      %v3314 = vpop.f32.mrb[0].mxu0
      %v3315 = vadd.f32 0.0, %v3314
      %v3316 = vpop.f32.mrb[0].mxu0
      %3317 = vmatprep.mubr.bf16.mxu0 0
      %3318 = vmatmul.mubr.bf16.gmra.mrb[0].mxu0 %v3177
      %v3319 = vpop.f32.mrb[0].mxu0
      %v3320 = vadd.f32 0.0, %v3319
      %v3321 = vpop.f32.mrb[0].mxu0
      %v3322 = vpop.f32.mrb[0].mxu0
      %v3323 = vadd.f32 0.0, %v3322
      %v3324 = vpop.f32.mrb[0].mxu0
      %3325 = vmatprep.mubr.bf16.mxu0 0
      %3326 = vmatmul.mubr.bf16.gmra.mrb[0].mxu0 %v3180
      %v3327 = vpop.f32.mrb[0].mxu0
      %v3328 = vadd.f32 0.0, %v3327
      %v3329 = vpop.f32.mrb[0].mxu0
      %v3330 = vpop.f32.mrb[0].mxu0
      %v3331 = vadd.f32 0.0, %v3330
      %v3332 = vpop.f32.mrb[0].mxu0
      %3333 = vmatprep.mubr.bf16.mxu0 0
      %3334 = vmatmul.mubr.bf16.gmra.mrb[0].mxu0 %v3183
      %v3335 = vpop.f32.mrb[0].mxu0
      %v3336 = vadd.f32 0.0, %v3335
      %v3337 = vpop.f32.mrb[0].mxu0
      %v3338 = vpop.f32.mrb[0].mxu0
      %v3339 = vadd.f32 0.0, %v3338
      %v3340 = vpop.f32.mrb[0].mxu0
      %3341 = vmatprep.mubr.bf16.mxu0 0
      %3342 = vmatmul.mubr.bf16.gmra.mrb[0].mxu0 %v3186
      %v3343 = vpop.f32.mrb[0].mxu0
      %v3344 = vadd.f32 0.0, %v3343
      %v3345 = vpop.f32.mrb[0].mxu0
      %v3346 = vpop.f32.mrb[0].mxu0
      %v3347 = vadd.f32 0.0, %v3346
      %v3348 = vpop.f32.mrb[0].mxu0
      %3349 = vmatprep.mubr.bf16.mxu0 0
      %3350 = vmatmul.mubr.bf16.gmra.mrb[0].mxu0 %v3189
      %v3351 = vpop.f32.mrb[0].mxu0
      %v3352 = vadd.f32 0.0, %v3351
      %v3353 = vpop.f32.mrb[0].mxu0
      %v3354 = vpop.f32.mrb[0].mxu0
      %v3355 = vadd.f32 0.0, %v3354
      %v3356 = vpop.f32.mrb[0].mxu0
      %3357 = vmatprep.mubr.bf16.mxu0 0
      %3358 = vmatmul.mubr.bf16.gmra.mrb[0].mxu0 %v3192
      %v3359 = vpop.f32.mrb[0].mxu0
      %v3360 = vadd.f32 0.0, %v3359
      %v3361 = vpop.f32.mrb[0].mxu0
      %v3362 = vpop.f32.mrb[0].mxu0
      %v3363 = vadd.f32 0.0, %v3362
      %v3364 = vpop.f32.mrb[0].mxu0
      %3365 = vmatprep.mubr.bf16.mxu0 0
      %3366 = vmatmul.mubr.bf16.gmra.mrb[0].mxu0 %v3195
      %v3367 = vpop.f32.mrb[0].mxu0
      %v3368 = vadd.f32 0.0, %v3367
      %v3369 = vpop.f32.mrb[0].mxu0
      %v3370 = vpop.f32.mrb[0].mxu0
      %v3371 = vadd.f32 0.0, %v3370
      %v3372 = vpop.f32.mrb[0].mxu0
      %3373 = vdwg.mxu0
      %v3374 = vadd.f32 %v3036, %v3232
      %v3375 = vadd.f32 %v3037, %v3235
      %v3376 = vadd.f32 %v3038, %v3240
      %v3377 = vadd.f32 %v3039, %v3243
      %v3378 = vadd.f32 %v3040, %v3248
      %v3379 = vadd.f32 %v3041, %v3251
      %v3380 = vadd.f32 %v3042, %v3256
      %v3381 = vadd.f32 %v3043, %v3259
      %v3382 = vadd.f32 %v3044, %v3264
      %v3383 = vadd.f32 %v3045, %v3267
      %v3384 = vadd.f32 %v3046, %v3272
      %v3385 = vadd.f32 %v3047, %v3275
      %v3386 = vadd.f32 %v3048, %v3280
      %v3387 = vadd.f32 %v3049, %v3283
      %v3388 = vadd.f32 %v3050, %v3288
      %v3389 = vadd.f32 %v3051, %v3291
      %v3390 = vadd.f32 %v3052, %v3296
      %v3391 = vadd.f32 %v3053, %v3299
      %v3392 = vadd.f32 %v3054, %v3304
      %v3393 = vadd.f32 %v3055, %v3307
      %v3394 = vadd.f32 %v3056, %v3312
      %v3395 = vadd.f32 %v3057, %v3315
      %v3396 = vadd.f32 %v3058, %v3320
      %v3397 = vadd.f32 %v3059, %v3323
      %v3398 = vadd.f32 %v3060, %v3328
      %v3399 = vadd.f32 %v3061, %v3331
      %v3400 = vadd.f32 %v3062, %v3336
      %v3401 = vadd.f32 %v3063, %v3339
      %v3402 = vadd.f32 %v3064, %v3344
      %v3403 = vadd.f32 %v3065, %v3347
      %v3404 = vadd.f32 %v3066, %v3352
      %v3405 = vadd.f32 %v3067, %v3355
      %v3406 = vadd.f32 %v3068, %v3360
      %v3407 = vadd.f32 %v3069, %v3363
      %v3408 = vadd.f32 %v3070, %v3368
      %v3409 = vadd.f32 %v3071, %v3371
      %s3410 = scalar_lea.vmem %s1, 256
      %v3411 = vld [vmem:[%s3410] sm:$0xf]
      %v3412 = vld [vmem:[%s3410 + $0x4] sm:$0xf]
      %v3413 = vld [vmem:[%s3410 + $0x8] sm:$0xf]
      %v3414 = vld [vmem:[%s3410 + $0xc] sm:$0xf]
      %v3415 = vld [vmem:[%s3410 + $0x10] sm:$0xf]
      %v3416 = vld [vmem:[%s3410 + $0x14] sm:$0xf]
      %v3417 = vld [vmem:[%s3410 + $0x18] sm:$0xf]
      %v3418 = vld [vmem:[%s3410 + $0x1c] sm:$0xf]
      %vm3419 = vsmask.f32 6400
      %v3420 = vrot.slane %v2390, 1
      %v3421 = vrot.slane %v2386, 2
      %v3422 = vor.u32 %v3420, %v3421
      %v3423 = vrot.slane %v2397, 1
      %v3424 = vrot.slane %v2393, 2
      %v3425 = vor.u32 %v3423, %v3424
      %v3426 = vsel %vm3419, %v3422, %v3425
      %v3427 = vrot.slane %v2404, 1
      %v3428 = vrot.slane %v2400, 2
      %v3429 = vor.u32 %v3427, %v3428
      %v3430 = vsel %vm3419, %v3425, %v3429
      %v3431 = vrot.slane %v2411, 1
      %v3432 = vrot.slane %v2407, 2
      %v3433 = vor.u32 %v3431, %v3432
      %v3434 = vsel %vm3419, %v3429, %v3433
      %v3435 = vrot.slane %v2418, 1
      %v3436 = vrot.slane %v2414, 2
      %v3437 = vor.u32 %v3435, %v3436
      %v3438 = vsel %vm3419, %v3433, %v3437
      %v3439 = vrot.slane %v2425, 1
      %v3440 = vrot.slane %v2421, 2
      %v3441 = vor.u32 %v3439, %v3440
      %v3442 = vsel %vm3419, %v3437, %v3441
      %v3443 = vrot.slane %v2432, 1
      %v3444 = vrot.slane %v2428, 2
      %v3445 = vor.u32 %v3443, %v3444
      %v3446 = vsel %vm3419, %v3441, %v3445
      %v3447 = vrot.slane %v2439, 1
      %v3448 = vrot.slane %v2435, 2
      %v3449 = vor.u32 %v3447, %v3448
      %v3450 = vsel %vm3419, %v3445, %v3449
      %v3451 = vrot.slane %v2446, 1
      %v3452 = vrot.slane %v2442, 2
      %v3453 = vor.u32 %v3451, %v3452
      %v3454 = vsel %vm3419, %v3449, %v3453
      %v3455 = vrot.slane %v2453, 1
      %v3456 = vrot.slane %v2449, 2
      %v3457 = vor.u32 %v3455, %v3456
      %v3458 = vsel %vm3419, %v3453, %v3457
      %v3459 = vrot.slane %v2460, 1
      %v3460 = vrot.slane %v2456, 2
      %v3461 = vor.u32 %v3459, %v3460
      %v3462 = vsel %vm3419, %v3457, %v3461
      %v3463 = vrot.slane %v2467, 1
      %v3464 = vrot.slane %v2463, 2
      %v3465 = vor.u32 %v3463, %v3464
      %v3466 = vsel %vm3419, %v3461, %v3465
      %v3467 = vrot.slane %v2474, 1
      %v3468 = vrot.slane %v2470, 2
      %v3469 = vor.u32 %v3467, %v3468
      %v3470 = vsel %vm3419, %v3465, %v3469
      %v3471 = vrot.slane %v2481, 1
      %v3472 = vrot.slane %v2477, 2
      %v3473 = vor.u32 %v3471, %v3472
      %v3474 = vsel %vm3419, %v3469, %v3473
      %v3475 = vrot.slane %v2488, 1
      %v3476 = vrot.slane %v2484, 2
      %v3477 = vor.u32 %v3475, %v3476
      %v3478 = vsel %vm3419, %v3473, %v3477
      %v3479 = vrot.slane %v2495, 1
      %v3480 = vrot.slane %v2491, 2
      %v3481 = vor.u32 %v3479, %v3480
      %v3482 = vsel %vm3419, %v3477, %v3481
      %v3483 = vrot.slane %v2502, 1
      %v3484 = vrot.slane %v2498, 2
      %v3485 = vor.u32 %v3483, %v3484
      %v3486 = vsel %vm3419, %v3481, %v3485
      %v3487 = vrot.slane %v2821, 1
      %v3488 = vrot.slane %v2817, 2
      %v3489 = vor.u32 %v3487, %v3488
      %v3490 = vsel %vm3419, %v3485, %v3489
      %v3491 = vshrl.u32 %v2815, 16
      %v3493 = vrot.slane %v3491, 1
      %v3494 = vrot.slane %v2825, 2
      %v3495 = vor.u32 %v3493, %v3494
      %v3496 = vsel %vm3419, %v3489, %v3495
      %v3505 = vunpack.c.l.b16 %v3411
      %v3506 = vunpack.c.l.b16 %v3412
      %v3507 = vunpack.c.l.b16 %v3413
      %v3508 = vunpack.c.l.b16 %v3414
      %v3509 = vunpack.c.l.b16 %v3415
      %v3510 = vunpack.c.l.b16 %v3416
      %v3511 = vunpack.c.l.b16 %v3417
      %v3512 = vunpack.c.l.b16 %v3418
      %v3513 = vpack.c.b16 %v3506, %v3505
      %v3514 = vpack.c.b16 %v3508, %v3507
      %v3515 = vpack.c.b16 %v3510, %v3509
      %v3516 = vpack.c.b16 %v3512, %v3511
      %v3522 = vsel %vm739, %v3426, 0
      %v3525 = vsel %vm739, %v3430, 0
      %v3528 = vsel %vm739, %v3434, 0
      %v3531 = vsel %vm739, %v3438, 0
      %v3534 = vsel %vm739, %v3442, 0
      %v3537 = vsel %vm739, %v3446, 0
      %v3540 = vsel %vm739, %v3450, 0
      %v3543 = vsel %vm739, %v3454, 0
      %v3546 = vsel %vm739, %v3458, 0
      %v3549 = vsel %vm739, %v3462, 0
      %v3552 = vsel %vm739, %v3466, 0
      %v3555 = vsel %vm739, %v3470, 0
      %v3558 = vsel %vm739, %v3474, 0
      %v3561 = vsel %vm739, %v3478, 0
      %v3564 = vsel %vm739, %v3482, 0
      %v3567 = vsel %vm739, %v3486, 0
      %v3570 = vsel %vm739, %v3490, 0
      %v3573 = vsel %vm739, %v3496, 0
      %3575 = vmatprep.subr.bf16.mxu0 0
      %3576 = vmatpush1.bf16.msra.mxu0 %v3513
      %3577 = vmatprep.subr.bf16.mxu0 0
      %3578 = vmatpush1.bf16.msra.mxu0 %v3514
      %3579 = vmatprep.subr.bf16.mxu0 0
      %3580 = vmatpush1.bf16.msra.mxu0 %v3515
      %3581 = vmatprep.subr.bf16.mxu0 0
      %3582 = vmatpush1.bf16.msra.mxu0 %v3516
      %3583 = vmatprep.subr.bf16.mxu0 0
      %3584 = vmatpush1.bf16.msra.mxu0 0
      %3585 = vmatprep.subr.bf16.mxu0 0
      %3586 = vmatpush1.bf16.msra.mxu0 0
      %3587 = vmatprep.subr.bf16.mxu0 0
      %3588 = vmatpush1.bf16.msra.mxu0 0
      %3589 = vmatprep.subr.bf16.mxu0 0
      %3590 = vmatpush1.bf16.msra.mxu0 0
      %3591 = vmatprep.subr.bf16.mxu0 0
      %3592 = vmatpush1.bf16.msra.mxu0 0
      %3593 = vmatprep.subr.bf16.mxu0 0
      %3594 = vmatpush1.bf16.msra.mxu0 0
      %3595 = vmatprep.subr.bf16.mxu0 0
      %3596 = vmatpush1.bf16.msra.mxu0 0
      %3597 = vmatprep.subr.bf16.mxu0 0
      %3598 = vmatpush1.bf16.msra.mxu0 0
      %3599 = vmatprep.subr.bf16.mxu0 0
      %3600 = vmatpush1.bf16.msra.mxu0 0
      %3601 = vmatprep.subr.bf16.mxu0 0
      %3602 = vmatpush1.bf16.msra.mxu0 0
      %3603 = vmatprep.subr.bf16.mxu0 0
      %3604 = vmatpush1.bf16.msra.mxu0 0
      %3605 = vmatprep.subr.bf16.mxu0 0
      %3606 = vmatpush1.bf16.msra.mxu0 0
      %3607 = vmatprep.mubr.bf16.mxu0 0
      %3608 = vmatmul.mubr.bf16.gmra.mrb[0].mxu0 %v3522
      %v3609 = vpop.f32.mrb[0].mxu0
      %v3610 = vadd.f32 0.0, %v3609
      %v3611 = vpop.f32.mrb[0].mxu0
      %v3612 = vpop.f32.mrb[0].mxu0
      %v3613 = vadd.f32 0.0, %v3612
      %v3614 = vpop.f32.mrb[0].mxu0
      %3615 = vmatprep.mubr.bf16.mxu0 0
      %3616 = vmatmul.mubr.bf16.gmra.mrb[0].mxu0 %v3525
      %v3617 = vpop.f32.mrb[0].mxu0
      %v3618 = vadd.f32 0.0, %v3617
      %v3619 = vpop.f32.mrb[0].mxu0
      %v3620 = vpop.f32.mrb[0].mxu0
      %v3621 = vadd.f32 0.0, %v3620
      %v3622 = vpop.f32.mrb[0].mxu0
      %3623 = vmatprep.mubr.bf16.mxu0 0
      %3624 = vmatmul.mubr.bf16.gmra.mrb[0].mxu0 %v3528
      %v3625 = vpop.f32.mrb[0].mxu0
      %v3626 = vadd.f32 0.0, %v3625
      %v3627 = vpop.f32.mrb[0].mxu0
      %v3628 = vpop.f32.mrb[0].mxu0
      %v3629 = vadd.f32 0.0, %v3628
      %v3630 = vpop.f32.mrb[0].mxu0
      %3631 = vmatprep.mubr.bf16.mxu0 0
      %3632 = vmatmul.mubr.bf16.gmra.mrb[0].mxu0 %v3531
      %v3633 = vpop.f32.mrb[0].mxu0
      %v3634 = vadd.f32 0.0, %v3633
      %v3635 = vpop.f32.mrb[0].mxu0
      %v3636 = vpop.f32.mrb[0].mxu0
      %v3637 = vadd.f32 0.0, %v3636
      %v3638 = vpop.f32.mrb[0].mxu0
      %3639 = vmatprep.mubr.bf16.mxu0 0
      %3640 = vmatmul.mubr.bf16.gmra.mrb[0].mxu0 %v3534
      %v3641 = vpop.f32.mrb[0].mxu0
      %v3642 = vadd.f32 0.0, %v3641
      %v3643 = vpop.f32.mrb[0].mxu0
      %v3644 = vpop.f32.mrb[0].mxu0
      %v3645 = vadd.f32 0.0, %v3644
      %v3646 = vpop.f32.mrb[0].mxu0
      %3647 = vmatprep.mubr.bf16.mxu0 0
      %3648 = vmatmul.mubr.bf16.gmra.mrb[0].mxu0 %v3537
      %v3649 = vpop.f32.mrb[0].mxu0
      %v3650 = vadd.f32 0.0, %v3649
      %v3651 = vpop.f32.mrb[0].mxu0
      %v3652 = vpop.f32.mrb[0].mxu0
      %v3653 = vadd.f32 0.0, %v3652
      %v3654 = vpop.f32.mrb[0].mxu0
      %3655 = vmatprep.mubr.bf16.mxu0 0
      %3656 = vmatmul.mubr.bf16.gmra.mrb[0].mxu0 %v3540
      %v3657 = vpop.f32.mrb[0].mxu0
      %v3658 = vadd.f32 0.0, %v3657
      %v3659 = vpop.f32.mrb[0].mxu0
      %v3660 = vpop.f32.mrb[0].mxu0
      %v3661 = vadd.f32 0.0, %v3660
      %v3662 = vpop.f32.mrb[0].mxu0
      %3663 = vmatprep.mubr.bf16.mxu0 0
      %3664 = vmatmul.mubr.bf16.gmra.mrb[0].mxu0 %v3543
      %v3665 = vpop.f32.mrb[0].mxu0
      %v3666 = vadd.f32 0.0, %v3665
      %v3667 = vpop.f32.mrb[0].mxu0
      %v3668 = vpop.f32.mrb[0].mxu0
      %v3669 = vadd.f32 0.0, %v3668
      %v3670 = vpop.f32.mrb[0].mxu0
      %3671 = vmatprep.mubr.bf16.mxu0 0
      %3672 = vmatmul.mubr.bf16.gmra.mrb[0].mxu0 %v3546
      %v3673 = vpop.f32.mrb[0].mxu0
      %v3674 = vadd.f32 0.0, %v3673
      %v3675 = vpop.f32.mrb[0].mxu0
      %v3676 = vpop.f32.mrb[0].mxu0
      %v3677 = vadd.f32 0.0, %v3676
      %v3678 = vpop.f32.mrb[0].mxu0
      %3679 = vmatprep.mubr.bf16.mxu0 0
      %3680 = vmatmul.mubr.bf16.gmra.mrb[0].mxu0 %v3549
      %v3681 = vpop.f32.mrb[0].mxu0
      %v3682 = vadd.f32 0.0, %v3681
      %v3683 = vpop.f32.mrb[0].mxu0
      %v3684 = vpop.f32.mrb[0].mxu0
      %v3685 = vadd.f32 0.0, %v3684
      %v3686 = vpop.f32.mrb[0].mxu0
      %3687 = vmatprep.mubr.bf16.mxu0 0
      %3688 = vmatmul.mubr.bf16.gmra.mrb[0].mxu0 %v3552
      %v3689 = vpop.f32.mrb[0].mxu0
      %v3690 = vadd.f32 0.0, %v3689
      %v3691 = vpop.f32.mrb[0].mxu0
      %v3692 = vpop.f32.mrb[0].mxu0
      %v3693 = vadd.f32 0.0, %v3692
      %v3694 = vpop.f32.mrb[0].mxu0
      %3695 = vmatprep.mubr.bf16.mxu0 0
      %3696 = vmatmul.mubr.bf16.gmra.mrb[0].mxu0 %v3555
      %v3697 = vpop.f32.mrb[0].mxu0
      %v3698 = vadd.f32 0.0, %v3697
      %v3699 = vpop.f32.mrb[0].mxu0
      %v3700 = vpop.f32.mrb[0].mxu0
      %v3701 = vadd.f32 0.0, %v3700
      %v3702 = vpop.f32.mrb[0].mxu0
      %3703 = vmatprep.mubr.bf16.mxu0 0
      %3704 = vmatmul.mubr.bf16.gmra.mrb[0].mxu0 %v3558
      %v3705 = vpop.f32.mrb[0].mxu0
      %v3706 = vadd.f32 0.0, %v3705
      %v3707 = vpop.f32.mrb[0].mxu0
      %v3708 = vpop.f32.mrb[0].mxu0
      %v3709 = vadd.f32 0.0, %v3708
      %v3710 = vpop.f32.mrb[0].mxu0
      %3711 = vmatprep.mubr.bf16.mxu0 0
      %3712 = vmatmul.mubr.bf16.gmra.mrb[0].mxu0 %v3561
      %v3713 = vpop.f32.mrb[0].mxu0
      %v3714 = vadd.f32 0.0, %v3713
      %v3715 = vpop.f32.mrb[0].mxu0
      %v3716 = vpop.f32.mrb[0].mxu0
      %v3717 = vadd.f32 0.0, %v3716
      %v3718 = vpop.f32.mrb[0].mxu0
      %3719 = vmatprep.mubr.bf16.mxu0 0
      %3720 = vmatmul.mubr.bf16.gmra.mrb[0].mxu0 %v3564
      %v3721 = vpop.f32.mrb[0].mxu0
      %v3722 = vadd.f32 0.0, %v3721
      %v3723 = vpop.f32.mrb[0].mxu0
      %v3724 = vpop.f32.mrb[0].mxu0
      %v3725 = vadd.f32 0.0, %v3724
      %v3726 = vpop.f32.mrb[0].mxu0
      %3727 = vmatprep.mubr.bf16.mxu0 0
      %3728 = vmatmul.mubr.bf16.gmra.mrb[0].mxu0 %v3567
      %v3729 = vpop.f32.mrb[0].mxu0
      %v3730 = vadd.f32 0.0, %v3729
      %v3731 = vpop.f32.mrb[0].mxu0
      %v3732 = vpop.f32.mrb[0].mxu0
      %v3733 = vadd.f32 0.0, %v3732
      %v3734 = vpop.f32.mrb[0].mxu0
      %3735 = vmatprep.mubr.bf16.mxu0 0
      %3736 = vmatmul.mubr.bf16.gmra.mrb[0].mxu0 %v3570
      %v3737 = vpop.f32.mrb[0].mxu0
      %v3738 = vadd.f32 0.0, %v3737
      %v3739 = vpop.f32.mrb[0].mxu0
      %v3740 = vpop.f32.mrb[0].mxu0
      %v3741 = vadd.f32 0.0, %v3740
      %v3742 = vpop.f32.mrb[0].mxu0
      %3743 = vmatprep.mubr.bf16.mxu0 0
      %3744 = vmatmul.mubr.bf16.gmra.mrb[0].mxu0 %v3573
      %v3745 = vpop.f32.mrb[0].mxu0
      %v3746 = vadd.f32 0.0, %v3745
      %v3747 = vpop.f32.mrb[0].mxu0
      %v3748 = vpop.f32.mrb[0].mxu0
      %v3749 = vadd.f32 0.0, %v3748
      %v3750 = vpop.f32.mrb[0].mxu0
      %3751 = vdwg.mxu0
      %v3752 = vadd.f32 %v3374, %v3610
      %v3753 = vadd.f32 %v3375, %v3613
      %v3754 = vadd.f32 %v3376, %v3618
      %v3755 = vadd.f32 %v3377, %v3621
      %v3756 = vadd.f32 %v3378, %v3626
      %v3757 = vadd.f32 %v3379, %v3629
      %v3758 = vadd.f32 %v3380, %v3634
      %v3759 = vadd.f32 %v3381, %v3637
      %v3760 = vadd.f32 %v3382, %v3642
      %v3761 = vadd.f32 %v3383, %v3645
      %v3762 = vadd.f32 %v3384, %v3650
      %v3763 = vadd.f32 %v3385, %v3653
      %v3764 = vadd.f32 %v3386, %v3658
      %v3765 = vadd.f32 %v3387, %v3661
      %v3766 = vadd.f32 %v3388, %v3666
      %v3767 = vadd.f32 %v3389, %v3669
      %v3768 = vadd.f32 %v3390, %v3674
      %v3769 = vadd.f32 %v3391, %v3677
      %v3770 = vadd.f32 %v3392, %v3682
      %v3771 = vadd.f32 %v3393, %v3685
      %v3772 = vadd.f32 %v3394, %v3690
      %v3773 = vadd.f32 %v3395, %v3693
      %v3774 = vadd.f32 %v3396, %v3698
      %v3775 = vadd.f32 %v3397, %v3701
      %v3776 = vadd.f32 %v3398, %v3706
      %v3777 = vadd.f32 %v3399, %v3709
      %v3778 = vadd.f32 %v3400, %v3714
      %v3779 = vadd.f32 %v3401, %v3717
      %v3780 = vadd.f32 %v3402, %v3722
      %v3781 = vadd.f32 %v3403, %v3725
      %v3782 = vadd.f32 %v3404, %v3730
      %v3783 = vadd.f32 %v3405, %v3733
      %v3784 = vadd.f32 %v3406, %v3738
      %v3785 = vadd.f32 %v3407, %v3741
      %v3786 = vadd.f32 %v3408, %v3746
      %v3787 = vadd.f32 %v3409, %v3749
      %v3788 = vld [vmem:[%s5] sm:$0xff]
      %v3789 = vld [vmem:[%s5 + $0x8] sm:$0xff]
      %v3790 = vld [vmem:[%s5 + $0x10] sm:$0xff]
      %v3791 = vld [vmem:[%s5 + $0x18] sm:$0xff]
      %v3792 = vld [vmem:[%s5 + $0x20] sm:$0xff]
      %v3793 = vld [vmem:[%s5 + $0x28] sm:$0xff]
      %v3794 = vld [vmem:[%s5 + $0x30] sm:$0xff]
      %v3795 = vld [vmem:[%s5 + $0x38] sm:$0xff]
      %v3796 = vld [vmem:[%s5 + $0x40] sm:$0xff]
      %v3797 = vld [vmem:[%s5 + $0x48] sm:$0xff]
      %v3798 = vld [vmem:[%s5 + $0x50] sm:$0xff]
      %v3799 = vld [vmem:[%s5 + $0x58] sm:$0xff]
      %v3800 = vld [vmem:[%s5 + $0x60] sm:$0xff]
      %v3801 = vld [vmem:[%s5 + $0x68] sm:$0xff]
      %v3802 = vld [vmem:[%s5 + $0x70] sm:$0xff]
      %v3803 = vld [vmem:[%s5 + $0x78] sm:$0xff]
      %v3804 = vld [vmem:[%s5 + $0x80] sm:$0xff]
      %v3805 = vld [vmem:[%s5 + $0x88] sm:$0xff]
      %v3806 = vld [vmem:[%s5 + $0x90] sm:$0xff]
      %v3807 = vld [vmem:[%s5 + $0x98] sm:$0xff]
      %v3808 = vld [vmem:[%s5 + $0xa0] sm:$0xff]
      %v3809 = vld [vmem:[%s5 + $0xa8] sm:$0xff]
      %v3810 = vld [vmem:[%s5 + $0xb0] sm:$0xff]
      %v3811 = vld [vmem:[%s5 + $0xb8] sm:$0xff]
      %v3812 = vld [vmem:[%s5 + $0xc0] sm:$0xff]
      %v3813 = vld [vmem:[%s5 + $0xc8] sm:$0xff]
      %v3814 = vld [vmem:[%s5 + $0xd0] sm:$0xff]
      %v3815 = vld [vmem:[%s5 + $0xd8] sm:$0xff]
      %v3816 = vld [vmem:[%s5 + $0xe0] sm:$0xff]
      %v3817 = vld [vmem:[%s5 + $0xe8] sm:$0xff]
      %v3818 = vld [vmem:[%s5 + $0xf0] sm:$0xff]
      %v3819 = vld [vmem:[%s5 + $0xf8] sm:$0xff]
      %v3820 = vld [vmem:[%s5 + $0x100] sm:$0xff]
      %v3821 = vld [vmem:[%s5 + $0x108] sm:$0xff]
      %v3822 = vld [vmem:[%s5 + $0x110] sm:$0xff]
      %v3823 = vld [vmem:[%s5 + $0x118] sm:$0xff]
      %v3824 = vmul.f32 %v3752, %v3788
      %v3825 = vmul.f32 %v3753, %v3789
      %v3826 = vmul.f32 %v3754, %v3790
      %v3827 = vmul.f32 %v3755, %v3791
      %v3828 = vmul.f32 %v3756, %v3792
      %v3829 = vmul.f32 %v3757, %v3793
      %v3830 = vmul.f32 %v3758, %v3794
      %v3831 = vmul.f32 %v3759, %v3795
      %v3832 = vmul.f32 %v3760, %v3796
      %v3833 = vmul.f32 %v3761, %v3797
      %v3834 = vmul.f32 %v3762, %v3798
      %v3835 = vmul.f32 %v3763, %v3799
      %v3836 = vmul.f32 %v3764, %v3800
      %v3837 = vmul.f32 %v3765, %v3801
      %v3838 = vmul.f32 %v3766, %v3802
      %v3839 = vmul.f32 %v3767, %v3803
      %v3840 = vmul.f32 %v3768, %v3804
      %v3841 = vmul.f32 %v3769, %v3805
      %v3842 = vmul.f32 %v3770, %v3806
      %v3843 = vmul.f32 %v3771, %v3807
      %v3844 = vmul.f32 %v3772, %v3808
      %v3845 = vmul.f32 %v3773, %v3809
      %v3846 = vmul.f32 %v3774, %v3810
      %v3847 = vmul.f32 %v3775, %v3811
      %v3848 = vmul.f32 %v3776, %v3812
      %v3849 = vmul.f32 %v3777, %v3813
      %v3850 = vmul.f32 %v3778, %v3814
      %v3851 = vmul.f32 %v3779, %v3815
      %v3852 = vmul.f32 %v3780, %v3816
      %v3853 = vmul.f32 %v3781, %v3817
      %v3854 = vmul.f32 %v3782, %v3818
      %v3855 = vmul.f32 %v3783, %v3819
      %v3856 = vmul.f32 %v3784, %v3820
      %v3857 = vmul.f32 %v3785, %v3821
      %v3858 = vmul.f32 %v3786, %v3822
      %v3859 = vmul.f32 %v3787, %v3823
      %v3860 = vpack.c.bf16 %v3825, %v3824
      %v3861 = vpack.c.bf16 %v3827, %v3826
      %v3862 = vpack.c.bf16 %v3829, %v3828
      %v3863 = vpack.c.bf16 %v3831, %v3830
      %v3864 = vpack.c.bf16 %v3833, %v3832
      %v3865 = vpack.c.bf16 %v3835, %v3834
      %v3866 = vpack.c.bf16 %v3837, %v3836
      %v3867 = vpack.c.bf16 %v3839, %v3838
      %v3868 = vpack.c.bf16 %v3841, %v3840
      %v3869 = vpack.c.bf16 %v3843, %v3842
      %v3870 = vpack.c.bf16 %v3845, %v3844
      %v3871 = vpack.c.bf16 %v3847, %v3846
      %v3872 = vpack.c.bf16 %v3849, %v3848
      %v3873 = vpack.c.bf16 %v3851, %v3850
      %v3874 = vpack.c.bf16 %v3853, %v3852
      %v3875 = vpack.c.bf16 %v3855, %v3854
      %v3876 = vpack.c.bf16 %v3857, %v3856
      %v3877 = vpack.c.bf16 %v3859, %v3858
      %v3896 = vunpack.c.l.b16 %v3860
      %v3897 = vunpack.c.h.b16 %v3860
      %v3898 = vunpack.c.l.b16 %v3861
      %v3899 = vunpack.c.h.b16 %v3861
      %v3900 = vunpack.c.l.b16 %v3862
      %v3901 = vunpack.c.h.b16 %v3862
      %v3902 = vunpack.c.l.b16 %v3863
      %v3903 = vunpack.c.h.b16 %v3863
      %v3904 = vunpack.c.l.b16 %v3864
      %v3905 = vunpack.c.h.b16 %v3864
      %v3906 = vunpack.c.l.b16 %v3865
      %v3907 = vunpack.c.h.b16 %v3865
      %v3908 = vunpack.c.l.b16 %v3866
      %v3909 = vunpack.c.h.b16 %v3866
      %v3910 = vunpack.c.l.b16 %v3867
      %v3911 = vunpack.c.h.b16 %v3867
      %v3912 = vunpack.c.l.b16 %v3868
      %v3913 = vunpack.c.h.b16 %v3868
      %v3914 = vunpack.c.l.b16 %v3869
      %v3915 = vunpack.c.h.b16 %v3869
      %v3916 = vunpack.c.l.b16 %v3870
      %v3917 = vunpack.c.h.b16 %v3870
      %v3918 = vunpack.c.l.b16 %v3871
      %v3919 = vunpack.c.h.b16 %v3871
      %v3920 = vunpack.c.l.b16 %v3872
      %v3921 = vunpack.c.h.b16 %v3872
      %v3922 = vunpack.c.l.b16 %v3873
      %v3923 = vunpack.c.h.b16 %v3873
      %v3924 = vunpack.c.l.b16 %v3874
      %v3925 = vunpack.c.h.b16 %v3874
      %v3926 = vunpack.c.l.b16 %v3875
      %v3927 = vunpack.c.h.b16 %v3875
      %v3928 = vunpack.c.l.b16 %v3876
      %v3929 = vunpack.c.h.b16 %v3876
      %v3930 = vunpack.c.l.b16 %v3877
      %v3931 = vunpack.c.h.b16 %v3877
      %v3932 = vpack.c.b16 %v3896, %v3896
      %v3933 = vpack.c.b16 %v3897, %v3897
      %v3934 = vpack.c.b16 %v3898, %v3898
      %v3935 = vpack.c.b16 %v3899, %v3899
      %v3936 = vpack.c.b16 %v3900, %v3900
      %v3937 = vpack.c.b16 %v3901, %v3901
      %v3938 = vpack.c.b16 %v3902, %v3902
      %v3939 = vpack.c.b16 %v3903, %v3903
      %v3940 = vpack.c.b16 %v3904, %v3904
      %v3941 = vpack.c.b16 %v3905, %v3905
      %v3942 = vpack.c.b16 %v3906, %v3906
      %v3943 = vpack.c.b16 %v3907, %v3907
      %v3944 = vpack.c.b16 %v3908, %v3908
      %v3945 = vpack.c.b16 %v3909, %v3909
      %v3946 = vpack.c.b16 %v3910, %v3910
      %v3947 = vpack.c.b16 %v3911, %v3911
      %v3948 = vpack.c.b16 %v3912, %v3912
      %v3949 = vpack.c.b16 %v3913, %v3913
      %v3950 = vpack.c.b16 %v3914, %v3914
      %v3951 = vpack.c.b16 %v3915, %v3915
      %v3952 = vpack.c.b16 %v3916, %v3916
      %v3953 = vpack.c.b16 %v3917, %v3917
      %v3954 = vpack.c.b16 %v3918, %v3918
      %v3955 = vpack.c.b16 %v3919, %v3919
      %v3956 = vpack.c.b16 %v3920, %v3920
      %v3957 = vpack.c.b16 %v3921, %v3921
      %v3958 = vpack.c.b16 %v3922, %v3922
      %v3959 = vpack.c.b16 %v3923, %v3923
      %v3960 = vpack.c.b16 %v3924, %v3924
      %v3961 = vpack.c.b16 %v3925, %v3925
      %v3962 = vpack.c.b16 %v3926, %v3926
      %v3963 = vpack.c.b16 %v3927, %v3927
      %v3964 = vpack.c.b16 %v3928, %v3928
      %v3965 = vpack.c.b16 %v3929, %v3929
      %v3966 = vpack.c.b16 %v3930, %v3930
      %v3967 = vpack.c.b16 %v3931, %v3931
      %vm4004 = vcmask 519168
      %4005 = vst.msk [vmem:[%s285] sm:$0xf] %vm4004, %v3932
      %4006 = vst.msk [vmem:[%s285 + $0x4] sm:$0xf] %vm4004, %v3933
      %4007 = vst.msk [vmem:[%s285 + $0x8] sm:$0xf] %vm4004, %v3934
      %4008 = vst.msk [vmem:[%s285 + $0xc] sm:$0xf] %vm4004, %v3935
      %4009 = vst.msk [vmem:[%s285 + $0x10] sm:$0xf] %vm4004, %v3936
      %4010 = vst.msk [vmem:[%s285 + $0x14] sm:$0xf] %vm4004, %v3937
      %4011 = vst.msk [vmem:[%s285 + $0x18] sm:$0xf] %vm4004, %v3938
      %4012 = vst.msk [vmem:[%s285 + $0x1c] sm:$0xf] %vm4004, %v3939
      %4013 = vst.msk [vmem:[%s285 + $0x20] sm:$0xf] %vm4004, %v3940
      %4014 = vst.msk [vmem:[%s285 + $0x24] sm:$0xf] %vm4004, %v3941
      %4015 = vst.msk [vmem:[%s285 + $0x28] sm:$0xf] %vm4004, %v3942
      %4016 = vst.msk [vmem:[%s285 + $0x2c] sm:$0xf] %vm4004, %v3943
      %4017 = vst.msk [vmem:[%s285 + $0x30] sm:$0xf] %vm4004, %v3944
      %4018 = vst.msk [vmem:[%s285 + $0x34] sm:$0xf] %vm4004, %v3945
      %4019 = vst.msk [vmem:[%s285 + $0x38] sm:$0xf] %vm4004, %v3946
      %4020 = vst.msk [vmem:[%s285 + $0x3c] sm:$0xf] %vm4004, %v3947
      %4021 = vst.msk [vmem:[%s285 + $0x40] sm:$0xf] %vm4004, %v3948
      %4022 = vst.msk [vmem:[%s285 + $0x44] sm:$0xf] %vm4004, %v3949
      %4023 = vst.msk [vmem:[%s285 + $0x48] sm:$0xf] %vm4004, %v3950
      %4024 = vst.msk [vmem:[%s285 + $0x4c] sm:$0xf] %vm4004, %v3951
      %4025 = vst.msk [vmem:[%s285 + $0x50] sm:$0xf] %vm4004, %v3952
      %4026 = vst.msk [vmem:[%s285 + $0x54] sm:$0xf] %vm4004, %v3953
      %4027 = vst.msk [vmem:[%s285 + $0x58] sm:$0xf] %vm4004, %v3954
      %4028 = vst.msk [vmem:[%s285 + $0x5c] sm:$0xf] %vm4004, %v3955
      %4029 = vst.msk [vmem:[%s285 + $0x60] sm:$0xf] %vm4004, %v3956
      %4030 = vst.msk [vmem:[%s285 + $0x64] sm:$0xf] %vm4004, %v3957
      %4031 = vst.msk [vmem:[%s285 + $0x68] sm:$0xf] %vm4004, %v3958
      %4032 = vst.msk [vmem:[%s285 + $0x6c] sm:$0xf] %vm4004, %v3959
      %4033 = vst.msk [vmem:[%s285 + $0x70] sm:$0xf] %vm4004, %v3960
      %4034 = vst.msk [vmem:[%s285 + $0x74] sm:$0xf] %vm4004, %v3961
      %4035 = vst.msk [vmem:[%s285 + $0x78] sm:$0xf] %vm4004, %v3962
      %4036 = vst.msk [vmem:[%s285 + $0x7c] sm:$0xf] %vm4004, %v3963
      %4037 = vst.msk [vmem:[%s285 + $0x80] sm:$0xf] %vm4004, %v3964
      %4038 = vst.msk [vmem:[%s285 + $0x84] sm:$0xf] %vm4004, %v3965
      %4039 = vst.msk [vmem:[%s285 + $0x88] sm:$0xf] %vm4004, %v3966
      %4040 = vst.msk [vmem:[%s285 + $0x8c] sm:$0xf] %vm4004, %v3967
      %v4041 = vsel %vm739, %v3824, 0.0
      %v4042 = vsel %vm739, %v3825, 0.0
      %v4043 = vadd.f32 %v4041, %v4042
      %v4044 = vsel %vm739, %v3826, 0.0
      %v4045 = vadd.f32 %v4043, %v4044
      %v4046 = vsel %vm739, %v3827, 0.0
      %v4047 = vadd.f32 %v4045, %v4046
      %v4048 = vsel %vm739, %v3828, 0.0
      %v4049 = vadd.f32 %v4047, %v4048
      %v4050 = vsel %vm739, %v3829, 0.0
      %v4051 = vadd.f32 %v4049, %v4050
      %v4052 = vsel %vm739, %v3830, 0.0
      %v4053 = vadd.f32 %v4051, %v4052
      %v4054 = vsel %vm739, %v3831, 0.0
      %v4055 = vadd.f32 %v4053, %v4054
      %v4056 = vsel %vm739, %v3832, 0.0
      %v4057 = vadd.f32 %v4055, %v4056
      %v4058 = vsel %vm739, %v3833, 0.0
      %v4059 = vadd.f32 %v4057, %v4058
      %v4060 = vsel %vm739, %v3834, 0.0
      %v4061 = vadd.f32 %v4059, %v4060
      %v4062 = vsel %vm739, %v3835, 0.0
      %v4063 = vadd.f32 %v4061, %v4062
      %v4064 = vsel %vm739, %v3836, 0.0
      %v4065 = vadd.f32 %v4063, %v4064
      %v4066 = vsel %vm739, %v3837, 0.0
      %v4067 = vadd.f32 %v4065, %v4066
      %v4068 = vsel %vm739, %v3838, 0.0
      %v4069 = vadd.f32 %v4067, %v4068
      %v4070 = vsel %vm739, %v3839, 0.0
      %v4071 = vadd.f32 %v4069, %v4070
      %v4072 = vsel %vm739, %v3840, 0.0
      %v4073 = vadd.f32 %v4071, %v4072
      %v4074 = vsel %vm739, %v3841, 0.0
      %v4075 = vadd.f32 %v4073, %v4074
      %v4076 = vsel %vm739, %v3842, 0.0
      %v4077 = vadd.f32 %v4075, %v4076
      %v4078 = vsel %vm739, %v3843, 0.0
      %v4079 = vadd.f32 %v4077, %v4078
      %v4080 = vsel %vm739, %v3844, 0.0
      %v4081 = vadd.f32 %v4079, %v4080
      %v4082 = vsel %vm739, %v3845, 0.0
      %v4083 = vadd.f32 %v4081, %v4082
      %v4084 = vsel %vm739, %v3846, 0.0
      %v4085 = vadd.f32 %v4083, %v4084
      %v4086 = vsel %vm739, %v3847, 0.0
      %v4087 = vadd.f32 %v4085, %v4086
      %v4088 = vsel %vm739, %v3848, 0.0
      %v4089 = vadd.f32 %v4087, %v4088
      %v4090 = vsel %vm739, %v3849, 0.0
      %v4091 = vadd.f32 %v4089, %v4090
      %v4092 = vsel %vm739, %v3850, 0.0
      %v4093 = vadd.f32 %v4091, %v4092
      %v4094 = vsel %vm739, %v3851, 0.0
      %v4095 = vadd.f32 %v4093, %v4094
      %v4096 = vsel %vm739, %v3852, 0.0
      %v4097 = vadd.f32 %v4095, %v4096
      %v4098 = vsel %vm739, %v3853, 0.0
      %v4099 = vadd.f32 %v4097, %v4098
      %v4100 = vsel %vm739, %v3854, 0.0
      %v4101 = vadd.f32 %v4099, %v4100
      %v4102 = vsel %vm739, %v3855, 0.0
      %v4103 = vadd.f32 %v4101, %v4102
      %v4104 = vsel %vm739, %v3856, 0.0
      %v4105 = vadd.f32 %v4103, %v4104
      %v4106 = vsel %vm739, %v3857, 0.0
      %v4107 = vadd.f32 %v4105, %v4106
      %v4108 = vsel %vm739, %v3858, 0.0
      %v4109 = vadd.f32 %v4107, %v4108
      %v4110 = vsel %vm739, %v3859, 0.0
      %v4111 = vadd.f32 %v4109, %v4110
      %v4112 = vrot.slane %v4111, 4
      %v4113 = vadd.f32 %v4111, %v4112
      %v4114 = vrot.slane %v4113, 2
      %v4115 = vadd.f32 %v4113, %v4114
      %v4116 = vrot.slane %v4115, 1
      %v4117 = vadd.f32 %v4115, %v4116
      %vm4118 = vcmask 516096
      %4119 = vst.msk [vmem:[%s289] sm:$0x1] %vm4118, %v4117
      %v4120 = vmul.f32 %v3824, %v3752
      %v4121 = vmul.f32 %v3825, %v3753
      %v4122 = vmul.f32 %v3826, %v3754
      %v4123 = vmul.f32 %v3827, %v3755
      %v4124 = vmul.f32 %v3828, %v3756
      %v4125 = vmul.f32 %v3829, %v3757
      %v4126 = vmul.f32 %v3830, %v3758
      %v4127 = vmul.f32 %v3831, %v3759
      %v4128 = vmul.f32 %v3832, %v3760
      %v4129 = vmul.f32 %v3833, %v3761
      %v4130 = vmul.f32 %v3834, %v3762
      %v4131 = vmul.f32 %v3835, %v3763
      %v4132 = vmul.f32 %v3836, %v3764
      %v4133 = vmul.f32 %v3837, %v3765
      %v4134 = vmul.f32 %v3838, %v3766
      %v4135 = vmul.f32 %v3839, %v3767
      %v4136 = vmul.f32 %v3840, %v3768
      %v4137 = vmul.f32 %v3841, %v3769
      %v4138 = vmul.f32 %v3842, %v3770
      %v4139 = vmul.f32 %v3843, %v3771
      %v4140 = vmul.f32 %v3844, %v3772
      %v4141 = vmul.f32 %v3845, %v3773
      %v4142 = vmul.f32 %v3846, %v3774
      %v4143 = vmul.f32 %v3847, %v3775
      %v4144 = vmul.f32 %v3848, %v3776
      %v4145 = vmul.f32 %v3849, %v3777
      %v4146 = vmul.f32 %v3850, %v3778
      %v4147 = vmul.f32 %v3851, %v3779
      %v4148 = vmul.f32 %v3852, %v3780
      %v4149 = vmul.f32 %v3853, %v3781
      %v4150 = vmul.f32 %v3854, %v3782
      %v4151 = vmul.f32 %v3855, %v3783
      %v4152 = vmul.f32 %v3856, %v3784
      %v4153 = vmul.f32 %v3857, %v3785
      %v4154 = vmul.f32 %v3858, %v3786
      %v4155 = vmul.f32 %v3859, %v3787
      %v4156 = vsel %vm739, %v4120, 0.0
      %v4157 = vsel %vm739, %v4121, 0.0
      %v4158 = vadd.f32 %v4156, %v4157
      %v4159 = vsel %vm739, %v4122, 0.0
      %v4160 = vadd.f32 %v4158, %v4159
      %v4161 = vsel %vm739, %v4123, 0.0
      %v4162 = vadd.f32 %v4160, %v4161
      %v4163 = vsel %vm739, %v4124, 0.0
      %v4164 = vadd.f32 %v4162, %v4163
      %v4165 = vsel %vm739, %v4125, 0.0
      %v4166 = vadd.f32 %v4164, %v4165
      %v4167 = vsel %vm739, %v4126, 0.0
      %v4168 = vadd.f32 %v4166, %v4167
      %v4169 = vsel %vm739, %v4127, 0.0
      %v4170 = vadd.f32 %v4168, %v4169
      %v4171 = vsel %vm739, %v4128, 0.0
      %v4172 = vadd.f32 %v4170, %v4171
      %v4173 = vsel %vm739, %v4129, 0.0
      %v4174 = vadd.f32 %v4172, %v4173
      %v4175 = vsel %vm739, %v4130, 0.0
      %v4176 = vadd.f32 %v4174, %v4175
      %v4177 = vsel %vm739, %v4131, 0.0
      %v4178 = vadd.f32 %v4176, %v4177
      %v4179 = vsel %vm739, %v4132, 0.0
      %v4180 = vadd.f32 %v4178, %v4179
      %v4181 = vsel %vm739, %v4133, 0.0
      %v4182 = vadd.f32 %v4180, %v4181
      %v4183 = vsel %vm739, %v4134, 0.0
      %v4184 = vadd.f32 %v4182, %v4183
      %v4185 = vsel %vm739, %v4135, 0.0
      %v4186 = vadd.f32 %v4184, %v4185
      %v4187 = vsel %vm739, %v4136, 0.0
      %v4188 = vadd.f32 %v4186, %v4187
      %v4189 = vsel %vm739, %v4137, 0.0
      %v4190 = vadd.f32 %v4188, %v4189
      %v4191 = vsel %vm739, %v4138, 0.0
      %v4192 = vadd.f32 %v4190, %v4191
      %v4193 = vsel %vm739, %v4139, 0.0
      %v4194 = vadd.f32 %v4192, %v4193
      %v4195 = vsel %vm739, %v4140, 0.0
      %v4196 = vadd.f32 %v4194, %v4195
      %v4197 = vsel %vm739, %v4141, 0.0
      %v4198 = vadd.f32 %v4196, %v4197
      %v4199 = vsel %vm739, %v4142, 0.0
      %v4200 = vadd.f32 %v4198, %v4199
      %v4201 = vsel %vm739, %v4143, 0.0
      %v4202 = vadd.f32 %v4200, %v4201
      %v4203 = vsel %vm739, %v4144, 0.0
      %v4204 = vadd.f32 %v4202, %v4203
      %v4205 = vsel %vm739, %v4145, 0.0
      %v4206 = vadd.f32 %v4204, %v4205
      %v4207 = vsel %vm739, %v4146, 0.0
      %v4208 = vadd.f32 %v4206, %v4207
      %v4209 = vsel %vm739, %v4147, 0.0
      %v4210 = vadd.f32 %v4208, %v4209
      %v4211 = vsel %vm739, %v4148, 0.0
      %v4212 = vadd.f32 %v4210, %v4211
      %v4213 = vsel %vm739, %v4149, 0.0
      %v4214 = vadd.f32 %v4212, %v4213
      %v4215 = vsel %vm739, %v4150, 0.0
      %v4216 = vadd.f32 %v4214, %v4215
      %v4217 = vsel %vm739, %v4151, 0.0
      %v4218 = vadd.f32 %v4216, %v4217
      %v4219 = vsel %vm739, %v4152, 0.0
      %v4220 = vadd.f32 %v4218, %v4219
      %v4221 = vsel %vm739, %v4153, 0.0
      %v4222 = vadd.f32 %v4220, %v4221
      %v4223 = vsel %vm739, %v4154, 0.0
      %v4224 = vadd.f32 %v4222, %v4223
      %v4225 = vsel %vm739, %v4155, 0.0
      %v4226 = vadd.f32 %v4224, %v4225
      %v4227 = vrot.slane %v4226, 4
      %v4228 = vadd.f32 %v4226, %v4227
      %v4229 = vrot.slane %v4228, 2
      %v4230 = vadd.f32 %v4228, %v4229
      %v4231 = vrot.slane %v4230, 1
      %v4232 = vadd.f32 %v4230, %v4231
      %4233 = vst.msk [vmem:[%s289 + $0x1] sm:$0x1] %vm4118, %v4232
      %p4234 = scmp.lt.s32.totalorder %s19, 1
      %s4235 = scalar_select %p4234, %s19, 1
      %s4236 = smul.addr %s4235, 36
      %s4237 = smul.addr %s4236, 4
      %s4238 = scalar_lea.vmem %s6, %s4237
      %p4239 = scmp.lt.s32.totalorder %s19, 1
      %s4240 = scalar_select %p4239, %s19, 1
      %s4241 = smul.addr %s4240, 2
      %s4242 = scalar_lea.vmem %s7, %s4241
      // Predicated region
      $region45: #{block_forward.4} parent=43 // pred_check
        %p4243 = pneg %p168
      $region46: #{block_forward.4} parent=43 // pred_check_branch
        %4245 = sbr.rel (%p4243) target = $region48
      $region47: #{block_forward.4} parent=43 // pred_region
        _
      $region48: #{block_forward.4} parent=43 // pred_fallthru
        _
      // Predicated region
      $region49: #{block_forward.4} parent=43 // pred_check
        %p4246 = pneg %p194
      $region50: #{block_forward.4} parent=43 // pred_check_branch
        %4248 = sbr.rel (%p4246) target = $region52
      $region51: #{block_forward.4} parent=43 // pred_region
        _
      $region52: #{block_forward.4} parent=43 // pred_fallthru
        _
    $region44: #{block_forward.4} parent=5 // pred_fallthru
      _
    %p4249 = scmp.le.s32.totalorder 2, %s14
    // Predicated region
    $region53: #{block_forward.4} parent=5 // pred_check
      %p4250 = pneg %p4249
    $region54: #{block_forward.4} parent=5 // pred_check_branch
      %4252 = sbr.rel (%p4250) target = $region56
    $region55: #{block_forward.4} parent=5 // pred_region
      %s4253 = ssub.s32 %s14, 2
      // Predicated region
      $region57: #{block_forward.4} parent=55 // pred_check
        %p4254 = pneg %p174
      $region58: #{block_forward.4} parent=55 // pred_check_branch
        %4256 = sbr.rel (%p4254) target = $region60
      $region59: #{block_forward.4} parent=55 // pred_region
        %p4257 = scmp.lt.s32.totalorder %s20, 1
        %s4258 = scalar_select %p4257, %s20, 1
        %s4259 = smul.addr %s4258, 36
        %s4260 = smul.addr %s4259, 4
        %s4261 = scalar_lea.vmem %s6, %s4260
      $region60: #{block_forward.4} parent=55 // pred_fallthru
        _
      // Predicated region
      $region61: #{block_forward.4} parent=55 // pred_check
        %p4262 = pneg %p200
      $region62: #{block_forward.4} parent=55 // pred_check_branch
        %4264 = sbr.rel (%p4262) target = $region64
      $region63: #{block_forward.4} parent=55 // pred_region
        %p4265 = scmp.lt.s32.totalorder %s20, 1
        %s4266 = scalar_select %p4265, %s20, 1
        %s4267 = smul.addr %s4266, 2
        %s4268 = scalar_lea.vmem %s7, %s4267
      $region64: #{block_forward.4} parent=55 // pred_fallthru
        _
    $region56: #{block_forward.4} parent=5 // pred_fallthru
      _
  $region6: #{block_forward.4} parent=0 // loop_footer
    %s18 = sadd.s32 1, %s14
  $region7: #{block_forward.4} parent=0 // loop_footer_branch
    %13 = sbr.rel target = $region3
  $region8: #{block_forward.4} parent=0 // loop_exit
    _

</llo_original>
